<compile_context>
chip_gen: v7x
topology: tpu7x:2x2x1
jax: 0.10.0
libtpu: 0.0.40
codegen_flags: <defaults>
</compile_context>

<pallas_src>
import functools

import jax
import jax.numpy as jnp
from jax.experimental import pallas as pl
from jax.experimental.pallas import tpu as pltpu


def _basic_block_kernel(xp_ref, w1_ref, b1_ref, w2_ref, b2_ref, o_ref,
                        pad2_ref, *, NB, H, W, Cin, Chid, Cout):
    M = NB * H * W

    # --- conv1 (3x3, padding=1) as ONE im2col matmul ---------------------------
    # xp_ref is the pre-padded input block (NB, H+2, W+2, Cin); the 9 shifted
    # views are concatenated along the channel (lane) axis -> (NB*H*W, 9*Cin).
    cols1 = [
        xp_ref[:, dy:dy + H, dx:dx + W, :].reshape(M, Cin)
        for dy in range(3) for dx in range(3)
    ]
    p1 = jnp.concatenate(cols1, axis=1).astype(jnp.bfloat16)        # (M, 9*Cin)
    acc1 = jnp.dot(p1, w1_ref[...], preferred_element_type=jnp.float32)
    h1 = jnp.maximum(acc1 + b1_ref[...], 0.0)                       # ReLU, f32 (M, Chid)

    # --- stage h1 into padded scratch; re-zero only the 1-wide halo ------------
    # Halo zeroing is done every step (not gated on program_id==0) so the kernel
    # stays correct when the batch axis is sharded across two TensorCores.
    zrow = jnp.zeros((NB, 1, W + 2, Chid), jnp.float32)
    zcol = jnp.zeros((NB, H + 2, 1, Chid), jnp.float32)
    pad2_ref[:, 0:1, :, :] = zrow
    pad2_ref[:, H + 1:H + 2, :, :] = zrow
    pad2_ref[:, :, 0:1, :] = zcol
    pad2_ref[:, :, W + 1:W + 2, :] = zcol
    pad2_ref[:, 1:H + 1, 1:W + 1, :] = h1.reshape(NB, H, W, Chid)

    # --- conv2 (3x3, padding=1) as ONE im2col matmul ---------------------------
    cols2 = [
        pad2_ref[:, dy:dy + H, dx:dx + W, :].reshape(M, Chid)
        for dy in range(3) for dx in range(3)
    ]
    p2 = jnp.concatenate(cols2, axis=1).astype(jnp.bfloat16)        # (M, 9*Chid)
    acc2 = jnp.dot(p2, w2_ref[...], preferred_element_type=jnp.float32)
    h2 = jnp.maximum(acc2 + b2_ref[...], 0.0)                       # ReLU, f32 (M, Cout)

    # --- max pool 2x2, stride 2 (lane-dim-preserving, <=4-D reshapes only) -----
    # Pool along W: (NB*H, W//2, 2, Cout). Pool along H: consecutive row pairs of
    # NB*H never cross an image boundary because H is even -> (NB*H//2, 2, W//2, Cout).
    yw = h2.reshape(NB * H, W // 2, 2, Cout)
    yw = jnp.maximum(yw[:, :, 0, :], yw[:, :, 1, :])                # (NB*H, W//2, Cout)
    yh = yw.reshape(NB * H // 2, 2, W // 2, Cout)
    pooled = jnp.maximum(yh[:, 0], yh[:, 1])                        # (NB*H//2, W//2, Cout)

    o_ref[...] = pooled.reshape(NB, H // 2, W // 2, Cout).astype(o_ref.dtype)


def _pick_batch_block(n, cap=4):
    """Largest divisor of n that is <= cap (keeps VMEM per step small)."""
    nb = 1
    for cand in range(1, min(n, cap) + 1):
        if n % cand == 0:
            nb = cand
    return nb


def basic_block_forward(x_nchw, params, *, batch_block_cap=4):
    """Forward pass of BasicBlock. x_nchw: (N, Cin, H, W) float32. Returns NCHW."""
    w1, b1, w2, b2 = params                  # w*: HWIO (3,3,Ci,Co), b*: (C,)
    N, Cin, H, W = x_nchw.shape
    Chid = w1.shape[3]
    Cout = w2.shape[3]
    assert H % 2 == 0 and W % 2 == 0
    P, Q = H // 2, W // 2
    NB = _pick_batch_block(N, batch_block_cap)

    # NHWC + wrapper-side zero padding (removes the conv1 pad scratch entirely).
    x_nhwc = jnp.transpose(x_nchw, (0, 2, 3, 1)).astype(jnp.float32)
    x_pad = jnp.pad(x_nhwc, ((0, 0), (1, 1), (1, 1), (0, 0)))

    # im2col-ready weights: HWIO (3,3,Ci,Co) -> (9*Ci, Co), bf16 for the MXU.
    w1_r = w1.reshape(9 * Cin, Chid).astype(jnp.bfloat16)
    w2_r = w2.reshape(9 * Chid, Cout).astype(jnp.bfloat16)
    b1_r = b1.reshape(1, Chid).astype(jnp.float32)
    b2_r = b2.reshape(1, Cout).astype(jnp.float32)

    kernel = functools.partial(_basic_block_kernel,
                               NB=NB, H=H, W=W, Cin=Cin, Chid=Chid, Cout=Cout)

    out_nhwc = pl.pallas_call(
        kernel,
        out_shape=jax.ShapeDtypeStruct((N, P, Q, Cout), jnp.float32),
        grid_spec=pltpu.PrefetchScalarGridSpec(
            num_scalar_prefetch=0,
            grid=(N // NB,),
            in_specs=[
                pl.BlockSpec((NB, H + 2, W + 2, Cin), lambda n: (n, 0, 0, 0)),
                pl.BlockSpec((9 * Cin, Chid), lambda n: (0, 0)),
                pl.BlockSpec((1, Chid), lambda n: (0, 0)),
                pl.BlockSpec((9 * Chid, Cout), lambda n: (0, 0)),
                pl.BlockSpec((1, Cout), lambda n: (0, 0)),
            ],
            out_specs=pl.BlockSpec((NB, P, Q, Cout), lambda n: (n, 0, 0, 0)),
            scratch_shapes=[
                # padded hidden activation, staged once per step for conv2
                pltpu.VMEM((NB, H + 2, W + 2, Chid), jnp.float32),
            ],
        ),
        # "parallel": batch-block axis can be sharded across v7x's 2 TensorCores
        # (no-op on single-core v5e/v6e). VMEM use is a few MiB/step at NB<=4,
        # comfortably under every chip's scoped limit.
        compiler_params=pltpu.CompilerParams(
            dimension_semantics=("parallel",)),
    )(x_pad, w1_r, b1_r, w2_r, b2_r)

    return jnp.transpose(out_nhwc, (0, 3, 1, 2))  # back to NCHW


def init_params(key, in_channels, out_channels, hidden_dim):
    """Deterministic init matching nn.Conv2d shapes (weights created directly in HWIO)."""
    k1, k2, k3, k4 = jax.random.split(key, 4)
    fan1 = in_channels * 3 * 3
    fan2 = hidden_dim * 3 * 3
    b1_bound = 1.0 / jnp.sqrt(fan1)
    b2_bound = 1.0 / jnp.sqrt(fan2)
    w1 = jax.random.uniform(k1, (3, 3, in_channels, hidden_dim),
                            jnp.float32, -b1_bound, b1_bound)
    b1 = jax.random.uniform(k2, (hidden_dim,), jnp.float32, -b1_bound, b1_bound)
    w2 = jax.random.uniform(k3, (3, 3, hidden_dim, out_channels),
                            jnp.float32, -b2_bound, b2_bound)
    b2 = jax.random.uniform(k4, (out_channels,), jnp.float32, -b2_bound, b2_bound)
    return (w1, b1, w2, b2)


def reference_forward(x_nchw, params):
    """Pure-JAX (XLA) reference, identical semantics to the PyTorch module."""
    w1, b1, w2, b2 = params
    dn1 = jax.lax.conv_dimension_numbers(x_nchw.shape, w1.shape,
                                         ("NCHW", "HWIO", "NCHW"))
    y = jax.lax.conv_general_dilated(x_nchw, w1, (1, 1), "SAME",
                                     dimension_numbers=dn1)
    y = jnp.maximum(y + b1.reshape(1, -1, 1, 1), 0.0)
    dn2 = jax.lax.conv_dimension_numbers(y.shape, w2.shape,
                                         ("NCHW", "HWIO", "NCHW"))
    y = jax.lax.conv_general_dilated(y, w2, (1, 1), "SAME",
                                     dimension_numbers=dn2)
    y = jnp.maximum(y + b2.reshape(1, -1, 1, 1), 0.0)
    y = jax.lax.reduce_window(y, -jnp.inf, jax.lax.max,
                              (1, 1, 2, 2), (1, 1, 2, 2), "VALID")
    return y


if __name__ == "__main__":
    N, Cin, H, W = 2, 4, 16, 16
    hidden_dim, Cout = 32, 8

    key = jax.random.PRNGKey(0)
    kx, kp = jax.random.split(key)
    x = jax.random.normal(kx, (N, Cin, H, W), jnp.float32)   # NCHW like PyTorch
    params = init_params(kp, Cin, Cout, hidden_dim)

    out = basic_block_forward(x, params)
    out = jax.block_until_ready(out)

    assert out.shape == (N, Cout, H // 2, W // 2), out.shape

    ref = jax.block_until_ready(reference_forward(x, params))
    max_err = float(jnp.max(jnp.abs(out - ref)))
    scale = float(jnp.max(jnp.abs(ref))) + 1e-6
    assert max_err <= 5e-2 * scale, f"max_err={max_err}, scale={scale}"

    print("KERNEL_OK")
</pallas_src>

<mosaic_0001>
module attributes {stable_mosaic.version = 11 : i64} {
  func.func @_basic_block_kernel(%arg0: i32, %arg1: memref<2x18x18x4xf32, #tpu.memory_space<vmem>>, %arg2: memref<36x32xbf16, #tpu.memory_space<vmem>>, %arg3: memref<1x32xf32, #tpu.memory_space<vmem>>, %arg4: memref<288x8xbf16, #tpu.memory_space<vmem>>, %arg5: memref<1x8xf32, #tpu.memory_space<vmem>>, %arg6: memref<2x8x8x8xf32, #tpu.memory_space<vmem>>, %arg7: memref<2x18x18x32xf32, #tpu.memory_space<vmem>>) attributes {dimension_semantics = [#tpu.dimension_semantics<parallel>], iteration_bounds = array<i64: 1>, scalar_prefetch = 0 : i64, scratch_operands = 1 : i64, tpu.core_type = #tpu.core_type<tc>, window_params = [{transform_indices = @transform_0, window_bounds = array<i64: 2, 18, 18, 4>}, {pipeline_mode = #tpu.pipeline_mode<synchronous>, transform_indices = @transform_1, window_bounds = array<i64: 36, 32>}, {pipeline_mode = #tpu.pipeline_mode<synchronous>, transform_indices = @transform_2, window_bounds = array<i64: 1, 32>}, {pipeline_mode = #tpu.pipeline_mode<synchronous>, transform_indices = @transform_3, window_bounds = array<i64: 288, 8>}, {pipeline_mode = #tpu.pipeline_mode<synchronous>, transform_indices = @transform_4, window_bounds = array<i64: 1, 8>}, {transform_indices = @transform_5, window_bounds = array<i64: 2, 8, 8, 8>}]} {
    %c0 = arith.constant 0 : index
    %c0_0 = arith.constant 0 : index
    %c0_1 = arith.constant 0 : index
    %c0_2 = arith.constant 0 : index
    %0 = vector.load %arg1[%c0, %c0_0, %c0_1, %c0_2] : memref<2x18x18x4xf32, #tpu.memory_space<vmem>>, vector<2x16x16x4xf32>
    %1 = vector.shape_cast %0 : vector<2x16x16x4xf32> to vector<512x4xf32>
    %c0_3 = arith.constant 0 : index
    %c0_4 = arith.constant 0 : index
    %c1 = arith.constant 1 : index
    %c0_5 = arith.constant 0 : index
    %2 = vector.load %arg1[%c0_3, %c0_4, %c1, %c0_5] : memref<2x18x18x4xf32, #tpu.memory_space<vmem>>, vector<2x16x16x4xf32>
    %3 = vector.shape_cast %2 : vector<2x16x16x4xf32> to vector<512x4xf32>
    %c0_6 = arith.constant 0 : index
    %c0_7 = arith.constant 0 : index
    %c2 = arith.constant 2 : index
    %c0_8 = arith.constant 0 : index
    %4 = vector.load %arg1[%c0_6, %c0_7, %c2, %c0_8] : memref<2x18x18x4xf32, #tpu.memory_space<vmem>>, vector<2x16x16x4xf32>
    %5 = vector.shape_cast %4 : vector<2x16x16x4xf32> to vector<512x4xf32>
    %c0_9 = arith.constant 0 : index
    %c1_10 = arith.constant 1 : index
    %c0_11 = arith.constant 0 : index
    %c0_12 = arith.constant 0 : index
    %6 = vector.load %arg1[%c0_9, %c1_10, %c0_11, %c0_12] : memref<2x18x18x4xf32, #tpu.memory_space<vmem>>, vector<2x16x16x4xf32>
    %7 = vector.shape_cast %6 : vector<2x16x16x4xf32> to vector<512x4xf32>
    %c0_13 = arith.constant 0 : index
    %c1_14 = arith.constant 1 : index
    %c1_15 = arith.constant 1 : index
    %c0_16 = arith.constant 0 : index
    %8 = vector.load %arg1[%c0_13, %c1_14, %c1_15, %c0_16] : memref<2x18x18x4xf32, #tpu.memory_space<vmem>>, vector<2x16x16x4xf32>
    %9 = vector.shape_cast %8 : vector<2x16x16x4xf32> to vector<512x4xf32>
    %c0_17 = arith.constant 0 : index
    %c1_18 = arith.constant 1 : index
    %c2_19 = arith.constant 2 : index
    %c0_20 = arith.constant 0 : index
    %10 = vector.load %arg1[%c0_17, %c1_18, %c2_19, %c0_20] : memref<2x18x18x4xf32, #tpu.memory_space<vmem>>, vector<2x16x16x4xf32>
    %11 = vector.shape_cast %10 : vector<2x16x16x4xf32> to vector<512x4xf32>
    %c0_21 = arith.constant 0 : index
    %c2_22 = arith.constant 2 : index
    %c0_23 = arith.constant 0 : index
    %c0_24 = arith.constant 0 : index
    %12 = vector.load %arg1[%c0_21, %c2_22, %c0_23, %c0_24] : memref<2x18x18x4xf32, #tpu.memory_space<vmem>>, vector<2x16x16x4xf32>
    %13 = vector.shape_cast %12 : vector<2x16x16x4xf32> to vector<512x4xf32>
    %c0_25 = arith.constant 0 : index
    %c2_26 = arith.constant 2 : index
    %c1_27 = arith.constant 1 : index
    %c0_28 = arith.constant 0 : index
    %14 = vector.load %arg1[%c0_25, %c2_26, %c1_27, %c0_28] : memref<2x18x18x4xf32, #tpu.memory_space<vmem>>, vector<2x16x16x4xf32>
    %15 = vector.shape_cast %14 : vector<2x16x16x4xf32> to vector<512x4xf32>
    %c0_29 = arith.constant 0 : index
    %c2_30 = arith.constant 2 : index
    %c2_31 = arith.constant 2 : index
    %c0_32 = arith.constant 0 : index
    %16 = vector.load %arg1[%c0_29, %c2_30, %c2_31, %c0_32] : memref<2x18x18x4xf32, #tpu.memory_space<vmem>>, vector<2x16x16x4xf32>
    %17 = vector.shape_cast %16 : vector<2x16x16x4xf32> to vector<512x4xf32>
    %18 = tpu.concatenate %1, %3, %5, %7, %9, %11, %13, %15, %17 in 1 : vector<512x4xf32>, vector<512x4xf32>, vector<512x4xf32>, vector<512x4xf32>, vector<512x4xf32>, vector<512x4xf32>, vector<512x4xf32>, vector<512x4xf32>, vector<512x4xf32> -> vector<512x36xf32>
    %19 = arith.truncf %18 : vector<512x36xf32> to vector<512x36xbf16>
    %c0_33 = arith.constant 0 : index
    %c0_34 = arith.constant 0 : index
    %20 = vector.load %arg2[%c0_33, %c0_34] : memref<36x32xbf16, #tpu.memory_space<vmem>>, vector<36x32xbf16>
    %cst = arith.constant dense<0.000000e+00> : vector<512x32xf32>
    %21 = tpu.matmul %19, %20, %cst {dimension_numbers = #tpu.dot_dimension_numbers<[1], [0], [0], [1], [0, 0, 1, 1], [], []>} : vector<512x36xbf16>, vector<36x32xbf16>, vector<512x32xf32> -> vector<512x32xf32>
    %c0_35 = arith.constant 0 : index
    %c0_36 = arith.constant 0 : index
    %22 = vector.load %arg3[%c0_35, %c0_36] : memref<1x32xf32, #tpu.memory_space<vmem>>, vector<1x32xf32>
    %23 = vector.broadcast %22 : vector<1x32xf32> to vector<512x32xf32>
    %24 = arith.addf %21, %23 : vector<512x32xf32>
    %cst_37 = arith.constant 0.000000e+00 : f32
    %25 = vector.broadcast %cst_37 : f32 to vector<512x32xf32>
    %26 = arith.maximumf %24, %25 : vector<512x32xf32>
    %cst_38 = arith.constant 0.000000e+00 : f32
    %27 = vector.broadcast %cst_38 : f32 to vector<2x1x18x32xf32>
    %cst_39 = arith.constant 0.000000e+00 : f32
    %28 = vector.broadcast %cst_39 : f32 to vector<2x18x1x32xf32>
    %c0_40 = arith.constant 0 : index
    %c0_41 = arith.constant 0 : index
    %c0_42 = arith.constant 0 : index
    %c0_43 = arith.constant 0 : index
    %29 = vector.load %arg7[%c0_40, %c0_41, %c0_42, %c0_43] : memref<2x18x18x32xf32, #tpu.memory_space<vmem>>, vector<2x1x18x32xf32>
    tpu.vector_store %arg7[%c0_40, %c0_41, %c0_42, %c0_43], %27 {strides = array<i32>} : memref<2x18x18x32xf32, #tpu.memory_space<vmem>>, vector<2x1x18x32xf32>,
    %c0_44 = arith.constant 0 : index
    %c17 = arith.constant 17 : index
    %c0_45 = arith.constant 0 : index
    %c0_46 = arith.constant 0 : index
    %30 = vector.load %arg7[%c0_44, %c17, %c0_45, %c0_46] : memref<2x18x18x32xf32, #tpu.memory_space<vmem>>, vector<2x1x18x32xf32>
    tpu.vector_store %arg7[%c0_44, %c17, %c0_45, %c0_46], %27 {strides = array<i32>} : memref<2x18x18x32xf32, #tpu.memory_space<vmem>>, vector<2x1x18x32xf32>,
    %c0_47 = arith.constant 0 : index
    %c0_48 = arith.constant 0 : index
    %c0_49 = arith.constant 0 : index
    %c0_50 = arith.constant 0 : index
    %31 = vector.load %arg7[%c0_47, %c0_48, %c0_49, %c0_50] : memref<2x18x18x32xf32, #tpu.memory_space<vmem>>, vector<2x18x1x32xf32>
    tpu.vector_store %arg7[%c0_47, %c0_48, %c0_49, %c0_50], %28 {strides = array<i32>} : memref<2x18x18x32xf32, #tpu.memory_space<vmem>>, vector<2x18x1x32xf32>,
    %c0_51 = arith.constant 0 : index
    %c0_52 = arith.constant 0 : index
    %c17_53 = arith.constant 17 : index
    %c0_54 = arith.constant 0 : index
    %32 = vector.load %arg7[%c0_51, %c0_52, %c17_53, %c0_54] : memref<2x18x18x32xf32, #tpu.memory_space<vmem>>, vector<2x18x1x32xf32>
    tpu.vector_store %arg7[%c0_51, %c0_52, %c17_53, %c0_54], %28 {strides = array<i32>} : memref<2x18x18x32xf32, #tpu.memory_space<vmem>>, vector<2x18x1x32xf32>,
    %33 = vector.shape_cast %26 : vector<512x32xf32> to vector<2x16x16x32xf32>
    %c0_55 = arith.constant 0 : index
    %c1_56 = arith.constant 1 : index
    %c1_57 = arith.constant 1 : index
    %c0_58 = arith.constant 0 : index
    %34 = vector.load %arg7[%c0_55, %c1_56, %c1_57, %c0_58] : memref<2x18x18x32xf32, #tpu.memory_space<vmem>>, vector<2x16x16x32xf32>
    tpu.vector_store %arg7[%c0_55, %c1_56, %c1_57, %c0_58], %33 {strides = array<i32>} : memref<2x18x18x32xf32, #tpu.memory_space<vmem>>, vector<2x16x16x32xf32>,
    %c0_59 = arith.constant 0 : index
    %c0_60 = arith.constant 0 : index
    %c0_61 = arith.constant 0 : index
    %c0_62 = arith.constant 0 : index
    %35 = vector.load %arg7[%c0_59, %c0_60, %c0_61, %c0_62] : memref<2x18x18x32xf32, #tpu.memory_space<vmem>>, vector<2x16x16x32xf32>
    %36 = vector.shape_cast %35 : vector<2x16x16x32xf32> to vector<512x32xf32>
    %c0_63 = arith.constant 0 : index
    %c0_64 = arith.constant 0 : index
    %c1_65 = arith.constant 1 : index
    %c0_66 = arith.constant 0 : index
    %37 = vector.load %arg7[%c0_63, %c0_64, %c1_65, %c0_66] : memref<2x18x18x32xf32, #tpu.memory_space<vmem>>, vector<2x16x16x32xf32>
    %38 = vector.shape_cast %37 : vector<2x16x16x32xf32> to vector<512x32xf32>
    %c0_67 = arith.constant 0 : index
    %c0_68 = arith.constant 0 : index
    %c2_69 = arith.constant 2 : index
    %c0_70 = arith.constant 0 : index
    %39 = vector.load %arg7[%c0_67, %c0_68, %c2_69, %c0_70] : memref<2x18x18x32xf32, #tpu.memory_space<vmem>>, vector<2x16x16x32xf32>
    %40 = vector.shape_cast %39 : vector<2x16x16x32xf32> to vector<512x32xf32>
    %c0_71 = arith.constant 0 : index
    %c1_72 = arith.constant 1 : index
    %c0_73 = arith.constant 0 : index
    %c0_74 = arith.constant 0 : index
    %41 = vector.load %arg7[%c0_71, %c1_72, %c0_73, %c0_74] : memref<2x18x18x32xf32, #tpu.memory_space<vmem>>, vector<2x16x16x32xf32>
    %42 = vector.shape_cast %41 : vector<2x16x16x32xf32> to vector<512x32xf32>
    %c0_75 = arith.constant 0 : index
    %c1_76 = arith.constant 1 : index
    %c1_77 = arith.constant 1 : index
    %c0_78 = arith.constant 0 : index
    %43 = vector.load %arg7[%c0_75, %c1_76, %c1_77, %c0_78] : memref<2x18x18x32xf32, #tpu.memory_space<vmem>>, vector<2x16x16x32xf32>
    %44 = vector.shape_cast %43 : vector<2x16x16x32xf32> to vector<512x32xf32>
    %c0_79 = arith.constant 0 : index
    %c1_80 = arith.constant 1 : index
    %c2_81 = arith.constant 2 : index
    %c0_82 = arith.constant 0 : index
    %45 = vector.load %arg7[%c0_79, %c1_80, %c2_81, %c0_82] : memref<2x18x18x32xf32, #tpu.memory_space<vmem>>, vector<2x16x16x32xf32>
    %46 = vector.shape_cast %45 : vector<2x16x16x32xf32> to vector<512x32xf32>
    %c0_83 = arith.constant 0 : index
    %c2_84 = arith.constant 2 : index
    %c0_85 = arith.constant 0 : index
    %c0_86 = arith.constant 0 : index
    %47 = vector.load %arg7[%c0_83, %c2_84, %c0_85, %c0_86] : memref<2x18x18x32xf32, #tpu.memory_space<vmem>>, vector<2x16x16x32xf32>
    %48 = vector.shape_cast %47 : vector<2x16x16x32xf32> to vector<512x32xf32>
    %c0_87 = arith.constant 0 : index
    %c2_88 = arith.constant 2 : index
    %c1_89 = arith.constant 1 : index
    %c0_90 = arith.constant 0 : index
    %49 = vector.load %arg7[%c0_87, %c2_88, %c1_89, %c0_90] : memref<2x18x18x32xf32, #tpu.memory_space<vmem>>, vector<2x16x16x32xf32>
    %50 = vector.shape_cast %49 : vector<2x16x16x32xf32> to vector<512x32xf32>
    %c0_91 = arith.constant 0 : index
    %c2_92 = arith.constant 2 : index
    %c2_93 = arith.constant 2 : index
    %c0_94 = arith.constant 0 : index
    %51 = vector.load %arg7[%c0_91, %c2_92, %c2_93, %c0_94] : memref<2x18x18x32xf32, #tpu.memory_space<vmem>>, vector<2x16x16x32xf32>
    %52 = vector.shape_cast %51 : vector<2x16x16x32xf32> to vector<512x32xf32>
    %53 = tpu.concatenate %36, %38, %40, %42, %44, %46, %48, %50, %52 in 1 : vector<512x32xf32>, vector<512x32xf32>, vector<512x32xf32>, vector<512x32xf32>, vector<512x32xf32>, vector<512x32xf32>, vector<512x32xf32>, vector<512x32xf32>, vector<512x32xf32> -> vector<512x288xf32>
    %54 = arith.truncf %53 : vector<512x288xf32> to vector<512x288xbf16>
    %c0_95 = arith.constant 0 : index
    %c0_96 = arith.constant 0 : index
    %55 = vector.load %arg4[%c0_95, %c0_96] : memref<288x8xbf16, #tpu.memory_space<vmem>>, vector<288x8xbf16>
    %cst_97 = arith.constant dense<0.000000e+00> : vector<512x8xf32>
    %56 = tpu.matmul %54, %55, %cst_97 {dimension_numbers = #tpu.dot_dimension_numbers<[1], [0], [0], [1], [0, 0, 1, 1], [], []>} : vector<512x288xbf16>, vector<288x8xbf16>, vector<512x8xf32> -> vector<512x8xf32>
    %c0_98 = arith.constant 0 : index
    %c0_99 = arith.constant 0 : index
    %57 = vector.load %arg5[%c0_98, %c0_99] : memref<1x8xf32, #tpu.memory_space<vmem>>, vector<1x8xf32>
    %58 = vector.broadcast %57 : vector<1x8xf32> to vector<512x8xf32>
    %59 = arith.addf %56, %58 : vector<512x8xf32>
    %cst_100 = arith.constant 0.000000e+00 : f32
    %60 = vector.broadcast %cst_100 : f32 to vector<512x8xf32>
    %61 = arith.maximumf %59, %60 : vector<512x8xf32>
    %62 = vector.shape_cast %61 : vector<512x8xf32> to vector<32x8x2x8xf32>
    %63 = vector.extract_strided_slice %62 {offsets = [0, 0, 0, 0], sizes = [32, 8, 1, 8], strides = [1, 1, 1, 1]} : vector<32x8x2x8xf32> to vector<32x8x1x8xf32>
    %64 = vector.shape_cast %63 : vector<32x8x1x8xf32> to vector<32x8x8xf32>
    %65 = vector.extract_strided_slice %62 {offsets = [0, 0, 1, 0], sizes = [32, 8, 1, 8], strides = [1, 1, 1, 1]} : vector<32x8x2x8xf32> to vector<32x8x1x8xf32>
    %66 = vector.shape_cast %65 : vector<32x8x1x8xf32> to vector<32x8x8xf32>
    %67 = arith.maximumf %64, %66 : vector<32x8x8xf32>
    %68 = vector.shape_cast %67 : vector<32x8x8xf32> to vector<16x2x8x8xf32>
    %69 = vector.extract_strided_slice %68 {offsets = [0, 0, 0, 0], sizes = [16, 1, 8, 8], strides = [1, 1, 1, 1]} : vector<16x2x8x8xf32> to vector<16x1x8x8xf32>
    %70 = vector.shape_cast %69 : vector<16x1x8x8xf32> to vector<16x8x8xf32>
    %71 = vector.extract_strided_slice %68 {offsets = [0, 1, 0, 0], sizes = [16, 1, 8, 8], strides = [1, 1, 1, 1]} : vector<16x2x8x8xf32> to vector<16x1x8x8xf32>
    %72 = vector.shape_cast %71 : vector<16x1x8x8xf32> to vector<16x8x8xf32>
    %73 = arith.maximumf %70, %72 : vector<16x8x8xf32>
    %74 = vector.shape_cast %73 : vector<16x8x8xf32> to vector<2x8x8x8xf32>
    %c0_101 = arith.constant 0 : index
    %c0_102 = arith.constant 0 : index
    %c0_103 = arith.constant 0 : index
    %c0_104 = arith.constant 0 : index
    %75 = vector.load %arg6[%c0_101, %c0_102, %c0_103, %c0_104] : memref<2x8x8x8xf32, #tpu.memory_space<vmem>>, vector<2x8x8x8xf32>
    tpu.vector_store %arg6[%c0_101, %c0_102, %c0_103, %c0_104], %74 {strides = array<i32>} : memref<2x8x8x8xf32, #tpu.memory_space<vmem>>, vector<2x8x8x8xf32>,
    return
  }
  func.func @transform_0(%arg0: i32) -> (i32, i32, i32, i32) {
    %c0_i32 = arith.constant 0 : i32
    %c0_i32_0 = arith.constant 0 : i32
    %c0_i32_1 = arith.constant 0 : i32
    %c0_i32_2 = arith.constant 0 : i32
    return %arg0, %c0_i32, %c0_i32_0, %c0_i32_1 : i32, i32, i32, i32
  }
  func.func @transform_1(%arg0: i32) -> (i32, i32) {
    %c0_i32 = arith.constant 0 : i32
    %c0_i32_0 = arith.constant 0 : i32
    %c0_i32_1 = arith.constant 0 : i32
    return %c0_i32, %c0_i32_0 : i32, i32
  }
  func.func @transform_2(%arg0: i32) -> (i32, i32) {
    %c0_i32 = arith.constant 0 : i32
    %c0_i32_0 = arith.constant 0 : i32
    %c0_i32_1 = arith.constant 0 : i32
    return %c0_i32, %c0_i32_0 : i32, i32
  }
  func.func @transform_3(%arg0: i32) -> (i32, i32) {
    %c0_i32 = arith.constant 0 : i32
    %c0_i32_0 = arith.constant 0 : i32
    %c0_i32_1 = arith.constant 0 : i32
    return %c0_i32, %c0_i32_0 : i32, i32
  }
  func.func @transform_4(%arg0: i32) -> (i32, i32) {
    %c0_i32 = arith.constant 0 : i32
    %c0_i32_0 = arith.constant 0 : i32
    %c0_i32_1 = arith.constant 0 : i32
    return %c0_i32, %c0_i32_0 : i32, i32
  }
  func.func @transform_5(%arg0: i32) -> (i32, i32, i32, i32) {
    %c0_i32 = arith.constant 0 : i32
    %c0_i32_0 = arith.constant 0 : i32
    %c0_i32_1 = arith.constant 0 : i32
    %c0_i32_2 = arith.constant 0 : i32
    return %arg0, %c0_i32, %c0_i32_0, %c0_i32_1 : i32, i32, i32, i32
  }
}

</mosaic_0001>

<llo_original>
// kernel: tpu_custom_call.1
$region0: #{tpu_custom_call.1}
  #allocation0 [shape = 'u32[]', space=smem, size = 0x4, offset = 0x4, fixed_abs, tag = 'smem constant byte address 0x4 - core index']
  #allocation1 [shape = 'u32[144,128]{1,0:T(1,128)}', space=vmem, size = 0x12000, scoped, tag = 'internal scratch']
  #allocation2 [shape = 'f32[2,18,18,32]{3,2,1,0:T(8,128)}', space=vmem, size = 0x6c000, scoped, tag = 'scratch operand']
  %s0 = inlined_call_operand.vmem [shape: f32[2,18,18,4], index: 0, kind: input, shape index: {}]
  %s1 = inlined_call_operand.vmem [shape: bf16[36,32], index: 1, kind: input, shape index: {}]
  %s2 = inlined_call_operand.vmem [shape: f32[1,32], index: 2, kind: input, shape index: {}]
  %s3 = inlined_call_operand.vmem [shape: bf16[288,8], index: 3, kind: input, shape index: {}]
  %s4 = inlined_call_operand.vmem [shape: f32[1,8], index: 4, kind: input, shape index: {}]
  %s5 = inlined_call_operand.hbm [shape: f32[2,8,8,8], index: 5, kind: output, shape index: {}]
  %s6 = sld [smem:[#allocation0]]
  $region30: #{tpu_custom_call.1} parent=0
    _
  %s8 = ssub.s32 1, %s6
  %s9 = scalar_select 0, %s8, %s6
  $region1: #{tpu_custom_call.1} parent=0
    #allocation3 [shape = 'u8[65536]{0}', space=vmem, size = 0x10000, scoped, tag = 'output window, operand 0, single buffered']
    #allocation4 [shape = 's32[1]{0}', space=sflag, size = 0x4, scoped, tag = 'scoped memory for tpu_custom_call.1']
    %10 = vsyncpa [#allocation4], 0
    // Predicated region
    $region2: #{tpu_custom_call.1} parent=1 // pred_check
      _
    $region3: #{tpu_custom_call.1} parent=1 // pred_check_branch
      %12 = sbr.rel (0) target = $region5
    $region4: #{tpu_custom_call.1} parent=1 // pred_region
      _
    $region5: #{tpu_custom_call.1} parent=1 // pred_fallthru
      _
    // Predicated region
    $region6: #{tpu_custom_call.1} parent=1 // pred_check
      _
    $region7: #{tpu_custom_call.1} parent=1 // pred_check_branch
      %14 = sbr.rel (0) target = $region9
    $region8: #{tpu_custom_call.1} parent=1 // pred_region
      _
    $region9: #{tpu_custom_call.1} parent=1 // pred_fallthru
      _
    // Predicated region
    $region10: #{tpu_custom_call.1} parent=1 // pred_check
      _
    $region11: #{tpu_custom_call.1} parent=1 // pred_check_branch
      %16 = sbr.rel (0) target = $region13
    $region12: #{tpu_custom_call.1} parent=1 // pred_region
      _
    $region13: #{tpu_custom_call.1} parent=1 // pred_fallthru
      _
    // Predicated region
    $region14: #{tpu_custom_call.1} parent=1 // pred_check
      _
    $region15: #{tpu_custom_call.1} parent=1 // pred_check_branch
      %18 = sbr.rel (0) target = $region17
    $region16: #{tpu_custom_call.1} parent=1 // pred_region
      _
    $region17: #{tpu_custom_call.1} parent=1 // pred_fallthru
      _
    // Predicated region
    $region18: #{tpu_custom_call.1} parent=1 // pred_check
      _
    $region19: #{tpu_custom_call.1} parent=1 // pred_check_branch
      %20 = sbr.rel (0) target = $region21
    $region20: #{tpu_custom_call.1} parent=1 // pred_region
      _
    $region21: #{tpu_custom_call.1} parent=1 // pred_fallthru
      _
    %v22 = vld [vmem:[%s0] sm:$0xff]
    %v23 = vld [vmem:[%s0 + $0x8] sm:$0xff]
    %v24 = vld [vmem:[%s0 + $0x18] sm:$0xff]
    %v25 = vld [vmem:[%s0 + $0x20] sm:$0xff]
    %v26 = vld [vmem:[%s0 + $0x30] sm:$0xff]
    %v27 = vld [vmem:[%s0 + $0x38] sm:$0xff]
    %v28 = vld [vmem:[%s0 + $0x48] sm:$0xff]
    %v29 = vld [vmem:[%s0 + $0x50] sm:$0xff]
    %v30 = vld [vmem:[%s0 + $0x60] sm:$0xff]
    %v31 = vld [vmem:[%s0 + $0x68] sm:$0xff]
    %v32 = vld [vmem:[%s0 + $0x78] sm:$0xff]
    %v33 = vld [vmem:[%s0 + $0x80] sm:$0xff]
    %v34 = vld [vmem:[%s0 + $0x90] sm:$0xff]
    %v35 = vld [vmem:[%s0 + $0x98] sm:$0xff]
    %v36 = vld [vmem:[%s0 + $0xa8] sm:$0xff]
    %v37 = vld [vmem:[%s0 + $0xb0] sm:$0xff]
    %v38 = vld [vmem:[%s0 + $0xc0] sm:$0xff]
    %v39 = vld [vmem:[%s0 + $0xc8] sm:$0xff]
    %v40 = vld [vmem:[%s0 + $0xd8] sm:$0xff]
    %v41 = vld [vmem:[%s0 + $0xe0] sm:$0xff]
    %v42 = vld [vmem:[%s0 + $0xf0] sm:$0xff]
    %v43 = vld [vmem:[%s0 + $0xf8] sm:$0xff]
    %v44 = vld [vmem:[%s0 + $0x108] sm:$0xff]
    %v45 = vld [vmem:[%s0 + $0x110] sm:$0xff]
    %v46 = vld [vmem:[%s0 + $0x120] sm:$0xff]
    %v47 = vld [vmem:[%s0 + $0x128] sm:$0xff]
    %v48 = vld [vmem:[%s0 + $0x138] sm:$0xff]
    %v49 = vld [vmem:[%s0 + $0x140] sm:$0xff]
    %v50 = vld [vmem:[%s0 + $0x150] sm:$0xff]
    %v51 = vld [vmem:[%s0 + $0x158] sm:$0xff]
    %v52 = vld [vmem:[%s0 + $0x168] sm:$0xff]
    %v53 = vld [vmem:[%s0 + $0x170] sm:$0xff]
    %v54 = vld [vmem:[%s0 + $0x1b0] sm:$0xff]
    %v55 = vld [vmem:[%s0 + $0x1b8] sm:$0xff]
    %v56 = vld [vmem:[%s0 + $0x1c8] sm:$0xff]
    %v57 = vld [vmem:[%s0 + $0x1d0] sm:$0xff]
    %v58 = vld [vmem:[%s0 + $0x1e0] sm:$0xff]
    %v59 = vld [vmem:[%s0 + $0x1e8] sm:$0xff]
    %v60 = vld [vmem:[%s0 + $0x1f8] sm:$0xff]
    %v61 = vld [vmem:[%s0 + $0x200] sm:$0xff]
    %v62 = vld [vmem:[%s0 + $0x210] sm:$0xff]
    %v63 = vld [vmem:[%s0 + $0x218] sm:$0xff]
    %v64 = vld [vmem:[%s0 + $0x228] sm:$0xff]
    %v65 = vld [vmem:[%s0 + $0x230] sm:$0xff]
    %v66 = vld [vmem:[%s0 + $0x240] sm:$0xff]
    %v67 = vld [vmem:[%s0 + $0x248] sm:$0xff]
    %v68 = vld [vmem:[%s0 + $0x258] sm:$0xff]
    %v69 = vld [vmem:[%s0 + $0x260] sm:$0xff]
    %v70 = vld [vmem:[%s0 + $0x270] sm:$0xff]
    %v71 = vld [vmem:[%s0 + $0x278] sm:$0xff]
    %v72 = vld [vmem:[%s0 + $0x288] sm:$0xff]
    %v73 = vld [vmem:[%s0 + $0x290] sm:$0xff]
    %v74 = vld [vmem:[%s0 + $0x2a0] sm:$0xff]
    %v75 = vld [vmem:[%s0 + $0x2a8] sm:$0xff]
    %v76 = vld [vmem:[%s0 + $0x2b8] sm:$0xff]
    %v77 = vld [vmem:[%s0 + $0x2c0] sm:$0xff]
    %v78 = vld [vmem:[%s0 + $0x2d0] sm:$0xff]
    %v79 = vld [vmem:[%s0 + $0x2d8] sm:$0xff]
    %v80 = vld [vmem:[%s0 + $0x2e8] sm:$0xff]
    %v81 = vld [vmem:[%s0 + $0x2f0] sm:$0xff]
    %v82 = vld [vmem:[%s0 + $0x300] sm:$0xff]
    %v83 = vld [vmem:[%s0 + $0x308] sm:$0xff]
    %v84 = vld [vmem:[%s0 + $0x318] sm:$0xff]
    %v85 = vld [vmem:[%s0 + $0x320] sm:$0xff]
    %v86 = vld [vmem:[%s0 + $0x1] sm:$0xff]
    %v87 = vld [vmem:[%s0 + $0x9] sm:$0xff]
    %v88 = vld [vmem:[%s0 + $0x19] sm:$0xff]
    %v89 = vld [vmem:[%s0 + $0x21] sm:$0xff]
    %v90 = vld [vmem:[%s0 + $0x31] sm:$0xff]
    %v91 = vld [vmem:[%s0 + $0x39] sm:$0xff]
    %v92 = vld [vmem:[%s0 + $0x49] sm:$0xff]
    %v93 = vld [vmem:[%s0 + $0x51] sm:$0xff]
    %v94 = vld [vmem:[%s0 + $0x61] sm:$0xff]
    %v95 = vld [vmem:[%s0 + $0x69] sm:$0xff]
    %v96 = vld [vmem:[%s0 + $0x79] sm:$0xff]
    %v97 = vld [vmem:[%s0 + $0x81] sm:$0xff]
    %v98 = vld [vmem:[%s0 + $0x91] sm:$0xff]
    %v99 = vld [vmem:[%s0 + $0x99] sm:$0xff]
    %v100 = vld [vmem:[%s0 + $0xa9] sm:$0xff]
    %v101 = vld [vmem:[%s0 + $0xb1] sm:$0xff]
    %v102 = vld [vmem:[%s0 + $0xc1] sm:$0xff]
    %v103 = vld [vmem:[%s0 + $0xc9] sm:$0xff]
    %v104 = vld [vmem:[%s0 + $0xd9] sm:$0xff]
    %v105 = vld [vmem:[%s0 + $0xe1] sm:$0xff]
    %v106 = vld [vmem:[%s0 + $0xf1] sm:$0xff]
    %v107 = vld [vmem:[%s0 + $0xf9] sm:$0xff]
    %v108 = vld [vmem:[%s0 + $0x109] sm:$0xff]
    %v109 = vld [vmem:[%s0 + $0x111] sm:$0xff]
    %v110 = vld [vmem:[%s0 + $0x121] sm:$0xff]
    %v111 = vld [vmem:[%s0 + $0x129] sm:$0xff]
    %v112 = vld [vmem:[%s0 + $0x139] sm:$0xff]
    %v113 = vld [vmem:[%s0 + $0x141] sm:$0xff]
    %v114 = vld [vmem:[%s0 + $0x151] sm:$0xff]
    %v115 = vld [vmem:[%s0 + $0x159] sm:$0xff]
    %v116 = vld [vmem:[%s0 + $0x169] sm:$0xff]
    %v117 = vld [vmem:[%s0 + $0x171] sm:$0xff]
    %v118 = vld [vmem:[%s0 + $0x1b1] sm:$0xff]
    %v119 = vld [vmem:[%s0 + $0x1b9] sm:$0xff]
    %v120 = vld [vmem:[%s0 + $0x1c9] sm:$0xff]
    %v121 = vld [vmem:[%s0 + $0x1d1] sm:$0xff]
    %v122 = vld [vmem:[%s0 + $0x1e1] sm:$0xff]
    %v123 = vld [vmem:[%s0 + $0x1e9] sm:$0xff]
    %v124 = vld [vmem:[%s0 + $0x1f9] sm:$0xff]
    %v125 = vld [vmem:[%s0 + $0x201] sm:$0xff]
    %v126 = vld [vmem:[%s0 + $0x211] sm:$0xff]
    %v127 = vld [vmem:[%s0 + $0x219] sm:$0xff]
    %v128 = vld [vmem:[%s0 + $0x229] sm:$0xff]
    %v129 = vld [vmem:[%s0 + $0x231] sm:$0xff]
    %v130 = vld [vmem:[%s0 + $0x241] sm:$0xff]
    %v131 = vld [vmem:[%s0 + $0x249] sm:$0xff]
    %v132 = vld [vmem:[%s0 + $0x259] sm:$0xff]
    %v133 = vld [vmem:[%s0 + $0x261] sm:$0xff]
    %v134 = vld [vmem:[%s0 + $0x271] sm:$0xff]
    %v135 = vld [vmem:[%s0 + $0x279] sm:$0xff]
    %v136 = vld [vmem:[%s0 + $0x289] sm:$0xff]
    %v137 = vld [vmem:[%s0 + $0x291] sm:$0xff]
    %v138 = vld [vmem:[%s0 + $0x2a1] sm:$0xff]
    %v139 = vld [vmem:[%s0 + $0x2a9] sm:$0xff]
    %v140 = vld [vmem:[%s0 + $0x2b9] sm:$0xff]
    %v141 = vld [vmem:[%s0 + $0x2c1] sm:$0xff]
    %v142 = vld [vmem:[%s0 + $0x2d1] sm:$0xff]
    %v143 = vld [vmem:[%s0 + $0x2d9] sm:$0xff]
    %v144 = vld [vmem:[%s0 + $0x2e9] sm:$0xff]
    %v145 = vld [vmem:[%s0 + $0x2f1] sm:$0xff]
    %v146 = vld [vmem:[%s0 + $0x301] sm:$0xff]
    %v147 = vld [vmem:[%s0 + $0x309] sm:$0xff]
    %v148 = vld [vmem:[%s0 + $0x319] sm:$0xff]
    %v149 = vld [vmem:[%s0 + $0x321] sm:$0xff]
    %v150 = vld [vmem:[%s0 + $0x2] sm:$0xff]
    %v151 = vld [vmem:[%s0 + $0xa] sm:$0xff]
    %v152 = vld [vmem:[%s0 + $0x1a] sm:$0xff]
    %v153 = vld [vmem:[%s0 + $0x22] sm:$0xff]
    %v154 = vld [vmem:[%s0 + $0x32] sm:$0xff]
    %v155 = vld [vmem:[%s0 + $0x3a] sm:$0xff]
    %v156 = vld [vmem:[%s0 + $0x4a] sm:$0xff]
    %v157 = vld [vmem:[%s0 + $0x52] sm:$0xff]
    %v158 = vld [vmem:[%s0 + $0x62] sm:$0xff]
    %v159 = vld [vmem:[%s0 + $0x6a] sm:$0xff]
    %v160 = vld [vmem:[%s0 + $0x7a] sm:$0xff]
    %v161 = vld [vmem:[%s0 + $0x82] sm:$0xff]
    %v162 = vld [vmem:[%s0 + $0x92] sm:$0xff]
    %v163 = vld [vmem:[%s0 + $0x9a] sm:$0xff]
    %v164 = vld [vmem:[%s0 + $0xaa] sm:$0xff]
    %v165 = vld [vmem:[%s0 + $0xb2] sm:$0xff]
    %v166 = vld [vmem:[%s0 + $0xc2] sm:$0xff]
    %v167 = vld [vmem:[%s0 + $0xca] sm:$0xff]
    %v168 = vld [vmem:[%s0 + $0xda] sm:$0xff]
    %v169 = vld [vmem:[%s0 + $0xe2] sm:$0xff]
    %v170 = vld [vmem:[%s0 + $0xf2] sm:$0xff]
    %v171 = vld [vmem:[%s0 + $0xfa] sm:$0xff]
    %v172 = vld [vmem:[%s0 + $0x10a] sm:$0xff]
    %v173 = vld [vmem:[%s0 + $0x112] sm:$0xff]
    %v174 = vld [vmem:[%s0 + $0x122] sm:$0xff]
    %v175 = vld [vmem:[%s0 + $0x12a] sm:$0xff]
    %v176 = vld [vmem:[%s0 + $0x13a] sm:$0xff]
    %v177 = vld [vmem:[%s0 + $0x142] sm:$0xff]
    %v178 = vld [vmem:[%s0 + $0x152] sm:$0xff]
    %v179 = vld [vmem:[%s0 + $0x15a] sm:$0xff]
    %v180 = vld [vmem:[%s0 + $0x16a] sm:$0xff]
    %v181 = vld [vmem:[%s0 + $0x172] sm:$0xff]
    %v182 = vld [vmem:[%s0 + $0x1b2] sm:$0xff]
    %v183 = vld [vmem:[%s0 + $0x1ba] sm:$0xff]
    %v184 = vld [vmem:[%s0 + $0x1ca] sm:$0xff]
    %v185 = vld [vmem:[%s0 + $0x1d2] sm:$0xff]
    %v186 = vld [vmem:[%s0 + $0x1e2] sm:$0xff]
    %v187 = vld [vmem:[%s0 + $0x1ea] sm:$0xff]
    %v188 = vld [vmem:[%s0 + $0x1fa] sm:$0xff]
    %v189 = vld [vmem:[%s0 + $0x202] sm:$0xff]
    %v190 = vld [vmem:[%s0 + $0x212] sm:$0xff]
    %v191 = vld [vmem:[%s0 + $0x21a] sm:$0xff]
    %v192 = vld [vmem:[%s0 + $0x22a] sm:$0xff]
    %v193 = vld [vmem:[%s0 + $0x232] sm:$0xff]
    %v194 = vld [vmem:[%s0 + $0x242] sm:$0xff]
    %v195 = vld [vmem:[%s0 + $0x24a] sm:$0xff]
    %v196 = vld [vmem:[%s0 + $0x25a] sm:$0xff]
    %v197 = vld [vmem:[%s0 + $0x262] sm:$0xff]
    %v198 = vld [vmem:[%s0 + $0x272] sm:$0xff]
    %v199 = vld [vmem:[%s0 + $0x27a] sm:$0xff]
    %v200 = vld [vmem:[%s0 + $0x28a] sm:$0xff]
    %v201 = vld [vmem:[%s0 + $0x292] sm:$0xff]
    %v202 = vld [vmem:[%s0 + $0x2a2] sm:$0xff]
    %v203 = vld [vmem:[%s0 + $0x2aa] sm:$0xff]
    %v204 = vld [vmem:[%s0 + $0x2ba] sm:$0xff]
    %v205 = vld [vmem:[%s0 + $0x2c2] sm:$0xff]
    %v206 = vld [vmem:[%s0 + $0x2d2] sm:$0xff]
    %v207 = vld [vmem:[%s0 + $0x2da] sm:$0xff]
    %v208 = vld [vmem:[%s0 + $0x2ea] sm:$0xff]
    %v209 = vld [vmem:[%s0 + $0x2f2] sm:$0xff]
    %v210 = vld [vmem:[%s0 + $0x302] sm:$0xff]
    %v211 = vld [vmem:[%s0 + $0x30a] sm:$0xff]
    %v212 = vld [vmem:[%s0 + $0x31a] sm:$0xff]
    %v213 = vld [vmem:[%s0 + $0x322] sm:$0xff]
    %s214 = scalar_lea.vmem %s0, 24
    %v215 = vld [vmem:[%s214] sm:$0xff]
    %v216 = vld [vmem:[%s214 + $0x8] sm:$0xff]
    %v217 = vld [vmem:[%s214 + $0x18] sm:$0xff]
    %v218 = vld [vmem:[%s214 + $0x20] sm:$0xff]
    %v219 = vld [vmem:[%s214 + $0x30] sm:$0xff]
    %v220 = vld [vmem:[%s214 + $0x38] sm:$0xff]
    %v221 = vld [vmem:[%s214 + $0x48] sm:$0xff]
    %v222 = vld [vmem:[%s214 + $0x50] sm:$0xff]
    %v223 = vld [vmem:[%s214 + $0x60] sm:$0xff]
    %v224 = vld [vmem:[%s214 + $0x68] sm:$0xff]
    %v225 = vld [vmem:[%s214 + $0x78] sm:$0xff]
    %v226 = vld [vmem:[%s214 + $0x80] sm:$0xff]
    %v227 = vld [vmem:[%s214 + $0x90] sm:$0xff]
    %v228 = vld [vmem:[%s214 + $0x98] sm:$0xff]
    %v229 = vld [vmem:[%s214 + $0xa8] sm:$0xff]
    %v230 = vld [vmem:[%s214 + $0xb0] sm:$0xff]
    %v231 = vld [vmem:[%s214 + $0xc0] sm:$0xff]
    %v232 = vld [vmem:[%s214 + $0xc8] sm:$0xff]
    %v233 = vld [vmem:[%s214 + $0xd8] sm:$0xff]
    %v234 = vld [vmem:[%s214 + $0xe0] sm:$0xff]
    %v235 = vld [vmem:[%s214 + $0xf0] sm:$0xff]
    %v236 = vld [vmem:[%s214 + $0xf8] sm:$0xff]
    %v237 = vld [vmem:[%s214 + $0x108] sm:$0xff]
    %v238 = vld [vmem:[%s214 + $0x110] sm:$0xff]
    %v239 = vld [vmem:[%s214 + $0x120] sm:$0xff]
    %v240 = vld [vmem:[%s214 + $0x128] sm:$0xff]
    %v241 = vld [vmem:[%s214 + $0x138] sm:$0xff]
    %v242 = vld [vmem:[%s214 + $0x140] sm:$0xff]
    %v243 = vld [vmem:[%s214 + $0x150] sm:$0xff]
    %v244 = vld [vmem:[%s214 + $0x158] sm:$0xff]
    %v245 = vld [vmem:[%s214 + $0x168] sm:$0xff]
    %v246 = vld [vmem:[%s214 + $0x170] sm:$0xff]
    %v247 = vld [vmem:[%s214 + $0x1b0] sm:$0xff]
    %v248 = vld [vmem:[%s214 + $0x1b8] sm:$0xff]
    %v249 = vld [vmem:[%s214 + $0x1c8] sm:$0xff]
    %v250 = vld [vmem:[%s214 + $0x1d0] sm:$0xff]
    %v251 = vld [vmem:[%s214 + $0x1e0] sm:$0xff]
    %v252 = vld [vmem:[%s214 + $0x1e8] sm:$0xff]
    %v253 = vld [vmem:[%s214 + $0x1f8] sm:$0xff]
    %v254 = vld [vmem:[%s214 + $0x200] sm:$0xff]
    %v255 = vld [vmem:[%s214 + $0x210] sm:$0xff]
    %v256 = vld [vmem:[%s214 + $0x218] sm:$0xff]
    %v257 = vld [vmem:[%s214 + $0x228] sm:$0xff]
    %v258 = vld [vmem:[%s214 + $0x230] sm:$0xff]
    %v259 = vld [vmem:[%s214 + $0x240] sm:$0xff]
    %v260 = vld [vmem:[%s214 + $0x248] sm:$0xff]
    %v261 = vld [vmem:[%s214 + $0x258] sm:$0xff]
    %v262 = vld [vmem:[%s214 + $0x260] sm:$0xff]
    %v263 = vld [vmem:[%s214 + $0x270] sm:$0xff]
    %v264 = vld [vmem:[%s214 + $0x278] sm:$0xff]
    %v265 = vld [vmem:[%s214 + $0x288] sm:$0xff]
    %v266 = vld [vmem:[%s214 + $0x290] sm:$0xff]
    %v267 = vld [vmem:[%s214 + $0x2a0] sm:$0xff]
    %v268 = vld [vmem:[%s214 + $0x2a8] sm:$0xff]
    %v269 = vld [vmem:[%s214 + $0x2b8] sm:$0xff]
    %v270 = vld [vmem:[%s214 + $0x2c0] sm:$0xff]
    %v271 = vld [vmem:[%s214 + $0x2d0] sm:$0xff]
    %v272 = vld [vmem:[%s214 + $0x2d8] sm:$0xff]
    %v273 = vld [vmem:[%s214 + $0x2e8] sm:$0xff]
    %v274 = vld [vmem:[%s214 + $0x2f0] sm:$0xff]
    %v275 = vld [vmem:[%s214 + $0x300] sm:$0xff]
    %v276 = vld [vmem:[%s214 + $0x308] sm:$0xff]
    %v277 = vld [vmem:[%s214 + $0x318] sm:$0xff]
    %v278 = vld [vmem:[%s214 + $0x320] sm:$0xff]
    %v279 = vld [vmem:[%s214 + $0x1] sm:$0xff]
    %v280 = vld [vmem:[%s214 + $0x9] sm:$0xff]
    %v281 = vld [vmem:[%s214 + $0x19] sm:$0xff]
    %v282 = vld [vmem:[%s214 + $0x21] sm:$0xff]
    %v283 = vld [vmem:[%s214 + $0x31] sm:$0xff]
    %v284 = vld [vmem:[%s214 + $0x39] sm:$0xff]
    %v285 = vld [vmem:[%s214 + $0x49] sm:$0xff]
    %v286 = vld [vmem:[%s214 + $0x51] sm:$0xff]
    %v287 = vld [vmem:[%s214 + $0x61] sm:$0xff]
    %v288 = vld [vmem:[%s214 + $0x69] sm:$0xff]
    %v289 = vld [vmem:[%s214 + $0x79] sm:$0xff]
    %v290 = vld [vmem:[%s214 + $0x81] sm:$0xff]
    %v291 = vld [vmem:[%s214 + $0x91] sm:$0xff]
    %v292 = vld [vmem:[%s214 + $0x99] sm:$0xff]
    %v293 = vld [vmem:[%s214 + $0xa9] sm:$0xff]
    %v294 = vld [vmem:[%s214 + $0xb1] sm:$0xff]
    %v295 = vld [vmem:[%s214 + $0xc1] sm:$0xff]
    %v296 = vld [vmem:[%s214 + $0xc9] sm:$0xff]
    %v297 = vld [vmem:[%s214 + $0xd9] sm:$0xff]
    %v298 = vld [vmem:[%s214 + $0xe1] sm:$0xff]
    %v299 = vld [vmem:[%s214 + $0xf1] sm:$0xff]
    %v300 = vld [vmem:[%s214 + $0xf9] sm:$0xff]
    %v301 = vld [vmem:[%s214 + $0x109] sm:$0xff]
    %v302 = vld [vmem:[%s214 + $0x111] sm:$0xff]
    %v303 = vld [vmem:[%s214 + $0x121] sm:$0xff]
    %v304 = vld [vmem:[%s214 + $0x129] sm:$0xff]
    %v305 = vld [vmem:[%s214 + $0x139] sm:$0xff]
    %v306 = vld [vmem:[%s214 + $0x141] sm:$0xff]
    %v307 = vld [vmem:[%s214 + $0x151] sm:$0xff]
    %v308 = vld [vmem:[%s214 + $0x159] sm:$0xff]
    %v309 = vld [vmem:[%s214 + $0x169] sm:$0xff]
    %v310 = vld [vmem:[%s214 + $0x171] sm:$0xff]
    %v311 = vld [vmem:[%s214 + $0x1b1] sm:$0xff]
    %v312 = vld [vmem:[%s214 + $0x1b9] sm:$0xff]
    %v313 = vld [vmem:[%s214 + $0x1c9] sm:$0xff]
    %v314 = vld [vmem:[%s214 + $0x1d1] sm:$0xff]
    %v315 = vld [vmem:[%s214 + $0x1e1] sm:$0xff]
    %v316 = vld [vmem:[%s214 + $0x1e9] sm:$0xff]
    %v317 = vld [vmem:[%s214 + $0x1f9] sm:$0xff]
    %v318 = vld [vmem:[%s214 + $0x201] sm:$0xff]
    %v319 = vld [vmem:[%s214 + $0x211] sm:$0xff]
    %v320 = vld [vmem:[%s214 + $0x219] sm:$0xff]
    %v321 = vld [vmem:[%s214 + $0x229] sm:$0xff]
    %v322 = vld [vmem:[%s214 + $0x231] sm:$0xff]
    %v323 = vld [vmem:[%s214 + $0x241] sm:$0xff]
    %v324 = vld [vmem:[%s214 + $0x249] sm:$0xff]
    %v325 = vld [vmem:[%s214 + $0x259] sm:$0xff]
    %v326 = vld [vmem:[%s214 + $0x261] sm:$0xff]
    %v327 = vld [vmem:[%s214 + $0x271] sm:$0xff]
    %v328 = vld [vmem:[%s214 + $0x279] sm:$0xff]
    %v329 = vld [vmem:[%s214 + $0x289] sm:$0xff]
    %v330 = vld [vmem:[%s214 + $0x291] sm:$0xff]
    %v331 = vld [vmem:[%s214 + $0x2a1] sm:$0xff]
    %v332 = vld [vmem:[%s214 + $0x2a9] sm:$0xff]
    %v333 = vld [vmem:[%s214 + $0x2b9] sm:$0xff]
    %v334 = vld [vmem:[%s214 + $0x2c1] sm:$0xff]
    %v335 = vld [vmem:[%s214 + $0x2d1] sm:$0xff]
    %v336 = vld [vmem:[%s214 + $0x2d9] sm:$0xff]
    %v337 = vld [vmem:[%s214 + $0x2e9] sm:$0xff]
    %v338 = vld [vmem:[%s214 + $0x2f1] sm:$0xff]
    %v339 = vld [vmem:[%s214 + $0x301] sm:$0xff]
    %v340 = vld [vmem:[%s214 + $0x309] sm:$0xff]
    %v341 = vld [vmem:[%s214 + $0x319] sm:$0xff]
    %v342 = vld [vmem:[%s214 + $0x321] sm:$0xff]
    %v343 = vld [vmem:[%s214 + $0x2] sm:$0xff]
    %v344 = vld [vmem:[%s214 + $0xa] sm:$0xff]
    %v345 = vld [vmem:[%s214 + $0x1a] sm:$0xff]
    %v346 = vld [vmem:[%s214 + $0x22] sm:$0xff]
    %v347 = vld [vmem:[%s214 + $0x32] sm:$0xff]
    %v348 = vld [vmem:[%s214 + $0x3a] sm:$0xff]
    %v349 = vld [vmem:[%s214 + $0x4a] sm:$0xff]
    %v350 = vld [vmem:[%s214 + $0x52] sm:$0xff]
    %v351 = vld [vmem:[%s214 + $0x62] sm:$0xff]
    %v352 = vld [vmem:[%s214 + $0x6a] sm:$0xff]
    %v353 = vld [vmem:[%s214 + $0x7a] sm:$0xff]
    %v354 = vld [vmem:[%s214 + $0x82] sm:$0xff]
    %v355 = vld [vmem:[%s214 + $0x92] sm:$0xff]
    %v356 = vld [vmem:[%s214 + $0x9a] sm:$0xff]
    %v357 = vld [vmem:[%s214 + $0xaa] sm:$0xff]
    %v358 = vld [vmem:[%s214 + $0xb2] sm:$0xff]
    %v359 = vld [vmem:[%s214 + $0xc2] sm:$0xff]
    %v360 = vld [vmem:[%s214 + $0xca] sm:$0xff]
    %v361 = vld [vmem:[%s214 + $0xda] sm:$0xff]
    %v362 = vld [vmem:[%s214 + $0xe2] sm:$0xff]
    %v363 = vld [vmem:[%s214 + $0xf2] sm:$0xff]
    %v364 = vld [vmem:[%s214 + $0xfa] sm:$0xff]
    %v365 = vld [vmem:[%s214 + $0x10a] sm:$0xff]
    %v366 = vld [vmem:[%s214 + $0x112] sm:$0xff]
    %v367 = vld [vmem:[%s214 + $0x122] sm:$0xff]
    %v368 = vld [vmem:[%s214 + $0x12a] sm:$0xff]
    %v369 = vld [vmem:[%s214 + $0x13a] sm:$0xff]
    %v370 = vld [vmem:[%s214 + $0x142] sm:$0xff]
    %v371 = vld [vmem:[%s214 + $0x152] sm:$0xff]
    %v372 = vld [vmem:[%s214 + $0x15a] sm:$0xff]
    %v373 = vld [vmem:[%s214 + $0x16a] sm:$0xff]
    %v374 = vld [vmem:[%s214 + $0x172] sm:$0xff]
    %v375 = vld [vmem:[%s214 + $0x1b2] sm:$0xff]
    %v376 = vld [vmem:[%s214 + $0x1ba] sm:$0xff]
    %v377 = vld [vmem:[%s214 + $0x1ca] sm:$0xff]
    %v378 = vld [vmem:[%s214 + $0x1d2] sm:$0xff]
    %v379 = vld [vmem:[%s214 + $0x1e2] sm:$0xff]
    %v380 = vld [vmem:[%s214 + $0x1ea] sm:$0xff]
    %v381 = vld [vmem:[%s214 + $0x1fa] sm:$0xff]
    %v382 = vld [vmem:[%s214 + $0x202] sm:$0xff]
    %v383 = vld [vmem:[%s214 + $0x212] sm:$0xff]
    %v384 = vld [vmem:[%s214 + $0x21a] sm:$0xff]
    %v385 = vld [vmem:[%s214 + $0x22a] sm:$0xff]
    %v386 = vld [vmem:[%s214 + $0x232] sm:$0xff]
    %v387 = vld [vmem:[%s214 + $0x242] sm:$0xff]
    %v388 = vld [vmem:[%s214 + $0x24a] sm:$0xff]
    %v389 = vld [vmem:[%s214 + $0x25a] sm:$0xff]
    %v390 = vld [vmem:[%s214 + $0x262] sm:$0xff]
    %v391 = vld [vmem:[%s214 + $0x272] sm:$0xff]
    %v392 = vld [vmem:[%s214 + $0x27a] sm:$0xff]
    %v393 = vld [vmem:[%s214 + $0x28a] sm:$0xff]
    %v394 = vld [vmem:[%s214 + $0x292] sm:$0xff]
    %v395 = vld [vmem:[%s214 + $0x2a2] sm:$0xff]
    %v396 = vld [vmem:[%s214 + $0x2aa] sm:$0xff]
    %v397 = vld [vmem:[%s214 + $0x2ba] sm:$0xff]
    %v398 = vld [vmem:[%s214 + $0x2c2] sm:$0xff]
    %v399 = vld [vmem:[%s214 + $0x2d2] sm:$0xff]
    %v400 = vld [vmem:[%s214 + $0x2da] sm:$0xff]
    %v401 = vld [vmem:[%s214 + $0x2ea] sm:$0xff]
    %v402 = vld [vmem:[%s214 + $0x2f2] sm:$0xff]
    %v403 = vld [vmem:[%s214 + $0x302] sm:$0xff]
    %v404 = vld [vmem:[%s214 + $0x30a] sm:$0xff]
    %v405 = vld [vmem:[%s214 + $0x31a] sm:$0xff]
    %v406 = vld [vmem:[%s214 + $0x322] sm:$0xff]
    %s407 = scalar_lea.vmem %s0, 48
    %v408 = vld [vmem:[%s407] sm:$0xff]
    %v409 = vld [vmem:[%s407 + $0x8] sm:$0xff]
    %v410 = vld [vmem:[%s407 + $0x18] sm:$0xff]
    %v411 = vld [vmem:[%s407 + $0x20] sm:$0xff]
    %v412 = vld [vmem:[%s407 + $0x30] sm:$0xff]
    %v413 = vld [vmem:[%s407 + $0x38] sm:$0xff]
    %v414 = vld [vmem:[%s407 + $0x48] sm:$0xff]
    %v415 = vld [vmem:[%s407 + $0x50] sm:$0xff]
    %v416 = vld [vmem:[%s407 + $0x60] sm:$0xff]
    %v417 = vld [vmem:[%s407 + $0x68] sm:$0xff]
    %v418 = vld [vmem:[%s407 + $0x78] sm:$0xff]
    %v419 = vld [vmem:[%s407 + $0x80] sm:$0xff]
    %v420 = vld [vmem:[%s407 + $0x90] sm:$0xff]
    %v421 = vld [vmem:[%s407 + $0x98] sm:$0xff]
    %v422 = vld [vmem:[%s407 + $0xa8] sm:$0xff]
    %v423 = vld [vmem:[%s407 + $0xb0] sm:$0xff]
    %v424 = vld [vmem:[%s407 + $0xc0] sm:$0xff]
    %v425 = vld [vmem:[%s407 + $0xc8] sm:$0xff]
    %v426 = vld [vmem:[%s407 + $0xd8] sm:$0xff]
    %v427 = vld [vmem:[%s407 + $0xe0] sm:$0xff]
    %v428 = vld [vmem:[%s407 + $0xf0] sm:$0xff]
    %v429 = vld [vmem:[%s407 + $0xf8] sm:$0xff]
    %v430 = vld [vmem:[%s407 + $0x108] sm:$0xff]
    %v431 = vld [vmem:[%s407 + $0x110] sm:$0xff]
    %v432 = vld [vmem:[%s407 + $0x120] sm:$0xff]
    %v433 = vld [vmem:[%s407 + $0x128] sm:$0xff]
    %v434 = vld [vmem:[%s407 + $0x138] sm:$0xff]
    %v435 = vld [vmem:[%s407 + $0x140] sm:$0xff]
    %v436 = vld [vmem:[%s407 + $0x150] sm:$0xff]
    %v437 = vld [vmem:[%s407 + $0x158] sm:$0xff]
    %v438 = vld [vmem:[%s407 + $0x168] sm:$0xff]
    %v439 = vld [vmem:[%s407 + $0x170] sm:$0xff]
    %v440 = vld [vmem:[%s407 + $0x1b0] sm:$0xff]
    %v441 = vld [vmem:[%s407 + $0x1b8] sm:$0xff]
    %v442 = vld [vmem:[%s407 + $0x1c8] sm:$0xff]
    %v443 = vld [vmem:[%s407 + $0x1d0] sm:$0xff]
    %v444 = vld [vmem:[%s407 + $0x1e0] sm:$0xff]
    %v445 = vld [vmem:[%s407 + $0x1e8] sm:$0xff]
    %v446 = vld [vmem:[%s407 + $0x1f8] sm:$0xff]
    %v447 = vld [vmem:[%s407 + $0x200] sm:$0xff]
    %v448 = vld [vmem:[%s407 + $0x210] sm:$0xff]
    %v449 = vld [vmem:[%s407 + $0x218] sm:$0xff]
    %v450 = vld [vmem:[%s407 + $0x228] sm:$0xff]
    %v451 = vld [vmem:[%s407 + $0x230] sm:$0xff]
    %v452 = vld [vmem:[%s407 + $0x240] sm:$0xff]
    %v453 = vld [vmem:[%s407 + $0x248] sm:$0xff]
    %v454 = vld [vmem:[%s407 + $0x258] sm:$0xff]
    %v455 = vld [vmem:[%s407 + $0x260] sm:$0xff]
    %v456 = vld [vmem:[%s407 + $0x270] sm:$0xff]
    %v457 = vld [vmem:[%s407 + $0x278] sm:$0xff]
    %v458 = vld [vmem:[%s407 + $0x288] sm:$0xff]
    %v459 = vld [vmem:[%s407 + $0x290] sm:$0xff]
    %v460 = vld [vmem:[%s407 + $0x2a0] sm:$0xff]
    %v461 = vld [vmem:[%s407 + $0x2a8] sm:$0xff]
    %v462 = vld [vmem:[%s407 + $0x2b8] sm:$0xff]
    %v463 = vld [vmem:[%s407 + $0x2c0] sm:$0xff]
    %v464 = vld [vmem:[%s407 + $0x2d0] sm:$0xff]
    %v465 = vld [vmem:[%s407 + $0x2d8] sm:$0xff]
    %v466 = vld [vmem:[%s407 + $0x2e8] sm:$0xff]
    %v467 = vld [vmem:[%s407 + $0x2f0] sm:$0xff]
    %v468 = vld [vmem:[%s407 + $0x300] sm:$0xff]
    %v469 = vld [vmem:[%s407 + $0x308] sm:$0xff]
    %v470 = vld [vmem:[%s407 + $0x318] sm:$0xff]
    %v471 = vld [vmem:[%s407 + $0x320] sm:$0xff]
    %v472 = vld [vmem:[%s407 + $0x1] sm:$0xff]
    %v473 = vld [vmem:[%s407 + $0x9] sm:$0xff]
    %v474 = vld [vmem:[%s407 + $0x19] sm:$0xff]
    %v475 = vld [vmem:[%s407 + $0x21] sm:$0xff]
    %v476 = vld [vmem:[%s407 + $0x31] sm:$0xff]
    %v477 = vld [vmem:[%s407 + $0x39] sm:$0xff]
    %v478 = vld [vmem:[%s407 + $0x49] sm:$0xff]
    %v479 = vld [vmem:[%s407 + $0x51] sm:$0xff]
    %v480 = vld [vmem:[%s407 + $0x61] sm:$0xff]
    %v481 = vld [vmem:[%s407 + $0x69] sm:$0xff]
    %v482 = vld [vmem:[%s407 + $0x79] sm:$0xff]
    %v483 = vld [vmem:[%s407 + $0x81] sm:$0xff]
    %v484 = vld [vmem:[%s407 + $0x91] sm:$0xff]
    %v485 = vld [vmem:[%s407 + $0x99] sm:$0xff]
    %v486 = vld [vmem:[%s407 + $0xa9] sm:$0xff]
    %v487 = vld [vmem:[%s407 + $0xb1] sm:$0xff]
    %v488 = vld [vmem:[%s407 + $0xc1] sm:$0xff]
    %v489 = vld [vmem:[%s407 + $0xc9] sm:$0xff]
    %v490 = vld [vmem:[%s407 + $0xd9] sm:$0xff]
    %v491 = vld [vmem:[%s407 + $0xe1] sm:$0xff]
    %v492 = vld [vmem:[%s407 + $0xf1] sm:$0xff]
    %v493 = vld [vmem:[%s407 + $0xf9] sm:$0xff]
    %v494 = vld [vmem:[%s407 + $0x109] sm:$0xff]
    %v495 = vld [vmem:[%s407 + $0x111] sm:$0xff]
    %v496 = vld [vmem:[%s407 + $0x121] sm:$0xff]
    %v497 = vld [vmem:[%s407 + $0x129] sm:$0xff]
    %v498 = vld [vmem:[%s407 + $0x139] sm:$0xff]
    %v499 = vld [vmem:[%s407 + $0x141] sm:$0xff]
    %v500 = vld [vmem:[%s407 + $0x151] sm:$0xff]
    %v501 = vld [vmem:[%s407 + $0x159] sm:$0xff]
    %v502 = vld [vmem:[%s407 + $0x169] sm:$0xff]
    %v503 = vld [vmem:[%s407 + $0x171] sm:$0xff]
    %v504 = vld [vmem:[%s407 + $0x1b1] sm:$0xff]
    %v505 = vld [vmem:[%s407 + $0x1b9] sm:$0xff]
    %v506 = vld [vmem:[%s407 + $0x1c9] sm:$0xff]
    %v507 = vld [vmem:[%s407 + $0x1d1] sm:$0xff]
    %v508 = vld [vmem:[%s407 + $0x1e1] sm:$0xff]
    %v509 = vld [vmem:[%s407 + $0x1e9] sm:$0xff]
    %v510 = vld [vmem:[%s407 + $0x1f9] sm:$0xff]
    %v511 = vld [vmem:[%s407 + $0x201] sm:$0xff]
    %v512 = vld [vmem:[%s407 + $0x211] sm:$0xff]
    %v513 = vld [vmem:[%s407 + $0x219] sm:$0xff]
    %v514 = vld [vmem:[%s407 + $0x229] sm:$0xff]
    %v515 = vld [vmem:[%s407 + $0x231] sm:$0xff]
    %v516 = vld [vmem:[%s407 + $0x241] sm:$0xff]
    %v517 = vld [vmem:[%s407 + $0x249] sm:$0xff]
    %v518 = vld [vmem:[%s407 + $0x259] sm:$0xff]
    %v519 = vld [vmem:[%s407 + $0x261] sm:$0xff]
    %v520 = vld [vmem:[%s407 + $0x271] sm:$0xff]
    %v521 = vld [vmem:[%s407 + $0x279] sm:$0xff]
    %v522 = vld [vmem:[%s407 + $0x289] sm:$0xff]
    %v523 = vld [vmem:[%s407 + $0x291] sm:$0xff]
    %v524 = vld [vmem:[%s407 + $0x2a1] sm:$0xff]
    %v525 = vld [vmem:[%s407 + $0x2a9] sm:$0xff]
    %v526 = vld [vmem:[%s407 + $0x2b9] sm:$0xff]
    %v527 = vld [vmem:[%s407 + $0x2c1] sm:$0xff]
    %v528 = vld [vmem:[%s407 + $0x2d1] sm:$0xff]
    %v529 = vld [vmem:[%s407 + $0x2d9] sm:$0xff]
    %v530 = vld [vmem:[%s407 + $0x2e9] sm:$0xff]
    %v531 = vld [vmem:[%s407 + $0x2f1] sm:$0xff]
    %v532 = vld [vmem:[%s407 + $0x301] sm:$0xff]
    %v533 = vld [vmem:[%s407 + $0x309] sm:$0xff]
    %v534 = vld [vmem:[%s407 + $0x319] sm:$0xff]
    %v535 = vld [vmem:[%s407 + $0x321] sm:$0xff]
    %v536 = vld [vmem:[%s407 + $0x2] sm:$0xff]
    %v537 = vld [vmem:[%s407 + $0xa] sm:$0xff]
    %v538 = vld [vmem:[%s407 + $0x1a] sm:$0xff]
    %v539 = vld [vmem:[%s407 + $0x22] sm:$0xff]
    %v540 = vld [vmem:[%s407 + $0x32] sm:$0xff]
    %v541 = vld [vmem:[%s407 + $0x3a] sm:$0xff]
    %v542 = vld [vmem:[%s407 + $0x4a] sm:$0xff]
    %v543 = vld [vmem:[%s407 + $0x52] sm:$0xff]
    %v544 = vld [vmem:[%s407 + $0x62] sm:$0xff]
    %v545 = vld [vmem:[%s407 + $0x6a] sm:$0xff]
    %v546 = vld [vmem:[%s407 + $0x7a] sm:$0xff]
    %v547 = vld [vmem:[%s407 + $0x82] sm:$0xff]
    %v548 = vld [vmem:[%s407 + $0x92] sm:$0xff]
    %v549 = vld [vmem:[%s407 + $0x9a] sm:$0xff]
    %v550 = vld [vmem:[%s407 + $0xaa] sm:$0xff]
    %v551 = vld [vmem:[%s407 + $0xb2] sm:$0xff]
    %v552 = vld [vmem:[%s407 + $0xc2] sm:$0xff]
    %v553 = vld [vmem:[%s407 + $0xca] sm:$0xff]
    %v554 = vld [vmem:[%s407 + $0xda] sm:$0xff]
    %v555 = vld [vmem:[%s407 + $0xe2] sm:$0xff]
    %v556 = vld [vmem:[%s407 + $0xf2] sm:$0xff]
    %v557 = vld [vmem:[%s407 + $0xfa] sm:$0xff]
    %v558 = vld [vmem:[%s407 + $0x10a] sm:$0xff]
    %v559 = vld [vmem:[%s407 + $0x112] sm:$0xff]
    %v560 = vld [vmem:[%s407 + $0x122] sm:$0xff]
    %v561 = vld [vmem:[%s407 + $0x12a] sm:$0xff]
    %v562 = vld [vmem:[%s407 + $0x13a] sm:$0xff]
    %v563 = vld [vmem:[%s407 + $0x142] sm:$0xff]
    %v564 = vld [vmem:[%s407 + $0x152] sm:$0xff]
    %v565 = vld [vmem:[%s407 + $0x15a] sm:$0xff]
    %v566 = vld [vmem:[%s407 + $0x16a] sm:$0xff]
    %v567 = vld [vmem:[%s407 + $0x172] sm:$0xff]
    %v568 = vld [vmem:[%s407 + $0x1b2] sm:$0xff]
    %v569 = vld [vmem:[%s407 + $0x1ba] sm:$0xff]
    %v570 = vld [vmem:[%s407 + $0x1ca] sm:$0xff]
    %v571 = vld [vmem:[%s407 + $0x1d2] sm:$0xff]
    %v572 = vld [vmem:[%s407 + $0x1e2] sm:$0xff]
    %v573 = vld [vmem:[%s407 + $0x1ea] sm:$0xff]
    %v574 = vld [vmem:[%s407 + $0x1fa] sm:$0xff]
    %v575 = vld [vmem:[%s407 + $0x202] sm:$0xff]
    %v576 = vld [vmem:[%s407 + $0x212] sm:$0xff]
    %v577 = vld [vmem:[%s407 + $0x21a] sm:$0xff]
    %v578 = vld [vmem:[%s407 + $0x22a] sm:$0xff]
    %v579 = vld [vmem:[%s407 + $0x232] sm:$0xff]
    %v580 = vld [vmem:[%s407 + $0x242] sm:$0xff]
    %v581 = vld [vmem:[%s407 + $0x24a] sm:$0xff]
    %v582 = vld [vmem:[%s407 + $0x25a] sm:$0xff]
    %v583 = vld [vmem:[%s407 + $0x262] sm:$0xff]
    %v584 = vld [vmem:[%s407 + $0x272] sm:$0xff]
    %v585 = vld [vmem:[%s407 + $0x27a] sm:$0xff]
    %v586 = vld [vmem:[%s407 + $0x28a] sm:$0xff]
    %v587 = vld [vmem:[%s407 + $0x292] sm:$0xff]
    %v588 = vld [vmem:[%s407 + $0x2a2] sm:$0xff]
    %v589 = vld [vmem:[%s407 + $0x2aa] sm:$0xff]
    %v590 = vld [vmem:[%s407 + $0x2ba] sm:$0xff]
    %v591 = vld [vmem:[%s407 + $0x2c2] sm:$0xff]
    %v592 = vld [vmem:[%s407 + $0x2d2] sm:$0xff]
    %v593 = vld [vmem:[%s407 + $0x2da] sm:$0xff]
    %v594 = vld [vmem:[%s407 + $0x2ea] sm:$0xff]
    %v595 = vld [vmem:[%s407 + $0x2f2] sm:$0xff]
    %v596 = vld [vmem:[%s407 + $0x302] sm:$0xff]
    %v597 = vld [vmem:[%s407 + $0x30a] sm:$0xff]
    %v598 = vld [vmem:[%s407 + $0x31a] sm:$0xff]
    %v599 = vld [vmem:[%s407 + $0x322] sm:$0xff]
    %664 = vrot.lane.b32.xlu0 %v86, 4
    %v665 = vpop.permute.xlu0 %664
    %666 = vrot.lane.b32.xlu0 %v87, 4
    %v667 = vpop.permute.xlu0 %666
    %668 = vrot.lane.b32.xlu0 %v88, 4
    %v669 = vpop.permute.xlu0 %668
    %670 = vrot.lane.b32.xlu0 %v89, 4
    %v671 = vpop.permute.xlu0 %670
    %672 = vrot.lane.b32.xlu0 %v90, 4
    %v673 = vpop.permute.xlu0 %672
    %674 = vrot.lane.b32.xlu0 %v91, 4
    %v675 = vpop.permute.xlu0 %674
    %676 = vrot.lane.b32.xlu0 %v92, 4
    %v677 = vpop.permute.xlu0 %676
    %678 = vrot.lane.b32.xlu0 %v93, 4
    %v679 = vpop.permute.xlu0 %678
    %680 = vrot.lane.b32.xlu0 %v94, 4
    %v681 = vpop.permute.xlu0 %680
    %682 = vrot.lane.b32.xlu0 %v95, 4
    %v683 = vpop.permute.xlu0 %682
    %684 = vrot.lane.b32.xlu0 %v96, 4
    %v685 = vpop.permute.xlu0 %684
    %686 = vrot.lane.b32.xlu0 %v97, 4
    %v687 = vpop.permute.xlu0 %686
    %688 = vrot.lane.b32.xlu0 %v98, 4
    %v689 = vpop.permute.xlu0 %688
    %690 = vrot.lane.b32.xlu0 %v99, 4
    %v691 = vpop.permute.xlu0 %690
    %692 = vrot.lane.b32.xlu0 %v100, 4
    %v693 = vpop.permute.xlu0 %692
    %694 = vrot.lane.b32.xlu0 %v101, 4
    %v695 = vpop.permute.xlu0 %694
    %696 = vrot.lane.b32.xlu0 %v102, 4
    %v697 = vpop.permute.xlu0 %696
    %698 = vrot.lane.b32.xlu0 %v103, 4
    %v699 = vpop.permute.xlu0 %698
    %700 = vrot.lane.b32.xlu0 %v104, 4
    %v701 = vpop.permute.xlu0 %700
    %702 = vrot.lane.b32.xlu0 %v105, 4
    %v703 = vpop.permute.xlu0 %702
    %704 = vrot.lane.b32.xlu0 %v106, 4
    %v705 = vpop.permute.xlu0 %704
    %706 = vrot.lane.b32.xlu0 %v107, 4
    %v707 = vpop.permute.xlu0 %706
    %708 = vrot.lane.b32.xlu0 %v108, 4
    %v709 = vpop.permute.xlu0 %708
    %710 = vrot.lane.b32.xlu0 %v109, 4
    %v711 = vpop.permute.xlu0 %710
    %712 = vrot.lane.b32.xlu0 %v110, 4
    %v713 = vpop.permute.xlu0 %712
    %714 = vrot.lane.b32.xlu0 %v111, 4
    %v715 = vpop.permute.xlu0 %714
    %716 = vrot.lane.b32.xlu0 %v112, 4
    %v717 = vpop.permute.xlu0 %716
    %718 = vrot.lane.b32.xlu0 %v113, 4
    %v719 = vpop.permute.xlu0 %718
    %720 = vrot.lane.b32.xlu0 %v114, 4
    %v721 = vpop.permute.xlu0 %720
    %722 = vrot.lane.b32.xlu0 %v115, 4
    %v723 = vpop.permute.xlu0 %722
    %724 = vrot.lane.b32.xlu0 %v116, 4
    %v725 = vpop.permute.xlu0 %724
    %726 = vrot.lane.b32.xlu0 %v117, 4
    %v727 = vpop.permute.xlu0 %726
    %728 = vrot.lane.b32.xlu0 %v118, 4
    %v729 = vpop.permute.xlu0 %728
    %730 = vrot.lane.b32.xlu0 %v119, 4
    %v731 = vpop.permute.xlu0 %730
    %732 = vrot.lane.b32.xlu0 %v120, 4
    %v733 = vpop.permute.xlu0 %732
    %734 = vrot.lane.b32.xlu0 %v121, 4
    %v735 = vpop.permute.xlu0 %734
    %736 = vrot.lane.b32.xlu0 %v122, 4
    %v737 = vpop.permute.xlu0 %736
    %738 = vrot.lane.b32.xlu0 %v123, 4
    %v739 = vpop.permute.xlu0 %738
    %740 = vrot.lane.b32.xlu0 %v124, 4
    %v741 = vpop.permute.xlu0 %740
    %742 = vrot.lane.b32.xlu0 %v125, 4
    %v743 = vpop.permute.xlu0 %742
    %744 = vrot.lane.b32.xlu0 %v126, 4
    %v745 = vpop.permute.xlu0 %744
    %746 = vrot.lane.b32.xlu0 %v127, 4
    %v747 = vpop.permute.xlu0 %746
    %748 = vrot.lane.b32.xlu0 %v128, 4
    %v749 = vpop.permute.xlu0 %748
    %750 = vrot.lane.b32.xlu0 %v129, 4
    %v751 = vpop.permute.xlu0 %750
    %752 = vrot.lane.b32.xlu0 %v130, 4
    %v753 = vpop.permute.xlu0 %752
    %754 = vrot.lane.b32.xlu0 %v131, 4
    %v755 = vpop.permute.xlu0 %754
    %756 = vrot.lane.b32.xlu0 %v132, 4
    %v757 = vpop.permute.xlu0 %756
    %758 = vrot.lane.b32.xlu0 %v133, 4
    %v759 = vpop.permute.xlu0 %758
    %760 = vrot.lane.b32.xlu0 %v134, 4
    %v761 = vpop.permute.xlu0 %760
    %762 = vrot.lane.b32.xlu0 %v135, 4
    %v763 = vpop.permute.xlu0 %762
    %764 = vrot.lane.b32.xlu0 %v136, 4
    %v765 = vpop.permute.xlu0 %764
    %766 = vrot.lane.b32.xlu0 %v137, 4
    %v767 = vpop.permute.xlu0 %766
    %768 = vrot.lane.b32.xlu0 %v138, 4
    %v769 = vpop.permute.xlu0 %768
    %770 = vrot.lane.b32.xlu0 %v139, 4
    %v771 = vpop.permute.xlu0 %770
    %772 = vrot.lane.b32.xlu0 %v140, 4
    %v773 = vpop.permute.xlu0 %772
    %774 = vrot.lane.b32.xlu0 %v141, 4
    %v775 = vpop.permute.xlu0 %774
    %776 = vrot.lane.b32.xlu0 %v142, 4
    %v777 = vpop.permute.xlu0 %776
    %778 = vrot.lane.b32.xlu0 %v143, 4
    %v779 = vpop.permute.xlu0 %778
    %780 = vrot.lane.b32.xlu0 %v144, 4
    %v781 = vpop.permute.xlu0 %780
    %782 = vrot.lane.b32.xlu0 %v145, 4
    %v783 = vpop.permute.xlu0 %782
    %784 = vrot.lane.b32.xlu0 %v146, 4
    %v785 = vpop.permute.xlu0 %784
    %786 = vrot.lane.b32.xlu0 %v147, 4
    %v787 = vpop.permute.xlu0 %786
    %788 = vrot.lane.b32.xlu0 %v148, 4
    %v789 = vpop.permute.xlu0 %788
    %790 = vrot.lane.b32.xlu0 %v149, 4
    %v791 = vpop.permute.xlu0 %790
    %920 = vrot.lane.b32.xlu0 %v150, 8
    %v921 = vpop.permute.xlu0 %920
    %922 = vrot.lane.b32.xlu0 %v151, 8
    %v923 = vpop.permute.xlu0 %922
    %924 = vrot.lane.b32.xlu0 %v152, 8
    %v925 = vpop.permute.xlu0 %924
    %926 = vrot.lane.b32.xlu0 %v153, 8
    %v927 = vpop.permute.xlu0 %926
    %928 = vrot.lane.b32.xlu0 %v154, 8
    %v929 = vpop.permute.xlu0 %928
    %930 = vrot.lane.b32.xlu0 %v155, 8
    %v931 = vpop.permute.xlu0 %930
    %932 = vrot.lane.b32.xlu0 %v156, 8
    %v933 = vpop.permute.xlu0 %932
    %934 = vrot.lane.b32.xlu0 %v157, 8
    %v935 = vpop.permute.xlu0 %934
    %936 = vrot.lane.b32.xlu0 %v158, 8
    %v937 = vpop.permute.xlu0 %936
    %938 = vrot.lane.b32.xlu0 %v159, 8
    %v939 = vpop.permute.xlu0 %938
    %940 = vrot.lane.b32.xlu0 %v160, 8
    %v941 = vpop.permute.xlu0 %940
    %942 = vrot.lane.b32.xlu0 %v161, 8
    %v943 = vpop.permute.xlu0 %942
    %944 = vrot.lane.b32.xlu0 %v162, 8
    %v945 = vpop.permute.xlu0 %944
    %946 = vrot.lane.b32.xlu0 %v163, 8
    %v947 = vpop.permute.xlu0 %946
    %948 = vrot.lane.b32.xlu0 %v164, 8
    %v949 = vpop.permute.xlu0 %948
    %950 = vrot.lane.b32.xlu0 %v165, 8
    %v951 = vpop.permute.xlu0 %950
    %952 = vrot.lane.b32.xlu0 %v166, 8
    %v953 = vpop.permute.xlu0 %952
    %954 = vrot.lane.b32.xlu0 %v167, 8
    %v955 = vpop.permute.xlu0 %954
    %956 = vrot.lane.b32.xlu0 %v168, 8
    %v957 = vpop.permute.xlu0 %956
    %958 = vrot.lane.b32.xlu0 %v169, 8
    %v959 = vpop.permute.xlu0 %958
    %960 = vrot.lane.b32.xlu0 %v170, 8
    %v961 = vpop.permute.xlu0 %960
    %962 = vrot.lane.b32.xlu0 %v171, 8
    %v963 = vpop.permute.xlu0 %962
    %964 = vrot.lane.b32.xlu0 %v172, 8
    %v965 = vpop.permute.xlu0 %964
    %966 = vrot.lane.b32.xlu0 %v173, 8
    %v967 = vpop.permute.xlu0 %966
    %968 = vrot.lane.b32.xlu0 %v174, 8
    %v969 = vpop.permute.xlu0 %968
    %970 = vrot.lane.b32.xlu0 %v175, 8
    %v971 = vpop.permute.xlu0 %970
    %972 = vrot.lane.b32.xlu0 %v176, 8
    %v973 = vpop.permute.xlu0 %972
    %974 = vrot.lane.b32.xlu0 %v177, 8
    %v975 = vpop.permute.xlu0 %974
    %976 = vrot.lane.b32.xlu0 %v178, 8
    %v977 = vpop.permute.xlu0 %976
    %978 = vrot.lane.b32.xlu0 %v179, 8
    %v979 = vpop.permute.xlu0 %978
    %980 = vrot.lane.b32.xlu0 %v180, 8
    %v981 = vpop.permute.xlu0 %980
    %982 = vrot.lane.b32.xlu0 %v181, 8
    %v983 = vpop.permute.xlu0 %982
    %984 = vrot.lane.b32.xlu0 %v182, 8
    %v985 = vpop.permute.xlu0 %984
    %986 = vrot.lane.b32.xlu0 %v183, 8
    %v987 = vpop.permute.xlu0 %986
    %988 = vrot.lane.b32.xlu0 %v184, 8
    %v989 = vpop.permute.xlu0 %988
    %990 = vrot.lane.b32.xlu0 %v185, 8
    %v991 = vpop.permute.xlu0 %990
    %992 = vrot.lane.b32.xlu0 %v186, 8
    %v993 = vpop.permute.xlu0 %992
    %994 = vrot.lane.b32.xlu0 %v187, 8
    %v995 = vpop.permute.xlu0 %994
    %996 = vrot.lane.b32.xlu0 %v188, 8
    %v997 = vpop.permute.xlu0 %996
    %998 = vrot.lane.b32.xlu0 %v189, 8
    %v999 = vpop.permute.xlu0 %998
    %1000 = vrot.lane.b32.xlu0 %v190, 8
    %v1001 = vpop.permute.xlu0 %1000
    %1002 = vrot.lane.b32.xlu0 %v191, 8
    %v1003 = vpop.permute.xlu0 %1002
    %1004 = vrot.lane.b32.xlu0 %v192, 8
    %v1005 = vpop.permute.xlu0 %1004
    %1006 = vrot.lane.b32.xlu0 %v193, 8
    %v1007 = vpop.permute.xlu0 %1006
    %1008 = vrot.lane.b32.xlu0 %v194, 8
    %v1009 = vpop.permute.xlu0 %1008
    %1010 = vrot.lane.b32.xlu0 %v195, 8
    %v1011 = vpop.permute.xlu0 %1010
    %1012 = vrot.lane.b32.xlu0 %v196, 8
    %v1013 = vpop.permute.xlu0 %1012
    %1014 = vrot.lane.b32.xlu0 %v197, 8
    %v1015 = vpop.permute.xlu0 %1014
    %1016 = vrot.lane.b32.xlu0 %v198, 8
    %v1017 = vpop.permute.xlu0 %1016
    %1018 = vrot.lane.b32.xlu0 %v199, 8
    %v1019 = vpop.permute.xlu0 %1018
    %1020 = vrot.lane.b32.xlu0 %v200, 8
    %v1021 = vpop.permute.xlu0 %1020
    %1022 = vrot.lane.b32.xlu0 %v201, 8
    %v1023 = vpop.permute.xlu0 %1022
    %1024 = vrot.lane.b32.xlu0 %v202, 8
    %v1025 = vpop.permute.xlu0 %1024
    %1026 = vrot.lane.b32.xlu0 %v203, 8
    %v1027 = vpop.permute.xlu0 %1026
    %1028 = vrot.lane.b32.xlu0 %v204, 8
    %v1029 = vpop.permute.xlu0 %1028
    %1030 = vrot.lane.b32.xlu0 %v205, 8
    %v1031 = vpop.permute.xlu0 %1030
    %1032 = vrot.lane.b32.xlu0 %v206, 8
    %v1033 = vpop.permute.xlu0 %1032
    %1034 = vrot.lane.b32.xlu0 %v207, 8
    %v1035 = vpop.permute.xlu0 %1034
    %1036 = vrot.lane.b32.xlu0 %v208, 8
    %v1037 = vpop.permute.xlu0 %1036
    %1038 = vrot.lane.b32.xlu0 %v209, 8
    %v1039 = vpop.permute.xlu0 %1038
    %1040 = vrot.lane.b32.xlu0 %v210, 8
    %v1041 = vpop.permute.xlu0 %1040
    %1042 = vrot.lane.b32.xlu0 %v211, 8
    %v1043 = vpop.permute.xlu0 %1042
    %1044 = vrot.lane.b32.xlu0 %v212, 8
    %v1045 = vpop.permute.xlu0 %1044
    %1046 = vrot.lane.b32.xlu0 %v213, 8
    %v1047 = vpop.permute.xlu0 %1046
    %1176 = vrot.lane.b32.xlu0 %v215, 12
    %v1177 = vpop.permute.xlu0 %1176
    %1178 = vrot.lane.b32.xlu0 %v216, 12
    %v1179 = vpop.permute.xlu0 %1178
    %1180 = vrot.lane.b32.xlu0 %v217, 12
    %v1181 = vpop.permute.xlu0 %1180
    %1182 = vrot.lane.b32.xlu0 %v218, 12
    %v1183 = vpop.permute.xlu0 %1182
    %1184 = vrot.lane.b32.xlu0 %v219, 12
    %v1185 = vpop.permute.xlu0 %1184
    %1186 = vrot.lane.b32.xlu0 %v220, 12
    %v1187 = vpop.permute.xlu0 %1186
    %1188 = vrot.lane.b32.xlu0 %v221, 12
    %v1189 = vpop.permute.xlu0 %1188
    %1190 = vrot.lane.b32.xlu0 %v222, 12
    %v1191 = vpop.permute.xlu0 %1190
    %1192 = vrot.lane.b32.xlu0 %v223, 12
    %v1193 = vpop.permute.xlu0 %1192
    %1194 = vrot.lane.b32.xlu0 %v224, 12
    %v1195 = vpop.permute.xlu0 %1194
    %1196 = vrot.lane.b32.xlu0 %v225, 12
    %v1197 = vpop.permute.xlu0 %1196
    %1198 = vrot.lane.b32.xlu0 %v226, 12
    %v1199 = vpop.permute.xlu0 %1198
    %1200 = vrot.lane.b32.xlu0 %v227, 12
    %v1201 = vpop.permute.xlu0 %1200
    %1202 = vrot.lane.b32.xlu0 %v228, 12
    %v1203 = vpop.permute.xlu0 %1202
    %1204 = vrot.lane.b32.xlu0 %v229, 12
    %v1205 = vpop.permute.xlu0 %1204
    %1206 = vrot.lane.b32.xlu0 %v230, 12
    %v1207 = vpop.permute.xlu0 %1206
    %1208 = vrot.lane.b32.xlu0 %v231, 12
    %v1209 = vpop.permute.xlu0 %1208
    %1210 = vrot.lane.b32.xlu0 %v232, 12
    %v1211 = vpop.permute.xlu0 %1210
    %1212 = vrot.lane.b32.xlu0 %v233, 12
    %v1213 = vpop.permute.xlu0 %1212
    %1214 = vrot.lane.b32.xlu0 %v234, 12
    %v1215 = vpop.permute.xlu0 %1214
    %1216 = vrot.lane.b32.xlu0 %v235, 12
    %v1217 = vpop.permute.xlu0 %1216
    %1218 = vrot.lane.b32.xlu0 %v236, 12
    %v1219 = vpop.permute.xlu0 %1218
    %1220 = vrot.lane.b32.xlu0 %v237, 12
    %v1221 = vpop.permute.xlu0 %1220
    %1222 = vrot.lane.b32.xlu0 %v238, 12
    %v1223 = vpop.permute.xlu0 %1222
    %1224 = vrot.lane.b32.xlu0 %v239, 12
    %v1225 = vpop.permute.xlu0 %1224
    %1226 = vrot.lane.b32.xlu0 %v240, 12
    %v1227 = vpop.permute.xlu0 %1226
    %1228 = vrot.lane.b32.xlu0 %v241, 12
    %v1229 = vpop.permute.xlu0 %1228
    %1230 = vrot.lane.b32.xlu0 %v242, 12
    %v1231 = vpop.permute.xlu0 %1230
    %1232 = vrot.lane.b32.xlu0 %v243, 12
    %v1233 = vpop.permute.xlu0 %1232
    %1234 = vrot.lane.b32.xlu0 %v244, 12
    %v1235 = vpop.permute.xlu0 %1234
    %1236 = vrot.lane.b32.xlu0 %v245, 12
    %v1237 = vpop.permute.xlu0 %1236
    %1238 = vrot.lane.b32.xlu0 %v246, 12
    %v1239 = vpop.permute.xlu0 %1238
    %1240 = vrot.lane.b32.xlu0 %v247, 12
    %v1241 = vpop.permute.xlu0 %1240
    %1242 = vrot.lane.b32.xlu0 %v248, 12
    %v1243 = vpop.permute.xlu0 %1242
    %1244 = vrot.lane.b32.xlu0 %v249, 12
    %v1245 = vpop.permute.xlu0 %1244
    %1246 = vrot.lane.b32.xlu0 %v250, 12
    %v1247 = vpop.permute.xlu0 %1246
    %1248 = vrot.lane.b32.xlu0 %v251, 12
    %v1249 = vpop.permute.xlu0 %1248
    %1250 = vrot.lane.b32.xlu0 %v252, 12
    %v1251 = vpop.permute.xlu0 %1250
    %1252 = vrot.lane.b32.xlu0 %v253, 12
    %v1253 = vpop.permute.xlu0 %1252
    %1254 = vrot.lane.b32.xlu0 %v254, 12
    %v1255 = vpop.permute.xlu0 %1254
    %1256 = vrot.lane.b32.xlu0 %v255, 12
    %v1257 = vpop.permute.xlu0 %1256
    %1258 = vrot.lane.b32.xlu0 %v256, 12
    %v1259 = vpop.permute.xlu0 %1258
    %1260 = vrot.lane.b32.xlu0 %v257, 12
    %v1261 = vpop.permute.xlu0 %1260
    %1262 = vrot.lane.b32.xlu0 %v258, 12
    %v1263 = vpop.permute.xlu0 %1262
    %1264 = vrot.lane.b32.xlu0 %v259, 12
    %v1265 = vpop.permute.xlu0 %1264
    %1266 = vrot.lane.b32.xlu0 %v260, 12
    %v1267 = vpop.permute.xlu0 %1266
    %1268 = vrot.lane.b32.xlu0 %v261, 12
    %v1269 = vpop.permute.xlu0 %1268
    %1270 = vrot.lane.b32.xlu0 %v262, 12
    %v1271 = vpop.permute.xlu0 %1270
    %1272 = vrot.lane.b32.xlu0 %v263, 12
    %v1273 = vpop.permute.xlu0 %1272
    %1274 = vrot.lane.b32.xlu0 %v264, 12
    %v1275 = vpop.permute.xlu0 %1274
    %1276 = vrot.lane.b32.xlu0 %v265, 12
    %v1277 = vpop.permute.xlu0 %1276
    %1278 = vrot.lane.b32.xlu0 %v266, 12
    %v1279 = vpop.permute.xlu0 %1278
    %1280 = vrot.lane.b32.xlu0 %v267, 12
    %v1281 = vpop.permute.xlu0 %1280
    %1282 = vrot.lane.b32.xlu0 %v268, 12
    %v1283 = vpop.permute.xlu0 %1282
    %1284 = vrot.lane.b32.xlu0 %v269, 12
    %v1285 = vpop.permute.xlu0 %1284
    %1286 = vrot.lane.b32.xlu0 %v270, 12
    %v1287 = vpop.permute.xlu0 %1286
    %1288 = vrot.lane.b32.xlu0 %v271, 12
    %v1289 = vpop.permute.xlu0 %1288
    %1290 = vrot.lane.b32.xlu0 %v272, 12
    %v1291 = vpop.permute.xlu0 %1290
    %1292 = vrot.lane.b32.xlu0 %v273, 12
    %v1293 = vpop.permute.xlu0 %1292
    %1294 = vrot.lane.b32.xlu0 %v274, 12
    %v1295 = vpop.permute.xlu0 %1294
    %1296 = vrot.lane.b32.xlu0 %v275, 12
    %v1297 = vpop.permute.xlu0 %1296
    %1298 = vrot.lane.b32.xlu0 %v276, 12
    %v1299 = vpop.permute.xlu0 %1298
    %1300 = vrot.lane.b32.xlu0 %v277, 12
    %v1301 = vpop.permute.xlu0 %1300
    %1302 = vrot.lane.b32.xlu0 %v278, 12
    %v1303 = vpop.permute.xlu0 %1302
    %1432 = vrot.lane.b32.xlu0 %v279, 16
    %v1433 = vpop.permute.xlu0 %1432
    %1434 = vrot.lane.b32.xlu0 %v280, 16
    %v1435 = vpop.permute.xlu0 %1434
    %1436 = vrot.lane.b32.xlu0 %v281, 16
    %v1437 = vpop.permute.xlu0 %1436
    %1438 = vrot.lane.b32.xlu0 %v282, 16
    %v1439 = vpop.permute.xlu0 %1438
    %1440 = vrot.lane.b32.xlu0 %v283, 16
    %v1441 = vpop.permute.xlu0 %1440
    %1442 = vrot.lane.b32.xlu0 %v284, 16
    %v1443 = vpop.permute.xlu0 %1442
    %1444 = vrot.lane.b32.xlu0 %v285, 16
    %v1445 = vpop.permute.xlu0 %1444
    %1446 = vrot.lane.b32.xlu0 %v286, 16
    %v1447 = vpop.permute.xlu0 %1446
    %1448 = vrot.lane.b32.xlu0 %v287, 16
    %v1449 = vpop.permute.xlu0 %1448
    %1450 = vrot.lane.b32.xlu0 %v288, 16
    %v1451 = vpop.permute.xlu0 %1450
    %1452 = vrot.lane.b32.xlu0 %v289, 16
    %v1453 = vpop.permute.xlu0 %1452
    %1454 = vrot.lane.b32.xlu0 %v290, 16
    %v1455 = vpop.permute.xlu0 %1454
    %1456 = vrot.lane.b32.xlu0 %v291, 16
    %v1457 = vpop.permute.xlu0 %1456
    %1458 = vrot.lane.b32.xlu0 %v292, 16
    %v1459 = vpop.permute.xlu0 %1458
    %1460 = vrot.lane.b32.xlu0 %v293, 16
    %v1461 = vpop.permute.xlu0 %1460
    %1462 = vrot.lane.b32.xlu0 %v294, 16
    %v1463 = vpop.permute.xlu0 %1462
    %1464 = vrot.lane.b32.xlu0 %v295, 16
    %v1465 = vpop.permute.xlu0 %1464
    %1466 = vrot.lane.b32.xlu0 %v296, 16
    %v1467 = vpop.permute.xlu0 %1466
    %1468 = vrot.lane.b32.xlu0 %v297, 16
    %v1469 = vpop.permute.xlu0 %1468
    %1470 = vrot.lane.b32.xlu0 %v298, 16
    %v1471 = vpop.permute.xlu0 %1470
    %1472 = vrot.lane.b32.xlu0 %v299, 16
    %v1473 = vpop.permute.xlu0 %1472
    %1474 = vrot.lane.b32.xlu0 %v300, 16
    %v1475 = vpop.permute.xlu0 %1474
    %1476 = vrot.lane.b32.xlu0 %v301, 16
    %v1477 = vpop.permute.xlu0 %1476
    %1478 = vrot.lane.b32.xlu0 %v302, 16
    %v1479 = vpop.permute.xlu0 %1478
    %1480 = vrot.lane.b32.xlu0 %v303, 16
    %v1481 = vpop.permute.xlu0 %1480
    %1482 = vrot.lane.b32.xlu0 %v304, 16
    %v1483 = vpop.permute.xlu0 %1482
    %1484 = vrot.lane.b32.xlu0 %v305, 16
    %v1485 = vpop.permute.xlu0 %1484
    %1486 = vrot.lane.b32.xlu0 %v306, 16
    %v1487 = vpop.permute.xlu0 %1486
    %1488 = vrot.lane.b32.xlu0 %v307, 16
    %v1489 = vpop.permute.xlu0 %1488
    %1490 = vrot.lane.b32.xlu0 %v308, 16
    %v1491 = vpop.permute.xlu0 %1490
    %1492 = vrot.lane.b32.xlu0 %v309, 16
    %v1493 = vpop.permute.xlu0 %1492
    %1494 = vrot.lane.b32.xlu0 %v310, 16
    %v1495 = vpop.permute.xlu0 %1494
    %1496 = vrot.lane.b32.xlu0 %v311, 16
    %v1497 = vpop.permute.xlu0 %1496
    %1498 = vrot.lane.b32.xlu0 %v312, 16
    %v1499 = vpop.permute.xlu0 %1498
    %1500 = vrot.lane.b32.xlu0 %v313, 16
    %v1501 = vpop.permute.xlu0 %1500
    %1502 = vrot.lane.b32.xlu0 %v314, 16
    %v1503 = vpop.permute.xlu0 %1502
    %1504 = vrot.lane.b32.xlu0 %v315, 16
    %v1505 = vpop.permute.xlu0 %1504
    %1506 = vrot.lane.b32.xlu0 %v316, 16
    %v1507 = vpop.permute.xlu0 %1506
    %1508 = vrot.lane.b32.xlu0 %v317, 16
    %v1509 = vpop.permute.xlu0 %1508
    %1510 = vrot.lane.b32.xlu0 %v318, 16
    %v1511 = vpop.permute.xlu0 %1510
    %1512 = vrot.lane.b32.xlu0 %v319, 16
    %v1513 = vpop.permute.xlu0 %1512
    %1514 = vrot.lane.b32.xlu0 %v320, 16
    %v1515 = vpop.permute.xlu0 %1514
    %1516 = vrot.lane.b32.xlu0 %v321, 16
    %v1517 = vpop.permute.xlu0 %1516
    %1518 = vrot.lane.b32.xlu0 %v322, 16
    %v1519 = vpop.permute.xlu0 %1518
    %1520 = vrot.lane.b32.xlu0 %v323, 16
    %v1521 = vpop.permute.xlu0 %1520
    %1522 = vrot.lane.b32.xlu0 %v324, 16
    %v1523 = vpop.permute.xlu0 %1522
    %1524 = vrot.lane.b32.xlu0 %v325, 16
    %v1525 = vpop.permute.xlu0 %1524
    %1526 = vrot.lane.b32.xlu0 %v326, 16
    %v1527 = vpop.permute.xlu0 %1526
    %1528 = vrot.lane.b32.xlu0 %v327, 16
    %v1529 = vpop.permute.xlu0 %1528
    %1530 = vrot.lane.b32.xlu0 %v328, 16
    %v1531 = vpop.permute.xlu0 %1530
    %1532 = vrot.lane.b32.xlu0 %v329, 16
    %v1533 = vpop.permute.xlu0 %1532
    %1534 = vrot.lane.b32.xlu0 %v330, 16
    %v1535 = vpop.permute.xlu0 %1534
    %1536 = vrot.lane.b32.xlu0 %v331, 16
    %v1537 = vpop.permute.xlu0 %1536
    %1538 = vrot.lane.b32.xlu0 %v332, 16
    %v1539 = vpop.permute.xlu0 %1538
    %1540 = vrot.lane.b32.xlu0 %v333, 16
    %v1541 = vpop.permute.xlu0 %1540
    %1542 = vrot.lane.b32.xlu0 %v334, 16
    %v1543 = vpop.permute.xlu0 %1542
    %1544 = vrot.lane.b32.xlu0 %v335, 16
    %v1545 = vpop.permute.xlu0 %1544
    %1546 = vrot.lane.b32.xlu0 %v336, 16
    %v1547 = vpop.permute.xlu0 %1546
    %1548 = vrot.lane.b32.xlu0 %v337, 16
    %v1549 = vpop.permute.xlu0 %1548
    %1550 = vrot.lane.b32.xlu0 %v338, 16
    %v1551 = vpop.permute.xlu0 %1550
    %1552 = vrot.lane.b32.xlu0 %v339, 16
    %v1553 = vpop.permute.xlu0 %1552
    %1554 = vrot.lane.b32.xlu0 %v340, 16
    %v1555 = vpop.permute.xlu0 %1554
    %1556 = vrot.lane.b32.xlu0 %v341, 16
    %v1557 = vpop.permute.xlu0 %1556
    %1558 = vrot.lane.b32.xlu0 %v342, 16
    %v1559 = vpop.permute.xlu0 %1558
    %1688 = vrot.lane.b32.xlu0 %v343, 20
    %v1689 = vpop.permute.xlu0 %1688
    %1690 = vrot.lane.b32.xlu0 %v344, 20
    %v1691 = vpop.permute.xlu0 %1690
    %1692 = vrot.lane.b32.xlu0 %v345, 20
    %v1693 = vpop.permute.xlu0 %1692
    %1694 = vrot.lane.b32.xlu0 %v346, 20
    %v1695 = vpop.permute.xlu0 %1694
    %1696 = vrot.lane.b32.xlu0 %v347, 20
    %v1697 = vpop.permute.xlu0 %1696
    %1698 = vrot.lane.b32.xlu0 %v348, 20
    %v1699 = vpop.permute.xlu0 %1698
    %1700 = vrot.lane.b32.xlu0 %v349, 20
    %v1701 = vpop.permute.xlu0 %1700
    %1702 = vrot.lane.b32.xlu0 %v350, 20
    %v1703 = vpop.permute.xlu0 %1702
    %1704 = vrot.lane.b32.xlu0 %v351, 20
    %v1705 = vpop.permute.xlu0 %1704
    %1706 = vrot.lane.b32.xlu0 %v352, 20
    %v1707 = vpop.permute.xlu0 %1706
    %1708 = vrot.lane.b32.xlu0 %v353, 20
    %v1709 = vpop.permute.xlu0 %1708
    %1710 = vrot.lane.b32.xlu0 %v354, 20
    %v1711 = vpop.permute.xlu0 %1710
    %1712 = vrot.lane.b32.xlu0 %v355, 20
    %v1713 = vpop.permute.xlu0 %1712
    %1714 = vrot.lane.b32.xlu0 %v356, 20
    %v1715 = vpop.permute.xlu0 %1714
    %1716 = vrot.lane.b32.xlu0 %v357, 20
    %v1717 = vpop.permute.xlu0 %1716
    %1718 = vrot.lane.b32.xlu0 %v358, 20
    %v1719 = vpop.permute.xlu0 %1718
    %1720 = vrot.lane.b32.xlu0 %v359, 20
    %v1721 = vpop.permute.xlu0 %1720
    %1722 = vrot.lane.b32.xlu0 %v360, 20
    %v1723 = vpop.permute.xlu0 %1722
    %1724 = vrot.lane.b32.xlu0 %v361, 20
    %v1725 = vpop.permute.xlu0 %1724
    %1726 = vrot.lane.b32.xlu0 %v362, 20
    %v1727 = vpop.permute.xlu0 %1726
    %1728 = vrot.lane.b32.xlu0 %v363, 20
    %v1729 = vpop.permute.xlu0 %1728
    %1730 = vrot.lane.b32.xlu0 %v364, 20
    %v1731 = vpop.permute.xlu0 %1730
    %1732 = vrot.lane.b32.xlu0 %v365, 20
    %v1733 = vpop.permute.xlu0 %1732
    %1734 = vrot.lane.b32.xlu0 %v366, 20
    %v1735 = vpop.permute.xlu0 %1734
    %1736 = vrot.lane.b32.xlu0 %v367, 20
    %v1737 = vpop.permute.xlu0 %1736
    %1738 = vrot.lane.b32.xlu0 %v368, 20
    %v1739 = vpop.permute.xlu0 %1738
    %1740 = vrot.lane.b32.xlu0 %v369, 20
    %v1741 = vpop.permute.xlu0 %1740
    %1742 = vrot.lane.b32.xlu0 %v370, 20
    %v1743 = vpop.permute.xlu0 %1742
    %1744 = vrot.lane.b32.xlu0 %v371, 20
    %v1745 = vpop.permute.xlu0 %1744
    %1746 = vrot.lane.b32.xlu0 %v372, 20
    %v1747 = vpop.permute.xlu0 %1746
    %1748 = vrot.lane.b32.xlu0 %v373, 20
    %v1749 = vpop.permute.xlu0 %1748
    %1750 = vrot.lane.b32.xlu0 %v374, 20
    %v1751 = vpop.permute.xlu0 %1750
    %1752 = vrot.lane.b32.xlu0 %v375, 20
    %v1753 = vpop.permute.xlu0 %1752
    %1754 = vrot.lane.b32.xlu0 %v376, 20
    %v1755 = vpop.permute.xlu0 %1754
    %1756 = vrot.lane.b32.xlu0 %v377, 20
    %v1757 = vpop.permute.xlu0 %1756
    %1758 = vrot.lane.b32.xlu0 %v378, 20
    %v1759 = vpop.permute.xlu0 %1758
    %1760 = vrot.lane.b32.xlu0 %v379, 20
    %v1761 = vpop.permute.xlu0 %1760
    %1762 = vrot.lane.b32.xlu0 %v380, 20
    %v1763 = vpop.permute.xlu0 %1762
    %1764 = vrot.lane.b32.xlu0 %v381, 20
    %v1765 = vpop.permute.xlu0 %1764
    %1766 = vrot.lane.b32.xlu0 %v382, 20
    %v1767 = vpop.permute.xlu0 %1766
    %1768 = vrot.lane.b32.xlu0 %v383, 20
    %v1769 = vpop.permute.xlu0 %1768
    %1770 = vrot.lane.b32.xlu0 %v384, 20
    %v1771 = vpop.permute.xlu0 %1770
    %1772 = vrot.lane.b32.xlu0 %v385, 20
    %v1773 = vpop.permute.xlu0 %1772
    %1774 = vrot.lane.b32.xlu0 %v386, 20
    %v1775 = vpop.permute.xlu0 %1774
    %1776 = vrot.lane.b32.xlu0 %v387, 20
    %v1777 = vpop.permute.xlu0 %1776
    %1778 = vrot.lane.b32.xlu0 %v388, 20
    %v1779 = vpop.permute.xlu0 %1778
    %1780 = vrot.lane.b32.xlu0 %v389, 20
    %v1781 = vpop.permute.xlu0 %1780
    %1782 = vrot.lane.b32.xlu0 %v390, 20
    %v1783 = vpop.permute.xlu0 %1782
    %1784 = vrot.lane.b32.xlu0 %v391, 20
    %v1785 = vpop.permute.xlu0 %1784
    %1786 = vrot.lane.b32.xlu0 %v392, 20
    %v1787 = vpop.permute.xlu0 %1786
    %1788 = vrot.lane.b32.xlu0 %v393, 20
    %v1789 = vpop.permute.xlu0 %1788
    %1790 = vrot.lane.b32.xlu0 %v394, 20
    %v1791 = vpop.permute.xlu0 %1790
    %1792 = vrot.lane.b32.xlu0 %v395, 20
    %v1793 = vpop.permute.xlu0 %1792
    %1794 = vrot.lane.b32.xlu0 %v396, 20
    %v1795 = vpop.permute.xlu0 %1794
    %1796 = vrot.lane.b32.xlu0 %v397, 20
    %v1797 = vpop.permute.xlu0 %1796
    %1798 = vrot.lane.b32.xlu0 %v398, 20
    %v1799 = vpop.permute.xlu0 %1798
    %1800 = vrot.lane.b32.xlu0 %v399, 20
    %v1801 = vpop.permute.xlu0 %1800
    %1802 = vrot.lane.b32.xlu0 %v400, 20
    %v1803 = vpop.permute.xlu0 %1802
    %1804 = vrot.lane.b32.xlu0 %v401, 20
    %v1805 = vpop.permute.xlu0 %1804
    %1806 = vrot.lane.b32.xlu0 %v402, 20
    %v1807 = vpop.permute.xlu0 %1806
    %1808 = vrot.lane.b32.xlu0 %v403, 20
    %v1809 = vpop.permute.xlu0 %1808
    %1810 = vrot.lane.b32.xlu0 %v404, 20
    %v1811 = vpop.permute.xlu0 %1810
    %1812 = vrot.lane.b32.xlu0 %v405, 20
    %v1813 = vpop.permute.xlu0 %1812
    %1814 = vrot.lane.b32.xlu0 %v406, 20
    %v1815 = vpop.permute.xlu0 %1814
    %1944 = vrot.lane.b32.xlu0 %v408, 24
    %v1945 = vpop.permute.xlu0 %1944
    %1946 = vrot.lane.b32.xlu0 %v409, 24
    %v1947 = vpop.permute.xlu0 %1946
    %1948 = vrot.lane.b32.xlu0 %v410, 24
    %v1949 = vpop.permute.xlu0 %1948
    %1950 = vrot.lane.b32.xlu0 %v411, 24
    %v1951 = vpop.permute.xlu0 %1950
    %1952 = vrot.lane.b32.xlu0 %v412, 24
    %v1953 = vpop.permute.xlu0 %1952
    %1954 = vrot.lane.b32.xlu0 %v413, 24
    %v1955 = vpop.permute.xlu0 %1954
    %1956 = vrot.lane.b32.xlu0 %v414, 24
    %v1957 = vpop.permute.xlu0 %1956
    %1958 = vrot.lane.b32.xlu0 %v415, 24
    %v1959 = vpop.permute.xlu0 %1958
    %1960 = vrot.lane.b32.xlu0 %v416, 24
    %v1961 = vpop.permute.xlu0 %1960
    %1962 = vrot.lane.b32.xlu0 %v417, 24
    %v1963 = vpop.permute.xlu0 %1962
    %1964 = vrot.lane.b32.xlu0 %v418, 24
    %v1965 = vpop.permute.xlu0 %1964
    %1966 = vrot.lane.b32.xlu0 %v419, 24
    %v1967 = vpop.permute.xlu0 %1966
    %1968 = vrot.lane.b32.xlu0 %v420, 24
    %v1969 = vpop.permute.xlu0 %1968
    %1970 = vrot.lane.b32.xlu0 %v421, 24
    %v1971 = vpop.permute.xlu0 %1970
    %1972 = vrot.lane.b32.xlu0 %v422, 24
    %v1973 = vpop.permute.xlu0 %1972
    %1974 = vrot.lane.b32.xlu0 %v423, 24
    %v1975 = vpop.permute.xlu0 %1974
    %1976 = vrot.lane.b32.xlu0 %v424, 24
    %v1977 = vpop.permute.xlu0 %1976
    %1978 = vrot.lane.b32.xlu0 %v425, 24
    %v1979 = vpop.permute.xlu0 %1978
    %1980 = vrot.lane.b32.xlu0 %v426, 24
    %v1981 = vpop.permute.xlu0 %1980
    %1982 = vrot.lane.b32.xlu0 %v427, 24
    %v1983 = vpop.permute.xlu0 %1982
    %1984 = vrot.lane.b32.xlu0 %v428, 24
    %v1985 = vpop.permute.xlu0 %1984
    %1986 = vrot.lane.b32.xlu0 %v429, 24
    %v1987 = vpop.permute.xlu0 %1986
    %1988 = vrot.lane.b32.xlu0 %v430, 24
    %v1989 = vpop.permute.xlu0 %1988
    %1990 = vrot.lane.b32.xlu0 %v431, 24
    %v1991 = vpop.permute.xlu0 %1990
    %1992 = vrot.lane.b32.xlu0 %v432, 24
    %v1993 = vpop.permute.xlu0 %1992
    %1994 = vrot.lane.b32.xlu0 %v433, 24
    %v1995 = vpop.permute.xlu0 %1994
    %1996 = vrot.lane.b32.xlu0 %v434, 24
    %v1997 = vpop.permute.xlu0 %1996
    %1998 = vrot.lane.b32.xlu0 %v435, 24
    %v1999 = vpop.permute.xlu0 %1998
    %2000 = vrot.lane.b32.xlu0 %v436, 24
    %v2001 = vpop.permute.xlu0 %2000
    %2002 = vrot.lane.b32.xlu0 %v437, 24
    %v2003 = vpop.permute.xlu0 %2002
    %2004 = vrot.lane.b32.xlu0 %v438, 24
    %v2005 = vpop.permute.xlu0 %2004
    %2006 = vrot.lane.b32.xlu0 %v439, 24
    %v2007 = vpop.permute.xlu0 %2006
    %2008 = vrot.lane.b32.xlu0 %v440, 24
    %v2009 = vpop.permute.xlu0 %2008
    %2010 = vrot.lane.b32.xlu0 %v441, 24
    %v2011 = vpop.permute.xlu0 %2010
    %2012 = vrot.lane.b32.xlu0 %v442, 24
    %v2013 = vpop.permute.xlu0 %2012
    %2014 = vrot.lane.b32.xlu0 %v443, 24
    %v2015 = vpop.permute.xlu0 %2014
    %2016 = vrot.lane.b32.xlu0 %v444, 24
    %v2017 = vpop.permute.xlu0 %2016
    %2018 = vrot.lane.b32.xlu0 %v445, 24
    %v2019 = vpop.permute.xlu0 %2018
    %2020 = vrot.lane.b32.xlu0 %v446, 24
    %v2021 = vpop.permute.xlu0 %2020
    %2022 = vrot.lane.b32.xlu0 %v447, 24
    %v2023 = vpop.permute.xlu0 %2022
    %2024 = vrot.lane.b32.xlu0 %v448, 24
    %v2025 = vpop.permute.xlu0 %2024
    %2026 = vrot.lane.b32.xlu0 %v449, 24
    %v2027 = vpop.permute.xlu0 %2026
    %2028 = vrot.lane.b32.xlu0 %v450, 24
    %v2029 = vpop.permute.xlu0 %2028
    %2030 = vrot.lane.b32.xlu0 %v451, 24
    %v2031 = vpop.permute.xlu0 %2030
    %2032 = vrot.lane.b32.xlu0 %v452, 24
    %v2033 = vpop.permute.xlu0 %2032
    %2034 = vrot.lane.b32.xlu0 %v453, 24
    %v2035 = vpop.permute.xlu0 %2034
    %2036 = vrot.lane.b32.xlu0 %v454, 24
    %v2037 = vpop.permute.xlu0 %2036
    %2038 = vrot.lane.b32.xlu0 %v455, 24
    %v2039 = vpop.permute.xlu0 %2038
    %2040 = vrot.lane.b32.xlu0 %v456, 24
    %v2041 = vpop.permute.xlu0 %2040
    %2042 = vrot.lane.b32.xlu0 %v457, 24
    %v2043 = vpop.permute.xlu0 %2042
    %2044 = vrot.lane.b32.xlu0 %v458, 24
    %v2045 = vpop.permute.xlu0 %2044
    %2046 = vrot.lane.b32.xlu0 %v459, 24
    %v2047 = vpop.permute.xlu0 %2046
    %2048 = vrot.lane.b32.xlu0 %v460, 24
    %v2049 = vpop.permute.xlu0 %2048
    %2050 = vrot.lane.b32.xlu0 %v461, 24
    %v2051 = vpop.permute.xlu0 %2050
    %2052 = vrot.lane.b32.xlu0 %v462, 24
    %v2053 = vpop.permute.xlu0 %2052
    %2054 = vrot.lane.b32.xlu0 %v463, 24
    %v2055 = vpop.permute.xlu0 %2054
    %2056 = vrot.lane.b32.xlu0 %v464, 24
    %v2057 = vpop.permute.xlu0 %2056
    %2058 = vrot.lane.b32.xlu0 %v465, 24
    %v2059 = vpop.permute.xlu0 %2058
    %2060 = vrot.lane.b32.xlu0 %v466, 24
    %v2061 = vpop.permute.xlu0 %2060
    %2062 = vrot.lane.b32.xlu0 %v467, 24
    %v2063 = vpop.permute.xlu0 %2062
    %2064 = vrot.lane.b32.xlu0 %v468, 24
    %v2065 = vpop.permute.xlu0 %2064
    %2066 = vrot.lane.b32.xlu0 %v469, 24
    %v2067 = vpop.permute.xlu0 %2066
    %2068 = vrot.lane.b32.xlu0 %v470, 24
    %v2069 = vpop.permute.xlu0 %2068
    %2070 = vrot.lane.b32.xlu0 %v471, 24
    %v2071 = vpop.permute.xlu0 %2070
    %2200 = vrot.lane.b32.xlu0 %v472, 28
    %v2201 = vpop.permute.xlu0 %2200
    %2202 = vrot.lane.b32.xlu0 %v473, 28
    %v2203 = vpop.permute.xlu0 %2202
    %2204 = vrot.lane.b32.xlu0 %v474, 28
    %v2205 = vpop.permute.xlu0 %2204
    %2206 = vrot.lane.b32.xlu0 %v475, 28
    %v2207 = vpop.permute.xlu0 %2206
    %2208 = vrot.lane.b32.xlu0 %v476, 28
    %v2209 = vpop.permute.xlu0 %2208
    %2210 = vrot.lane.b32.xlu0 %v477, 28
    %v2211 = vpop.permute.xlu0 %2210
    %2212 = vrot.lane.b32.xlu0 %v478, 28
    %v2213 = vpop.permute.xlu0 %2212
    %2214 = vrot.lane.b32.xlu0 %v479, 28
    %v2215 = vpop.permute.xlu0 %2214
    %2216 = vrot.lane.b32.xlu0 %v480, 28
    %v2217 = vpop.permute.xlu0 %2216
    %2218 = vrot.lane.b32.xlu0 %v481, 28
    %v2219 = vpop.permute.xlu0 %2218
    %2220 = vrot.lane.b32.xlu0 %v482, 28
    %v2221 = vpop.permute.xlu0 %2220
    %2222 = vrot.lane.b32.xlu0 %v483, 28
    %v2223 = vpop.permute.xlu0 %2222
    %2224 = vrot.lane.b32.xlu0 %v484, 28
    %v2225 = vpop.permute.xlu0 %2224
    %2226 = vrot.lane.b32.xlu0 %v485, 28
    %v2227 = vpop.permute.xlu0 %2226
    %2228 = vrot.lane.b32.xlu0 %v486, 28
    %v2229 = vpop.permute.xlu0 %2228
    %2230 = vrot.lane.b32.xlu0 %v487, 28
    %v2231 = vpop.permute.xlu0 %2230
    %2232 = vrot.lane.b32.xlu0 %v488, 28
    %v2233 = vpop.permute.xlu0 %2232
    %2234 = vrot.lane.b32.xlu0 %v489, 28
    %v2235 = vpop.permute.xlu0 %2234
    %2236 = vrot.lane.b32.xlu0 %v490, 28
    %v2237 = vpop.permute.xlu0 %2236
    %2238 = vrot.lane.b32.xlu0 %v491, 28
    %v2239 = vpop.permute.xlu0 %2238
    %2240 = vrot.lane.b32.xlu0 %v492, 28
    %v2241 = vpop.permute.xlu0 %2240
    %2242 = vrot.lane.b32.xlu0 %v493, 28
    %v2243 = vpop.permute.xlu0 %2242
    %2244 = vrot.lane.b32.xlu0 %v494, 28
    %v2245 = vpop.permute.xlu0 %2244
    %2246 = vrot.lane.b32.xlu0 %v495, 28
    %v2247 = vpop.permute.xlu0 %2246
    %2248 = vrot.lane.b32.xlu0 %v496, 28
    %v2249 = vpop.permute.xlu0 %2248
    %2250 = vrot.lane.b32.xlu0 %v497, 28
    %v2251 = vpop.permute.xlu0 %2250
    %2252 = vrot.lane.b32.xlu0 %v498, 28
    %v2253 = vpop.permute.xlu0 %2252
    %2254 = vrot.lane.b32.xlu0 %v499, 28
    %v2255 = vpop.permute.xlu0 %2254
    %2256 = vrot.lane.b32.xlu0 %v500, 28
    %v2257 = vpop.permute.xlu0 %2256
    %2258 = vrot.lane.b32.xlu0 %v501, 28
    %v2259 = vpop.permute.xlu0 %2258
    %2260 = vrot.lane.b32.xlu0 %v502, 28
    %v2261 = vpop.permute.xlu0 %2260
    %2262 = vrot.lane.b32.xlu0 %v503, 28
    %v2263 = vpop.permute.xlu0 %2262
    %2264 = vrot.lane.b32.xlu0 %v504, 28
    %v2265 = vpop.permute.xlu0 %2264
    %2266 = vrot.lane.b32.xlu0 %v505, 28
    %v2267 = vpop.permute.xlu0 %2266
    %2268 = vrot.lane.b32.xlu0 %v506, 28
    %v2269 = vpop.permute.xlu0 %2268
    %2270 = vrot.lane.b32.xlu0 %v507, 28
    %v2271 = vpop.permute.xlu0 %2270
    %2272 = vrot.lane.b32.xlu0 %v508, 28
    %v2273 = vpop.permute.xlu0 %2272
    %2274 = vrot.lane.b32.xlu0 %v509, 28
    %v2275 = vpop.permute.xlu0 %2274
    %2276 = vrot.lane.b32.xlu0 %v510, 28
    %v2277 = vpop.permute.xlu0 %2276
    %2278 = vrot.lane.b32.xlu0 %v511, 28
    %v2279 = vpop.permute.xlu0 %2278
    %2280 = vrot.lane.b32.xlu0 %v512, 28
    %v2281 = vpop.permute.xlu0 %2280
    %2282 = vrot.lane.b32.xlu0 %v513, 28
    %v2283 = vpop.permute.xlu0 %2282
    %2284 = vrot.lane.b32.xlu0 %v514, 28
    %v2285 = vpop.permute.xlu0 %2284
    %2286 = vrot.lane.b32.xlu0 %v515, 28
    %v2287 = vpop.permute.xlu0 %2286
    %2288 = vrot.lane.b32.xlu0 %v516, 28
    %v2289 = vpop.permute.xlu0 %2288
    %2290 = vrot.lane.b32.xlu0 %v517, 28
    %v2291 = vpop.permute.xlu0 %2290
    %2292 = vrot.lane.b32.xlu0 %v518, 28
    %v2293 = vpop.permute.xlu0 %2292
    %2294 = vrot.lane.b32.xlu0 %v519, 28
    %v2295 = vpop.permute.xlu0 %2294
    %2296 = vrot.lane.b32.xlu0 %v520, 28
    %v2297 = vpop.permute.xlu0 %2296
    %2298 = vrot.lane.b32.xlu0 %v521, 28
    %v2299 = vpop.permute.xlu0 %2298
    %2300 = vrot.lane.b32.xlu0 %v522, 28
    %v2301 = vpop.permute.xlu0 %2300
    %2302 = vrot.lane.b32.xlu0 %v523, 28
    %v2303 = vpop.permute.xlu0 %2302
    %2304 = vrot.lane.b32.xlu0 %v524, 28
    %v2305 = vpop.permute.xlu0 %2304
    %2306 = vrot.lane.b32.xlu0 %v525, 28
    %v2307 = vpop.permute.xlu0 %2306
    %2308 = vrot.lane.b32.xlu0 %v526, 28
    %v2309 = vpop.permute.xlu0 %2308
    %2310 = vrot.lane.b32.xlu0 %v527, 28
    %v2311 = vpop.permute.xlu0 %2310
    %2312 = vrot.lane.b32.xlu0 %v528, 28
    %v2313 = vpop.permute.xlu0 %2312
    %2314 = vrot.lane.b32.xlu0 %v529, 28
    %v2315 = vpop.permute.xlu0 %2314
    %2316 = vrot.lane.b32.xlu0 %v530, 28
    %v2317 = vpop.permute.xlu0 %2316
    %2318 = vrot.lane.b32.xlu0 %v531, 28
    %v2319 = vpop.permute.xlu0 %2318
    %2320 = vrot.lane.b32.xlu0 %v532, 28
    %v2321 = vpop.permute.xlu0 %2320
    %2322 = vrot.lane.b32.xlu0 %v533, 28
    %v2323 = vpop.permute.xlu0 %2322
    %2324 = vrot.lane.b32.xlu0 %v534, 28
    %v2325 = vpop.permute.xlu0 %2324
    %2326 = vrot.lane.b32.xlu0 %v535, 28
    %v2327 = vpop.permute.xlu0 %2326
    %2456 = vrot.lane.b32.xlu0 %v536, 32
    %v2457 = vpop.permute.xlu0 %2456
    %2458 = vrot.lane.b32.xlu0 %v537, 32
    %v2459 = vpop.permute.xlu0 %2458
    %2460 = vrot.lane.b32.xlu0 %v538, 32
    %v2461 = vpop.permute.xlu0 %2460
    %2462 = vrot.lane.b32.xlu0 %v539, 32
    %v2463 = vpop.permute.xlu0 %2462
    %2464 = vrot.lane.b32.xlu0 %v540, 32
    %v2465 = vpop.permute.xlu0 %2464
    %2466 = vrot.lane.b32.xlu0 %v541, 32
    %v2467 = vpop.permute.xlu0 %2466
    %2468 = vrot.lane.b32.xlu0 %v542, 32
    %v2469 = vpop.permute.xlu0 %2468
    %2470 = vrot.lane.b32.xlu0 %v543, 32
    %v2471 = vpop.permute.xlu0 %2470
    %2472 = vrot.lane.b32.xlu0 %v544, 32
    %v2473 = vpop.permute.xlu0 %2472
    %2474 = vrot.lane.b32.xlu0 %v545, 32
    %v2475 = vpop.permute.xlu0 %2474
    %2476 = vrot.lane.b32.xlu0 %v546, 32
    %v2477 = vpop.permute.xlu0 %2476
    %2478 = vrot.lane.b32.xlu0 %v547, 32
    %v2479 = vpop.permute.xlu0 %2478
    %2480 = vrot.lane.b32.xlu0 %v548, 32
    %v2481 = vpop.permute.xlu0 %2480
    %2482 = vrot.lane.b32.xlu0 %v549, 32
    %v2483 = vpop.permute.xlu0 %2482
    %2484 = vrot.lane.b32.xlu0 %v550, 32
    %v2485 = vpop.permute.xlu0 %2484
    %2486 = vrot.lane.b32.xlu0 %v551, 32
    %v2487 = vpop.permute.xlu0 %2486
    %2488 = vrot.lane.b32.xlu0 %v552, 32
    %v2489 = vpop.permute.xlu0 %2488
    %2490 = vrot.lane.b32.xlu0 %v553, 32
    %v2491 = vpop.permute.xlu0 %2490
    %2492 = vrot.lane.b32.xlu0 %v554, 32
    %v2493 = vpop.permute.xlu0 %2492
    %2494 = vrot.lane.b32.xlu0 %v555, 32
    %v2495 = vpop.permute.xlu0 %2494
    %2496 = vrot.lane.b32.xlu0 %v556, 32
    %v2497 = vpop.permute.xlu0 %2496
    %2498 = vrot.lane.b32.xlu0 %v557, 32
    %v2499 = vpop.permute.xlu0 %2498
    %2500 = vrot.lane.b32.xlu0 %v558, 32
    %v2501 = vpop.permute.xlu0 %2500
    %2502 = vrot.lane.b32.xlu0 %v559, 32
    %v2503 = vpop.permute.xlu0 %2502
    %2504 = vrot.lane.b32.xlu0 %v560, 32
    %v2505 = vpop.permute.xlu0 %2504
    %2506 = vrot.lane.b32.xlu0 %v561, 32
    %v2507 = vpop.permute.xlu0 %2506
    %2508 = vrot.lane.b32.xlu0 %v562, 32
    %v2509 = vpop.permute.xlu0 %2508
    %2510 = vrot.lane.b32.xlu0 %v563, 32
    %v2511 = vpop.permute.xlu0 %2510
    %2512 = vrot.lane.b32.xlu0 %v564, 32
    %v2513 = vpop.permute.xlu0 %2512
    %2514 = vrot.lane.b32.xlu0 %v565, 32
    %v2515 = vpop.permute.xlu0 %2514
    %2516 = vrot.lane.b32.xlu0 %v566, 32
    %v2517 = vpop.permute.xlu0 %2516
    %2518 = vrot.lane.b32.xlu0 %v567, 32
    %v2519 = vpop.permute.xlu0 %2518
    %2520 = vrot.lane.b32.xlu0 %v568, 32
    %v2521 = vpop.permute.xlu0 %2520
    %2522 = vrot.lane.b32.xlu0 %v569, 32
    %v2523 = vpop.permute.xlu0 %2522
    %2524 = vrot.lane.b32.xlu0 %v570, 32
    %v2525 = vpop.permute.xlu0 %2524
    %2526 = vrot.lane.b32.xlu0 %v571, 32
    %v2527 = vpop.permute.xlu0 %2526
    %2528 = vrot.lane.b32.xlu0 %v572, 32
    %v2529 = vpop.permute.xlu0 %2528
    %2530 = vrot.lane.b32.xlu0 %v573, 32
    %v2531 = vpop.permute.xlu0 %2530
    %2532 = vrot.lane.b32.xlu0 %v574, 32
    %v2533 = vpop.permute.xlu0 %2532
    %2534 = vrot.lane.b32.xlu0 %v575, 32
    %v2535 = vpop.permute.xlu0 %2534
    %2536 = vrot.lane.b32.xlu0 %v576, 32
    %v2537 = vpop.permute.xlu0 %2536
    %2538 = vrot.lane.b32.xlu0 %v577, 32
    %v2539 = vpop.permute.xlu0 %2538
    %2540 = vrot.lane.b32.xlu0 %v578, 32
    %v2541 = vpop.permute.xlu0 %2540
    %2542 = vrot.lane.b32.xlu0 %v579, 32
    %v2543 = vpop.permute.xlu0 %2542
    %2544 = vrot.lane.b32.xlu0 %v580, 32
    %v2545 = vpop.permute.xlu0 %2544
    %2546 = vrot.lane.b32.xlu0 %v581, 32
    %v2547 = vpop.permute.xlu0 %2546
    %2548 = vrot.lane.b32.xlu0 %v582, 32
    %v2549 = vpop.permute.xlu0 %2548
    %2550 = vrot.lane.b32.xlu0 %v583, 32
    %v2551 = vpop.permute.xlu0 %2550
    %2552 = vrot.lane.b32.xlu0 %v584, 32
    %v2553 = vpop.permute.xlu0 %2552
    %2554 = vrot.lane.b32.xlu0 %v585, 32
    %v2555 = vpop.permute.xlu0 %2554
    %2556 = vrot.lane.b32.xlu0 %v586, 32
    %v2557 = vpop.permute.xlu0 %2556
    %2558 = vrot.lane.b32.xlu0 %v587, 32
    %v2559 = vpop.permute.xlu0 %2558
    %2560 = vrot.lane.b32.xlu0 %v588, 32
    %v2561 = vpop.permute.xlu0 %2560
    %2562 = vrot.lane.b32.xlu0 %v589, 32
    %v2563 = vpop.permute.xlu0 %2562
    %2564 = vrot.lane.b32.xlu0 %v590, 32
    %v2565 = vpop.permute.xlu0 %2564
    %2566 = vrot.lane.b32.xlu0 %v591, 32
    %v2567 = vpop.permute.xlu0 %2566
    %2568 = vrot.lane.b32.xlu0 %v592, 32
    %v2569 = vpop.permute.xlu0 %2568
    %2570 = vrot.lane.b32.xlu0 %v593, 32
    %v2571 = vpop.permute.xlu0 %2570
    %2572 = vrot.lane.b32.xlu0 %v594, 32
    %v2573 = vpop.permute.xlu0 %2572
    %2574 = vrot.lane.b32.xlu0 %v595, 32
    %v2575 = vpop.permute.xlu0 %2574
    %2576 = vrot.lane.b32.xlu0 %v596, 32
    %v2577 = vpop.permute.xlu0 %2576
    %2578 = vrot.lane.b32.xlu0 %v597, 32
    %v2579 = vpop.permute.xlu0 %2578
    %2580 = vrot.lane.b32.xlu0 %v598, 32
    %v2581 = vpop.permute.xlu0 %2580
    %2582 = vrot.lane.b32.xlu0 %v599, 32
    %v2583 = vpop.permute.xlu0 %2582
    %vm2648 = vcmask 31744
    %v2649 = vsel %vm2648, %v22, %v665
    %v2650 = vsel %vm2648, %v23, %v667
    %v2651 = vsel %vm2648, %v24, %v669
    %v2652 = vsel %vm2648, %v25, %v671
    %v2653 = vsel %vm2648, %v26, %v673
    %v2654 = vsel %vm2648, %v27, %v675
    %v2655 = vsel %vm2648, %v28, %v677
    %v2656 = vsel %vm2648, %v29, %v679
    %v2657 = vsel %vm2648, %v30, %v681
    %v2658 = vsel %vm2648, %v31, %v683
    %v2659 = vsel %vm2648, %v32, %v685
    %v2660 = vsel %vm2648, %v33, %v687
    %v2661 = vsel %vm2648, %v34, %v689
    %v2662 = vsel %vm2648, %v35, %v691
    %v2663 = vsel %vm2648, %v36, %v693
    %v2664 = vsel %vm2648, %v37, %v695
    %v2665 = vsel %vm2648, %v38, %v697
    %v2666 = vsel %vm2648, %v39, %v699
    %v2667 = vsel %vm2648, %v40, %v701
    %v2668 = vsel %vm2648, %v41, %v703
    %v2669 = vsel %vm2648, %v42, %v705
    %v2670 = vsel %vm2648, %v43, %v707
    %v2671 = vsel %vm2648, %v44, %v709
    %v2672 = vsel %vm2648, %v45, %v711
    %v2673 = vsel %vm2648, %v46, %v713
    %v2674 = vsel %vm2648, %v47, %v715
    %v2675 = vsel %vm2648, %v48, %v717
    %v2676 = vsel %vm2648, %v49, %v719
    %v2677 = vsel %vm2648, %v50, %v721
    %v2678 = vsel %vm2648, %v51, %v723
    %v2679 = vsel %vm2648, %v52, %v725
    %v2680 = vsel %vm2648, %v53, %v727
    %v2681 = vsel %vm2648, %v54, %v729
    %v2682 = vsel %vm2648, %v55, %v731
    %v2683 = vsel %vm2648, %v56, %v733
    %v2684 = vsel %vm2648, %v57, %v735
    %v2685 = vsel %vm2648, %v58, %v737
    %v2686 = vsel %vm2648, %v59, %v739
    %v2687 = vsel %vm2648, %v60, %v741
    %v2688 = vsel %vm2648, %v61, %v743
    %v2689 = vsel %vm2648, %v62, %v745
    %v2690 = vsel %vm2648, %v63, %v747
    %v2691 = vsel %vm2648, %v64, %v749
    %v2692 = vsel %vm2648, %v65, %v751
    %v2693 = vsel %vm2648, %v66, %v753
    %v2694 = vsel %vm2648, %v67, %v755
    %v2695 = vsel %vm2648, %v68, %v757
    %v2696 = vsel %vm2648, %v69, %v759
    %v2697 = vsel %vm2648, %v70, %v761
    %v2698 = vsel %vm2648, %v71, %v763
    %v2699 = vsel %vm2648, %v72, %v765
    %v2700 = vsel %vm2648, %v73, %v767
    %v2701 = vsel %vm2648, %v74, %v769
    %v2702 = vsel %vm2648, %v75, %v771
    %v2703 = vsel %vm2648, %v76, %v773
    %v2704 = vsel %vm2648, %v77, %v775
    %v2705 = vsel %vm2648, %v78, %v777
    %v2706 = vsel %vm2648, %v79, %v779
    %v2707 = vsel %vm2648, %v80, %v781
    %v2708 = vsel %vm2648, %v81, %v783
    %v2709 = vsel %vm2648, %v82, %v785
    %v2710 = vsel %vm2648, %v83, %v787
    %v2711 = vsel %vm2648, %v84, %v789
    %v2712 = vsel %vm2648, %v85, %v791
    %vm2713 = vcmask 64512
    %v2714 = vsel %vm2713, %v2649, %v921
    %v2715 = vsel %vm2713, %v2650, %v923
    %v2716 = vsel %vm2713, %v2651, %v925
    %v2717 = vsel %vm2713, %v2652, %v927
    %v2718 = vsel %vm2713, %v2653, %v929
    %v2719 = vsel %vm2713, %v2654, %v931
    %v2720 = vsel %vm2713, %v2655, %v933
    %v2721 = vsel %vm2713, %v2656, %v935
    %v2722 = vsel %vm2713, %v2657, %v937
    %v2723 = vsel %vm2713, %v2658, %v939
    %v2724 = vsel %vm2713, %v2659, %v941
    %v2725 = vsel %vm2713, %v2660, %v943
    %v2726 = vsel %vm2713, %v2661, %v945
    %v2727 = vsel %vm2713, %v2662, %v947
    %v2728 = vsel %vm2713, %v2663, %v949
    %v2729 = vsel %vm2713, %v2664, %v951
    %v2730 = vsel %vm2713, %v2665, %v953
    %v2731 = vsel %vm2713, %v2666, %v955
    %v2732 = vsel %vm2713, %v2667, %v957
    %v2733 = vsel %vm2713, %v2668, %v959
    %v2734 = vsel %vm2713, %v2669, %v961
    %v2735 = vsel %vm2713, %v2670, %v963
    %v2736 = vsel %vm2713, %v2671, %v965
    %v2737 = vsel %vm2713, %v2672, %v967
    %v2738 = vsel %vm2713, %v2673, %v969
    %v2739 = vsel %vm2713, %v2674, %v971
    %v2740 = vsel %vm2713, %v2675, %v973
    %v2741 = vsel %vm2713, %v2676, %v975
    %v2742 = vsel %vm2713, %v2677, %v977
    %v2743 = vsel %vm2713, %v2678, %v979
    %v2744 = vsel %vm2713, %v2679, %v981
    %v2745 = vsel %vm2713, %v2680, %v983
    %v2746 = vsel %vm2713, %v2681, %v985
    %v2747 = vsel %vm2713, %v2682, %v987
    %v2748 = vsel %vm2713, %v2683, %v989
    %v2749 = vsel %vm2713, %v2684, %v991
    %v2750 = vsel %vm2713, %v2685, %v993
    %v2751 = vsel %vm2713, %v2686, %v995
    %v2752 = vsel %vm2713, %v2687, %v997
    %v2753 = vsel %vm2713, %v2688, %v999
    %v2754 = vsel %vm2713, %v2689, %v1001
    %v2755 = vsel %vm2713, %v2690, %v1003
    %v2756 = vsel %vm2713, %v2691, %v1005
    %v2757 = vsel %vm2713, %v2692, %v1007
    %v2758 = vsel %vm2713, %v2693, %v1009
    %v2759 = vsel %vm2713, %v2694, %v1011
    %v2760 = vsel %vm2713, %v2695, %v1013
    %v2761 = vsel %vm2713, %v2696, %v1015
    %v2762 = vsel %vm2713, %v2697, %v1017
    %v2763 = vsel %vm2713, %v2698, %v1019
    %v2764 = vsel %vm2713, %v2699, %v1021
    %v2765 = vsel %vm2713, %v2700, %v1023
    %v2766 = vsel %vm2713, %v2701, %v1025
    %v2767 = vsel %vm2713, %v2702, %v1027
    %v2768 = vsel %vm2713, %v2703, %v1029
    %v2769 = vsel %vm2713, %v2704, %v1031
    %v2770 = vsel %vm2713, %v2705, %v1033
    %v2771 = vsel %vm2713, %v2706, %v1035
    %v2772 = vsel %vm2713, %v2707, %v1037
    %v2773 = vsel %vm2713, %v2708, %v1039
    %v2774 = vsel %vm2713, %v2709, %v1041
    %v2775 = vsel %vm2713, %v2710, %v1043
    %v2776 = vsel %vm2713, %v2711, %v1045
    %v2777 = vsel %vm2713, %v2712, %v1047
    %vm2778 = vcmask 97280
    %v2779 = vsel %vm2778, %v2714, %v1177
    %v2780 = vsel %vm2778, %v2715, %v1179
    %v2781 = vsel %vm2778, %v2716, %v1181
    %v2782 = vsel %vm2778, %v2717, %v1183
    %v2783 = vsel %vm2778, %v2718, %v1185
    %v2784 = vsel %vm2778, %v2719, %v1187
    %v2785 = vsel %vm2778, %v2720, %v1189
    %v2786 = vsel %vm2778, %v2721, %v1191
    %v2787 = vsel %vm2778, %v2722, %v1193
    %v2788 = vsel %vm2778, %v2723, %v1195
    %v2789 = vsel %vm2778, %v2724, %v1197
    %v2790 = vsel %vm2778, %v2725, %v1199
    %v2791 = vsel %vm2778, %v2726, %v1201
    %v2792 = vsel %vm2778, %v2727, %v1203
    %v2793 = vsel %vm2778, %v2728, %v1205
    %v2794 = vsel %vm2778, %v2729, %v1207
    %v2795 = vsel %vm2778, %v2730, %v1209
    %v2796 = vsel %vm2778, %v2731, %v1211
    %v2797 = vsel %vm2778, %v2732, %v1213
    %v2798 = vsel %vm2778, %v2733, %v1215
    %v2799 = vsel %vm2778, %v2734, %v1217
    %v2800 = vsel %vm2778, %v2735, %v1219
    %v2801 = vsel %vm2778, %v2736, %v1221
    %v2802 = vsel %vm2778, %v2737, %v1223
    %v2803 = vsel %vm2778, %v2738, %v1225
    %v2804 = vsel %vm2778, %v2739, %v1227
    %v2805 = vsel %vm2778, %v2740, %v1229
    %v2806 = vsel %vm2778, %v2741, %v1231
    %v2807 = vsel %vm2778, %v2742, %v1233
    %v2808 = vsel %vm2778, %v2743, %v1235
    %v2809 = vsel %vm2778, %v2744, %v1237
    %v2810 = vsel %vm2778, %v2745, %v1239
    %v2811 = vsel %vm2778, %v2746, %v1241
    %v2812 = vsel %vm2778, %v2747, %v1243
    %v2813 = vsel %vm2778, %v2748, %v1245
    %v2814 = vsel %vm2778, %v2749, %v1247
    %v2815 = vsel %vm2778, %v2750, %v1249
    %v2816 = vsel %vm2778, %v2751, %v1251
    %v2817 = vsel %vm2778, %v2752, %v1253
    %v2818 = vsel %vm2778, %v2753, %v1255
    %v2819 = vsel %vm2778, %v2754, %v1257
    %v2820 = vsel %vm2778, %v2755, %v1259
    %v2821 = vsel %vm2778, %v2756, %v1261
    %v2822 = vsel %vm2778, %v2757, %v1263
    %v2823 = vsel %vm2778, %v2758, %v1265
    %v2824 = vsel %vm2778, %v2759, %v1267
    %v2825 = vsel %vm2778, %v2760, %v1269
    %v2826 = vsel %vm2778, %v2761, %v1271
    %v2827 = vsel %vm2778, %v2762, %v1273
    %v2828 = vsel %vm2778, %v2763, %v1275
    %v2829 = vsel %vm2778, %v2764, %v1277
    %v2830 = vsel %vm2778, %v2765, %v1279
    %v2831 = vsel %vm2778, %v2766, %v1281
    %v2832 = vsel %vm2778, %v2767, %v1283
    %v2833 = vsel %vm2778, %v2768, %v1285
    %v2834 = vsel %vm2778, %v2769, %v1287
    %v2835 = vsel %vm2778, %v2770, %v1289
    %v2836 = vsel %vm2778, %v2771, %v1291
    %v2837 = vsel %vm2778, %v2772, %v1293
    %v2838 = vsel %vm2778, %v2773, %v1295
    %v2839 = vsel %vm2778, %v2774, %v1297
    %v2840 = vsel %vm2778, %v2775, %v1299
    %v2841 = vsel %vm2778, %v2776, %v1301
    %v2842 = vsel %vm2778, %v2777, %v1303
    %vm2843 = vcmask 130048
    %v2844 = vsel %vm2843, %v2779, %v1433
    %v2845 = vsel %vm2843, %v2780, %v1435
    %v2846 = vsel %vm2843, %v2781, %v1437
    %v2847 = vsel %vm2843, %v2782, %v1439
    %v2848 = vsel %vm2843, %v2783, %v1441
    %v2849 = vsel %vm2843, %v2784, %v1443
    %v2850 = vsel %vm2843, %v2785, %v1445
    %v2851 = vsel %vm2843, %v2786, %v1447
    %v2852 = vsel %vm2843, %v2787, %v1449
    %v2853 = vsel %vm2843, %v2788, %v1451
    %v2854 = vsel %vm2843, %v2789, %v1453
    %v2855 = vsel %vm2843, %v2790, %v1455
    %v2856 = vsel %vm2843, %v2791, %v1457
    %v2857 = vsel %vm2843, %v2792, %v1459
    %v2858 = vsel %vm2843, %v2793, %v1461
    %v2859 = vsel %vm2843, %v2794, %v1463
    %v2860 = vsel %vm2843, %v2795, %v1465
    %v2861 = vsel %vm2843, %v2796, %v1467
    %v2862 = vsel %vm2843, %v2797, %v1469
    %v2863 = vsel %vm2843, %v2798, %v1471
    %v2864 = vsel %vm2843, %v2799, %v1473
    %v2865 = vsel %vm2843, %v2800, %v1475
    %v2866 = vsel %vm2843, %v2801, %v1477
    %v2867 = vsel %vm2843, %v2802, %v1479
    %v2868 = vsel %vm2843, %v2803, %v1481
    %v2869 = vsel %vm2843, %v2804, %v1483
    %v2870 = vsel %vm2843, %v2805, %v1485
    %v2871 = vsel %vm2843, %v2806, %v1487
    %v2872 = vsel %vm2843, %v2807, %v1489
    %v2873 = vsel %vm2843, %v2808, %v1491
    %v2874 = vsel %vm2843, %v2809, %v1493
    %v2875 = vsel %vm2843, %v2810, %v1495
    %v2876 = vsel %vm2843, %v2811, %v1497
    %v2877 = vsel %vm2843, %v2812, %v1499
    %v2878 = vsel %vm2843, %v2813, %v1501
    %v2879 = vsel %vm2843, %v2814, %v1503
    %v2880 = vsel %vm2843, %v2815, %v1505
    %v2881 = vsel %vm2843, %v2816, %v1507
    %v2882 = vsel %vm2843, %v2817, %v1509
    %v2883 = vsel %vm2843, %v2818, %v1511
    %v2884 = vsel %vm2843, %v2819, %v1513
    %v2885 = vsel %vm2843, %v2820, %v1515
    %v2886 = vsel %vm2843, %v2821, %v1517
    %v2887 = vsel %vm2843, %v2822, %v1519
    %v2888 = vsel %vm2843, %v2823, %v1521
    %v2889 = vsel %vm2843, %v2824, %v1523
    %v2890 = vsel %vm2843, %v2825, %v1525
    %v2891 = vsel %vm2843, %v2826, %v1527
    %v2892 = vsel %vm2843, %v2827, %v1529
    %v2893 = vsel %vm2843, %v2828, %v1531
    %v2894 = vsel %vm2843, %v2829, %v1533
    %v2895 = vsel %vm2843, %v2830, %v1535
    %v2896 = vsel %vm2843, %v2831, %v1537
    %v2897 = vsel %vm2843, %v2832, %v1539
    %v2898 = vsel %vm2843, %v2833, %v1541
    %v2899 = vsel %vm2843, %v2834, %v1543
    %v2900 = vsel %vm2843, %v2835, %v1545
    %v2901 = vsel %vm2843, %v2836, %v1547
    %v2902 = vsel %vm2843, %v2837, %v1549
    %v2903 = vsel %vm2843, %v2838, %v1551
    %v2904 = vsel %vm2843, %v2839, %v1553
    %v2905 = vsel %vm2843, %v2840, %v1555
    %v2906 = vsel %vm2843, %v2841, %v1557
    %v2907 = vsel %vm2843, %v2842, %v1559
    %vm2908 = vcmask 162816
    %v2909 = vsel %vm2908, %v2844, %v1689
    %v2910 = vsel %vm2908, %v2845, %v1691
    %v2911 = vsel %vm2908, %v2846, %v1693
    %v2912 = vsel %vm2908, %v2847, %v1695
    %v2913 = vsel %vm2908, %v2848, %v1697
    %v2914 = vsel %vm2908, %v2849, %v1699
    %v2915 = vsel %vm2908, %v2850, %v1701
    %v2916 = vsel %vm2908, %v2851, %v1703
    %v2917 = vsel %vm2908, %v2852, %v1705
    %v2918 = vsel %vm2908, %v2853, %v1707
    %v2919 = vsel %vm2908, %v2854, %v1709
    %v2920 = vsel %vm2908, %v2855, %v1711
    %v2921 = vsel %vm2908, %v2856, %v1713
    %v2922 = vsel %vm2908, %v2857, %v1715
    %v2923 = vsel %vm2908, %v2858, %v1717
    %v2924 = vsel %vm2908, %v2859, %v1719
    %v2925 = vsel %vm2908, %v2860, %v1721
    %v2926 = vsel %vm2908, %v2861, %v1723
    %v2927 = vsel %vm2908, %v2862, %v1725
    %v2928 = vsel %vm2908, %v2863, %v1727
    %v2929 = vsel %vm2908, %v2864, %v1729
    %v2930 = vsel %vm2908, %v2865, %v1731
    %v2931 = vsel %vm2908, %v2866, %v1733
    %v2932 = vsel %vm2908, %v2867, %v1735
    %v2933 = vsel %vm2908, %v2868, %v1737
    %v2934 = vsel %vm2908, %v2869, %v1739
    %v2935 = vsel %vm2908, %v2870, %v1741
    %v2936 = vsel %vm2908, %v2871, %v1743
    %v2937 = vsel %vm2908, %v2872, %v1745
    %v2938 = vsel %vm2908, %v2873, %v1747
    %v2939 = vsel %vm2908, %v2874, %v1749
    %v2940 = vsel %vm2908, %v2875, %v1751
    %v2941 = vsel %vm2908, %v2876, %v1753
    %v2942 = vsel %vm2908, %v2877, %v1755
    %v2943 = vsel %vm2908, %v2878, %v1757
    %v2944 = vsel %vm2908, %v2879, %v1759
    %v2945 = vsel %vm2908, %v2880, %v1761
    %v2946 = vsel %vm2908, %v2881, %v1763
    %v2947 = vsel %vm2908, %v2882, %v1765
    %v2948 = vsel %vm2908, %v2883, %v1767
    %v2949 = vsel %vm2908, %v2884, %v1769
    %v2950 = vsel %vm2908, %v2885, %v1771
    %v2951 = vsel %vm2908, %v2886, %v1773
    %v2952 = vsel %vm2908, %v2887, %v1775
    %v2953 = vsel %vm2908, %v2888, %v1777
    %v2954 = vsel %vm2908, %v2889, %v1779
    %v2955 = vsel %vm2908, %v2890, %v1781
    %v2956 = vsel %vm2908, %v2891, %v1783
    %v2957 = vsel %vm2908, %v2892, %v1785
    %v2958 = vsel %vm2908, %v2893, %v1787
    %v2959 = vsel %vm2908, %v2894, %v1789
    %v2960 = vsel %vm2908, %v2895, %v1791
    %v2961 = vsel %vm2908, %v2896, %v1793
    %v2962 = vsel %vm2908, %v2897, %v1795
    %v2963 = vsel %vm2908, %v2898, %v1797
    %v2964 = vsel %vm2908, %v2899, %v1799
    %v2965 = vsel %vm2908, %v2900, %v1801
    %v2966 = vsel %vm2908, %v2901, %v1803
    %v2967 = vsel %vm2908, %v2902, %v1805
    %v2968 = vsel %vm2908, %v2903, %v1807
    %v2969 = vsel %vm2908, %v2904, %v1809
    %v2970 = vsel %vm2908, %v2905, %v1811
    %v2971 = vsel %vm2908, %v2906, %v1813
    %v2972 = vsel %vm2908, %v2907, %v1815
    %vm2973 = vcmask 195584
    %v2974 = vsel %vm2973, %v2909, %v1945
    %v2975 = vsel %vm2973, %v2910, %v1947
    %v2976 = vsel %vm2973, %v2911, %v1949
    %v2977 = vsel %vm2973, %v2912, %v1951
    %v2978 = vsel %vm2973, %v2913, %v1953
    %v2979 = vsel %vm2973, %v2914, %v1955
    %v2980 = vsel %vm2973, %v2915, %v1957
    %v2981 = vsel %vm2973, %v2916, %v1959
    %v2982 = vsel %vm2973, %v2917, %v1961
    %v2983 = vsel %vm2973, %v2918, %v1963
    %v2984 = vsel %vm2973, %v2919, %v1965
    %v2985 = vsel %vm2973, %v2920, %v1967
    %v2986 = vsel %vm2973, %v2921, %v1969
    %v2987 = vsel %vm2973, %v2922, %v1971
    %v2988 = vsel %vm2973, %v2923, %v1973
    %v2989 = vsel %vm2973, %v2924, %v1975
    %v2990 = vsel %vm2973, %v2925, %v1977
    %v2991 = vsel %vm2973, %v2926, %v1979
    %v2992 = vsel %vm2973, %v2927, %v1981
    %v2993 = vsel %vm2973, %v2928, %v1983
    %v2994 = vsel %vm2973, %v2929, %v1985
    %v2995 = vsel %vm2973, %v2930, %v1987
    %v2996 = vsel %vm2973, %v2931, %v1989
    %v2997 = vsel %vm2973, %v2932, %v1991
    %v2998 = vsel %vm2973, %v2933, %v1993
    %v2999 = vsel %vm2973, %v2934, %v1995
    %v3000 = vsel %vm2973, %v2935, %v1997
    %v3001 = vsel %vm2973, %v2936, %v1999
    %v3002 = vsel %vm2973, %v2937, %v2001
    %v3003 = vsel %vm2973, %v2938, %v2003
    %v3004 = vsel %vm2973, %v2939, %v2005
    %v3005 = vsel %vm2973, %v2940, %v2007
    %v3006 = vsel %vm2973, %v2941, %v2009
    %v3007 = vsel %vm2973, %v2942, %v2011
    %v3008 = vsel %vm2973, %v2943, %v2013
    %v3009 = vsel %vm2973, %v2944, %v2015
    %v3010 = vsel %vm2973, %v2945, %v2017
    %v3011 = vsel %vm2973, %v2946, %v2019
    %v3012 = vsel %vm2973, %v2947, %v2021
    %v3013 = vsel %vm2973, %v2948, %v2023
    %v3014 = vsel %vm2973, %v2949, %v2025
    %v3015 = vsel %vm2973, %v2950, %v2027
    %v3016 = vsel %vm2973, %v2951, %v2029
    %v3017 = vsel %vm2973, %v2952, %v2031
    %v3018 = vsel %vm2973, %v2953, %v2033
    %v3019 = vsel %vm2973, %v2954, %v2035
    %v3020 = vsel %vm2973, %v2955, %v2037
    %v3021 = vsel %vm2973, %v2956, %v2039
    %v3022 = vsel %vm2973, %v2957, %v2041
    %v3023 = vsel %vm2973, %v2958, %v2043
    %v3024 = vsel %vm2973, %v2959, %v2045
    %v3025 = vsel %vm2973, %v2960, %v2047
    %v3026 = vsel %vm2973, %v2961, %v2049
    %v3027 = vsel %vm2973, %v2962, %v2051
    %v3028 = vsel %vm2973, %v2963, %v2053
    %v3029 = vsel %vm2973, %v2964, %v2055
    %v3030 = vsel %vm2973, %v2965, %v2057
    %v3031 = vsel %vm2973, %v2966, %v2059
    %v3032 = vsel %vm2973, %v2967, %v2061
    %v3033 = vsel %vm2973, %v2968, %v2063
    %v3034 = vsel %vm2973, %v2969, %v2065
    %v3035 = vsel %vm2973, %v2970, %v2067
    %v3036 = vsel %vm2973, %v2971, %v2069
    %v3037 = vsel %vm2973, %v2972, %v2071
    %vm3038 = vcmask 228352
    %v3039 = vsel %vm3038, %v2974, %v2201
    %v3040 = vsel %vm3038, %v2975, %v2203
    %v3041 = vsel %vm3038, %v2976, %v2205
    %v3042 = vsel %vm3038, %v2977, %v2207
    %v3043 = vsel %vm3038, %v2978, %v2209
    %v3044 = vsel %vm3038, %v2979, %v2211
    %v3045 = vsel %vm3038, %v2980, %v2213
    %v3046 = vsel %vm3038, %v2981, %v2215
    %v3047 = vsel %vm3038, %v2982, %v2217
    %v3048 = vsel %vm3038, %v2983, %v2219
    %v3049 = vsel %vm3038, %v2984, %v2221
    %v3050 = vsel %vm3038, %v2985, %v2223
    %v3051 = vsel %vm3038, %v2986, %v2225
    %v3052 = vsel %vm3038, %v2987, %v2227
    %v3053 = vsel %vm3038, %v2988, %v2229
    %v3054 = vsel %vm3038, %v2989, %v2231
    %v3055 = vsel %vm3038, %v2990, %v2233
    %v3056 = vsel %vm3038, %v2991, %v2235
    %v3057 = vsel %vm3038, %v2992, %v2237
    %v3058 = vsel %vm3038, %v2993, %v2239
    %v3059 = vsel %vm3038, %v2994, %v2241
    %v3060 = vsel %vm3038, %v2995, %v2243
    %v3061 = vsel %vm3038, %v2996, %v2245
    %v3062 = vsel %vm3038, %v2997, %v2247
    %v3063 = vsel %vm3038, %v2998, %v2249
    %v3064 = vsel %vm3038, %v2999, %v2251
    %v3065 = vsel %vm3038, %v3000, %v2253
    %v3066 = vsel %vm3038, %v3001, %v2255
    %v3067 = vsel %vm3038, %v3002, %v2257
    %v3068 = vsel %vm3038, %v3003, %v2259
    %v3069 = vsel %vm3038, %v3004, %v2261
    %v3070 = vsel %vm3038, %v3005, %v2263
    %v3071 = vsel %vm3038, %v3006, %v2265
    %v3072 = vsel %vm3038, %v3007, %v2267
    %v3073 = vsel %vm3038, %v3008, %v2269
    %v3074 = vsel %vm3038, %v3009, %v2271
    %v3075 = vsel %vm3038, %v3010, %v2273
    %v3076 = vsel %vm3038, %v3011, %v2275
    %v3077 = vsel %vm3038, %v3012, %v2277
    %v3078 = vsel %vm3038, %v3013, %v2279
    %v3079 = vsel %vm3038, %v3014, %v2281
    %v3080 = vsel %vm3038, %v3015, %v2283
    %v3081 = vsel %vm3038, %v3016, %v2285
    %v3082 = vsel %vm3038, %v3017, %v2287
    %v3083 = vsel %vm3038, %v3018, %v2289
    %v3084 = vsel %vm3038, %v3019, %v2291
    %v3085 = vsel %vm3038, %v3020, %v2293
    %v3086 = vsel %vm3038, %v3021, %v2295
    %v3087 = vsel %vm3038, %v3022, %v2297
    %v3088 = vsel %vm3038, %v3023, %v2299
    %v3089 = vsel %vm3038, %v3024, %v2301
    %v3090 = vsel %vm3038, %v3025, %v2303
    %v3091 = vsel %vm3038, %v3026, %v2305
    %v3092 = vsel %vm3038, %v3027, %v2307
    %v3093 = vsel %vm3038, %v3028, %v2309
    %v3094 = vsel %vm3038, %v3029, %v2311
    %v3095 = vsel %vm3038, %v3030, %v2313
    %v3096 = vsel %vm3038, %v3031, %v2315
    %v3097 = vsel %vm3038, %v3032, %v2317
    %v3098 = vsel %vm3038, %v3033, %v2319
    %v3099 = vsel %vm3038, %v3034, %v2321
    %v3100 = vsel %vm3038, %v3035, %v2323
    %v3101 = vsel %vm3038, %v3036, %v2325
    %v3102 = vsel %vm3038, %v3037, %v2327
    %vm3103 = vcmask 261120
    %v3104 = vsel %vm3103, %v3039, %v2457
    %v3105 = vsel %vm3103, %v3040, %v2459
    %v3106 = vsel %vm3103, %v3041, %v2461
    %v3107 = vsel %vm3103, %v3042, %v2463
    %v3108 = vsel %vm3103, %v3043, %v2465
    %v3109 = vsel %vm3103, %v3044, %v2467
    %v3110 = vsel %vm3103, %v3045, %v2469
    %v3111 = vsel %vm3103, %v3046, %v2471
    %v3112 = vsel %vm3103, %v3047, %v2473
    %v3113 = vsel %vm3103, %v3048, %v2475
    %v3114 = vsel %vm3103, %v3049, %v2477
    %v3115 = vsel %vm3103, %v3050, %v2479
    %v3116 = vsel %vm3103, %v3051, %v2481
    %v3117 = vsel %vm3103, %v3052, %v2483
    %v3118 = vsel %vm3103, %v3053, %v2485
    %v3119 = vsel %vm3103, %v3054, %v2487
    %v3120 = vsel %vm3103, %v3055, %v2489
    %v3121 = vsel %vm3103, %v3056, %v2491
    %v3122 = vsel %vm3103, %v3057, %v2493
    %v3123 = vsel %vm3103, %v3058, %v2495
    %v3124 = vsel %vm3103, %v3059, %v2497
    %v3125 = vsel %vm3103, %v3060, %v2499
    %v3126 = vsel %vm3103, %v3061, %v2501
    %v3127 = vsel %vm3103, %v3062, %v2503
    %v3128 = vsel %vm3103, %v3063, %v2505
    %v3129 = vsel %vm3103, %v3064, %v2507
    %v3130 = vsel %vm3103, %v3065, %v2509
    %v3131 = vsel %vm3103, %v3066, %v2511
    %v3132 = vsel %vm3103, %v3067, %v2513
    %v3133 = vsel %vm3103, %v3068, %v2515
    %v3134 = vsel %vm3103, %v3069, %v2517
    %v3135 = vsel %vm3103, %v3070, %v2519
    %v3136 = vsel %vm3103, %v3071, %v2521
    %v3137 = vsel %vm3103, %v3072, %v2523
    %v3138 = vsel %vm3103, %v3073, %v2525
    %v3139 = vsel %vm3103, %v3074, %v2527
    %v3140 = vsel %vm3103, %v3075, %v2529
    %v3141 = vsel %vm3103, %v3076, %v2531
    %v3142 = vsel %vm3103, %v3077, %v2533
    %v3143 = vsel %vm3103, %v3078, %v2535
    %v3144 = vsel %vm3103, %v3079, %v2537
    %v3145 = vsel %vm3103, %v3080, %v2539
    %v3146 = vsel %vm3103, %v3081, %v2541
    %v3147 = vsel %vm3103, %v3082, %v2543
    %v3148 = vsel %vm3103, %v3083, %v2545
    %v3149 = vsel %vm3103, %v3084, %v2547
    %v3150 = vsel %vm3103, %v3085, %v2549
    %v3151 = vsel %vm3103, %v3086, %v2551
    %v3152 = vsel %vm3103, %v3087, %v2553
    %v3153 = vsel %vm3103, %v3088, %v2555
    %v3154 = vsel %vm3103, %v3089, %v2557
    %v3155 = vsel %vm3103, %v3090, %v2559
    %v3156 = vsel %vm3103, %v3091, %v2561
    %v3157 = vsel %vm3103, %v3092, %v2563
    %v3158 = vsel %vm3103, %v3093, %v2565
    %v3159 = vsel %vm3103, %v3094, %v2567
    %v3160 = vsel %vm3103, %v3095, %v2569
    %v3161 = vsel %vm3103, %v3096, %v2571
    %v3162 = vsel %vm3103, %v3097, %v2573
    %v3163 = vsel %vm3103, %v3098, %v2575
    %v3164 = vsel %vm3103, %v3099, %v2577
    %v3165 = vsel %vm3103, %v3100, %v2579
    %v3166 = vsel %vm3103, %v3101, %v2581
    %v3167 = vsel %vm3103, %v3102, %v2583
    %v3168 = vpack.c.bf16 %v3105, %v3104
    %v3169 = vpack.c.bf16 %v3107, %v3106
    %v3170 = vpack.c.bf16 %v3109, %v3108
    %v3171 = vpack.c.bf16 %v3111, %v3110
    %v3172 = vpack.c.bf16 %v3113, %v3112
    %v3173 = vpack.c.bf16 %v3115, %v3114
    %v3174 = vpack.c.bf16 %v3117, %v3116
    %v3175 = vpack.c.bf16 %v3119, %v3118
    %v3176 = vpack.c.bf16 %v3121, %v3120
    %v3177 = vpack.c.bf16 %v3123, %v3122
    %v3178 = vpack.c.bf16 %v3125, %v3124
    %v3179 = vpack.c.bf16 %v3127, %v3126
    %v3180 = vpack.c.bf16 %v3129, %v3128
    %v3181 = vpack.c.bf16 %v3131, %v3130
    %v3182 = vpack.c.bf16 %v3133, %v3132
    %v3183 = vpack.c.bf16 %v3135, %v3134
    %v3184 = vpack.c.bf16 %v3137, %v3136
    %v3185 = vpack.c.bf16 %v3139, %v3138
    %v3186 = vpack.c.bf16 %v3141, %v3140
    %v3187 = vpack.c.bf16 %v3143, %v3142
    %v3188 = vpack.c.bf16 %v3145, %v3144
    %v3189 = vpack.c.bf16 %v3147, %v3146
    %v3190 = vpack.c.bf16 %v3149, %v3148
    %v3191 = vpack.c.bf16 %v3151, %v3150
    %v3192 = vpack.c.bf16 %v3153, %v3152
    %v3193 = vpack.c.bf16 %v3155, %v3154
    %v3194 = vpack.c.bf16 %v3157, %v3156
    %v3195 = vpack.c.bf16 %v3159, %v3158
    %v3196 = vpack.c.bf16 %v3161, %v3160
    %v3197 = vpack.c.bf16 %v3163, %v3162
    %v3198 = vpack.c.bf16 %v3165, %v3164
    %v3199 = vpack.c.bf16 %v3167, %v3166
    %v3200 = vld [vmem:[%s1] sm:$0xf]
    %v3201 = vld [vmem:[%s1 + $0x4] sm:$0xf]
    %v3202 = vld [vmem:[%s1 + $0x8] sm:$0xf]
    %v3203 = vld [vmem:[%s1 + $0xc] sm:$0xf]
    %v3204 = vld [vmem:[%s1 + $0x10] sm:$0x3]
    %v3205 = vld [vmem:[%s2] sm:$0x1]
    %v3207 = vlaneseq
    %v3208 = vshrl.u32 %v3207, 7
    %v3209 = vsub.s32 0, %v3208
    %v3210 = vrot.slane %v3205, %v3209
    %v3217 = vunpack.c.l.b16 %v3200
    %v3218 = vunpack.c.l.b16 %v3201
    %v3219 = vunpack.c.l.b16 %v3202
    %v3220 = vunpack.c.l.b16 %v3203
    %v3221 = vunpack.c.l.b16 %v3204
    %v3222 = vpack.c.b16 %v3218, %v3217
    %v3223 = vpack.c.b16 %v3220, %v3219
    %v3224 = vpack.c.b16 %v3221, %v3221
    %vm3227 = vcmask 293888
    %v3229 = vsel %vm3227, %v3168, 0
    %v3232 = vsel %vm3227, %v3169, 0
    %v3235 = vsel %vm3227, %v3170, 0
    %v3238 = vsel %vm3227, %v3171, 0
    %v3241 = vsel %vm3227, %v3172, 0
    %v3244 = vsel %vm3227, %v3173, 0
    %v3247 = vsel %vm3227, %v3174, 0
    %v3250 = vsel %vm3227, %v3175, 0
    %v3253 = vsel %vm3227, %v3176, 0
    %v3256 = vsel %vm3227, %v3177, 0
    %v3259 = vsel %vm3227, %v3178, 0
    %v3262 = vsel %vm3227, %v3179, 0
    %v3265 = vsel %vm3227, %v3180, 0
    %v3268 = vsel %vm3227, %v3181, 0
    %v3271 = vsel %vm3227, %v3182, 0
    %v3274 = vsel %vm3227, %v3183, 0
    %v3277 = vsel %vm3227, %v3184, 0
    %v3280 = vsel %vm3227, %v3185, 0
    %v3283 = vsel %vm3227, %v3186, 0
    %v3286 = vsel %vm3227, %v3187, 0
    %v3289 = vsel %vm3227, %v3188, 0
    %v3292 = vsel %vm3227, %v3189, 0
    %v3295 = vsel %vm3227, %v3190, 0
    %v3298 = vsel %vm3227, %v3191, 0
    %v3301 = vsel %vm3227, %v3192, 0
    %v3304 = vsel %vm3227, %v3193, 0
    %v3307 = vsel %vm3227, %v3194, 0
    %v3310 = vsel %vm3227, %v3195, 0
    %v3313 = vsel %vm3227, %v3196, 0
    %v3316 = vsel %vm3227, %v3197, 0
    %v3319 = vsel %vm3227, %v3198, 0
    %v3322 = vsel %vm3227, %v3199, 0
    %vm3324 = vcmask 1041408
    %v3326 = vsel %vm3324, %v3224, 0
    %3328 = vmatprep.subr.bf16.mxu0 0
    %3329 = vmatpush1.bf16.msra.mxu0 %v3222
    %3330 = vmatprep.subr.bf16.mxu0 0
    %3331 = vmatpush1.bf16.msra.mxu0 %v3223
    %3332 = vmatprep.subr.bf16.mxu0 0
    %3333 = vmatpush1.bf16.msra.mxu0 %v3326
    %3334 = vmatprep.subr.bf16.mxu0 0
    %3335 = vmatpush1.bf16.msra.mxu0 0
    %3336 = vmatprep.subr.bf16.mxu0 0
    %3337 = vmatpush1.bf16.msra.mxu0 0
    %3338 = vmatprep.subr.bf16.mxu0 0
    %3339 = vmatpush1.bf16.msra.mxu0 0
    %3340 = vmatprep.subr.bf16.mxu0 0
    %3341 = vmatpush1.bf16.msra.mxu0 0
    %3342 = vmatprep.subr.bf16.mxu0 0
    %3343 = vmatpush1.bf16.msra.mxu0 0
    %3344 = vmatprep.subr.bf16.mxu0 0
    %3345 = vmatpush1.bf16.msra.mxu0 0
    %3346 = vmatprep.subr.bf16.mxu0 0
    %3347 = vmatpush1.bf16.msra.mxu0 0
    %3348 = vmatprep.subr.bf16.mxu0 0
    %3349 = vmatpush1.bf16.msra.mxu0 0
    %3350 = vmatprep.subr.bf16.mxu0 0
    %3351 = vmatpush1.bf16.msra.mxu0 0
    %3352 = vmatprep.subr.bf16.mxu0 0
    %3353 = vmatpush1.bf16.msra.mxu0 0
    %3354 = vmatprep.subr.bf16.mxu0 0
    %3355 = vmatpush1.bf16.msra.mxu0 0
    %3356 = vmatprep.subr.bf16.mxu0 0
    %3357 = vmatpush1.bf16.msra.mxu0 0
    %3358 = vmatprep.subr.bf16.mxu0 0
    %3359 = vmatpush1.bf16.msra.mxu0 0
    %3360 = vmatprep.mubr.bf16.mxu0 0
    %3361 = vmatmul.mubr.bf16.gmra.mrb[0].mxu0 %v3229
    %v3362 = vpop.f32.mrb[0].mxu0
    %v3363 = vadd.f32 %v3210, %v3362
    %v3364 = vpop.f32.mrb[0].mxu0
    %v3365 = vpop.f32.mrb[0].mxu0
    %v3366 = vadd.f32 %v3210, %v3365
    %v3367 = vpop.f32.mrb[0].mxu0
    %3368 = vmatprep.mubr.bf16.mxu0 0
    %3369 = vmatmul.mubr.bf16.gmra.mrb[0].mxu0 %v3232
    %v3370 = vpop.f32.mrb[0].mxu0
    %v3371 = vadd.f32 %v3210, %v3370
    %v3372 = vpop.f32.mrb[0].mxu0
    %v3373 = vpop.f32.mrb[0].mxu0
    %v3374 = vadd.f32 %v3210, %v3373
    %v3375 = vpop.f32.mrb[0].mxu0
    %3376 = vmatprep.mubr.bf16.mxu0 0
    %3377 = vmatmul.mubr.bf16.gmra.mrb[0].mxu0 %v3235
    %v3378 = vpop.f32.mrb[0].mxu0
    %v3379 = vadd.f32 %v3210, %v3378
    %v3380 = vpop.f32.mrb[0].mxu0
    %v3381 = vpop.f32.mrb[0].mxu0
    %v3382 = vadd.f32 %v3210, %v3381
    %v3383 = vpop.f32.mrb[0].mxu0
    %3384 = vmatprep.mubr.bf16.mxu0 0
    %3385 = vmatmul.mubr.bf16.gmra.mrb[0].mxu0 %v3238
    %v3386 = vpop.f32.mrb[0].mxu0
    %v3387 = vadd.f32 %v3210, %v3386
    %v3388 = vpop.f32.mrb[0].mxu0
    %v3389 = vpop.f32.mrb[0].mxu0
    %v3390 = vadd.f32 %v3210, %v3389
    %v3391 = vpop.f32.mrb[0].mxu0
    %3392 = vmatprep.mubr.bf16.mxu0 0
    %3393 = vmatmul.mubr.bf16.gmra.mrb[0].mxu0 %v3241
    %v3394 = vpop.f32.mrb[0].mxu0
    %v3395 = vadd.f32 %v3210, %v3394
    %v3396 = vpop.f32.mrb[0].mxu0
    %v3397 = vpop.f32.mrb[0].mxu0
    %v3398 = vadd.f32 %v3210, %v3397
    %v3399 = vpop.f32.mrb[0].mxu0
    %3400 = vmatprep.mubr.bf16.mxu0 0
    %3401 = vmatmul.mubr.bf16.gmra.mrb[0].mxu0 %v3244
    %v3402 = vpop.f32.mrb[0].mxu0
    %v3403 = vadd.f32 %v3210, %v3402
    %v3404 = vpop.f32.mrb[0].mxu0
    %v3405 = vpop.f32.mrb[0].mxu0
    %v3406 = vadd.f32 %v3210, %v3405
    %v3407 = vpop.f32.mrb[0].mxu0
    %3408 = vmatprep.mubr.bf16.mxu0 0
    %3409 = vmatmul.mubr.bf16.gmra.mrb[0].mxu0 %v3247
    %v3410 = vpop.f32.mrb[0].mxu0
    %v3411 = vadd.f32 %v3210, %v3410
    %v3412 = vpop.f32.mrb[0].mxu0
    %v3413 = vpop.f32.mrb[0].mxu0
    %v3414 = vadd.f32 %v3210, %v3413
    %v3415 = vpop.f32.mrb[0].mxu0
    %3416 = vmatprep.mubr.bf16.mxu0 0
    %3417 = vmatmul.mubr.bf16.gmra.mrb[0].mxu0 %v3250
    %v3418 = vpop.f32.mrb[0].mxu0
    %v3419 = vadd.f32 %v3210, %v3418
    %v3420 = vpop.f32.mrb[0].mxu0
    %v3421 = vpop.f32.mrb[0].mxu0
    %v3422 = vadd.f32 %v3210, %v3421
    %v3423 = vpop.f32.mrb[0].mxu0
    %3424 = vmatprep.mubr.bf16.mxu0 0
    %3425 = vmatmul.mubr.bf16.gmra.mrb[0].mxu0 %v3253
    %v3426 = vpop.f32.mrb[0].mxu0
    %v3427 = vadd.f32 %v3210, %v3426
    %v3428 = vpop.f32.mrb[0].mxu0
    %v3429 = vpop.f32.mrb[0].mxu0
    %v3430 = vadd.f32 %v3210, %v3429
    %v3431 = vpop.f32.mrb[0].mxu0
    %3432 = vmatprep.mubr.bf16.mxu0 0
    %3433 = vmatmul.mubr.bf16.gmra.mrb[0].mxu0 %v3256
    %v3434 = vpop.f32.mrb[0].mxu0
    %v3435 = vadd.f32 %v3210, %v3434
    %v3436 = vpop.f32.mrb[0].mxu0
    %v3437 = vpop.f32.mrb[0].mxu0
    %v3438 = vadd.f32 %v3210, %v3437
    %v3439 = vpop.f32.mrb[0].mxu0
    %3440 = vmatprep.mubr.bf16.mxu0 0
    %3441 = vmatmul.mubr.bf16.gmra.mrb[0].mxu0 %v3259
    %v3442 = vpop.f32.mrb[0].mxu0
    %v3443 = vadd.f32 %v3210, %v3442
    %v3444 = vpop.f32.mrb[0].mxu0
    %v3445 = vpop.f32.mrb[0].mxu0
    %v3446 = vadd.f32 %v3210, %v3445
    %v3447 = vpop.f32.mrb[0].mxu0
    %3448 = vmatprep.mubr.bf16.mxu0 0
    %3449 = vmatmul.mubr.bf16.gmra.mrb[0].mxu0 %v3262
    %v3450 = vpop.f32.mrb[0].mxu0
    %v3451 = vadd.f32 %v3210, %v3450
    %v3452 = vpop.f32.mrb[0].mxu0
    %v3453 = vpop.f32.mrb[0].mxu0
    %v3454 = vadd.f32 %v3210, %v3453
    %v3455 = vpop.f32.mrb[0].mxu0
    %3456 = vmatprep.mubr.bf16.mxu0 0
    %3457 = vmatmul.mubr.bf16.gmra.mrb[0].mxu0 %v3265
    %v3458 = vpop.f32.mrb[0].mxu0
    %v3459 = vadd.f32 %v3210, %v3458
    %v3460 = vpop.f32.mrb[0].mxu0
    %v3461 = vpop.f32.mrb[0].mxu0
    %v3462 = vadd.f32 %v3210, %v3461
    %v3463 = vpop.f32.mrb[0].mxu0
    %3464 = vmatprep.mubr.bf16.mxu0 0
    %3465 = vmatmul.mubr.bf16.gmra.mrb[0].mxu0 %v3268
    %v3466 = vpop.f32.mrb[0].mxu0
    %v3467 = vadd.f32 %v3210, %v3466
    %v3468 = vpop.f32.mrb[0].mxu0
    %v3469 = vpop.f32.mrb[0].mxu0
    %v3470 = vadd.f32 %v3210, %v3469
    %v3471 = vpop.f32.mrb[0].mxu0
    %3472 = vmatprep.mubr.bf16.mxu0 0
    %3473 = vmatmul.mubr.bf16.gmra.mrb[0].mxu0 %v3271
    %v3474 = vpop.f32.mrb[0].mxu0
    %v3475 = vadd.f32 %v3210, %v3474
    %v3476 = vpop.f32.mrb[0].mxu0
    %v3477 = vpop.f32.mrb[0].mxu0
    %v3478 = vadd.f32 %v3210, %v3477
    %v3479 = vpop.f32.mrb[0].mxu0
    %3480 = vmatprep.mubr.bf16.mxu0 0
    %3481 = vmatmul.mubr.bf16.gmra.mrb[0].mxu0 %v3274
    %v3482 = vpop.f32.mrb[0].mxu0
    %v3483 = vadd.f32 %v3210, %v3482
    %v3484 = vpop.f32.mrb[0].mxu0
    %v3485 = vpop.f32.mrb[0].mxu0
    %v3486 = vadd.f32 %v3210, %v3485
    %v3487 = vpop.f32.mrb[0].mxu0
    %3488 = vmatprep.mubr.bf16.mxu0 0
    %3489 = vmatmul.mubr.bf16.gmra.mrb[0].mxu0 %v3277
    %v3490 = vpop.f32.mrb[0].mxu0
    %v3491 = vadd.f32 %v3210, %v3490
    %v3492 = vpop.f32.mrb[0].mxu0
    %v3493 = vpop.f32.mrb[0].mxu0
    %v3494 = vadd.f32 %v3210, %v3493
    %v3495 = vpop.f32.mrb[0].mxu0
    %3496 = vmatprep.mubr.bf16.mxu0 0
    %3497 = vmatmul.mubr.bf16.gmra.mrb[0].mxu0 %v3280
    %v3498 = vpop.f32.mrb[0].mxu0
    %v3499 = vadd.f32 %v3210, %v3498
    %v3500 = vpop.f32.mrb[0].mxu0
    %v3501 = vpop.f32.mrb[0].mxu0
    %v3502 = vadd.f32 %v3210, %v3501
    %v3503 = vpop.f32.mrb[0].mxu0
    %3504 = vmatprep.mubr.bf16.mxu0 0
    %3505 = vmatmul.mubr.bf16.gmra.mrb[0].mxu0 %v3283
    %v3506 = vpop.f32.mrb[0].mxu0
    %v3507 = vadd.f32 %v3210, %v3506
    %v3508 = vpop.f32.mrb[0].mxu0
    %v3509 = vpop.f32.mrb[0].mxu0
    %v3510 = vadd.f32 %v3210, %v3509
    %v3511 = vpop.f32.mrb[0].mxu0
    %3512 = vmatprep.mubr.bf16.mxu0 0
    %3513 = vmatmul.mubr.bf16.gmra.mrb[0].mxu0 %v3286
    %v3514 = vpop.f32.mrb[0].mxu0
    %v3515 = vadd.f32 %v3210, %v3514
    %v3516 = vpop.f32.mrb[0].mxu0
    %v3517 = vpop.f32.mrb[0].mxu0
    %v3518 = vadd.f32 %v3210, %v3517
    %v3519 = vpop.f32.mrb[0].mxu0
    %3520 = vmatprep.mubr.bf16.mxu0 0
    %3521 = vmatmul.mubr.bf16.gmra.mrb[0].mxu0 %v3289
    %v3522 = vpop.f32.mrb[0].mxu0
    %v3523 = vadd.f32 %v3210, %v3522
    %v3524 = vpop.f32.mrb[0].mxu0
    %v3525 = vpop.f32.mrb[0].mxu0
    %v3526 = vadd.f32 %v3210, %v3525
    %v3527 = vpop.f32.mrb[0].mxu0
    %3528 = vmatprep.mubr.bf16.mxu0 0
    %3529 = vmatmul.mubr.bf16.gmra.mrb[0].mxu0 %v3292
    %v3530 = vpop.f32.mrb[0].mxu0
    %v3531 = vadd.f32 %v3210, %v3530
    %v3532 = vpop.f32.mrb[0].mxu0
    %v3533 = vpop.f32.mrb[0].mxu0
    %v3534 = vadd.f32 %v3210, %v3533
    %v3535 = vpop.f32.mrb[0].mxu0
    %3536 = vmatprep.mubr.bf16.mxu0 0
    %3537 = vmatmul.mubr.bf16.gmra.mrb[0].mxu0 %v3295
    %v3538 = vpop.f32.mrb[0].mxu0
    %v3539 = vadd.f32 %v3210, %v3538
    %v3540 = vpop.f32.mrb[0].mxu0
    %v3541 = vpop.f32.mrb[0].mxu0
    %v3542 = vadd.f32 %v3210, %v3541
    %v3543 = vpop.f32.mrb[0].mxu0
    %3544 = vmatprep.mubr.bf16.mxu0 0
    %3545 = vmatmul.mubr.bf16.gmra.mrb[0].mxu0 %v3298
    %v3546 = vpop.f32.mrb[0].mxu0
    %v3547 = vadd.f32 %v3210, %v3546
    %v3548 = vpop.f32.mrb[0].mxu0
    %v3549 = vpop.f32.mrb[0].mxu0
    %v3550 = vadd.f32 %v3210, %v3549
    %v3551 = vpop.f32.mrb[0].mxu0
    %3552 = vmatprep.mubr.bf16.mxu0 0
    %3553 = vmatmul.mubr.bf16.gmra.mrb[0].mxu0 %v3301
    %v3554 = vpop.f32.mrb[0].mxu0
    %v3555 = vadd.f32 %v3210, %v3554
    %v3556 = vpop.f32.mrb[0].mxu0
    %v3557 = vpop.f32.mrb[0].mxu0
    %v3558 = vadd.f32 %v3210, %v3557
    %v3559 = vpop.f32.mrb[0].mxu0
    %3560 = vmatprep.mubr.bf16.mxu0 0
    %3561 = vmatmul.mubr.bf16.gmra.mrb[0].mxu0 %v3304
    %v3562 = vpop.f32.mrb[0].mxu0
    %v3563 = vadd.f32 %v3210, %v3562
    %v3564 = vpop.f32.mrb[0].mxu0
    %v3565 = vpop.f32.mrb[0].mxu0
    %v3566 = vadd.f32 %v3210, %v3565
    %v3567 = vpop.f32.mrb[0].mxu0
    %3568 = vmatprep.mubr.bf16.mxu0 0
    %3569 = vmatmul.mubr.bf16.gmra.mrb[0].mxu0 %v3307
    %v3570 = vpop.f32.mrb[0].mxu0
    %v3571 = vadd.f32 %v3210, %v3570
    %v3572 = vpop.f32.mrb[0].mxu0
    %v3573 = vpop.f32.mrb[0].mxu0
    %v3574 = vadd.f32 %v3210, %v3573
    %v3575 = vpop.f32.mrb[0].mxu0
    %3576 = vmatprep.mubr.bf16.mxu0 0
    %3577 = vmatmul.mubr.bf16.gmra.mrb[0].mxu0 %v3310
    %v3578 = vpop.f32.mrb[0].mxu0
    %v3579 = vadd.f32 %v3210, %v3578
    %v3580 = vpop.f32.mrb[0].mxu0
    %v3581 = vpop.f32.mrb[0].mxu0
    %v3582 = vadd.f32 %v3210, %v3581
    %v3583 = vpop.f32.mrb[0].mxu0
    %3584 = vmatprep.mubr.bf16.mxu0 0
    %3585 = vmatmul.mubr.bf16.gmra.mrb[0].mxu0 %v3313
    %v3586 = vpop.f32.mrb[0].mxu0
    %v3587 = vadd.f32 %v3210, %v3586
    %v3588 = vpop.f32.mrb[0].mxu0
    %v3589 = vpop.f32.mrb[0].mxu0
    %v3590 = vadd.f32 %v3210, %v3589
    %v3591 = vpop.f32.mrb[0].mxu0
    %3592 = vmatprep.mubr.bf16.mxu0 0
    %3593 = vmatmul.mubr.bf16.gmra.mrb[0].mxu0 %v3316
    %v3594 = vpop.f32.mrb[0].mxu0
    %v3595 = vadd.f32 %v3210, %v3594
    %v3596 = vpop.f32.mrb[0].mxu0
    %v3597 = vpop.f32.mrb[0].mxu0
    %v3598 = vadd.f32 %v3210, %v3597
    %v3599 = vpop.f32.mrb[0].mxu0
    %3600 = vmatprep.mubr.bf16.mxu0 0
    %3601 = vmatmul.mubr.bf16.gmra.mrb[0].mxu0 %v3319
    %v3602 = vpop.f32.mrb[0].mxu0
    %v3603 = vadd.f32 %v3210, %v3602
    %v3604 = vpop.f32.mrb[0].mxu0
    %v3605 = vpop.f32.mrb[0].mxu0
    %v3606 = vadd.f32 %v3210, %v3605
    %v3607 = vpop.f32.mrb[0].mxu0
    %3608 = vmatprep.mubr.bf16.mxu0 0
    %3609 = vmatmul.mubr.bf16.gmra.mrb[0].mxu0 %v3322
    %v3610 = vpop.f32.mrb[0].mxu0
    %v3611 = vadd.f32 %v3210, %v3610
    %v3612 = vpop.f32.mrb[0].mxu0
    %v3613 = vpop.f32.mrb[0].mxu0
    %v3614 = vadd.f32 %v3210, %v3613
    %v3615 = vpop.f32.mrb[0].mxu0
    %3616 = vdwg.mxu0
    %v3617 = vmax.f32 %v3363, 0.0
    %v3618 = vmax.f32 %v3366, 0.0
    %v3619 = vmax.f32 %v3371, 0.0
    %v3620 = vmax.f32 %v3374, 0.0
    %v3621 = vmax.f32 %v3379, 0.0
    %v3622 = vmax.f32 %v3382, 0.0
    %v3623 = vmax.f32 %v3387, 0.0
    %v3624 = vmax.f32 %v3390, 0.0
    %v3625 = vmax.f32 %v3395, 0.0
    %v3626 = vmax.f32 %v3398, 0.0
    %v3627 = vmax.f32 %v3403, 0.0
    %v3628 = vmax.f32 %v3406, 0.0
    %v3629 = vmax.f32 %v3411, 0.0
    %v3630 = vmax.f32 %v3414, 0.0
    %v3631 = vmax.f32 %v3419, 0.0
    %v3632 = vmax.f32 %v3422, 0.0
    %v3633 = vmax.f32 %v3427, 0.0
    %v3634 = vmax.f32 %v3430, 0.0
    %v3635 = vmax.f32 %v3435, 0.0
    %v3636 = vmax.f32 %v3438, 0.0
    %v3637 = vmax.f32 %v3443, 0.0
    %v3638 = vmax.f32 %v3446, 0.0
    %v3639 = vmax.f32 %v3451, 0.0
    %v3640 = vmax.f32 %v3454, 0.0
    %v3641 = vmax.f32 %v3459, 0.0
    %v3642 = vmax.f32 %v3462, 0.0
    %v3643 = vmax.f32 %v3467, 0.0
    %v3644 = vmax.f32 %v3470, 0.0
    %v3645 = vmax.f32 %v3475, 0.0
    %v3646 = vmax.f32 %v3478, 0.0
    %v3647 = vmax.f32 %v3483, 0.0
    %v3648 = vmax.f32 %v3486, 0.0
    %v3649 = vmax.f32 %v3491, 0.0
    %v3650 = vmax.f32 %v3494, 0.0
    %v3651 = vmax.f32 %v3499, 0.0
    %v3652 = vmax.f32 %v3502, 0.0
    %v3653 = vmax.f32 %v3507, 0.0
    %v3654 = vmax.f32 %v3510, 0.0
    %v3655 = vmax.f32 %v3515, 0.0
    %v3656 = vmax.f32 %v3518, 0.0
    %v3657 = vmax.f32 %v3523, 0.0
    %v3658 = vmax.f32 %v3526, 0.0
    %v3659 = vmax.f32 %v3531, 0.0
    %v3660 = vmax.f32 %v3534, 0.0
    %v3661 = vmax.f32 %v3539, 0.0
    %v3662 = vmax.f32 %v3542, 0.0
    %v3663 = vmax.f32 %v3547, 0.0
    %v3664 = vmax.f32 %v3550, 0.0
    %v3665 = vmax.f32 %v3555, 0.0
    %v3666 = vmax.f32 %v3558, 0.0
    %v3667 = vmax.f32 %v3563, 0.0
    %v3668 = vmax.f32 %v3566, 0.0
    %v3669 = vmax.f32 %v3571, 0.0
    %v3670 = vmax.f32 %v3574, 0.0
    %v3671 = vmax.f32 %v3579, 0.0
    %v3672 = vmax.f32 %v3582, 0.0
    %v3673 = vmax.f32 %v3587, 0.0
    %v3674 = vmax.f32 %v3590, 0.0
    %v3675 = vmax.f32 %v3595, 0.0
    %v3676 = vmax.f32 %v3598, 0.0
    %v3677 = vmax.f32 %v3603, 0.0
    %v3678 = vmax.f32 %v3606, 0.0
    %v3679 = vmax.f32 %v3611, 0.0
    %v3680 = vmax.f32 %v3614, 0.0
    %3681 = vst.msk [vmem:[#allocation2] sm:$0xff] %vm3103, 0.0
    %3682 = vst.msk [vmem:[#allocation2 + $0x8] sm:$0xff] %vm3103, 0.0
    %vm3683 = vcmask 254976
    %3684 = vst.msk [vmem:[#allocation2 + $0x10] sm:$0x3] %vm3683, 0.0
    %3685 = vst.msk [vmem:[#allocation2 + $0x1b0] sm:$0xff] %vm3103, 0.0
    %3686 = vst.msk [vmem:[#allocation2 + $0x1b8] sm:$0xff] %vm3103, 0.0
    %3687 = vst.msk [vmem:[#allocation2 + $0x1c0] sm:$0x3] %vm3683, 0.0
    %s3688 = scalar_lea.vmem [#allocation2], 408
    %3689 = vst.msk [vmem:[%s3688] sm:$0xff] %vm3103, 0.0
    %3690 = vst.msk [vmem:[%s3688 + $0x8] sm:$0xff] %vm3103, 0.0
    %3691 = vst.msk [vmem:[%s3688 + $0x10] sm:$0x3] %vm3683, 0.0
    %3692 = vst.msk [vmem:[%s3688 + $0x1b0] sm:$0xff] %vm3103, 0.0
    %3693 = vst.msk [vmem:[%s3688 + $0x1b8] sm:$0xff] %vm3103, 0.0
    %3694 = vst.msk [vmem:[%s3688 + $0x1c0] sm:$0x3] %vm3683, 0.0
    %vm3695 = vcmask 253952
    %3696 = vst.msk [vmem:[#allocation2] sm:$0x1] %vm3695, 0.0
    %3697 = vst.msk [vmem:[#allocation2 + $0x18] sm:$0x1] %vm3695, 0.0
    %3698 = vst.msk [vmem:[#allocation2 + $0x30] sm:$0x1] %vm3695, 0.0
    %3699 = vst.msk [vmem:[#allocation2 + $0x48] sm:$0x1] %vm3695, 0.0
    %3700 = vst.msk [vmem:[#allocation2 + $0x60] sm:$0x1] %vm3695, 0.0
    %3701 = vst.msk [vmem:[#allocation2 + $0x78] sm:$0x1] %vm3695, 0.0
    %3702 = vst.msk [vmem:[#allocation2 + $0x90] sm:$0x1] %vm3695, 0.0
    %3703 = vst.msk [vmem:[#allocation2 + $0xa8] sm:$0x1] %vm3695, 0.0
    %3704 = vst.msk [vmem:[#allocation2 + $0xc0] sm:$0x1] %vm3695, 0.0
    %3705 = vst.msk [vmem:[#allocation2 + $0xd8] sm:$0x1] %vm3695, 0.0
    %3706 = vst.msk [vmem:[#allocation2 + $0xf0] sm:$0x1] %vm3695, 0.0
    %3707 = vst.msk [vmem:[#allocation2 + $0x108] sm:$0x1] %vm3695, 0.0
    %3708 = vst.msk [vmem:[#allocation2 + $0x120] sm:$0x1] %vm3695, 0.0
    %3709 = vst.msk [vmem:[#allocation2 + $0x138] sm:$0x1] %vm3695, 0.0
    %3710 = vst.msk [vmem:[#allocation2 + $0x150] sm:$0x1] %vm3695, 0.0
    %3711 = vst.msk [vmem:[#allocation2 + $0x168] sm:$0x1] %vm3695, 0.0
    %3712 = vst.msk [vmem:[#allocation2 + $0x180] sm:$0x1] %vm3695, 0.0
    %3713 = vst.msk [vmem:[#allocation2 + $0x198] sm:$0x1] %vm3695, 0.0
    %3714 = vst.msk [vmem:[#allocation2 + $0x1b0] sm:$0x1] %vm3695, 0.0
    %3715 = vst.msk [vmem:[#allocation2 + $0x1c8] sm:$0x1] %vm3695, 0.0
    %3716 = vst.msk [vmem:[#allocation2 + $0x1e0] sm:$0x1] %vm3695, 0.0
    %3717 = vst.msk [vmem:[#allocation2 + $0x1f8] sm:$0x1] %vm3695, 0.0
    %3718 = vst.msk [vmem:[#allocation2 + $0x210] sm:$0x1] %vm3695, 0.0
    %3719 = vst.msk [vmem:[#allocation2 + $0x228] sm:$0x1] %vm3695, 0.0
    %3720 = vst.msk [vmem:[#allocation2 + $0x240] sm:$0x1] %vm3695, 0.0
    %3721 = vst.msk [vmem:[#allocation2 + $0x258] sm:$0x1] %vm3695, 0.0
    %3722 = vst.msk [vmem:[#allocation2 + $0x270] sm:$0x1] %vm3695, 0.0
    %3723 = vst.msk [vmem:[#allocation2 + $0x288] sm:$0x1] %vm3695, 0.0
    %3724 = vst.msk [vmem:[#allocation2 + $0x2a0] sm:$0x1] %vm3695, 0.0
    %3725 = vst.msk [vmem:[#allocation2 + $0x2b8] sm:$0x1] %vm3695, 0.0
    %3726 = vst.msk [vmem:[#allocation2 + $0x2d0] sm:$0x1] %vm3695, 0.0
    %3727 = vst.msk [vmem:[#allocation2 + $0x2e8] sm:$0x1] %vm3695, 0.0
    %3728 = vst.msk [vmem:[#allocation2 + $0x300] sm:$0x1] %vm3695, 0.0
    %3729 = vst.msk [vmem:[#allocation2 + $0x318] sm:$0x1] %vm3695, 0.0
    %3730 = vst.msk [vmem:[#allocation2 + $0x330] sm:$0x1] %vm3695, 0.0
    %3731 = vst.msk [vmem:[#allocation2 + $0x348] sm:$0x1] %vm3695, 0.0
    %3732 = vst.msk [vmem:[#allocation2 + $0x11] sm:$0x1] %vm3695, 0.0
    %3733 = vst.msk [vmem:[#allocation2 + $0x29] sm:$0x1] %vm3695, 0.0
    %3734 = vst.msk [vmem:[#allocation2 + $0x41] sm:$0x1] %vm3695, 0.0
    %3735 = vst.msk [vmem:[#allocation2 + $0x59] sm:$0x1] %vm3695, 0.0
    %3736 = vst.msk [vmem:[#allocation2 + $0x71] sm:$0x1] %vm3695, 0.0
    %3737 = vst.msk [vmem:[#allocation2 + $0x89] sm:$0x1] %vm3695, 0.0
    %3738 = vst.msk [vmem:[#allocation2 + $0xa1] sm:$0x1] %vm3695, 0.0
    %3739 = vst.msk [vmem:[#allocation2 + $0xb9] sm:$0x1] %vm3695, 0.0
    %3740 = vst.msk [vmem:[#allocation2 + $0xd1] sm:$0x1] %vm3695, 0.0
    %3741 = vst.msk [vmem:[#allocation2 + $0xe9] sm:$0x1] %vm3695, 0.0
    %3742 = vst.msk [vmem:[#allocation2 + $0x101] sm:$0x1] %vm3695, 0.0
    %3743 = vst.msk [vmem:[#allocation2 + $0x119] sm:$0x1] %vm3695, 0.0
    %3744 = vst.msk [vmem:[#allocation2 + $0x131] sm:$0x1] %vm3695, 0.0
    %3745 = vst.msk [vmem:[#allocation2 + $0x149] sm:$0x1] %vm3695, 0.0
    %3746 = vst.msk [vmem:[#allocation2 + $0x161] sm:$0x1] %vm3695, 0.0
    %3747 = vst.msk [vmem:[#allocation2 + $0x179] sm:$0x1] %vm3695, 0.0
    %3748 = vst.msk [vmem:[#allocation2 + $0x191] sm:$0x1] %vm3695, 0.0
    %3749 = vst.msk [vmem:[#allocation2 + $0x1a9] sm:$0x1] %vm3695, 0.0
    %3750 = vst.msk [vmem:[#allocation2 + $0x1c1] sm:$0x1] %vm3695, 0.0
    %3751 = vst.msk [vmem:[#allocation2 + $0x1d9] sm:$0x1] %vm3695, 0.0
    %3752 = vst.msk [vmem:[#allocation2 + $0x1f1] sm:$0x1] %vm3695, 0.0
    %3753 = vst.msk [vmem:[#allocation2 + $0x209] sm:$0x1] %vm3695, 0.0
    %3754 = vst.msk [vmem:[#allocation2 + $0x221] sm:$0x1] %vm3695, 0.0
    %3755 = vst.msk [vmem:[#allocation2 + $0x239] sm:$0x1] %vm3695, 0.0
    %3756 = vst.msk [vmem:[#allocation2 + $0x251] sm:$0x1] %vm3695, 0.0
    %3757 = vst.msk [vmem:[#allocation2 + $0x269] sm:$0x1] %vm3695, 0.0
    %3758 = vst.msk [vmem:[#allocation2 + $0x281] sm:$0x1] %vm3695, 0.0
    %3759 = vst.msk [vmem:[#allocation2 + $0x299] sm:$0x1] %vm3695, 0.0
    %3760 = vst.msk [vmem:[#allocation2 + $0x2b1] sm:$0x1] %vm3695, 0.0
    %3761 = vst.msk [vmem:[#allocation2 + $0x2c9] sm:$0x1] %vm3695, 0.0
    %3762 = vst.msk [vmem:[#allocation2 + $0x2e1] sm:$0x1] %vm3695, 0.0
    %3763 = vst.msk [vmem:[#allocation2 + $0x2f9] sm:$0x1] %vm3695, 0.0
    %3764 = vst.msk [vmem:[#allocation2 + $0x311] sm:$0x1] %vm3695, 0.0
    %3765 = vst.msk [vmem:[#allocation2 + $0x329] sm:$0x1] %vm3695, 0.0
    %3766 = vst.msk [vmem:[#allocation2 + $0x341] sm:$0x1] %vm3695, 0.0
    %3767 = vst.msk [vmem:[#allocation2 + $0x359] sm:$0x1] %vm3695, 0.0
    %s3768 = scalar_lea.vmem [#allocation2], 24
    %3769 = vst.msk [vmem:[%s3768 + $0x1] sm:$0xff] %vm3103, %v3617
    %3770 = vst.msk [vmem:[%s3768 + $0x9] sm:$0xff] %vm3103, %v3618
    %3771 = vst.msk [vmem:[%s3768 + $0x19] sm:$0xff] %vm3103, %v3619
    %3772 = vst.msk [vmem:[%s3768 + $0x21] sm:$0xff] %vm3103, %v3620
    %3773 = vst.msk [vmem:[%s3768 + $0x31] sm:$0xff] %vm3103, %v3621
    %3774 = vst.msk [vmem:[%s3768 + $0x39] sm:$0xff] %vm3103, %v3622
    %3775 = vst.msk [vmem:[%s3768 + $0x49] sm:$0xff] %vm3103, %v3623
    %3776 = vst.msk [vmem:[%s3768 + $0x51] sm:$0xff] %vm3103, %v3624
    %3777 = vst.msk [vmem:[%s3768 + $0x61] sm:$0xff] %vm3103, %v3625
    %3778 = vst.msk [vmem:[%s3768 + $0x69] sm:$0xff] %vm3103, %v3626
    %3779 = vst.msk [vmem:[%s3768 + $0x79] sm:$0xff] %vm3103, %v3627
    %3780 = vst.msk [vmem:[%s3768 + $0x81] sm:$0xff] %vm3103, %v3628
    %3781 = vst.msk [vmem:[%s3768 + $0x91] sm:$0xff] %vm3103, %v3629
    %3782 = vst.msk [vmem:[%s3768 + $0x99] sm:$0xff] %vm3103, %v3630
    %3783 = vst.msk [vmem:[%s3768 + $0xa9] sm:$0xff] %vm3103, %v3631
    %3784 = vst.msk [vmem:[%s3768 + $0xb1] sm:$0xff] %vm3103, %v3632
    %3785 = vst.msk [vmem:[%s3768 + $0xc1] sm:$0xff] %vm3103, %v3633
    %3786 = vst.msk [vmem:[%s3768 + $0xc9] sm:$0xff] %vm3103, %v3634
    %3787 = vst.msk [vmem:[%s3768 + $0xd9] sm:$0xff] %vm3103, %v3635
    %3788 = vst.msk [vmem:[%s3768 + $0xe1] sm:$0xff] %vm3103, %v3636
    %3789 = vst.msk [vmem:[%s3768 + $0xf1] sm:$0xff] %vm3103, %v3637
    %3790 = vst.msk [vmem:[%s3768 + $0xf9] sm:$0xff] %vm3103, %v3638
    %3791 = vst.msk [vmem:[%s3768 + $0x109] sm:$0xff] %vm3103, %v3639
    %3792 = vst.msk [vmem:[%s3768 + $0x111] sm:$0xff] %vm3103, %v3640
    %3793 = vst.msk [vmem:[%s3768 + $0x121] sm:$0xff] %vm3103, %v3641
    %3794 = vst.msk [vmem:[%s3768 + $0x129] sm:$0xff] %vm3103, %v3642
    %3795 = vst.msk [vmem:[%s3768 + $0x139] sm:$0xff] %vm3103, %v3643
    %3796 = vst.msk [vmem:[%s3768 + $0x141] sm:$0xff] %vm3103, %v3644
    %3797 = vst.msk [vmem:[%s3768 + $0x151] sm:$0xff] %vm3103, %v3645
    %3798 = vst.msk [vmem:[%s3768 + $0x159] sm:$0xff] %vm3103, %v3646
    %3799 = vst.msk [vmem:[%s3768 + $0x169] sm:$0xff] %vm3103, %v3647
    %3800 = vst.msk [vmem:[%s3768 + $0x171] sm:$0xff] %vm3103, %v3648
    %3801 = vst.msk [vmem:[%s3768 + $0x1b1] sm:$0xff] %vm3103, %v3649
    %3802 = vst.msk [vmem:[%s3768 + $0x1b9] sm:$0xff] %vm3103, %v3650
    %3803 = vst.msk [vmem:[%s3768 + $0x1c9] sm:$0xff] %vm3103, %v3651
    %3804 = vst.msk [vmem:[%s3768 + $0x1d1] sm:$0xff] %vm3103, %v3652
    %3805 = vst.msk [vmem:[%s3768 + $0x1e1] sm:$0xff] %vm3103, %v3653
    %3806 = vst.msk [vmem:[%s3768 + $0x1e9] sm:$0xff] %vm3103, %v3654
    %3807 = vst.msk [vmem:[%s3768 + $0x1f9] sm:$0xff] %vm3103, %v3655
    %3808 = vst.msk [vmem:[%s3768 + $0x201] sm:$0xff] %vm3103, %v3656
    %3809 = vst.msk [vmem:[%s3768 + $0x211] sm:$0xff] %vm3103, %v3657
    %3810 = vst.msk [vmem:[%s3768 + $0x219] sm:$0xff] %vm3103, %v3658
    %3811 = vst.msk [vmem:[%s3768 + $0x229] sm:$0xff] %vm3103, %v3659
    %3812 = vst.msk [vmem:[%s3768 + $0x231] sm:$0xff] %vm3103, %v3660
    %3813 = vst.msk [vmem:[%s3768 + $0x241] sm:$0xff] %vm3103, %v3661
    %3814 = vst.msk [vmem:[%s3768 + $0x249] sm:$0xff] %vm3103, %v3662
    %3815 = vst.msk [vmem:[%s3768 + $0x259] sm:$0xff] %vm3103, %v3663
    %3816 = vst.msk [vmem:[%s3768 + $0x261] sm:$0xff] %vm3103, %v3664
    %3817 = vst.msk [vmem:[%s3768 + $0x271] sm:$0xff] %vm3103, %v3665
    %3818 = vst.msk [vmem:[%s3768 + $0x279] sm:$0xff] %vm3103, %v3666
    %3819 = vst.msk [vmem:[%s3768 + $0x289] sm:$0xff] %vm3103, %v3667
    %3820 = vst.msk [vmem:[%s3768 + $0x291] sm:$0xff] %vm3103, %v3668
    %3821 = vst.msk [vmem:[%s3768 + $0x2a1] sm:$0xff] %vm3103, %v3669
    %3822 = vst.msk [vmem:[%s3768 + $0x2a9] sm:$0xff] %vm3103, %v3670
    %3823 = vst.msk [vmem:[%s3768 + $0x2b9] sm:$0xff] %vm3103, %v3671
    %3824 = vst.msk [vmem:[%s3768 + $0x2c1] sm:$0xff] %vm3103, %v3672
    %3825 = vst.msk [vmem:[%s3768 + $0x2d1] sm:$0xff] %vm3103, %v3673
    %3826 = vst.msk [vmem:[%s3768 + $0x2d9] sm:$0xff] %vm3103, %v3674
    %3827 = vst.msk [vmem:[%s3768 + $0x2e9] sm:$0xff] %vm3103, %v3675
    %3828 = vst.msk [vmem:[%s3768 + $0x2f1] sm:$0xff] %vm3103, %v3676
    %3829 = vst.msk [vmem:[%s3768 + $0x301] sm:$0xff] %vm3103, %v3677
    %3830 = vst.msk [vmem:[%s3768 + $0x309] sm:$0xff] %vm3103, %v3678
    %3831 = vst.msk [vmem:[%s3768 + $0x319] sm:$0xff] %vm3103, %v3679
    %3832 = vst.msk [vmem:[%s3768 + $0x321] sm:$0xff] %vm3103, %v3680
    %v3833 = vld [vmem:[#allocation2] sm:$0xff]
    %v3834 = vld [vmem:[#allocation2 + $0x8] sm:$0xff]
    %v3835 = vld [vmem:[#allocation2 + $0x18] sm:$0xff]
    %v3836 = vld [vmem:[#allocation2 + $0x20] sm:$0xff]
    %v3837 = vld [vmem:[#allocation2 + $0x30] sm:$0xff]
    %v3838 = vld [vmem:[#allocation2 + $0x38] sm:$0xff]
    %v3839 = vld [vmem:[#allocation2 + $0x48] sm:$0xff]
    %v3840 = vld [vmem:[#allocation2 + $0x50] sm:$0xff]
    %v3841 = vld [vmem:[#allocation2 + $0x60] sm:$0xff]
    %v3842 = vld [vmem:[#allocation2 + $0x68] sm:$0xff]
    %v3843 = vld [vmem:[#allocation2 + $0x78] sm:$0xff]
    %v3844 = vld [vmem:[#allocation2 + $0x80] sm:$0xff]
    %v3845 = vld [vmem:[#allocation2 + $0x90] sm:$0xff]
    %v3846 = vld [vmem:[#allocation2 + $0x98] sm:$0xff]
    %v3847 = vld [vmem:[#allocation2 + $0xa8] sm:$0xff]
    %v3848 = vld [vmem:[#allocation2 + $0xb0] sm:$0xff]
    %v3849 = vld [vmem:[#allocation2 + $0xc0] sm:$0xff]
    %v3850 = vld [vmem:[#allocation2 + $0xc8] sm:$0xff]
    %v3851 = vld [vmem:[#allocation2 + $0xd8] sm:$0xff]
    %v3852 = vld [vmem:[#allocation2 + $0xe0] sm:$0xff]
    %v3853 = vld [vmem:[#allocation2 + $0xf0] sm:$0xff]
    %v3854 = vld [vmem:[#allocation2 + $0xf8] sm:$0xff]
    %v3855 = vld [vmem:[#allocation2 + $0x108] sm:$0xff]
    %v3856 = vld [vmem:[#allocation2 + $0x110] sm:$0xff]
    %v3857 = vld [vmem:[#allocation2 + $0x120] sm:$0xff]
    %v3858 = vld [vmem:[#allocation2 + $0x128] sm:$0xff]
    %v3859 = vld [vmem:[#allocation2 + $0x138] sm:$0xff]
    %v3860 = vld [vmem:[#allocation2 + $0x140] sm:$0xff]
    %v3861 = vld [vmem:[#allocation2 + $0x150] sm:$0xff]
    %v3862 = vld [vmem:[#allocation2 + $0x158] sm:$0xff]
    %v3863 = vld [vmem:[#allocation2 + $0x168] sm:$0xff]
    %v3864 = vld [vmem:[#allocation2 + $0x170] sm:$0xff]
    %v3865 = vld [vmem:[#allocation2 + $0x1b0] sm:$0xff]
    %v3866 = vld [vmem:[#allocation2 + $0x1b8] sm:$0xff]
    %v3867 = vld [vmem:[#allocation2 + $0x1c8] sm:$0xff]
    %v3868 = vld [vmem:[#allocation2 + $0x1d0] sm:$0xff]
    %v3869 = vld [vmem:[#allocation2 + $0x1e0] sm:$0xff]
    %v3870 = vld [vmem:[#allocation2 + $0x1e8] sm:$0xff]
    %v3871 = vld [vmem:[#allocation2 + $0x1f8] sm:$0xff]
    %v3872 = vld [vmem:[#allocation2 + $0x200] sm:$0xff]
    %v3873 = vld [vmem:[#allocation2 + $0x210] sm:$0xff]
    %v3874 = vld [vmem:[#allocation2 + $0x218] sm:$0xff]
    %v3875 = vld [vmem:[#allocation2 + $0x228] sm:$0xff]
    %v3876 = vld [vmem:[#allocation2 + $0x230] sm:$0xff]
    %v3877 = vld [vmem:[#allocation2 + $0x240] sm:$0xff]
    %v3878 = vld [vmem:[#allocation2 + $0x248] sm:$0xff]
    %v3879 = vld [vmem:[#allocation2 + $0x258] sm:$0xff]
    %v3880 = vld [vmem:[#allocation2 + $0x260] sm:$0xff]
    %v3881 = vld [vmem:[#allocation2 + $0x270] sm:$0xff]
    %v3882 = vld [vmem:[#allocation2 + $0x278] sm:$0xff]
    %v3883 = vld [vmem:[#allocation2 + $0x288] sm:$0xff]
    %v3884 = vld [vmem:[#allocation2 + $0x290] sm:$0xff]
    %v3885 = vld [vmem:[#allocation2 + $0x2a0] sm:$0xff]
    %v3886 = vld [vmem:[#allocation2 + $0x2a8] sm:$0xff]
    %v3887 = vld [vmem:[#allocation2 + $0x2b8] sm:$0xff]
    %v3888 = vld [vmem:[#allocation2 + $0x2c0] sm:$0xff]
    %v3889 = vld [vmem:[#allocation2 + $0x2d0] sm:$0xff]
    %v3890 = vld [vmem:[#allocation2 + $0x2d8] sm:$0xff]
    %v3891 = vld [vmem:[#allocation2 + $0x2e8] sm:$0xff]
    %v3892 = vld [vmem:[#allocation2 + $0x2f0] sm:$0xff]
    %v3893 = vld [vmem:[#allocation2 + $0x300] sm:$0xff]
    %v3894 = vld [vmem:[#allocation2 + $0x308] sm:$0xff]
    %v3895 = vld [vmem:[#allocation2 + $0x318] sm:$0xff]
    %v3896 = vld [vmem:[#allocation2 + $0x320] sm:$0xff]
    %v3897 = vld [vmem:[#allocation2 + $0x1] sm:$0xff]
    %v3898 = vld [vmem:[#allocation2 + $0x9] sm:$0xff]
    %v3899 = vld [vmem:[#allocation2 + $0x19] sm:$0xff]
    %v3900 = vld [vmem:[#allocation2 + $0x21] sm:$0xff]
    %v3901 = vld [vmem:[#allocation2 + $0x31] sm:$0xff]
    %v3902 = vld [vmem:[#allocation2 + $0x39] sm:$0xff]
    %v3903 = vld [vmem:[#allocation2 + $0x49] sm:$0xff]
    %v3904 = vld [vmem:[#allocation2 + $0x51] sm:$0xff]
    %v3905 = vld [vmem:[#allocation2 + $0x61] sm:$0xff]
    %v3906 = vld [vmem:[#allocation2 + $0x69] sm:$0xff]
    %v3907 = vld [vmem:[#allocation2 + $0x79] sm:$0xff]
    %v3908 = vld [vmem:[#allocation2 + $0x81] sm:$0xff]
    %v3909 = vld [vmem:[#allocation2 + $0x91] sm:$0xff]
    %v3910 = vld [vmem:[#allocation2 + $0x99] sm:$0xff]
    %v3911 = vld [vmem:[#allocation2 + $0xa9] sm:$0xff]
    %v3912 = vld [vmem:[#allocation2 + $0xb1] sm:$0xff]
    %v3913 = vld [vmem:[#allocation2 + $0xc1] sm:$0xff]
    %v3914 = vld [vmem:[#allocation2 + $0xc9] sm:$0xff]
    %v3915 = vld [vmem:[#allocation2 + $0xd9] sm:$0xff]
    %v3916 = vld [vmem:[#allocation2 + $0xe1] sm:$0xff]
    %v3917 = vld [vmem:[#allocation2 + $0xf1] sm:$0xff]
    %v3918 = vld [vmem:[#allocation2 + $0xf9] sm:$0xff]
    %v3919 = vld [vmem:[#allocation2 + $0x109] sm:$0xff]
    %v3920 = vld [vmem:[#allocation2 + $0x111] sm:$0xff]
    %v3921 = vld [vmem:[#allocation2 + $0x121] sm:$0xff]
    %v3922 = vld [vmem:[#allocation2 + $0x129] sm:$0xff]
    %v3923 = vld [vmem:[#allocation2 + $0x139] sm:$0xff]
    %v3924 = vld [vmem:[#allocation2 + $0x141] sm:$0xff]
    %v3925 = vld [vmem:[#allocation2 + $0x151] sm:$0xff]
    %v3926 = vld [vmem:[#allocation2 + $0x159] sm:$0xff]
    %v3927 = vld [vmem:[#allocation2 + $0x169] sm:$0xff]
    %v3928 = vld [vmem:[#allocation2 + $0x171] sm:$0xff]
    %v3929 = vld [vmem:[#allocation2 + $0x1b1] sm:$0xff]
    %v3930 = vld [vmem:[#allocation2 + $0x1b9] sm:$0xff]
    %v3931 = vld [vmem:[#allocation2 + $0x1c9] sm:$0xff]
    %v3932 = vld [vmem:[#allocation2 + $0x1d1] sm:$0xff]
    %v3933 = vld [vmem:[#allocation2 + $0x1e1] sm:$0xff]
    %v3934 = vld [vmem:[#allocation2 + $0x1e9] sm:$0xff]
    %v3935 = vld [vmem:[#allocation2 + $0x1f9] sm:$0xff]
    %v3936 = vld [vmem:[#allocation2 + $0x201] sm:$0xff]
    %v3937 = vld [vmem:[#allocation2 + $0x211] sm:$0xff]
    %v3938 = vld [vmem:[#allocation2 + $0x219] sm:$0xff]
    %v3939 = vld [vmem:[#allocation2 + $0x229] sm:$0xff]
    %v3940 = vld [vmem:[#allocation2 + $0x231] sm:$0xff]
    %v3941 = vld [vmem:[#allocation2 + $0x241] sm:$0xff]
    %v3942 = vld [vmem:[#allocation2 + $0x249] sm:$0xff]
    %v3943 = vld [vmem:[#allocation2 + $0x259] sm:$0xff]
    %v3944 = vld [vmem:[#allocation2 + $0x261] sm:$0xff]
    %v3945 = vld [vmem:[#allocation2 + $0x271] sm:$0xff]
    %v3946 = vld [vmem:[#allocation2 + $0x279] sm:$0xff]
    %v3947 = vld [vmem:[#allocation2 + $0x289] sm:$0xff]
    %v3948 = vld [vmem:[#allocation2 + $0x291] sm:$0xff]
    %v3949 = vld [vmem:[#allocation2 + $0x2a1] sm:$0xff]
    %v3950 = vld [vmem:[#allocation2 + $0x2a9] sm:$0xff]
    %v3951 = vld [vmem:[#allocation2 + $0x2b9] sm:$0xff]
    %v3952 = vld [vmem:[#allocation2 + $0x2c1] sm:$0xff]
    %v3953 = vld [vmem:[#allocation2 + $0x2d1] sm:$0xff]
    %v3954 = vld [vmem:[#allocation2 + $0x2d9] sm:$0xff]
    %v3955 = vld [vmem:[#allocation2 + $0x2e9] sm:$0xff]
    %v3956 = vld [vmem:[#allocation2 + $0x2f1] sm:$0xff]
    %v3957 = vld [vmem:[#allocation2 + $0x301] sm:$0xff]
    %v3958 = vld [vmem:[#allocation2 + $0x309] sm:$0xff]
    %v3959 = vld [vmem:[#allocation2 + $0x319] sm:$0xff]
    %v3960 = vld [vmem:[#allocation2 + $0x321] sm:$0xff]
    %v3961 = vld [vmem:[#allocation2 + $0x2] sm:$0xff]
    %v3962 = vld [vmem:[#allocation2 + $0xa] sm:$0xff]
    %v3963 = vld [vmem:[#allocation2 + $0x1a] sm:$0xff]
    %v3964 = vld [vmem:[#allocation2 + $0x22] sm:$0xff]
    %v3965 = vld [vmem:[#allocation2 + $0x32] sm:$0xff]
    %v3966 = vld [vmem:[#allocation2 + $0x3a] sm:$0xff]
    %v3967 = vld [vmem:[#allocation2 + $0x4a] sm:$0xff]
    %v3968 = vld [vmem:[#allocation2 + $0x52] sm:$0xff]
    %v3969 = vld [vmem:[#allocation2 + $0x62] sm:$0xff]
    %v3970 = vld [vmem:[#allocation2 + $0x6a] sm:$0xff]
    %v3971 = vld [vmem:[#allocation2 + $0x7a] sm:$0xff]
    %v3972 = vld [vmem:[#allocation2 + $0x82] sm:$0xff]
    %v3973 = vld [vmem:[#allocation2 + $0x92] sm:$0xff]
    %v3974 = vld [vmem:[#allocation2 + $0x9a] sm:$0xff]
    %v3975 = vld [vmem:[#allocation2 + $0xaa] sm:$0xff]
    %v3976 = vld [vmem:[#allocation2 + $0xb2] sm:$0xff]
    %v3977 = vld [vmem:[#allocation2 + $0xc2] sm:$0xff]
    %v3978 = vld [vmem:[#allocation2 + $0xca] sm:$0xff]
    %v3979 = vld [vmem:[#allocation2 + $0xda] sm:$0xff]
    %v3980 = vld [vmem:[#allocation2 + $0xe2] sm:$0xff]
    %v3981 = vld [vmem:[#allocation2 + $0xf2] sm:$0xff]
    %v3982 = vld [vmem:[#allocation2 + $0xfa] sm:$0xff]
    %v3983 = vld [vmem:[#allocation2 + $0x10a] sm:$0xff]
    %v3984 = vld [vmem:[#allocation2 + $0x112] sm:$0xff]
    %v3985 = vld [vmem:[#allocation2 + $0x122] sm:$0xff]
    %v3986 = vld [vmem:[#allocation2 + $0x12a] sm:$0xff]
    %v3987 = vld [vmem:[#allocation2 + $0x13a] sm:$0xff]
    %v3988 = vld [vmem:[#allocation2 + $0x142] sm:$0xff]
    %v3989 = vld [vmem:[#allocation2 + $0x152] sm:$0xff]
    %v3990 = vld [vmem:[#allocation2 + $0x15a] sm:$0xff]
    %v3991 = vld [vmem:[#allocation2 + $0x16a] sm:$0xff]
    %v3992 = vld [vmem:[#allocation2 + $0x172] sm:$0xff]
    %v3993 = vld [vmem:[#allocation2 + $0x1b2] sm:$0xff]
    %v3994 = vld [vmem:[#allocation2 + $0x1ba] sm:$0xff]
    %v3995 = vld [vmem:[#allocation2 + $0x1ca] sm:$0xff]
    %v3996 = vld [vmem:[#allocation2 + $0x1d2] sm:$0xff]
    %v3997 = vld [vmem:[#allocation2 + $0x1e2] sm:$0xff]
    %v3998 = vld [vmem:[#allocation2 + $0x1ea] sm:$0xff]
    %v3999 = vld [vmem:[#allocation2 + $0x1fa] sm:$0xff]
    %v4000 = vld [vmem:[#allocation2 + $0x202] sm:$0xff]
    %v4001 = vld [vmem:[#allocation2 + $0x212] sm:$0xff]
    %v4002 = vld [vmem:[#allocation2 + $0x21a] sm:$0xff]
    %v4003 = vld [vmem:[#allocation2 + $0x22a] sm:$0xff]
    %v4004 = vld [vmem:[#allocation2 + $0x232] sm:$0xff]
    %v4005 = vld [vmem:[#allocation2 + $0x242] sm:$0xff]
    %v4006 = vld [vmem:[#allocation2 + $0x24a] sm:$0xff]
    %v4007 = vld [vmem:[#allocation2 + $0x25a] sm:$0xff]
    %v4008 = vld [vmem:[#allocation2 + $0x262] sm:$0xff]
    %v4009 = vld [vmem:[#allocation2 + $0x272] sm:$0xff]
    %v4010 = vld [vmem:[#allocation2 + $0x27a] sm:$0xff]
    %v4011 = vld [vmem:[#allocation2 + $0x28a] sm:$0xff]
    %v4012 = vld [vmem:[#allocation2 + $0x292] sm:$0xff]
    %v4013 = vld [vmem:[#allocation2 + $0x2a2] sm:$0xff]
    %v4014 = vld [vmem:[#allocation2 + $0x2aa] sm:$0xff]
    %v4015 = vld [vmem:[#allocation2 + $0x2ba] sm:$0xff]
    %v4016 = vld [vmem:[#allocation2 + $0x2c2] sm:$0xff]
    %v4017 = vld [vmem:[#allocation2 + $0x2d2] sm:$0xff]
    %v4018 = vld [vmem:[#allocation2 + $0x2da] sm:$0xff]
    %v4019 = vld [vmem:[#allocation2 + $0x2ea] sm:$0xff]
    %v4020 = vld [vmem:[#allocation2 + $0x2f2] sm:$0xff]
    %v4021 = vld [vmem:[#allocation2 + $0x302] sm:$0xff]
    %v4022 = vld [vmem:[#allocation2 + $0x30a] sm:$0xff]
    %v4023 = vld [vmem:[#allocation2 + $0x31a] sm:$0xff]
    %v4024 = vld [vmem:[#allocation2 + $0x322] sm:$0xff]
    %v4025 = vld [vmem:[%s3768] sm:$0xff]
    %v4026 = vld [vmem:[%s3768 + $0x8] sm:$0xff]
    %v4027 = vld [vmem:[%s3768 + $0x18] sm:$0xff]
    %v4028 = vld [vmem:[%s3768 + $0x20] sm:$0xff]
    %v4029 = vld [vmem:[%s3768 + $0x30] sm:$0xff]
    %v4030 = vld [vmem:[%s3768 + $0x38] sm:$0xff]
    %v4031 = vld [vmem:[%s3768 + $0x48] sm:$0xff]
    %v4032 = vld [vmem:[%s3768 + $0x50] sm:$0xff]
    %v4033 = vld [vmem:[%s3768 + $0x60] sm:$0xff]
    %v4034 = vld [vmem:[%s3768 + $0x68] sm:$0xff]
    %v4035 = vld [vmem:[%s3768 + $0x78] sm:$0xff]
    %v4036 = vld [vmem:[%s3768 + $0x80] sm:$0xff]
    %v4037 = vld [vmem:[%s3768 + $0x90] sm:$0xff]
    %v4038 = vld [vmem:[%s3768 + $0x98] sm:$0xff]
    %v4039 = vld [vmem:[%s3768 + $0xa8] sm:$0xff]
    %v4040 = vld [vmem:[%s3768 + $0xb0] sm:$0xff]
    %v4041 = vld [vmem:[%s3768 + $0xc0] sm:$0xff]
    %v4042 = vld [vmem:[%s3768 + $0xc8] sm:$0xff]
    %v4043 = vld [vmem:[%s3768 + $0xd8] sm:$0xff]
    %v4044 = vld [vmem:[%s3768 + $0xe0] sm:$0xff]
    %v4045 = vld [vmem:[%s3768 + $0xf0] sm:$0xff]
    %v4046 = vld [vmem:[%s3768 + $0xf8] sm:$0xff]
    %v4047 = vld [vmem:[%s3768 + $0x108] sm:$0xff]
    %v4048 = vld [vmem:[%s3768 + $0x110] sm:$0xff]
    %v4049 = vld [vmem:[%s3768 + $0x120] sm:$0xff]
    %v4050 = vld [vmem:[%s3768 + $0x128] sm:$0xff]
    %v4051 = vld [vmem:[%s3768 + $0x138] sm:$0xff]
    %v4052 = vld [vmem:[%s3768 + $0x140] sm:$0xff]
    %v4053 = vld [vmem:[%s3768 + $0x150] sm:$0xff]
    %v4054 = vld [vmem:[%s3768 + $0x158] sm:$0xff]
    %v4055 = vld [vmem:[%s3768 + $0x168] sm:$0xff]
    %v4056 = vld [vmem:[%s3768 + $0x170] sm:$0xff]
    %v4057 = vld [vmem:[%s3768 + $0x1b0] sm:$0xff]
    %v4058 = vld [vmem:[%s3768 + $0x1b8] sm:$0xff]
    %v4059 = vld [vmem:[%s3768 + $0x1c8] sm:$0xff]
    %v4060 = vld [vmem:[%s3768 + $0x1d0] sm:$0xff]
    %v4061 = vld [vmem:[%s3768 + $0x1e0] sm:$0xff]
    %v4062 = vld [vmem:[%s3768 + $0x1e8] sm:$0xff]
    %v4063 = vld [vmem:[%s3768 + $0x1f8] sm:$0xff]
    %v4064 = vld [vmem:[%s3768 + $0x200] sm:$0xff]
    %v4065 = vld [vmem:[%s3768 + $0x210] sm:$0xff]
    %v4066 = vld [vmem:[%s3768 + $0x218] sm:$0xff]
    %v4067 = vld [vmem:[%s3768 + $0x228] sm:$0xff]
    %v4068 = vld [vmem:[%s3768 + $0x230] sm:$0xff]
    %v4069 = vld [vmem:[%s3768 + $0x240] sm:$0xff]
    %v4070 = vld [vmem:[%s3768 + $0x248] sm:$0xff]
    %v4071 = vld [vmem:[%s3768 + $0x258] sm:$0xff]
    %v4072 = vld [vmem:[%s3768 + $0x260] sm:$0xff]
    %v4073 = vld [vmem:[%s3768 + $0x270] sm:$0xff]
    %v4074 = vld [vmem:[%s3768 + $0x278] sm:$0xff]
    %v4075 = vld [vmem:[%s3768 + $0x288] sm:$0xff]
    %v4076 = vld [vmem:[%s3768 + $0x290] sm:$0xff]
    %v4077 = vld [vmem:[%s3768 + $0x2a0] sm:$0xff]
    %v4078 = vld [vmem:[%s3768 + $0x2a8] sm:$0xff]
    %v4079 = vld [vmem:[%s3768 + $0x2b8] sm:$0xff]
    %v4080 = vld [vmem:[%s3768 + $0x2c0] sm:$0xff]
    %v4081 = vld [vmem:[%s3768 + $0x2d0] sm:$0xff]
    %v4082 = vld [vmem:[%s3768 + $0x2d8] sm:$0xff]
    %v4083 = vld [vmem:[%s3768 + $0x2e8] sm:$0xff]
    %v4084 = vld [vmem:[%s3768 + $0x2f0] sm:$0xff]
    %v4085 = vld [vmem:[%s3768 + $0x300] sm:$0xff]
    %v4086 = vld [vmem:[%s3768 + $0x308] sm:$0xff]
    %v4087 = vld [vmem:[%s3768 + $0x318] sm:$0xff]
    %v4088 = vld [vmem:[%s3768 + $0x320] sm:$0xff]
    %v4089 = vld [vmem:[%s3768 + $0x1] sm:$0xff]
    %v4090 = vld [vmem:[%s3768 + $0x9] sm:$0xff]
    %v4091 = vld [vmem:[%s3768 + $0x19] sm:$0xff]
    %v4092 = vld [vmem:[%s3768 + $0x21] sm:$0xff]
    %v4093 = vld [vmem:[%s3768 + $0x31] sm:$0xff]
    %v4094 = vld [vmem:[%s3768 + $0x39] sm:$0xff]
    %v4095 = vld [vmem:[%s3768 + $0x49] sm:$0xff]
    %v4096 = vld [vmem:[%s3768 + $0x51] sm:$0xff]
    %v4097 = vld [vmem:[%s3768 + $0x61] sm:$0xff]
    %v4098 = vld [vmem:[%s3768 + $0x69] sm:$0xff]
    %v4099 = vld [vmem:[%s3768 + $0x79] sm:$0xff]
    %v4100 = vld [vmem:[%s3768 + $0x81] sm:$0xff]
    %v4101 = vld [vmem:[%s3768 + $0x91] sm:$0xff]
    %v4102 = vld [vmem:[%s3768 + $0x99] sm:$0xff]
    %v4103 = vld [vmem:[%s3768 + $0xa9] sm:$0xff]
    %v4104 = vld [vmem:[%s3768 + $0xb1] sm:$0xff]
    %v4105 = vld [vmem:[%s3768 + $0xc1] sm:$0xff]
    %v4106 = vld [vmem:[%s3768 + $0xc9] sm:$0xff]
    %v4107 = vld [vmem:[%s3768 + $0xd9] sm:$0xff]
    %v4108 = vld [vmem:[%s3768 + $0xe1] sm:$0xff]
    %v4109 = vld [vmem:[%s3768 + $0xf1] sm:$0xff]
    %v4110 = vld [vmem:[%s3768 + $0xf9] sm:$0xff]
    %v4111 = vld [vmem:[%s3768 + $0x109] sm:$0xff]
    %v4112 = vld [vmem:[%s3768 + $0x111] sm:$0xff]
    %v4113 = vld [vmem:[%s3768 + $0x121] sm:$0xff]
    %v4114 = vld [vmem:[%s3768 + $0x129] sm:$0xff]
    %v4115 = vld [vmem:[%s3768 + $0x139] sm:$0xff]
    %v4116 = vld [vmem:[%s3768 + $0x141] sm:$0xff]
    %v4117 = vld [vmem:[%s3768 + $0x151] sm:$0xff]
    %v4118 = vld [vmem:[%s3768 + $0x159] sm:$0xff]
    %v4119 = vld [vmem:[%s3768 + $0x169] sm:$0xff]
    %v4120 = vld [vmem:[%s3768 + $0x171] sm:$0xff]
    %v4121 = vld [vmem:[%s3768 + $0x1b1] sm:$0xff]
    %v4122 = vld [vmem:[%s3768 + $0x1b9] sm:$0xff]
    %v4123 = vld [vmem:[%s3768 + $0x1c9] sm:$0xff]
    %v4124 = vld [vmem:[%s3768 + $0x1d1] sm:$0xff]
    %v4125 = vld [vmem:[%s3768 + $0x1e1] sm:$0xff]
    %v4126 = vld [vmem:[%s3768 + $0x1e9] sm:$0xff]
    %v4127 = vld [vmem:[%s3768 + $0x1f9] sm:$0xff]
    %v4128 = vld [vmem:[%s3768 + $0x201] sm:$0xff]
    %v4129 = vld [vmem:[%s3768 + $0x211] sm:$0xff]
    %v4130 = vld [vmem:[%s3768 + $0x219] sm:$0xff]
    %v4131 = vld [vmem:[%s3768 + $0x229] sm:$0xff]
    %v4132 = vld [vmem:[%s3768 + $0x231] sm:$0xff]
    %v4133 = vld [vmem:[%s3768 + $0x241] sm:$0xff]
    %v4134 = vld [vmem:[%s3768 + $0x249] sm:$0xff]
    %v4135 = vld [vmem:[%s3768 + $0x259] sm:$0xff]
    %v4136 = vld [vmem:[%s3768 + $0x261] sm:$0xff]
    %v4137 = vld [vmem:[%s3768 + $0x271] sm:$0xff]
    %v4138 = vld [vmem:[%s3768 + $0x279] sm:$0xff]
    %v4139 = vld [vmem:[%s3768 + $0x289] sm:$0xff]
    %v4140 = vld [vmem:[%s3768 + $0x291] sm:$0xff]
    %v4141 = vld [vmem:[%s3768 + $0x2a1] sm:$0xff]
    %v4142 = vld [vmem:[%s3768 + $0x2a9] sm:$0xff]
    %v4143 = vld [vmem:[%s3768 + $0x2b9] sm:$0xff]
    %v4144 = vld [vmem:[%s3768 + $0x2c1] sm:$0xff]
    %v4145 = vld [vmem:[%s3768 + $0x2d1] sm:$0xff]
    %v4146 = vld [vmem:[%s3768 + $0x2d9] sm:$0xff]
    %v4147 = vld [vmem:[%s3768 + $0x2e9] sm:$0xff]
    %v4148 = vld [vmem:[%s3768 + $0x2f1] sm:$0xff]
    %v4149 = vld [vmem:[%s3768 + $0x301] sm:$0xff]
    %v4150 = vld [vmem:[%s3768 + $0x309] sm:$0xff]
    %v4151 = vld [vmem:[%s3768 + $0x319] sm:$0xff]
    %v4152 = vld [vmem:[%s3768 + $0x321] sm:$0xff]
    %v4153 = vld [vmem:[%s3768 + $0x2] sm:$0xff]
    %v4154 = vld [vmem:[%s3768 + $0xa] sm:$0xff]
    %v4155 = vld [vmem:[%s3768 + $0x1a] sm:$0xff]
    %v4156 = vld [vmem:[%s3768 + $0x22] sm:$0xff]
    %v4157 = vld [vmem:[%s3768 + $0x32] sm:$0xff]
    %v4158 = vld [vmem:[%s3768 + $0x3a] sm:$0xff]
    %v4159 = vld [vmem:[%s3768 + $0x4a] sm:$0xff]
    %v4160 = vld [vmem:[%s3768 + $0x52] sm:$0xff]
    %v4161 = vld [vmem:[%s3768 + $0x62] sm:$0xff]
    %v4162 = vld [vmem:[%s3768 + $0x6a] sm:$0xff]
    %v4163 = vld [vmem:[%s3768 + $0x7a] sm:$0xff]
    %v4164 = vld [vmem:[%s3768 + $0x82] sm:$0xff]
    %v4165 = vld [vmem:[%s3768 + $0x92] sm:$0xff]
    %v4166 = vld [vmem:[%s3768 + $0x9a] sm:$0xff]
    %v4167 = vld [vmem:[%s3768 + $0xaa] sm:$0xff]
    %v4168 = vld [vmem:[%s3768 + $0xb2] sm:$0xff]
    %v4169 = vld [vmem:[%s3768 + $0xc2] sm:$0xff]
    %v4170 = vld [vmem:[%s3768 + $0xca] sm:$0xff]
    %v4171 = vld [vmem:[%s3768 + $0xda] sm:$0xff]
    %v4172 = vld [vmem:[%s3768 + $0xe2] sm:$0xff]
    %v4173 = vld [vmem:[%s3768 + $0xf2] sm:$0xff]
    %v4174 = vld [vmem:[%s3768 + $0xfa] sm:$0xff]
    %v4175 = vld [vmem:[%s3768 + $0x10a] sm:$0xff]
    %v4176 = vld [vmem:[%s3768 + $0x112] sm:$0xff]
    %v4177 = vld [vmem:[%s3768 + $0x122] sm:$0xff]
    %v4178 = vld [vmem:[%s3768 + $0x12a] sm:$0xff]
    %v4179 = vld [vmem:[%s3768 + $0x13a] sm:$0xff]
    %v4180 = vld [vmem:[%s3768 + $0x142] sm:$0xff]
    %v4181 = vld [vmem:[%s3768 + $0x152] sm:$0xff]
    %v4182 = vld [vmem:[%s3768 + $0x15a] sm:$0xff]
    %v4183 = vld [vmem:[%s3768 + $0x16a] sm:$0xff]
    %v4184 = vld [vmem:[%s3768 + $0x172] sm:$0xff]
    %v4185 = vld [vmem:[%s3768 + $0x1b2] sm:$0xff]
    %v4186 = vld [vmem:[%s3768 + $0x1ba] sm:$0xff]
    %v4187 = vld [vmem:[%s3768 + $0x1ca] sm:$0xff]
    %v4188 = vld [vmem:[%s3768 + $0x1d2] sm:$0xff]
    %v4189 = vld [vmem:[%s3768 + $0x1e2] sm:$0xff]
    %v4190 = vld [vmem:[%s3768 + $0x1ea] sm:$0xff]
    %v4191 = vld [vmem:[%s3768 + $0x1fa] sm:$0xff]
    %v4192 = vld [vmem:[%s3768 + $0x202] sm:$0xff]
    %v4193 = vld [vmem:[%s3768 + $0x212] sm:$0xff]
    %v4194 = vld [vmem:[%s3768 + $0x21a] sm:$0xff]
    %v4195 = vld [vmem:[%s3768 + $0x22a] sm:$0xff]
    %v4196 = vld [vmem:[%s3768 + $0x232] sm:$0xff]
    %v4197 = vld [vmem:[%s3768 + $0x242] sm:$0xff]
    %v4198 = vld [vmem:[%s3768 + $0x24a] sm:$0xff]
    %v4199 = vld [vmem:[%s3768 + $0x25a] sm:$0xff]
    %v4200 = vld [vmem:[%s3768 + $0x262] sm:$0xff]
    %v4201 = vld [vmem:[%s3768 + $0x272] sm:$0xff]
    %v4202 = vld [vmem:[%s3768 + $0x27a] sm:$0xff]
    %v4203 = vld [vmem:[%s3768 + $0x28a] sm:$0xff]
    %v4204 = vld [vmem:[%s3768 + $0x292] sm:$0xff]
    %v4205 = vld [vmem:[%s3768 + $0x2a2] sm:$0xff]
    %v4206 = vld [vmem:[%s3768 + $0x2aa] sm:$0xff]
    %v4207 = vld [vmem:[%s3768 + $0x2ba] sm:$0xff]
    %v4208 = vld [vmem:[%s3768 + $0x2c2] sm:$0xff]
    %v4209 = vld [vmem:[%s3768 + $0x2d2] sm:$0xff]
    %v4210 = vld [vmem:[%s3768 + $0x2da] sm:$0xff]
    %v4211 = vld [vmem:[%s3768 + $0x2ea] sm:$0xff]
    %v4212 = vld [vmem:[%s3768 + $0x2f2] sm:$0xff]
    %v4213 = vld [vmem:[%s3768 + $0x302] sm:$0xff]
    %v4214 = vld [vmem:[%s3768 + $0x30a] sm:$0xff]
    %v4215 = vld [vmem:[%s3768 + $0x31a] sm:$0xff]
    %v4216 = vld [vmem:[%s3768 + $0x322] sm:$0xff]
    %s4217 = scalar_lea.vmem [#allocation2], 48
    %v4218 = vld [vmem:[%s4217] sm:$0xff]
    %v4219 = vld [vmem:[%s4217 + $0x8] sm:$0xff]
    %v4220 = vld [vmem:[%s4217 + $0x18] sm:$0xff]
    %v4221 = vld [vmem:[%s4217 + $0x20] sm:$0xff]
    %v4222 = vld [vmem:[%s4217 + $0x30] sm:$0xff]
    %v4223 = vld [vmem:[%s4217 + $0x38] sm:$0xff]
    %v4224 = vld [vmem:[%s4217 + $0x48] sm:$0xff]
    %v4225 = vld [vmem:[%s4217 + $0x50] sm:$0xff]
    %v4226 = vld [vmem:[%s4217 + $0x60] sm:$0xff]
    %v4227 = vld [vmem:[%s4217 + $0x68] sm:$0xff]
    %v4228 = vld [vmem:[%s4217 + $0x78] sm:$0xff]
    %v4229 = vld [vmem:[%s4217 + $0x80] sm:$0xff]
    %v4230 = vld [vmem:[%s4217 + $0x90] sm:$0xff]
    %v4231 = vld [vmem:[%s4217 + $0x98] sm:$0xff]
    %v4232 = vld [vmem:[%s4217 + $0xa8] sm:$0xff]
    %v4233 = vld [vmem:[%s4217 + $0xb0] sm:$0xff]
    %v4234 = vld [vmem:[%s4217 + $0xc0] sm:$0xff]
    %v4235 = vld [vmem:[%s4217 + $0xc8] sm:$0xff]
    %v4236 = vld [vmem:[%s4217 + $0xd8] sm:$0xff]
    %v4237 = vld [vmem:[%s4217 + $0xe0] sm:$0xff]
    %v4238 = vld [vmem:[%s4217 + $0xf0] sm:$0xff]
    %v4239 = vld [vmem:[%s4217 + $0xf8] sm:$0xff]
    %v4240 = vld [vmem:[%s4217 + $0x108] sm:$0xff]
    %v4241 = vld [vmem:[%s4217 + $0x110] sm:$0xff]
    %v4242 = vld [vmem:[%s4217 + $0x120] sm:$0xff]
    %v4243 = vld [vmem:[%s4217 + $0x128] sm:$0xff]
    %v4244 = vld [vmem:[%s4217 + $0x138] sm:$0xff]
    %v4245 = vld [vmem:[%s4217 + $0x140] sm:$0xff]
    %v4246 = vld [vmem:[%s4217 + $0x150] sm:$0xff]
    %v4247 = vld [vmem:[%s4217 + $0x158] sm:$0xff]
    %v4248 = vld [vmem:[%s4217 + $0x168] sm:$0xff]
    %v4249 = vld [vmem:[%s4217 + $0x170] sm:$0xff]
    %v4250 = vld [vmem:[%s4217 + $0x1b0] sm:$0xff]
    %v4251 = vld [vmem:[%s4217 + $0x1b8] sm:$0xff]
    %v4252 = vld [vmem:[%s4217 + $0x1c8] sm:$0xff]
    %v4253 = vld [vmem:[%s4217 + $0x1d0] sm:$0xff]
    %v4254 = vld [vmem:[%s4217 + $0x1e0] sm:$0xff]
    %v4255 = vld [vmem:[%s4217 + $0x1e8] sm:$0xff]
    %v4256 = vld [vmem:[%s4217 + $0x1f8] sm:$0xff]
    %v4257 = vld [vmem:[%s4217 + $0x200] sm:$0xff]
    %v4258 = vld [vmem:[%s4217 + $0x210] sm:$0xff]
    %v4259 = vld [vmem:[%s4217 + $0x218] sm:$0xff]
    %v4260 = vld [vmem:[%s4217 + $0x228] sm:$0xff]
    %v4261 = vld [vmem:[%s4217 + $0x230] sm:$0xff]
    %v4262 = vld [vmem:[%s4217 + $0x240] sm:$0xff]
    %v4263 = vld [vmem:[%s4217 + $0x248] sm:$0xff]
    %v4264 = vld [vmem:[%s4217 + $0x258] sm:$0xff]
    %v4265 = vld [vmem:[%s4217 + $0x260] sm:$0xff]
    %v4266 = vld [vmem:[%s4217 + $0x270] sm:$0xff]
    %v4267 = vld [vmem:[%s4217 + $0x278] sm:$0xff]
    %v4268 = vld [vmem:[%s4217 + $0x288] sm:$0xff]
    %v4269 = vld [vmem:[%s4217 + $0x290] sm:$0xff]
    %v4270 = vld [vmem:[%s4217 + $0x2a0] sm:$0xff]
    %v4271 = vld [vmem:[%s4217 + $0x2a8] sm:$0xff]
    %v4272 = vld [vmem:[%s4217 + $0x2b8] sm:$0xff]
    %v4273 = vld [vmem:[%s4217 + $0x2c0] sm:$0xff]
    %v4274 = vld [vmem:[%s4217 + $0x2d0] sm:$0xff]
    %v4275 = vld [vmem:[%s4217 + $0x2d8] sm:$0xff]
    %v4276 = vld [vmem:[%s4217 + $0x2e8] sm:$0xff]
    %v4277 = vld [vmem:[%s4217 + $0x2f0] sm:$0xff]
    %v4278 = vld [vmem:[%s4217 + $0x300] sm:$0xff]
    %v4279 = vld [vmem:[%s4217 + $0x308] sm:$0xff]
    %v4280 = vld [vmem:[%s4217 + $0x318] sm:$0xff]
    %v4281 = vld [vmem:[%s4217 + $0x320] sm:$0xff]
    %v4282 = vld [vmem:[%s4217 + $0x1] sm:$0xff]
    %v4283 = vld [vmem:[%s4217 + $0x9] sm:$0xff]
    %v4284 = vld [vmem:[%s4217 + $0x19] sm:$0xff]
    %v4285 = vld [vmem:[%s4217 + $0x21] sm:$0xff]
    %v4286 = vld [vmem:[%s4217 + $0x31] sm:$0xff]
    %v4287 = vld [vmem:[%s4217 + $0x39] sm:$0xff]
    %v4288 = vld [vmem:[%s4217 + $0x49] sm:$0xff]
    %v4289 = vld [vmem:[%s4217 + $0x51] sm:$0xff]
    %v4290 = vld [vmem:[%s4217 + $0x61] sm:$0xff]
    %v4291 = vld [vmem:[%s4217 + $0x69] sm:$0xff]
    %v4292 = vld [vmem:[%s4217 + $0x79] sm:$0xff]
    %v4293 = vld [vmem:[%s4217 + $0x81] sm:$0xff]
    %v4294 = vld [vmem:[%s4217 + $0x91] sm:$0xff]
    %v4295 = vld [vmem:[%s4217 + $0x99] sm:$0xff]
    %v4296 = vld [vmem:[%s4217 + $0xa9] sm:$0xff]
    %v4297 = vld [vmem:[%s4217 + $0xb1] sm:$0xff]
    %v4298 = vld [vmem:[%s4217 + $0xc1] sm:$0xff]
    %v4299 = vld [vmem:[%s4217 + $0xc9] sm:$0xff]
    %v4300 = vld [vmem:[%s4217 + $0xd9] sm:$0xff]
    %v4301 = vld [vmem:[%s4217 + $0xe1] sm:$0xff]
    %v4302 = vld [vmem:[%s4217 + $0xf1] sm:$0xff]
    %v4303 = vld [vmem:[%s4217 + $0xf9] sm:$0xff]
    %v4304 = vld [vmem:[%s4217 + $0x109] sm:$0xff]
    %v4305 = vld [vmem:[%s4217 + $0x111] sm:$0xff]
    %v4306 = vld [vmem:[%s4217 + $0x121] sm:$0xff]
    %v4307 = vld [vmem:[%s4217 + $0x129] sm:$0xff]
    %v4308 = vld [vmem:[%s4217 + $0x139] sm:$0xff]
    %v4309 = vld [vmem:[%s4217 + $0x141] sm:$0xff]
    %v4310 = vld [vmem:[%s4217 + $0x151] sm:$0xff]
    %v4311 = vld [vmem:[%s4217 + $0x159] sm:$0xff]
    %v4312 = vld [vmem:[%s4217 + $0x169] sm:$0xff]
    %v4313 = vld [vmem:[%s4217 + $0x171] sm:$0xff]
    %v4314 = vld [vmem:[%s4217 + $0x1b1] sm:$0xff]
    %v4315 = vld [vmem:[%s4217 + $0x1b9] sm:$0xff]
    %v4316 = vld [vmem:[%s4217 + $0x1c9] sm:$0xff]
    %v4317 = vld [vmem:[%s4217 + $0x1d1] sm:$0xff]
    %v4318 = vld [vmem:[%s4217 + $0x1e1] sm:$0xff]
    %v4319 = vld [vmem:[%s4217 + $0x1e9] sm:$0xff]
    %v4320 = vld [vmem:[%s4217 + $0x1f9] sm:$0xff]
    %v4321 = vld [vmem:[%s4217 + $0x201] sm:$0xff]
    %v4322 = vld [vmem:[%s4217 + $0x211] sm:$0xff]
    %v4323 = vld [vmem:[%s4217 + $0x219] sm:$0xff]
    %v4324 = vld [vmem:[%s4217 + $0x229] sm:$0xff]
    %v4325 = vld [vmem:[%s4217 + $0x231] sm:$0xff]
    %v4326 = vld [vmem:[%s4217 + $0x241] sm:$0xff]
    %v4327 = vld [vmem:[%s4217 + $0x249] sm:$0xff]
    %v4328 = vld [vmem:[%s4217 + $0x259] sm:$0xff]
    %v4329 = vld [vmem:[%s4217 + $0x261] sm:$0xff]
    %v4330 = vld [vmem:[%s4217 + $0x271] sm:$0xff]
    %v4331 = vld [vmem:[%s4217 + $0x279] sm:$0xff]
    %v4332 = vld [vmem:[%s4217 + $0x289] sm:$0xff]
    %v4333 = vld [vmem:[%s4217 + $0x291] sm:$0xff]
    %v4334 = vld [vmem:[%s4217 + $0x2a1] sm:$0xff]
    %v4335 = vld [vmem:[%s4217 + $0x2a9] sm:$0xff]
    %v4336 = vld [vmem:[%s4217 + $0x2b9] sm:$0xff]
    %v4337 = vld [vmem:[%s4217 + $0x2c1] sm:$0xff]
    %v4338 = vld [vmem:[%s4217 + $0x2d1] sm:$0xff]
    %v4339 = vld [vmem:[%s4217 + $0x2d9] sm:$0xff]
    %v4340 = vld [vmem:[%s4217 + $0x2e9] sm:$0xff]
    %v4341 = vld [vmem:[%s4217 + $0x2f1] sm:$0xff]
    %v4342 = vld [vmem:[%s4217 + $0x301] sm:$0xff]
    %v4343 = vld [vmem:[%s4217 + $0x309] sm:$0xff]
    %v4344 = vld [vmem:[%s4217 + $0x319] sm:$0xff]
    %v4345 = vld [vmem:[%s4217 + $0x321] sm:$0xff]
    %v4346 = vld [vmem:[%s4217 + $0x2] sm:$0xff]
    %v4347 = vld [vmem:[%s4217 + $0xa] sm:$0xff]
    %v4348 = vld [vmem:[%s4217 + $0x1a] sm:$0xff]
    %v4349 = vld [vmem:[%s4217 + $0x22] sm:$0xff]
    %v4350 = vld [vmem:[%s4217 + $0x32] sm:$0xff]
    %v4351 = vld [vmem:[%s4217 + $0x3a] sm:$0xff]
    %v4352 = vld [vmem:[%s4217 + $0x4a] sm:$0xff]
    %v4353 = vld [vmem:[%s4217 + $0x52] sm:$0xff]
    %v4354 = vld [vmem:[%s4217 + $0x62] sm:$0xff]
    %v4355 = vld [vmem:[%s4217 + $0x6a] sm:$0xff]
    %v4356 = vld [vmem:[%s4217 + $0x7a] sm:$0xff]
    %v4357 = vld [vmem:[%s4217 + $0x82] sm:$0xff]
    %v4358 = vld [vmem:[%s4217 + $0x92] sm:$0xff]
    %v4359 = vld [vmem:[%s4217 + $0x9a] sm:$0xff]
    %v4360 = vld [vmem:[%s4217 + $0xaa] sm:$0xff]
    %v4361 = vld [vmem:[%s4217 + $0xb2] sm:$0xff]
    %v4362 = vld [vmem:[%s4217 + $0xc2] sm:$0xff]
    %v4363 = vld [vmem:[%s4217 + $0xca] sm:$0xff]
    %v4364 = vld [vmem:[%s4217 + $0xda] sm:$0xff]
    %v4365 = vld [vmem:[%s4217 + $0xe2] sm:$0xff]
    %v4366 = vld [vmem:[%s4217 + $0xf2] sm:$0xff]
    %v4367 = vld [vmem:[%s4217 + $0xfa] sm:$0xff]
    %v4368 = vld [vmem:[%s4217 + $0x10a] sm:$0xff]
    %v4369 = vld [vmem:[%s4217 + $0x112] sm:$0xff]
    %v4370 = vld [vmem:[%s4217 + $0x122] sm:$0xff]
    %v4371 = vld [vmem:[%s4217 + $0x12a] sm:$0xff]
    %v4372 = vld [vmem:[%s4217 + $0x13a] sm:$0xff]
    %v4373 = vld [vmem:[%s4217 + $0x142] sm:$0xff]
    %v4374 = vld [vmem:[%s4217 + $0x152] sm:$0xff]
    %v4375 = vld [vmem:[%s4217 + $0x15a] sm:$0xff]
    %v4376 = vld [vmem:[%s4217 + $0x16a] sm:$0xff]
    %v4377 = vld [vmem:[%s4217 + $0x172] sm:$0xff]
    %v4378 = vld [vmem:[%s4217 + $0x1b2] sm:$0xff]
    %v4379 = vld [vmem:[%s4217 + $0x1ba] sm:$0xff]
    %v4380 = vld [vmem:[%s4217 + $0x1ca] sm:$0xff]
    %v4381 = vld [vmem:[%s4217 + $0x1d2] sm:$0xff]
    %v4382 = vld [vmem:[%s4217 + $0x1e2] sm:$0xff]
    %v4383 = vld [vmem:[%s4217 + $0x1ea] sm:$0xff]
    %v4384 = vld [vmem:[%s4217 + $0x1fa] sm:$0xff]
    %v4385 = vld [vmem:[%s4217 + $0x202] sm:$0xff]
    %v4386 = vld [vmem:[%s4217 + $0x212] sm:$0xff]
    %v4387 = vld [vmem:[%s4217 + $0x21a] sm:$0xff]
    %v4388 = vld [vmem:[%s4217 + $0x22a] sm:$0xff]
    %v4389 = vld [vmem:[%s4217 + $0x232] sm:$0xff]
    %v4390 = vld [vmem:[%s4217 + $0x242] sm:$0xff]
    %v4391 = vld [vmem:[%s4217 + $0x24a] sm:$0xff]
    %v4392 = vld [vmem:[%s4217 + $0x25a] sm:$0xff]
    %v4393 = vld [vmem:[%s4217 + $0x262] sm:$0xff]
    %v4394 = vld [vmem:[%s4217 + $0x272] sm:$0xff]
    %v4395 = vld [vmem:[%s4217 + $0x27a] sm:$0xff]
    %v4396 = vld [vmem:[%s4217 + $0x28a] sm:$0xff]
    %v4397 = vld [vmem:[%s4217 + $0x292] sm:$0xff]
    %v4398 = vld [vmem:[%s4217 + $0x2a2] sm:$0xff]
    %v4399 = vld [vmem:[%s4217 + $0x2aa] sm:$0xff]
    %v4400 = vld [vmem:[%s4217 + $0x2ba] sm:$0xff]
    %v4401 = vld [vmem:[%s4217 + $0x2c2] sm:$0xff]
    %v4402 = vld [vmem:[%s4217 + $0x2d2] sm:$0xff]
    %v4403 = vld [vmem:[%s4217 + $0x2da] sm:$0xff]
    %v4404 = vld [vmem:[%s4217 + $0x2ea] sm:$0xff]
    %v4405 = vld [vmem:[%s4217 + $0x2f2] sm:$0xff]
    %v4406 = vld [vmem:[%s4217 + $0x302] sm:$0xff]
    %v4407 = vld [vmem:[%s4217 + $0x30a] sm:$0xff]
    %v4408 = vld [vmem:[%s4217 + $0x31a] sm:$0xff]
    %v4409 = vld [vmem:[%s4217 + $0x322] sm:$0xff]
    %4474 = vrot.lane.b32.xlu0 %v3897, 32
    %v4475 = vpop.permute.xlu0 %4474
    %4476 = vrot.lane.b32.xlu0 %v3898, 32
    %v4477 = vpop.permute.xlu0 %4476
    %4478 = vrot.lane.b32.xlu0 %v3899, 32
    %v4479 = vpop.permute.xlu0 %4478
    %4480 = vrot.lane.b32.xlu0 %v3900, 32
    %v4481 = vpop.permute.xlu0 %4480
    %4482 = vrot.lane.b32.xlu0 %v3901, 32
    %v4483 = vpop.permute.xlu0 %4482
    %4484 = vrot.lane.b32.xlu0 %v3902, 32
    %v4485 = vpop.permute.xlu0 %4484
    %4486 = vrot.lane.b32.xlu0 %v3903, 32
    %v4487 = vpop.permute.xlu0 %4486
    %4488 = vrot.lane.b32.xlu0 %v3904, 32
    %v4489 = vpop.permute.xlu0 %4488
    %4490 = vrot.lane.b32.xlu0 %v3905, 32
    %v4491 = vpop.permute.xlu0 %4490
    %4492 = vrot.lane.b32.xlu0 %v3906, 32
    %v4493 = vpop.permute.xlu0 %4492
    %4494 = vrot.lane.b32.xlu0 %v3907, 32
    %v4495 = vpop.permute.xlu0 %4494
    %4496 = vrot.lane.b32.xlu0 %v3908, 32
    %v4497 = vpop.permute.xlu0 %4496
    %4498 = vrot.lane.b32.xlu0 %v3909, 32
    %v4499 = vpop.permute.xlu0 %4498
    %4500 = vrot.lane.b32.xlu0 %v3910, 32
    %v4501 = vpop.permute.xlu0 %4500
    %4502 = vrot.lane.b32.xlu0 %v3911, 32
    %v4503 = vpop.permute.xlu0 %4502
    %4504 = vrot.lane.b32.xlu0 %v3912, 32
    %v4505 = vpop.permute.xlu0 %4504
    %4506 = vrot.lane.b32.xlu0 %v3913, 32
    %v4507 = vpop.permute.xlu0 %4506
    %4508 = vrot.lane.b32.xlu0 %v3914, 32
    %v4509 = vpop.permute.xlu0 %4508
    %4510 = vrot.lane.b32.xlu0 %v3915, 32
    %v4511 = vpop.permute.xlu0 %4510
    %4512 = vrot.lane.b32.xlu0 %v3916, 32
    %v4513 = vpop.permute.xlu0 %4512
    %4514 = vrot.lane.b32.xlu0 %v3917, 32
    %v4515 = vpop.permute.xlu0 %4514
    %4516 = vrot.lane.b32.xlu0 %v3918, 32
    %v4517 = vpop.permute.xlu0 %4516
    %4518 = vrot.lane.b32.xlu0 %v3919, 32
    %v4519 = vpop.permute.xlu0 %4518
    %4520 = vrot.lane.b32.xlu0 %v3920, 32
    %v4521 = vpop.permute.xlu0 %4520
    %4522 = vrot.lane.b32.xlu0 %v3921, 32
    %v4523 = vpop.permute.xlu0 %4522
    %4524 = vrot.lane.b32.xlu0 %v3922, 32
    %v4525 = vpop.permute.xlu0 %4524
    %4526 = vrot.lane.b32.xlu0 %v3923, 32
    %v4527 = vpop.permute.xlu0 %4526
    %4528 = vrot.lane.b32.xlu0 %v3924, 32
    %v4529 = vpop.permute.xlu0 %4528
    %4530 = vrot.lane.b32.xlu0 %v3925, 32
    %v4531 = vpop.permute.xlu0 %4530
    %4532 = vrot.lane.b32.xlu0 %v3926, 32
    %v4533 = vpop.permute.xlu0 %4532
    %4534 = vrot.lane.b32.xlu0 %v3927, 32
    %v4535 = vpop.permute.xlu0 %4534
    %4536 = vrot.lane.b32.xlu0 %v3928, 32
    %v4537 = vpop.permute.xlu0 %4536
    %4538 = vrot.lane.b32.xlu0 %v3929, 32
    %v4539 = vpop.permute.xlu0 %4538
    %4540 = vrot.lane.b32.xlu0 %v3930, 32
    %v4541 = vpop.permute.xlu0 %4540
    %4542 = vrot.lane.b32.xlu0 %v3931, 32
    %v4543 = vpop.permute.xlu0 %4542
    %4544 = vrot.lane.b32.xlu0 %v3932, 32
    %v4545 = vpop.permute.xlu0 %4544
    %4546 = vrot.lane.b32.xlu0 %v3933, 32
    %v4547 = vpop.permute.xlu0 %4546
    %4548 = vrot.lane.b32.xlu0 %v3934, 32
    %v4549 = vpop.permute.xlu0 %4548
    %4550 = vrot.lane.b32.xlu0 %v3935, 32
    %v4551 = vpop.permute.xlu0 %4550
    %4552 = vrot.lane.b32.xlu0 %v3936, 32
    %v4553 = vpop.permute.xlu0 %4552
    %4554 = vrot.lane.b32.xlu0 %v3937, 32
    %v4555 = vpop.permute.xlu0 %4554
    %4556 = vrot.lane.b32.xlu0 %v3938, 32
    %v4557 = vpop.permute.xlu0 %4556
    %4558 = vrot.lane.b32.xlu0 %v3939, 32
    %v4559 = vpop.permute.xlu0 %4558
    %4560 = vrot.lane.b32.xlu0 %v3940, 32
    %v4561 = vpop.permute.xlu0 %4560
    %4562 = vrot.lane.b32.xlu0 %v3941, 32
    %v4563 = vpop.permute.xlu0 %4562
    %4564 = vrot.lane.b32.xlu0 %v3942, 32
    %v4565 = vpop.permute.xlu0 %4564
    %4566 = vrot.lane.b32.xlu0 %v3943, 32
    %v4567 = vpop.permute.xlu0 %4566
    %4568 = vrot.lane.b32.xlu0 %v3944, 32
    %v4569 = vpop.permute.xlu0 %4568
    %4570 = vrot.lane.b32.xlu0 %v3945, 32
    %v4571 = vpop.permute.xlu0 %4570
    %4572 = vrot.lane.b32.xlu0 %v3946, 32
    %v4573 = vpop.permute.xlu0 %4572
    %4574 = vrot.lane.b32.xlu0 %v3947, 32
    %v4575 = vpop.permute.xlu0 %4574
    %4576 = vrot.lane.b32.xlu0 %v3948, 32
    %v4577 = vpop.permute.xlu0 %4576
    %4578 = vrot.lane.b32.xlu0 %v3949, 32
    %v4579 = vpop.permute.xlu0 %4578
    %4580 = vrot.lane.b32.xlu0 %v3950, 32
    %v4581 = vpop.permute.xlu0 %4580
    %4582 = vrot.lane.b32.xlu0 %v3951, 32
    %v4583 = vpop.permute.xlu0 %4582
    %4584 = vrot.lane.b32.xlu0 %v3952, 32
    %v4585 = vpop.permute.xlu0 %4584
    %4586 = vrot.lane.b32.xlu0 %v3953, 32
    %v4587 = vpop.permute.xlu0 %4586
    %4588 = vrot.lane.b32.xlu0 %v3954, 32
    %v4589 = vpop.permute.xlu0 %4588
    %4590 = vrot.lane.b32.xlu0 %v3955, 32
    %v4591 = vpop.permute.xlu0 %4590
    %4592 = vrot.lane.b32.xlu0 %v3956, 32
    %v4593 = vpop.permute.xlu0 %4592
    %4594 = vrot.lane.b32.xlu0 %v3957, 32
    %v4595 = vpop.permute.xlu0 %4594
    %4596 = vrot.lane.b32.xlu0 %v3958, 32
    %v4597 = vpop.permute.xlu0 %4596
    %4598 = vrot.lane.b32.xlu0 %v3959, 32
    %v4599 = vpop.permute.xlu0 %4598
    %4600 = vrot.lane.b32.xlu0 %v3960, 32
    %v4601 = vpop.permute.xlu0 %4600
    %4730 = vrot.lane.b32.xlu0 %v3961, 64
    %v4731 = vpop.permute.xlu0 %4730
    %4732 = vrot.lane.b32.xlu0 %v3962, 64
    %v4733 = vpop.permute.xlu0 %4732
    %4734 = vrot.lane.b32.xlu0 %v3963, 64
    %v4735 = vpop.permute.xlu0 %4734
    %4736 = vrot.lane.b32.xlu0 %v3964, 64
    %v4737 = vpop.permute.xlu0 %4736
    %4738 = vrot.lane.b32.xlu0 %v3965, 64
    %v4739 = vpop.permute.xlu0 %4738
    %4740 = vrot.lane.b32.xlu0 %v3966, 64
    %v4741 = vpop.permute.xlu0 %4740
    %4742 = vrot.lane.b32.xlu0 %v3967, 64
    %v4743 = vpop.permute.xlu0 %4742
    %4744 = vrot.lane.b32.xlu0 %v3968, 64
    %v4745 = vpop.permute.xlu0 %4744
    %4746 = vrot.lane.b32.xlu0 %v3969, 64
    %v4747 = vpop.permute.xlu0 %4746
    %4748 = vrot.lane.b32.xlu0 %v3970, 64
    %v4749 = vpop.permute.xlu0 %4748
    %4750 = vrot.lane.b32.xlu0 %v3971, 64
    %v4751 = vpop.permute.xlu0 %4750
    %4752 = vrot.lane.b32.xlu0 %v3972, 64
    %v4753 = vpop.permute.xlu0 %4752
    %4754 = vrot.lane.b32.xlu0 %v3973, 64
    %v4755 = vpop.permute.xlu0 %4754
    %4756 = vrot.lane.b32.xlu0 %v3974, 64
    %v4757 = vpop.permute.xlu0 %4756
    %4758 = vrot.lane.b32.xlu0 %v3975, 64
    %v4759 = vpop.permute.xlu0 %4758
    %4760 = vrot.lane.b32.xlu0 %v3976, 64
    %v4761 = vpop.permute.xlu0 %4760
    %4762 = vrot.lane.b32.xlu0 %v3977, 64
    %v4763 = vpop.permute.xlu0 %4762
    %4764 = vrot.lane.b32.xlu0 %v3978, 64
    %v4765 = vpop.permute.xlu0 %4764
    %4766 = vrot.lane.b32.xlu0 %v3979, 64
    %v4767 = vpop.permute.xlu0 %4766
    %4768 = vrot.lane.b32.xlu0 %v3980, 64
    %v4769 = vpop.permute.xlu0 %4768
    %4770 = vrot.lane.b32.xlu0 %v3981, 64
    %v4771 = vpop.permute.xlu0 %4770
    %4772 = vrot.lane.b32.xlu0 %v3982, 64
    %v4773 = vpop.permute.xlu0 %4772
    %4774 = vrot.lane.b32.xlu0 %v3983, 64
    %v4775 = vpop.permute.xlu0 %4774
    %4776 = vrot.lane.b32.xlu0 %v3984, 64
    %v4777 = vpop.permute.xlu0 %4776
    %4778 = vrot.lane.b32.xlu0 %v3985, 64
    %v4779 = vpop.permute.xlu0 %4778
    %4780 = vrot.lane.b32.xlu0 %v3986, 64
    %v4781 = vpop.permute.xlu0 %4780
    %4782 = vrot.lane.b32.xlu0 %v3987, 64
    %v4783 = vpop.permute.xlu0 %4782
    %4784 = vrot.lane.b32.xlu0 %v3988, 64
    %v4785 = vpop.permute.xlu0 %4784
    %4786 = vrot.lane.b32.xlu0 %v3989, 64
    %v4787 = vpop.permute.xlu0 %4786
    %4788 = vrot.lane.b32.xlu0 %v3990, 64
    %v4789 = vpop.permute.xlu0 %4788
    %4790 = vrot.lane.b32.xlu0 %v3991, 64
    %v4791 = vpop.permute.xlu0 %4790
    %4792 = vrot.lane.b32.xlu0 %v3992, 64
    %v4793 = vpop.permute.xlu0 %4792
    %4794 = vrot.lane.b32.xlu0 %v3993, 64
    %v4795 = vpop.permute.xlu0 %4794
    %4796 = vrot.lane.b32.xlu0 %v3994, 64
    %v4797 = vpop.permute.xlu0 %4796
    %4798 = vrot.lane.b32.xlu0 %v3995, 64
    %v4799 = vpop.permute.xlu0 %4798
    %4800 = vrot.lane.b32.xlu0 %v3996, 64
    %v4801 = vpop.permute.xlu0 %4800
    %4802 = vrot.lane.b32.xlu0 %v3997, 64
    %v4803 = vpop.permute.xlu0 %4802
    %4804 = vrot.lane.b32.xlu0 %v3998, 64
    %v4805 = vpop.permute.xlu0 %4804
    %4806 = vrot.lane.b32.xlu0 %v3999, 64
    %v4807 = vpop.permute.xlu0 %4806
    %4808 = vrot.lane.b32.xlu0 %v4000, 64
    %v4809 = vpop.permute.xlu0 %4808
    %4810 = vrot.lane.b32.xlu0 %v4001, 64
    %v4811 = vpop.permute.xlu0 %4810
    %4812 = vrot.lane.b32.xlu0 %v4002, 64
    %v4813 = vpop.permute.xlu0 %4812
    %4814 = vrot.lane.b32.xlu0 %v4003, 64
    %v4815 = vpop.permute.xlu0 %4814
    %4816 = vrot.lane.b32.xlu0 %v4004, 64
    %v4817 = vpop.permute.xlu0 %4816
    %4818 = vrot.lane.b32.xlu0 %v4005, 64
    %v4819 = vpop.permute.xlu0 %4818
    %4820 = vrot.lane.b32.xlu0 %v4006, 64
    %v4821 = vpop.permute.xlu0 %4820
    %4822 = vrot.lane.b32.xlu0 %v4007, 64
    %v4823 = vpop.permute.xlu0 %4822
    %4824 = vrot.lane.b32.xlu0 %v4008, 64
    %v4825 = vpop.permute.xlu0 %4824
    %4826 = vrot.lane.b32.xlu0 %v4009, 64
    %v4827 = vpop.permute.xlu0 %4826
    %4828 = vrot.lane.b32.xlu0 %v4010, 64
    %v4829 = vpop.permute.xlu0 %4828
    %4830 = vrot.lane.b32.xlu0 %v4011, 64
    %v4831 = vpop.permute.xlu0 %4830
    %4832 = vrot.lane.b32.xlu0 %v4012, 64
    %v4833 = vpop.permute.xlu0 %4832
    %4834 = vrot.lane.b32.xlu0 %v4013, 64
    %v4835 = vpop.permute.xlu0 %4834
    %4836 = vrot.lane.b32.xlu0 %v4014, 64
    %v4837 = vpop.permute.xlu0 %4836
    %4838 = vrot.lane.b32.xlu0 %v4015, 64
    %v4839 = vpop.permute.xlu0 %4838
    %4840 = vrot.lane.b32.xlu0 %v4016, 64
    %v4841 = vpop.permute.xlu0 %4840
    %4842 = vrot.lane.b32.xlu0 %v4017, 64
    %v4843 = vpop.permute.xlu0 %4842
    %4844 = vrot.lane.b32.xlu0 %v4018, 64
    %v4845 = vpop.permute.xlu0 %4844
    %4846 = vrot.lane.b32.xlu0 %v4019, 64
    %v4847 = vpop.permute.xlu0 %4846
    %4848 = vrot.lane.b32.xlu0 %v4020, 64
    %v4849 = vpop.permute.xlu0 %4848
    %4850 = vrot.lane.b32.xlu0 %v4021, 64
    %v4851 = vpop.permute.xlu0 %4850
    %4852 = vrot.lane.b32.xlu0 %v4022, 64
    %v4853 = vpop.permute.xlu0 %4852
    %4854 = vrot.lane.b32.xlu0 %v4023, 64
    %v4855 = vpop.permute.xlu0 %4854
    %4856 = vrot.lane.b32.xlu0 %v4024, 64
    %v4857 = vpop.permute.xlu0 %4856
    %4986 = vrot.lane.b32.xlu0 %v4025, 96
    %v4987 = vpop.permute.xlu0 %4986
    %4988 = vrot.lane.b32.xlu0 %v4026, 96
    %v4989 = vpop.permute.xlu0 %4988
    %4990 = vrot.lane.b32.xlu0 %v4027, 96
    %v4991 = vpop.permute.xlu0 %4990
    %4992 = vrot.lane.b32.xlu0 %v4028, 96
    %v4993 = vpop.permute.xlu0 %4992
    %4994 = vrot.lane.b32.xlu0 %v4029, 96
    %v4995 = vpop.permute.xlu0 %4994
    %4996 = vrot.lane.b32.xlu0 %v4030, 96
    %v4997 = vpop.permute.xlu0 %4996
    %4998 = vrot.lane.b32.xlu0 %v4031, 96
    %v4999 = vpop.permute.xlu0 %4998
    %5000 = vrot.lane.b32.xlu0 %v4032, 96
    %v5001 = vpop.permute.xlu0 %5000
    %5002 = vrot.lane.b32.xlu0 %v4033, 96
    %v5003 = vpop.permute.xlu0 %5002
    %5004 = vrot.lane.b32.xlu0 %v4034, 96
    %v5005 = vpop.permute.xlu0 %5004
    %5006 = vrot.lane.b32.xlu0 %v4035, 96
    %v5007 = vpop.permute.xlu0 %5006
    %5008 = vrot.lane.b32.xlu0 %v4036, 96
    %v5009 = vpop.permute.xlu0 %5008
    %5010 = vrot.lane.b32.xlu0 %v4037, 96
    %v5011 = vpop.permute.xlu0 %5010
    %5012 = vrot.lane.b32.xlu0 %v4038, 96
    %v5013 = vpop.permute.xlu0 %5012
    %5014 = vrot.lane.b32.xlu0 %v4039, 96
    %v5015 = vpop.permute.xlu0 %5014
    %5016 = vrot.lane.b32.xlu0 %v4040, 96
    %v5017 = vpop.permute.xlu0 %5016
    %5018 = vrot.lane.b32.xlu0 %v4041, 96
    %v5019 = vpop.permute.xlu0 %5018
    %5020 = vrot.lane.b32.xlu0 %v4042, 96
    %v5021 = vpop.permute.xlu0 %5020
    %5022 = vrot.lane.b32.xlu0 %v4043, 96
    %v5023 = vpop.permute.xlu0 %5022
    %5024 = vrot.lane.b32.xlu0 %v4044, 96
    %v5025 = vpop.permute.xlu0 %5024
    %5026 = vrot.lane.b32.xlu0 %v4045, 96
    %v5027 = vpop.permute.xlu0 %5026
    %5028 = vrot.lane.b32.xlu0 %v4046, 96
    %v5029 = vpop.permute.xlu0 %5028
    %5030 = vrot.lane.b32.xlu0 %v4047, 96
    %v5031 = vpop.permute.xlu0 %5030
    %5032 = vrot.lane.b32.xlu0 %v4048, 96
    %v5033 = vpop.permute.xlu0 %5032
    %5034 = vrot.lane.b32.xlu0 %v4049, 96
    %v5035 = vpop.permute.xlu0 %5034
    %5036 = vrot.lane.b32.xlu0 %v4050, 96
    %v5037 = vpop.permute.xlu0 %5036
    %5038 = vrot.lane.b32.xlu0 %v4051, 96
    %v5039 = vpop.permute.xlu0 %5038
    %5040 = vrot.lane.b32.xlu0 %v4052, 96
    %v5041 = vpop.permute.xlu0 %5040
    %5042 = vrot.lane.b32.xlu0 %v4053, 96
    %v5043 = vpop.permute.xlu0 %5042
    %5044 = vrot.lane.b32.xlu0 %v4054, 96
    %v5045 = vpop.permute.xlu0 %5044
    %5046 = vrot.lane.b32.xlu0 %v4055, 96
    %v5047 = vpop.permute.xlu0 %5046
    %5048 = vrot.lane.b32.xlu0 %v4056, 96
    %v5049 = vpop.permute.xlu0 %5048
    %5050 = vrot.lane.b32.xlu0 %v4057, 96
    %v5051 = vpop.permute.xlu0 %5050
    %5052 = vrot.lane.b32.xlu0 %v4058, 96
    %v5053 = vpop.permute.xlu0 %5052
    %5054 = vrot.lane.b32.xlu0 %v4059, 96
    %v5055 = vpop.permute.xlu0 %5054
    %5056 = vrot.lane.b32.xlu0 %v4060, 96
    %v5057 = vpop.permute.xlu0 %5056
    %5058 = vrot.lane.b32.xlu0 %v4061, 96
    %v5059 = vpop.permute.xlu0 %5058
    %5060 = vrot.lane.b32.xlu0 %v4062, 96
    %v5061 = vpop.permute.xlu0 %5060
    %5062 = vrot.lane.b32.xlu0 %v4063, 96
    %v5063 = vpop.permute.xlu0 %5062
    %5064 = vrot.lane.b32.xlu0 %v4064, 96
    %v5065 = vpop.permute.xlu0 %5064
    %5066 = vrot.lane.b32.xlu0 %v4065, 96
    %v5067 = vpop.permute.xlu0 %5066
    %5068 = vrot.lane.b32.xlu0 %v4066, 96
    %v5069 = vpop.permute.xlu0 %5068
    %5070 = vrot.lane.b32.xlu0 %v4067, 96
    %v5071 = vpop.permute.xlu0 %5070
    %5072 = vrot.lane.b32.xlu0 %v4068, 96
    %v5073 = vpop.permute.xlu0 %5072
    %5074 = vrot.lane.b32.xlu0 %v4069, 96
    %v5075 = vpop.permute.xlu0 %5074
    %5076 = vrot.lane.b32.xlu0 %v4070, 96
    %v5077 = vpop.permute.xlu0 %5076
    %5078 = vrot.lane.b32.xlu0 %v4071, 96
    %v5079 = vpop.permute.xlu0 %5078
    %5080 = vrot.lane.b32.xlu0 %v4072, 96
    %v5081 = vpop.permute.xlu0 %5080
    %5082 = vrot.lane.b32.xlu0 %v4073, 96
    %v5083 = vpop.permute.xlu0 %5082
    %5084 = vrot.lane.b32.xlu0 %v4074, 96
    %v5085 = vpop.permute.xlu0 %5084
    %5086 = vrot.lane.b32.xlu0 %v4075, 96
    %v5087 = vpop.permute.xlu0 %5086
    %5088 = vrot.lane.b32.xlu0 %v4076, 96
    %v5089 = vpop.permute.xlu0 %5088
    %5090 = vrot.lane.b32.xlu0 %v4077, 96
    %v5091 = vpop.permute.xlu0 %5090
    %5092 = vrot.lane.b32.xlu0 %v4078, 96
    %v5093 = vpop.permute.xlu0 %5092
    %5094 = vrot.lane.b32.xlu0 %v4079, 96
    %v5095 = vpop.permute.xlu0 %5094
    %5096 = vrot.lane.b32.xlu0 %v4080, 96
    %v5097 = vpop.permute.xlu0 %5096
    %5098 = vrot.lane.b32.xlu0 %v4081, 96
    %v5099 = vpop.permute.xlu0 %5098
    %5100 = vrot.lane.b32.xlu0 %v4082, 96
    %v5101 = vpop.permute.xlu0 %5100
    %5102 = vrot.lane.b32.xlu0 %v4083, 96
    %v5103 = vpop.permute.xlu0 %5102
    %5104 = vrot.lane.b32.xlu0 %v4084, 96
    %v5105 = vpop.permute.xlu0 %5104
    %5106 = vrot.lane.b32.xlu0 %v4085, 96
    %v5107 = vpop.permute.xlu0 %5106
    %5108 = vrot.lane.b32.xlu0 %v4086, 96
    %v5109 = vpop.permute.xlu0 %5108
    %5110 = vrot.lane.b32.xlu0 %v4087, 96
    %v5111 = vpop.permute.xlu0 %5110
    %5112 = vrot.lane.b32.xlu0 %v4088, 96
    %v5113 = vpop.permute.xlu0 %5112
    %5242 = vrot.lane.b32.xlu0 %v4153, 32
    %v5243 = vpop.permute.xlu0 %5242
    %5244 = vrot.lane.b32.xlu0 %v4154, 32
    %v5245 = vpop.permute.xlu0 %5244
    %5246 = vrot.lane.b32.xlu0 %v4155, 32
    %v5247 = vpop.permute.xlu0 %5246
    %5248 = vrot.lane.b32.xlu0 %v4156, 32
    %v5249 = vpop.permute.xlu0 %5248
    %5250 = vrot.lane.b32.xlu0 %v4157, 32
    %v5251 = vpop.permute.xlu0 %5250
    %5252 = vrot.lane.b32.xlu0 %v4158, 32
    %v5253 = vpop.permute.xlu0 %5252
    %5254 = vrot.lane.b32.xlu0 %v4159, 32
    %v5255 = vpop.permute.xlu0 %5254
    %5256 = vrot.lane.b32.xlu0 %v4160, 32
    %v5257 = vpop.permute.xlu0 %5256
    %5258 = vrot.lane.b32.xlu0 %v4161, 32
    %v5259 = vpop.permute.xlu0 %5258
    %5260 = vrot.lane.b32.xlu0 %v4162, 32
    %v5261 = vpop.permute.xlu0 %5260
    %5262 = vrot.lane.b32.xlu0 %v4163, 32
    %v5263 = vpop.permute.xlu0 %5262
    %5264 = vrot.lane.b32.xlu0 %v4164, 32
    %v5265 = vpop.permute.xlu0 %5264
    %5266 = vrot.lane.b32.xlu0 %v4165, 32
    %v5267 = vpop.permute.xlu0 %5266
    %5268 = vrot.lane.b32.xlu0 %v4166, 32
    %v5269 = vpop.permute.xlu0 %5268
    %5270 = vrot.lane.b32.xlu0 %v4167, 32
    %v5271 = vpop.permute.xlu0 %5270
    %5272 = vrot.lane.b32.xlu0 %v4168, 32
    %v5273 = vpop.permute.xlu0 %5272
    %5274 = vrot.lane.b32.xlu0 %v4169, 32
    %v5275 = vpop.permute.xlu0 %5274
    %5276 = vrot.lane.b32.xlu0 %v4170, 32
    %v5277 = vpop.permute.xlu0 %5276
    %5278 = vrot.lane.b32.xlu0 %v4171, 32
    %v5279 = vpop.permute.xlu0 %5278
    %5280 = vrot.lane.b32.xlu0 %v4172, 32
    %v5281 = vpop.permute.xlu0 %5280
    %5282 = vrot.lane.b32.xlu0 %v4173, 32
    %v5283 = vpop.permute.xlu0 %5282
    %5284 = vrot.lane.b32.xlu0 %v4174, 32
    %v5285 = vpop.permute.xlu0 %5284
    %5286 = vrot.lane.b32.xlu0 %v4175, 32
    %v5287 = vpop.permute.xlu0 %5286
    %5288 = vrot.lane.b32.xlu0 %v4176, 32
    %v5289 = vpop.permute.xlu0 %5288
    %5290 = vrot.lane.b32.xlu0 %v4177, 32
    %v5291 = vpop.permute.xlu0 %5290
    %5292 = vrot.lane.b32.xlu0 %v4178, 32
    %v5293 = vpop.permute.xlu0 %5292
    %5294 = vrot.lane.b32.xlu0 %v4179, 32
    %v5295 = vpop.permute.xlu0 %5294
    %5296 = vrot.lane.b32.xlu0 %v4180, 32
    %v5297 = vpop.permute.xlu0 %5296
    %5298 = vrot.lane.b32.xlu0 %v4181, 32
    %v5299 = vpop.permute.xlu0 %5298
    %5300 = vrot.lane.b32.xlu0 %v4182, 32
    %v5301 = vpop.permute.xlu0 %5300
    %5302 = vrot.lane.b32.xlu0 %v4183, 32
    %v5303 = vpop.permute.xlu0 %5302
    %5304 = vrot.lane.b32.xlu0 %v4184, 32
    %v5305 = vpop.permute.xlu0 %5304
    %5306 = vrot.lane.b32.xlu0 %v4185, 32
    %v5307 = vpop.permute.xlu0 %5306
    %5308 = vrot.lane.b32.xlu0 %v4186, 32
    %v5309 = vpop.permute.xlu0 %5308
    %5310 = vrot.lane.b32.xlu0 %v4187, 32
    %v5311 = vpop.permute.xlu0 %5310
    %5312 = vrot.lane.b32.xlu0 %v4188, 32
    %v5313 = vpop.permute.xlu0 %5312
    %5314 = vrot.lane.b32.xlu0 %v4189, 32
    %v5315 = vpop.permute.xlu0 %5314
    %5316 = vrot.lane.b32.xlu0 %v4190, 32
    %v5317 = vpop.permute.xlu0 %5316
    %5318 = vrot.lane.b32.xlu0 %v4191, 32
    %v5319 = vpop.permute.xlu0 %5318
    %5320 = vrot.lane.b32.xlu0 %v4192, 32
    %v5321 = vpop.permute.xlu0 %5320
    %5322 = vrot.lane.b32.xlu0 %v4193, 32
    %v5323 = vpop.permute.xlu0 %5322
    %5324 = vrot.lane.b32.xlu0 %v4194, 32
    %v5325 = vpop.permute.xlu0 %5324
    %5326 = vrot.lane.b32.xlu0 %v4195, 32
    %v5327 = vpop.permute.xlu0 %5326
    %5328 = vrot.lane.b32.xlu0 %v4196, 32
    %v5329 = vpop.permute.xlu0 %5328
    %5330 = vrot.lane.b32.xlu0 %v4197, 32
    %v5331 = vpop.permute.xlu0 %5330
    %5332 = vrot.lane.b32.xlu0 %v4198, 32
    %v5333 = vpop.permute.xlu0 %5332
    %5334 = vrot.lane.b32.xlu0 %v4199, 32
    %v5335 = vpop.permute.xlu0 %5334
    %5336 = vrot.lane.b32.xlu0 %v4200, 32
    %v5337 = vpop.permute.xlu0 %5336
    %5338 = vrot.lane.b32.xlu0 %v4201, 32
    %v5339 = vpop.permute.xlu0 %5338
    %5340 = vrot.lane.b32.xlu0 %v4202, 32
    %v5341 = vpop.permute.xlu0 %5340
    %5342 = vrot.lane.b32.xlu0 %v4203, 32
    %v5343 = vpop.permute.xlu0 %5342
    %5344 = vrot.lane.b32.xlu0 %v4204, 32
    %v5345 = vpop.permute.xlu0 %5344
    %5346 = vrot.lane.b32.xlu0 %v4205, 32
    %v5347 = vpop.permute.xlu0 %5346
    %5348 = vrot.lane.b32.xlu0 %v4206, 32
    %v5349 = vpop.permute.xlu0 %5348
    %5350 = vrot.lane.b32.xlu0 %v4207, 32
    %v5351 = vpop.permute.xlu0 %5350
    %5352 = vrot.lane.b32.xlu0 %v4208, 32
    %v5353 = vpop.permute.xlu0 %5352
    %5354 = vrot.lane.b32.xlu0 %v4209, 32
    %v5355 = vpop.permute.xlu0 %5354
    %5356 = vrot.lane.b32.xlu0 %v4210, 32
    %v5357 = vpop.permute.xlu0 %5356
    %5358 = vrot.lane.b32.xlu0 %v4211, 32
    %v5359 = vpop.permute.xlu0 %5358
    %5360 = vrot.lane.b32.xlu0 %v4212, 32
    %v5361 = vpop.permute.xlu0 %5360
    %5362 = vrot.lane.b32.xlu0 %v4213, 32
    %v5363 = vpop.permute.xlu0 %5362
    %5364 = vrot.lane.b32.xlu0 %v4214, 32
    %v5365 = vpop.permute.xlu0 %5364
    %5366 = vrot.lane.b32.xlu0 %v4215, 32
    %v5367 = vpop.permute.xlu0 %5366
    %5368 = vrot.lane.b32.xlu0 %v4216, 32
    %v5369 = vpop.permute.xlu0 %5368
    %5498 = vrot.lane.b32.xlu0 %v4218, 64
    %v5499 = vpop.permute.xlu0 %5498
    %5500 = vrot.lane.b32.xlu0 %v4219, 64
    %v5501 = vpop.permute.xlu0 %5500
    %5502 = vrot.lane.b32.xlu0 %v4220, 64
    %v5503 = vpop.permute.xlu0 %5502
    %5504 = vrot.lane.b32.xlu0 %v4221, 64
    %v5505 = vpop.permute.xlu0 %5504
    %5506 = vrot.lane.b32.xlu0 %v4222, 64
    %v5507 = vpop.permute.xlu0 %5506
    %5508 = vrot.lane.b32.xlu0 %v4223, 64
    %v5509 = vpop.permute.xlu0 %5508
    %5510 = vrot.lane.b32.xlu0 %v4224, 64
    %v5511 = vpop.permute.xlu0 %5510
    %5512 = vrot.lane.b32.xlu0 %v4225, 64
    %v5513 = vpop.permute.xlu0 %5512
    %5514 = vrot.lane.b32.xlu0 %v4226, 64
    %v5515 = vpop.permute.xlu0 %5514
    %5516 = vrot.lane.b32.xlu0 %v4227, 64
    %v5517 = vpop.permute.xlu0 %5516
    %5518 = vrot.lane.b32.xlu0 %v4228, 64
    %v5519 = vpop.permute.xlu0 %5518
    %5520 = vrot.lane.b32.xlu0 %v4229, 64
    %v5521 = vpop.permute.xlu0 %5520
    %5522 = vrot.lane.b32.xlu0 %v4230, 64
    %v5523 = vpop.permute.xlu0 %5522
    %5524 = vrot.lane.b32.xlu0 %v4231, 64
    %v5525 = vpop.permute.xlu0 %5524
    %5526 = vrot.lane.b32.xlu0 %v4232, 64
    %v5527 = vpop.permute.xlu0 %5526
    %5528 = vrot.lane.b32.xlu0 %v4233, 64
    %v5529 = vpop.permute.xlu0 %5528
    %5530 = vrot.lane.b32.xlu0 %v4234, 64
    %v5531 = vpop.permute.xlu0 %5530
    %5532 = vrot.lane.b32.xlu0 %v4235, 64
    %v5533 = vpop.permute.xlu0 %5532
    %5534 = vrot.lane.b32.xlu0 %v4236, 64
    %v5535 = vpop.permute.xlu0 %5534
    %5536 = vrot.lane.b32.xlu0 %v4237, 64
    %v5537 = vpop.permute.xlu0 %5536
    %5538 = vrot.lane.b32.xlu0 %v4238, 64
    %v5539 = vpop.permute.xlu0 %5538
    %5540 = vrot.lane.b32.xlu0 %v4239, 64
    %v5541 = vpop.permute.xlu0 %5540
    %5542 = vrot.lane.b32.xlu0 %v4240, 64
    %v5543 = vpop.permute.xlu0 %5542
    %5544 = vrot.lane.b32.xlu0 %v4241, 64
    %v5545 = vpop.permute.xlu0 %5544
    %5546 = vrot.lane.b32.xlu0 %v4242, 64
    %v5547 = vpop.permute.xlu0 %5546
    %5548 = vrot.lane.b32.xlu0 %v4243, 64
    %v5549 = vpop.permute.xlu0 %5548
    %5550 = vrot.lane.b32.xlu0 %v4244, 64
    %v5551 = vpop.permute.xlu0 %5550
    %5552 = vrot.lane.b32.xlu0 %v4245, 64
    %v5553 = vpop.permute.xlu0 %5552
    %5554 = vrot.lane.b32.xlu0 %v4246, 64
    %v5555 = vpop.permute.xlu0 %5554
    %5556 = vrot.lane.b32.xlu0 %v4247, 64
    %v5557 = vpop.permute.xlu0 %5556
    %5558 = vrot.lane.b32.xlu0 %v4248, 64
    %v5559 = vpop.permute.xlu0 %5558
    %5560 = vrot.lane.b32.xlu0 %v4249, 64
    %v5561 = vpop.permute.xlu0 %5560
    %5562 = vrot.lane.b32.xlu0 %v4250, 64
    %v5563 = vpop.permute.xlu0 %5562
    %5564 = vrot.lane.b32.xlu0 %v4251, 64
    %v5565 = vpop.permute.xlu0 %5564
    %5566 = vrot.lane.b32.xlu0 %v4252, 64
    %v5567 = vpop.permute.xlu0 %5566
    %5568 = vrot.lane.b32.xlu0 %v4253, 64
    %v5569 = vpop.permute.xlu0 %5568
    %5570 = vrot.lane.b32.xlu0 %v4254, 64
    %v5571 = vpop.permute.xlu0 %5570
    %5572 = vrot.lane.b32.xlu0 %v4255, 64
    %v5573 = vpop.permute.xlu0 %5572
    %5574 = vrot.lane.b32.xlu0 %v4256, 64
    %v5575 = vpop.permute.xlu0 %5574
    %5576 = vrot.lane.b32.xlu0 %v4257, 64
    %v5577 = vpop.permute.xlu0 %5576
    %5578 = vrot.lane.b32.xlu0 %v4258, 64
    %v5579 = vpop.permute.xlu0 %5578
    %5580 = vrot.lane.b32.xlu0 %v4259, 64
    %v5581 = vpop.permute.xlu0 %5580
    %5582 = vrot.lane.b32.xlu0 %v4260, 64
    %v5583 = vpop.permute.xlu0 %5582
    %5584 = vrot.lane.b32.xlu0 %v4261, 64
    %v5585 = vpop.permute.xlu0 %5584
    %5586 = vrot.lane.b32.xlu0 %v4262, 64
    %v5587 = vpop.permute.xlu0 %5586
    %5588 = vrot.lane.b32.xlu0 %v4263, 64
    %v5589 = vpop.permute.xlu0 %5588
    %5590 = vrot.lane.b32.xlu0 %v4264, 64
    %v5591 = vpop.permute.xlu0 %5590
    %5592 = vrot.lane.b32.xlu0 %v4265, 64
    %v5593 = vpop.permute.xlu0 %5592
    %5594 = vrot.lane.b32.xlu0 %v4266, 64
    %v5595 = vpop.permute.xlu0 %5594
    %5596 = vrot.lane.b32.xlu0 %v4267, 64
    %v5597 = vpop.permute.xlu0 %5596
    %5598 = vrot.lane.b32.xlu0 %v4268, 64
    %v5599 = vpop.permute.xlu0 %5598
    %5600 = vrot.lane.b32.xlu0 %v4269, 64
    %v5601 = vpop.permute.xlu0 %5600
    %5602 = vrot.lane.b32.xlu0 %v4270, 64
    %v5603 = vpop.permute.xlu0 %5602
    %5604 = vrot.lane.b32.xlu0 %v4271, 64
    %v5605 = vpop.permute.xlu0 %5604
    %5606 = vrot.lane.b32.xlu0 %v4272, 64
    %v5607 = vpop.permute.xlu0 %5606
    %5608 = vrot.lane.b32.xlu0 %v4273, 64
    %v5609 = vpop.permute.xlu0 %5608
    %5610 = vrot.lane.b32.xlu0 %v4274, 64
    %v5611 = vpop.permute.xlu0 %5610
    %5612 = vrot.lane.b32.xlu0 %v4275, 64
    %v5613 = vpop.permute.xlu0 %5612
    %5614 = vrot.lane.b32.xlu0 %v4276, 64
    %v5615 = vpop.permute.xlu0 %5614
    %5616 = vrot.lane.b32.xlu0 %v4277, 64
    %v5617 = vpop.permute.xlu0 %5616
    %5618 = vrot.lane.b32.xlu0 %v4278, 64
    %v5619 = vpop.permute.xlu0 %5618
    %5620 = vrot.lane.b32.xlu0 %v4279, 64
    %v5621 = vpop.permute.xlu0 %5620
    %5622 = vrot.lane.b32.xlu0 %v4280, 64
    %v5623 = vpop.permute.xlu0 %5622
    %5624 = vrot.lane.b32.xlu0 %v4281, 64
    %v5625 = vpop.permute.xlu0 %5624
    %5754 = vrot.lane.b32.xlu0 %v4282, 96
    %v5755 = vpop.permute.xlu0 %5754
    %5756 = vrot.lane.b32.xlu0 %v4283, 96
    %v5757 = vpop.permute.xlu0 %5756
    %5758 = vrot.lane.b32.xlu0 %v4284, 96
    %v5759 = vpop.permute.xlu0 %5758
    %5760 = vrot.lane.b32.xlu0 %v4285, 96
    %v5761 = vpop.permute.xlu0 %5760
    %5762 = vrot.lane.b32.xlu0 %v4286, 96
    %v5763 = vpop.permute.xlu0 %5762
    %5764 = vrot.lane.b32.xlu0 %v4287, 96
    %v5765 = vpop.permute.xlu0 %5764
    %5766 = vrot.lane.b32.xlu0 %v4288, 96
    %v5767 = vpop.permute.xlu0 %5766
    %5768 = vrot.lane.b32.xlu0 %v4289, 96
    %v5769 = vpop.permute.xlu0 %5768
    %5770 = vrot.lane.b32.xlu0 %v4290, 96
    %v5771 = vpop.permute.xlu0 %5770
    %5772 = vrot.lane.b32.xlu0 %v4291, 96
    %v5773 = vpop.permute.xlu0 %5772
    %5774 = vrot.lane.b32.xlu0 %v4292, 96
    %v5775 = vpop.permute.xlu0 %5774
    %5776 = vrot.lane.b32.xlu0 %v4293, 96
    %v5777 = vpop.permute.xlu0 %5776
    %5778 = vrot.lane.b32.xlu0 %v4294, 96
    %v5779 = vpop.permute.xlu0 %5778
    %5780 = vrot.lane.b32.xlu0 %v4295, 96
    %v5781 = vpop.permute.xlu0 %5780
    %5782 = vrot.lane.b32.xlu0 %v4296, 96
    %v5783 = vpop.permute.xlu0 %5782
    %5784 = vrot.lane.b32.xlu0 %v4297, 96
    %v5785 = vpop.permute.xlu0 %5784
    %5786 = vrot.lane.b32.xlu0 %v4298, 96
    %v5787 = vpop.permute.xlu0 %5786
    %5788 = vrot.lane.b32.xlu0 %v4299, 96
    %v5789 = vpop.permute.xlu0 %5788
    %5790 = vrot.lane.b32.xlu0 %v4300, 96
    %v5791 = vpop.permute.xlu0 %5790
    %5792 = vrot.lane.b32.xlu0 %v4301, 96
    %v5793 = vpop.permute.xlu0 %5792
    %5794 = vrot.lane.b32.xlu0 %v4302, 96
    %v5795 = vpop.permute.xlu0 %5794
    %5796 = vrot.lane.b32.xlu0 %v4303, 96
    %v5797 = vpop.permute.xlu0 %5796
    %5798 = vrot.lane.b32.xlu0 %v4304, 96
    %v5799 = vpop.permute.xlu0 %5798
    %5800 = vrot.lane.b32.xlu0 %v4305, 96
    %v5801 = vpop.permute.xlu0 %5800
    %5802 = vrot.lane.b32.xlu0 %v4306, 96
    %v5803 = vpop.permute.xlu0 %5802
    %5804 = vrot.lane.b32.xlu0 %v4307, 96
    %v5805 = vpop.permute.xlu0 %5804
    %5806 = vrot.lane.b32.xlu0 %v4308, 96
    %v5807 = vpop.permute.xlu0 %5806
    %5808 = vrot.lane.b32.xlu0 %v4309, 96
    %v5809 = vpop.permute.xlu0 %5808
    %5810 = vrot.lane.b32.xlu0 %v4310, 96
    %v5811 = vpop.permute.xlu0 %5810
    %5812 = vrot.lane.b32.xlu0 %v4311, 96
    %v5813 = vpop.permute.xlu0 %5812
    %5814 = vrot.lane.b32.xlu0 %v4312, 96
    %v5815 = vpop.permute.xlu0 %5814
    %5816 = vrot.lane.b32.xlu0 %v4313, 96
    %v5817 = vpop.permute.xlu0 %5816
    %5818 = vrot.lane.b32.xlu0 %v4314, 96
    %v5819 = vpop.permute.xlu0 %5818
    %5820 = vrot.lane.b32.xlu0 %v4315, 96
    %v5821 = vpop.permute.xlu0 %5820
    %5822 = vrot.lane.b32.xlu0 %v4316, 96
    %v5823 = vpop.permute.xlu0 %5822
    %5824 = vrot.lane.b32.xlu0 %v4317, 96
    %v5825 = vpop.permute.xlu0 %5824
    %5826 = vrot.lane.b32.xlu0 %v4318, 96
    %v5827 = vpop.permute.xlu0 %5826
    %5828 = vrot.lane.b32.xlu0 %v4319, 96
    %v5829 = vpop.permute.xlu0 %5828
    %5830 = vrot.lane.b32.xlu0 %v4320, 96
    %v5831 = vpop.permute.xlu0 %5830
    %5832 = vrot.lane.b32.xlu0 %v4321, 96
    %v5833 = vpop.permute.xlu0 %5832
    %5834 = vrot.lane.b32.xlu0 %v4322, 96
    %v5835 = vpop.permute.xlu0 %5834
    %5836 = vrot.lane.b32.xlu0 %v4323, 96
    %v5837 = vpop.permute.xlu0 %5836
    %5838 = vrot.lane.b32.xlu0 %v4324, 96
    %v5839 = vpop.permute.xlu0 %5838
    %5840 = vrot.lane.b32.xlu0 %v4325, 96
    %v5841 = vpop.permute.xlu0 %5840
    %5842 = vrot.lane.b32.xlu0 %v4326, 96
    %v5843 = vpop.permute.xlu0 %5842
    %5844 = vrot.lane.b32.xlu0 %v4327, 96
    %v5845 = vpop.permute.xlu0 %5844
    %5846 = vrot.lane.b32.xlu0 %v4328, 96
    %v5847 = vpop.permute.xlu0 %5846
    %5848 = vrot.lane.b32.xlu0 %v4329, 96
    %v5849 = vpop.permute.xlu0 %5848
    %5850 = vrot.lane.b32.xlu0 %v4330, 96
    %v5851 = vpop.permute.xlu0 %5850
    %5852 = vrot.lane.b32.xlu0 %v4331, 96
    %v5853 = vpop.permute.xlu0 %5852
    %5854 = vrot.lane.b32.xlu0 %v4332, 96
    %v5855 = vpop.permute.xlu0 %5854
    %5856 = vrot.lane.b32.xlu0 %v4333, 96
    %v5857 = vpop.permute.xlu0 %5856
    %5858 = vrot.lane.b32.xlu0 %v4334, 96
    %v5859 = vpop.permute.xlu0 %5858
    %5860 = vrot.lane.b32.xlu0 %v4335, 96
    %v5861 = vpop.permute.xlu0 %5860
    %5862 = vrot.lane.b32.xlu0 %v4336, 96
    %v5863 = vpop.permute.xlu0 %5862
    %5864 = vrot.lane.b32.xlu0 %v4337, 96
    %v5865 = vpop.permute.xlu0 %5864
    %5866 = vrot.lane.b32.xlu0 %v4338, 96
    %v5867 = vpop.permute.xlu0 %5866
    %5868 = vrot.lane.b32.xlu0 %v4339, 96
    %v5869 = vpop.permute.xlu0 %5868
    %5870 = vrot.lane.b32.xlu0 %v4340, 96
    %v5871 = vpop.permute.xlu0 %5870
    %5872 = vrot.lane.b32.xlu0 %v4341, 96
    %v5873 = vpop.permute.xlu0 %5872
    %5874 = vrot.lane.b32.xlu0 %v4342, 96
    %v5875 = vpop.permute.xlu0 %5874
    %5876 = vrot.lane.b32.xlu0 %v4343, 96
    %v5877 = vpop.permute.xlu0 %5876
    %5878 = vrot.lane.b32.xlu0 %v4344, 96
    %v5879 = vpop.permute.xlu0 %5878
    %5880 = vrot.lane.b32.xlu0 %v4345, 96
    %v5881 = vpop.permute.xlu0 %5880
    %v5946 = vsel %vm3103, %v3833, %v4475
    %v5947 = vsel %vm3103, %v3834, %v4477
    %v5948 = vsel %vm3103, %v3835, %v4479
    %v5949 = vsel %vm3103, %v3836, %v4481
    %v5950 = vsel %vm3103, %v3837, %v4483
    %v5951 = vsel %vm3103, %v3838, %v4485
    %v5952 = vsel %vm3103, %v3839, %v4487
    %v5953 = vsel %vm3103, %v3840, %v4489
    %v5954 = vsel %vm3103, %v3841, %v4491
    %v5955 = vsel %vm3103, %v3842, %v4493
    %v5956 = vsel %vm3103, %v3843, %v4495
    %v5957 = vsel %vm3103, %v3844, %v4497
    %v5958 = vsel %vm3103, %v3845, %v4499
    %v5959 = vsel %vm3103, %v3846, %v4501
    %v5960 = vsel %vm3103, %v3847, %v4503
    %v5961 = vsel %vm3103, %v3848, %v4505
    %v5962 = vsel %vm3103, %v3849, %v4507
    %v5963 = vsel %vm3103, %v3850, %v4509
    %v5964 = vsel %vm3103, %v3851, %v4511
    %v5965 = vsel %vm3103, %v3852, %v4513
    %v5966 = vsel %vm3103, %v3853, %v4515
    %v5967 = vsel %vm3103, %v3854, %v4517
    %v5968 = vsel %vm3103, %v3855, %v4519
    %v5969 = vsel %vm3103, %v3856, %v4521
    %v5970 = vsel %vm3103, %v3857, %v4523
    %v5971 = vsel %vm3103, %v3858, %v4525
    %v5972 = vsel %vm3103, %v3859, %v4527
    %v5973 = vsel %vm3103, %v3860, %v4529
    %v5974 = vsel %vm3103, %v3861, %v4531
    %v5975 = vsel %vm3103, %v3862, %v4533
    %v5976 = vsel %vm3103, %v3863, %v4535
    %v5977 = vsel %vm3103, %v3864, %v4537
    %v5978 = vsel %vm3103, %v3865, %v4539
    %v5979 = vsel %vm3103, %v3866, %v4541
    %v5980 = vsel %vm3103, %v3867, %v4543
    %v5981 = vsel %vm3103, %v3868, %v4545
    %v5982 = vsel %vm3103, %v3869, %v4547
    %v5983 = vsel %vm3103, %v3870, %v4549
    %v5984 = vsel %vm3103, %v3871, %v4551
    %v5985 = vsel %vm3103, %v3872, %v4553
    %v5986 = vsel %vm3103, %v3873, %v4555
    %v5987 = vsel %vm3103, %v3874, %v4557
    %v5988 = vsel %vm3103, %v3875, %v4559
    %v5989 = vsel %vm3103, %v3876, %v4561
    %v5990 = vsel %vm3103, %v3877, %v4563
    %v5991 = vsel %vm3103, %v3878, %v4565
    %v5992 = vsel %vm3103, %v3879, %v4567
    %v5993 = vsel %vm3103, %v3880, %v4569
    %v5994 = vsel %vm3103, %v3881, %v4571
    %v5995 = vsel %vm3103, %v3882, %v4573
    %v5996 = vsel %vm3103, %v3883, %v4575
    %v5997 = vsel %vm3103, %v3884, %v4577
    %v5998 = vsel %vm3103, %v3885, %v4579
    %v5999 = vsel %vm3103, %v3886, %v4581
    %v6000 = vsel %vm3103, %v3887, %v4583
    %v6001 = vsel %vm3103, %v3888, %v4585
    %v6002 = vsel %vm3103, %v3889, %v4587
    %v6003 = vsel %vm3103, %v3890, %v4589
    %v6004 = vsel %vm3103, %v3891, %v4591
    %v6005 = vsel %vm3103, %v3892, %v4593
    %v6006 = vsel %vm3103, %v3893, %v4595
    %v6007 = vsel %vm3103, %v3894, %v4597
    %v6008 = vsel %vm3103, %v3895, %v4599
    %v6009 = vsel %vm3103, %v3896, %v4601
    %vm6010 = vcmask 523264
    %v6011 = vsel %vm6010, %v5946, %v4731
    %v6012 = vsel %vm6010, %v5947, %v4733
    %v6013 = vsel %vm6010, %v5948, %v4735
    %v6014 = vsel %vm6010, %v5949, %v4737
    %v6015 = vsel %vm6010, %v5950, %v4739
    %v6016 = vsel %vm6010, %v5951, %v4741
    %v6017 = vsel %vm6010, %v5952, %v4743
    %v6018 = vsel %vm6010, %v5953, %v4745
    %v6019 = vsel %vm6010, %v5954, %v4747
    %v6020 = vsel %vm6010, %v5955, %v4749
    %v6021 = vsel %vm6010, %v5956, %v4751
    %v6022 = vsel %vm6010, %v5957, %v4753
    %v6023 = vsel %vm6010, %v5958, %v4755
    %v6024 = vsel %vm6010, %v5959, %v4757
    %v6025 = vsel %vm6010, %v5960, %v4759
    %v6026 = vsel %vm6010, %v5961, %v4761
    %v6027 = vsel %vm6010, %v5962, %v4763
    %v6028 = vsel %vm6010, %v5963, %v4765
    %v6029 = vsel %vm6010, %v5964, %v4767
    %v6030 = vsel %vm6010, %v5965, %v4769
    %v6031 = vsel %vm6010, %v5966, %v4771
    %v6032 = vsel %vm6010, %v5967, %v4773
    %v6033 = vsel %vm6010, %v5968, %v4775
    %v6034 = vsel %vm6010, %v5969, %v4777
    %v6035 = vsel %vm6010, %v5970, %v4779
    %v6036 = vsel %vm6010, %v5971, %v4781
    %v6037 = vsel %vm6010, %v5972, %v4783
    %v6038 = vsel %vm6010, %v5973, %v4785
    %v6039 = vsel %vm6010, %v5974, %v4787
    %v6040 = vsel %vm6010, %v5975, %v4789
    %v6041 = vsel %vm6010, %v5976, %v4791
    %v6042 = vsel %vm6010, %v5977, %v4793
    %v6043 = vsel %vm6010, %v5978, %v4795
    %v6044 = vsel %vm6010, %v5979, %v4797
    %v6045 = vsel %vm6010, %v5980, %v4799
    %v6046 = vsel %vm6010, %v5981, %v4801
    %v6047 = vsel %vm6010, %v5982, %v4803
    %v6048 = vsel %vm6010, %v5983, %v4805
    %v6049 = vsel %vm6010, %v5984, %v4807
    %v6050 = vsel %vm6010, %v5985, %v4809
    %v6051 = vsel %vm6010, %v5986, %v4811
    %v6052 = vsel %vm6010, %v5987, %v4813
    %v6053 = vsel %vm6010, %v5988, %v4815
    %v6054 = vsel %vm6010, %v5989, %v4817
    %v6055 = vsel %vm6010, %v5990, %v4819
    %v6056 = vsel %vm6010, %v5991, %v4821
    %v6057 = vsel %vm6010, %v5992, %v4823
    %v6058 = vsel %vm6010, %v5993, %v4825
    %v6059 = vsel %vm6010, %v5994, %v4827
    %v6060 = vsel %vm6010, %v5995, %v4829
    %v6061 = vsel %vm6010, %v5996, %v4831
    %v6062 = vsel %vm6010, %v5997, %v4833
    %v6063 = vsel %vm6010, %v5998, %v4835
    %v6064 = vsel %vm6010, %v5999, %v4837
    %v6065 = vsel %vm6010, %v6000, %v4839
    %v6066 = vsel %vm6010, %v6001, %v4841
    %v6067 = vsel %vm6010, %v6002, %v4843
    %v6068 = vsel %vm6010, %v6003, %v4845
    %v6069 = vsel %vm6010, %v6004, %v4847
    %v6070 = vsel %vm6010, %v6005, %v4849
    %v6071 = vsel %vm6010, %v6006, %v4851
    %v6072 = vsel %vm6010, %v6007, %v4853
    %v6073 = vsel %vm6010, %v6008, %v4855
    %v6074 = vsel %vm6010, %v6009, %v4857
    %vm6075 = vcmask 785408
    %v6076 = vsel %vm6075, %v6011, %v4987
    %v6077 = vsel %vm6075, %v6012, %v4989
    %v6078 = vsel %vm6075, %v6013, %v4991
    %v6079 = vsel %vm6075, %v6014, %v4993
    %v6080 = vsel %vm6075, %v6015, %v4995
    %v6081 = vsel %vm6075, %v6016, %v4997
    %v6082 = vsel %vm6075, %v6017, %v4999
    %v6083 = vsel %vm6075, %v6018, %v5001
    %v6084 = vsel %vm6075, %v6019, %v5003
    %v6085 = vsel %vm6075, %v6020, %v5005
    %v6086 = vsel %vm6075, %v6021, %v5007
    %v6087 = vsel %vm6075, %v6022, %v5009
    %v6088 = vsel %vm6075, %v6023, %v5011
    %v6089 = vsel %vm6075, %v6024, %v5013
    %v6090 = vsel %vm6075, %v6025, %v5015
    %v6091 = vsel %vm6075, %v6026, %v5017
    %v6092 = vsel %vm6075, %v6027, %v5019
    %v6093 = vsel %vm6075, %v6028, %v5021
    %v6094 = vsel %vm6075, %v6029, %v5023
    %v6095 = vsel %vm6075, %v6030, %v5025
    %v6096 = vsel %vm6075, %v6031, %v5027
    %v6097 = vsel %vm6075, %v6032, %v5029
    %v6098 = vsel %vm6075, %v6033, %v5031
    %v6099 = vsel %vm6075, %v6034, %v5033
    %v6100 = vsel %vm6075, %v6035, %v5035
    %v6101 = vsel %vm6075, %v6036, %v5037
    %v6102 = vsel %vm6075, %v6037, %v5039
    %v6103 = vsel %vm6075, %v6038, %v5041
    %v6104 = vsel %vm6075, %v6039, %v5043
    %v6105 = vsel %vm6075, %v6040, %v5045
    %v6106 = vsel %vm6075, %v6041, %v5047
    %v6107 = vsel %vm6075, %v6042, %v5049
    %v6108 = vsel %vm6075, %v6043, %v5051
    %v6109 = vsel %vm6075, %v6044, %v5053
    %v6110 = vsel %vm6075, %v6045, %v5055
    %v6111 = vsel %vm6075, %v6046, %v5057
    %v6112 = vsel %vm6075, %v6047, %v5059
    %v6113 = vsel %vm6075, %v6048, %v5061
    %v6114 = vsel %vm6075, %v6049, %v5063
    %v6115 = vsel %vm6075, %v6050, %v5065
    %v6116 = vsel %vm6075, %v6051, %v5067
    %v6117 = vsel %vm6075, %v6052, %v5069
    %v6118 = vsel %vm6075, %v6053, %v5071
    %v6119 = vsel %vm6075, %v6054, %v5073
    %v6120 = vsel %vm6075, %v6055, %v5075
    %v6121 = vsel %vm6075, %v6056, %v5077
    %v6122 = vsel %vm6075, %v6057, %v5079
    %v6123 = vsel %vm6075, %v6058, %v5081
    %v6124 = vsel %vm6075, %v6059, %v5083
    %v6125 = vsel %vm6075, %v6060, %v5085
    %v6126 = vsel %vm6075, %v6061, %v5087
    %v6127 = vsel %vm6075, %v6062, %v5089
    %v6128 = vsel %vm6075, %v6063, %v5091
    %v6129 = vsel %vm6075, %v6064, %v5093
    %v6130 = vsel %vm6075, %v6065, %v5095
    %v6131 = vsel %vm6075, %v6066, %v5097
    %v6132 = vsel %vm6075, %v6067, %v5099
    %v6133 = vsel %vm6075, %v6068, %v5101
    %v6134 = vsel %vm6075, %v6069, %v5103
    %v6135 = vsel %vm6075, %v6070, %v5105
    %v6136 = vsel %vm6075, %v6071, %v5107
    %v6137 = vsel %vm6075, %v6072, %v5109
    %v6138 = vsel %vm6075, %v6073, %v5111
    %v6139 = vsel %vm6075, %v6074, %v5113
    %v6140 = vsel %vm3103, %v4089, %v5243
    %v6141 = vsel %vm3103, %v4090, %v5245
    %v6142 = vsel %vm3103, %v4091, %v5247
    %v6143 = vsel %vm3103, %v4092, %v5249
    %v6144 = vsel %vm3103, %v4093, %v5251
    %v6145 = vsel %vm3103, %v4094, %v5253
    %v6146 = vsel %vm3103, %v4095, %v5255
    %v6147 = vsel %vm3103, %v4096, %v5257
    %v6148 = vsel %vm3103, %v4097, %v5259
    %v6149 = vsel %vm3103, %v4098, %v5261
    %v6150 = vsel %vm3103, %v4099, %v5263
    %v6151 = vsel %vm3103, %v4100, %v5265
    %v6152 = vsel %vm3103, %v4101, %v5267
    %v6153 = vsel %vm3103, %v4102, %v5269
    %v6154 = vsel %vm3103, %v4103, %v5271
    %v6155 = vsel %vm3103, %v4104, %v5273
    %v6156 = vsel %vm3103, %v4105, %v5275
    %v6157 = vsel %vm3103, %v4106, %v5277
    %v6158 = vsel %vm3103, %v4107, %v5279
    %v6159 = vsel %vm3103, %v4108, %v5281
    %v6160 = vsel %vm3103, %v4109, %v5283
    %v6161 = vsel %vm3103, %v4110, %v5285
    %v6162 = vsel %vm3103, %v4111, %v5287
    %v6163 = vsel %vm3103, %v4112, %v5289
    %v6164 = vsel %vm3103, %v4113, %v5291
    %v6165 = vsel %vm3103, %v4114, %v5293
    %v6166 = vsel %vm3103, %v4115, %v5295
    %v6167 = vsel %vm3103, %v4116, %v5297
    %v6168 = vsel %vm3103, %v4117, %v5299
    %v6169 = vsel %vm3103, %v4118, %v5301
    %v6170 = vsel %vm3103, %v4119, %v5303
    %v6171 = vsel %vm3103, %v4120, %v5305
    %v6172 = vsel %vm3103, %v4121, %v5307
    %v6173 = vsel %vm3103, %v4122, %v5309
    %v6174 = vsel %vm3103, %v4123, %v5311
    %v6175 = vsel %vm3103, %v4124, %v5313
    %v6176 = vsel %vm3103, %v4125, %v5315
    %v6177 = vsel %vm3103, %v4126, %v5317
    %v6178 = vsel %vm3103, %v4127, %v5319
    %v6179 = vsel %vm3103, %v4128, %v5321
    %v6180 = vsel %vm3103, %v4129, %v5323
    %v6181 = vsel %vm3103, %v4130, %v5325
    %v6182 = vsel %vm3103, %v4131, %v5327
    %v6183 = vsel %vm3103, %v4132, %v5329
    %v6184 = vsel %vm3103, %v4133, %v5331
    %v6185 = vsel %vm3103, %v4134, %v5333
    %v6186 = vsel %vm3103, %v4135, %v5335
    %v6187 = vsel %vm3103, %v4136, %v5337
    %v6188 = vsel %vm3103, %v4137, %v5339
    %v6189 = vsel %vm3103, %v4138, %v5341
    %v6190 = vsel %vm3103, %v4139, %v5343
    %v6191 = vsel %vm3103, %v4140, %v5345
    %v6192 = vsel %vm3103, %v4141, %v5347
    %v6193 = vsel %vm3103, %v4142, %v5349
    %v6194 = vsel %vm3103, %v4143, %v5351
    %v6195 = vsel %vm3103, %v4144, %v5353
    %v6196 = vsel %vm3103, %v4145, %v5355
    %v6197 = vsel %vm3103, %v4146, %v5357
    %v6198 = vsel %vm3103, %v4147, %v5359
    %v6199 = vsel %vm3103, %v4148, %v5361
    %v6200 = vsel %vm3103, %v4149, %v5363
    %v6201 = vsel %vm3103, %v4150, %v5365
    %v6202 = vsel %vm3103, %v4151, %v5367
    %v6203 = vsel %vm3103, %v4152, %v5369
    %v6204 = vsel %vm6010, %v6140, %v5499
    %v6205 = vsel %vm6010, %v6141, %v5501
    %v6206 = vsel %vm6010, %v6142, %v5503
    %v6207 = vsel %vm6010, %v6143, %v5505
    %v6208 = vsel %vm6010, %v6144, %v5507
    %v6209 = vsel %vm6010, %v6145, %v5509
    %v6210 = vsel %vm6010, %v6146, %v5511
    %v6211 = vsel %vm6010, %v6147, %v5513
    %v6212 = vsel %vm6010, %v6148, %v5515
    %v6213 = vsel %vm6010, %v6149, %v5517
    %v6214 = vsel %vm6010, %v6150, %v5519
    %v6215 = vsel %vm6010, %v6151, %v5521
    %v6216 = vsel %vm6010, %v6152, %v5523
    %v6217 = vsel %vm6010, %v6153, %v5525
    %v6218 = vsel %vm6010, %v6154, %v5527
    %v6219 = vsel %vm6010, %v6155, %v5529
    %v6220 = vsel %vm6010, %v6156, %v5531
    %v6221 = vsel %vm6010, %v6157, %v5533
    %v6222 = vsel %vm6010, %v6158, %v5535
    %v6223 = vsel %vm6010, %v6159, %v5537
    %v6224 = vsel %vm6010, %v6160, %v5539
    %v6225 = vsel %vm6010, %v6161, %v5541
    %v6226 = vsel %vm6010, %v6162, %v5543
    %v6227 = vsel %vm6010, %v6163, %v5545
    %v6228 = vsel %vm6010, %v6164, %v5547
    %v6229 = vsel %vm6010, %v6165, %v5549
    %v6230 = vsel %vm6010, %v6166, %v5551
    %v6231 = vsel %vm6010, %v6167, %v5553
    %v6232 = vsel %vm6010, %v6168, %v5555
    %v6233 = vsel %vm6010, %v6169, %v5557
    %v6234 = vsel %vm6010, %v6170, %v5559
    %v6235 = vsel %vm6010, %v6171, %v5561
    %v6236 = vsel %vm6010, %v6172, %v5563
    %v6237 = vsel %vm6010, %v6173, %v5565
    %v6238 = vsel %vm6010, %v6174, %v5567
    %v6239 = vsel %vm6010, %v6175, %v5569
    %v6240 = vsel %vm6010, %v6176, %v5571
    %v6241 = vsel %vm6010, %v6177, %v5573
    %v6242 = vsel %vm6010, %v6178, %v5575
    %v6243 = vsel %vm6010, %v6179, %v5577
    %v6244 = vsel %vm6010, %v6180, %v5579
    %v6245 = vsel %vm6010, %v6181, %v5581
    %v6246 = vsel %vm6010, %v6182, %v5583
    %v6247 = vsel %vm6010, %v6183, %v5585
    %v6248 = vsel %vm6010, %v6184, %v5587
    %v6249 = vsel %vm6010, %v6185, %v5589
    %v6250 = vsel %vm6010, %v6186, %v5591
    %v6251 = vsel %vm6010, %v6187, %v5593
    %v6252 = vsel %vm6010, %v6188, %v5595
    %v6253 = vsel %vm6010, %v6189, %v5597
    %v6254 = vsel %vm6010, %v6190, %v5599
    %v6255 = vsel %vm6010, %v6191, %v5601
    %v6256 = vsel %vm6010, %v6192, %v5603
    %v6257 = vsel %vm6010, %v6193, %v5605
    %v6258 = vsel %vm6010, %v6194, %v5607
    %v6259 = vsel %vm6010, %v6195, %v5609
    %v6260 = vsel %vm6010, %v6196, %v5611
    %v6261 = vsel %vm6010, %v6197, %v5613
    %v6262 = vsel %vm6010, %v6198, %v5615
    %v6263 = vsel %vm6010, %v6199, %v5617
    %v6264 = vsel %vm6010, %v6200, %v5619
    %v6265 = vsel %vm6010, %v6201, %v5621
    %v6266 = vsel %vm6010, %v6202, %v5623
    %v6267 = vsel %vm6010, %v6203, %v5625
    %v6268 = vsel %vm6075, %v6204, %v5755
    %v6269 = vsel %vm6075, %v6205, %v5757
    %v6270 = vsel %vm6075, %v6206, %v5759
    %v6271 = vsel %vm6075, %v6207, %v5761
    %v6272 = vsel %vm6075, %v6208, %v5763
    %v6273 = vsel %vm6075, %v6209, %v5765
    %v6274 = vsel %vm6075, %v6210, %v5767
    %v6275 = vsel %vm6075, %v6211, %v5769
    %v6276 = vsel %vm6075, %v6212, %v5771
    %v6277 = vsel %vm6075, %v6213, %v5773
    %v6278 = vsel %vm6075, %v6214, %v5775
    %v6279 = vsel %vm6075, %v6215, %v5777
    %v6280 = vsel %vm6075, %v6216, %v5779
    %v6281 = vsel %vm6075, %v6217, %v5781
    %v6282 = vsel %vm6075, %v6218, %v5783
    %v6283 = vsel %vm6075, %v6219, %v5785
    %v6284 = vsel %vm6075, %v6220, %v5787
    %v6285 = vsel %vm6075, %v6221, %v5789
    %v6286 = vsel %vm6075, %v6222, %v5791
    %v6287 = vsel %vm6075, %v6223, %v5793
    %v6288 = vsel %vm6075, %v6224, %v5795
    %v6289 = vsel %vm6075, %v6225, %v5797
    %v6290 = vsel %vm6075, %v6226, %v5799
    %v6291 = vsel %vm6075, %v6227, %v5801
    %v6292 = vsel %vm6075, %v6228, %v5803
    %v6293 = vsel %vm6075, %v6229, %v5805
    %v6294 = vsel %vm6075, %v6230, %v5807
    %v6295 = vsel %vm6075, %v6231, %v5809
    %v6296 = vsel %vm6075, %v6232, %v5811
    %v6297 = vsel %vm6075, %v6233, %v5813
    %v6298 = vsel %vm6075, %v6234, %v5815
    %v6299 = vsel %vm6075, %v6235, %v5817
    %v6300 = vsel %vm6075, %v6236, %v5819
    %v6301 = vsel %vm6075, %v6237, %v5821
    %v6302 = vsel %vm6075, %v6238, %v5823
    %v6303 = vsel %vm6075, %v6239, %v5825
    %v6304 = vsel %vm6075, %v6240, %v5827
    %v6305 = vsel %vm6075, %v6241, %v5829
    %v6306 = vsel %vm6075, %v6242, %v5831
    %v6307 = vsel %vm6075, %v6243, %v5833
    %v6308 = vsel %vm6075, %v6244, %v5835
    %v6309 = vsel %vm6075, %v6245, %v5837
    %v6310 = vsel %vm6075, %v6246, %v5839
    %v6311 = vsel %vm6075, %v6247, %v5841
    %v6312 = vsel %vm6075, %v6248, %v5843
    %v6313 = vsel %vm6075, %v6249, %v5845
    %v6314 = vsel %vm6075, %v6250, %v5847
    %v6315 = vsel %vm6075, %v6251, %v5849
    %v6316 = vsel %vm6075, %v6252, %v5851
    %v6317 = vsel %vm6075, %v6253, %v5853
    %v6318 = vsel %vm6075, %v6254, %v5855
    %v6319 = vsel %vm6075, %v6255, %v5857
    %v6320 = vsel %vm6075, %v6256, %v5859
    %v6321 = vsel %vm6075, %v6257, %v5861
    %v6322 = vsel %vm6075, %v6258, %v5863
    %v6323 = vsel %vm6075, %v6259, %v5865
    %v6324 = vsel %vm6075, %v6260, %v5867
    %v6325 = vsel %vm6075, %v6261, %v5869
    %v6326 = vsel %vm6075, %v6262, %v5871
    %v6327 = vsel %vm6075, %v6263, %v5873
    %v6328 = vsel %vm6075, %v6264, %v5875
    %v6329 = vsel %vm6075, %v6265, %v5877
    %v6330 = vsel %vm6075, %v6266, %v5879
    %v6331 = vsel %vm6075, %v6267, %v5881
    %v6332 = vpack.c.bf16 %v6077, %v6076
    %v6333 = vpack.c.bf16 %v6269, %v6268
    %v6334 = vpack.c.bf16 %v4347, %v4346
    %v6335 = vpack.c.bf16 %v6079, %v6078
    %v6336 = vpack.c.bf16 %v6271, %v6270
    %v6337 = vpack.c.bf16 %v4349, %v4348
    %v6338 = vpack.c.bf16 %v6081, %v6080
    %v6339 = vpack.c.bf16 %v6273, %v6272
    %v6340 = vpack.c.bf16 %v4351, %v4350
    %v6341 = vpack.c.bf16 %v6083, %v6082
    %v6342 = vpack.c.bf16 %v6275, %v6274
    %v6343 = vpack.c.bf16 %v4353, %v4352
    %v6344 = vpack.c.bf16 %v6085, %v6084
    %v6345 = vpack.c.bf16 %v6277, %v6276
    %v6346 = vpack.c.bf16 %v4355, %v4354
    %v6347 = vpack.c.bf16 %v6087, %v6086
    %v6348 = vpack.c.bf16 %v6279, %v6278
    %v6349 = vpack.c.bf16 %v4357, %v4356
    %v6350 = vpack.c.bf16 %v6089, %v6088
    %v6351 = vpack.c.bf16 %v6281, %v6280
    %v6352 = vpack.c.bf16 %v4359, %v4358
    %v6353 = vpack.c.bf16 %v6091, %v6090
    %v6354 = vpack.c.bf16 %v6283, %v6282
    %v6355 = vpack.c.bf16 %v4361, %v4360
    %v6356 = vpack.c.bf16 %v6093, %v6092
    %v6357 = vpack.c.bf16 %v6285, %v6284
    %v6358 = vpack.c.bf16 %v4363, %v4362
    %v6359 = vpack.c.bf16 %v6095, %v6094
    %v6360 = vpack.c.bf16 %v6287, %v6286
    %v6361 = vpack.c.bf16 %v4365, %v4364
    %v6362 = vpack.c.bf16 %v6097, %v6096
    %v6363 = vpack.c.bf16 %v6289, %v6288
    %v6364 = vpack.c.bf16 %v4367, %v4366
    %v6365 = vpack.c.bf16 %v6099, %v6098
    %v6366 = vpack.c.bf16 %v6291, %v6290
    %v6367 = vpack.c.bf16 %v4369, %v4368
    %v6368 = vpack.c.bf16 %v6101, %v6100
    %v6369 = vpack.c.bf16 %v6293, %v6292
    %v6370 = vpack.c.bf16 %v4371, %v4370
    %v6371 = vpack.c.bf16 %v6103, %v6102
    %v6372 = vpack.c.bf16 %v6295, %v6294
    %v6373 = vpack.c.bf16 %v4373, %v4372
    %v6374 = vpack.c.bf16 %v6105, %v6104
    %v6375 = vpack.c.bf16 %v6297, %v6296
    %v6376 = vpack.c.bf16 %v4375, %v4374
    %v6377 = vpack.c.bf16 %v6107, %v6106
    %v6378 = vpack.c.bf16 %v6299, %v6298
    %v6379 = vpack.c.bf16 %v4377, %v4376
    %v6380 = vpack.c.bf16 %v6109, %v6108
    %v6381 = vpack.c.bf16 %v6301, %v6300
    %v6382 = vpack.c.bf16 %v4379, %v4378
    %v6383 = vpack.c.bf16 %v6111, %v6110
    %v6384 = vpack.c.bf16 %v6303, %v6302
    %v6385 = vpack.c.bf16 %v4381, %v4380
    %v6386 = vpack.c.bf16 %v6113, %v6112
    %v6387 = vpack.c.bf16 %v6305, %v6304
    %v6388 = vpack.c.bf16 %v4383, %v4382
    %v6389 = vpack.c.bf16 %v6115, %v6114
    %v6390 = vpack.c.bf16 %v6307, %v6306
    %v6391 = vpack.c.bf16 %v4385, %v4384
    %v6392 = vpack.c.bf16 %v6117, %v6116
    %v6393 = vpack.c.bf16 %v6309, %v6308
    %v6394 = vpack.c.bf16 %v4387, %v4386
    %v6395 = vpack.c.bf16 %v6119, %v6118
    %v6396 = vpack.c.bf16 %v6311, %v6310
    %v6397 = vpack.c.bf16 %v4389, %v4388
    %v6398 = vpack.c.bf16 %v6121, %v6120
    %v6399 = vpack.c.bf16 %v6313, %v6312
    %v6400 = vpack.c.bf16 %v4391, %v4390
    %v6401 = vpack.c.bf16 %v6123, %v6122
    %v6402 = vpack.c.bf16 %v6315, %v6314
    %v6403 = vpack.c.bf16 %v4393, %v4392
    %v6404 = vpack.c.bf16 %v6125, %v6124
    %v6405 = vpack.c.bf16 %v6317, %v6316
    %v6406 = vpack.c.bf16 %v4395, %v4394
    %v6407 = vpack.c.bf16 %v6127, %v6126
    %v6408 = vpack.c.bf16 %v6319, %v6318
    %v6409 = vpack.c.bf16 %v4397, %v4396
    %v6410 = vpack.c.bf16 %v6129, %v6128
    %v6411 = vpack.c.bf16 %v6321, %v6320
    %v6412 = vpack.c.bf16 %v4399, %v4398
    %v6413 = vpack.c.bf16 %v6131, %v6130
    %v6414 = vpack.c.bf16 %v6323, %v6322
    %v6415 = vpack.c.bf16 %v4401, %v4400
    %v6416 = vpack.c.bf16 %v6133, %v6132
    %v6417 = vpack.c.bf16 %v6325, %v6324
    %v6418 = vpack.c.bf16 %v4403, %v4402
    %v6419 = vpack.c.bf16 %v6135, %v6134
    %v6420 = vpack.c.bf16 %v6327, %v6326
    %v6421 = vpack.c.bf16 %v4405, %v4404
    %v6422 = vpack.c.bf16 %v6137, %v6136
    %v6423 = vpack.c.bf16 %v6329, %v6328
    %v6424 = vpack.c.bf16 %v4407, %v4406
    %v6425 = vpack.c.bf16 %v6139, %v6138
    %v6426 = vpack.c.bf16 %v6331, %v6330
    %v6427 = vpack.c.bf16 %v4409, %v4408
    %v6428 = vld [vmem:[%s3] sm:$0xf]
    %v6429 = vld [vmem:[%s3 + $0x4] sm:$0xf]
    %v6430 = vld [vmem:[%s3 + $0x8] sm:$0xf]
    %v6431 = vld [vmem:[%s3 + $0xc] sm:$0xf]
    %v6432 = vld [vmem:[%s3 + $0x10] sm:$0xf]
    %v6433 = vld [vmem:[%s3 + $0x14] sm:$0xf]
    %v6434 = vld [vmem:[%s3 + $0x18] sm:$0xf]
    %v6435 = vld [vmem:[%s3 + $0x1c] sm:$0xf]
    %v6436 = vld [vmem:[%s3 + $0x20] sm:$0xf]
    %v6437 = vld [vmem:[%s3 + $0x24] sm:$0xf]
    %v6438 = vld [vmem:[%s3 + $0x28] sm:$0xf]
    %v6439 = vld [vmem:[%s3 + $0x2c] sm:$0xf]
    %v6440 = vld [vmem:[%s3 + $0x30] sm:$0xf]
    %v6441 = vld [vmem:[%s3 + $0x34] sm:$0xf]
    %v6442 = vld [vmem:[%s3 + $0x38] sm:$0xf]
    %v6443 = vld [vmem:[%s3 + $0x3c] sm:$0xf]
    %v6444 = vld [vmem:[%s3 + $0x40] sm:$0xf]
    %v6445 = vld [vmem:[%s3 + $0x44] sm:$0xf]
    %v6446 = vld [vmem:[%s3 + $0x48] sm:$0xf]
    %v6447 = vld [vmem:[%s3 + $0x4c] sm:$0xf]
    %v6448 = vld [vmem:[%s3 + $0x50] sm:$0xf]
    %v6449 = vld [vmem:[%s3 + $0x54] sm:$0xf]
    %v6450 = vld [vmem:[%s3 + $0x58] sm:$0xf]
    %v6451 = vld [vmem:[%s3 + $0x5c] sm:$0xf]
    %v6452 = vld [vmem:[%s3 + $0x60] sm:$0xf]
    %v6453 = vld [vmem:[%s3 + $0x64] sm:$0xf]
    %v6454 = vld [vmem:[%s3 + $0x68] sm:$0xf]
    %v6455 = vld [vmem:[%s3 + $0x6c] sm:$0xf]
    %v6456 = vld [vmem:[%s3 + $0x70] sm:$0xf]
    %v6457 = vld [vmem:[%s3 + $0x74] sm:$0xf]
    %v6458 = vld [vmem:[%s3 + $0x78] sm:$0xf]
    %v6459 = vld [vmem:[%s3 + $0x7c] sm:$0xf]
    %v6460 = vld [vmem:[%s3 + $0x80] sm:$0xf]
    %v6461 = vld [vmem:[%s3 + $0x84] sm:$0xf]
    %v6462 = vld [vmem:[%s3 + $0x88] sm:$0xf]
    %v6463 = vld [vmem:[%s3 + $0x8c] sm:$0xf]
    %v6464 = vld [vmem:[%s4] sm:$0x1]
    %v6466 = vlaneseq
    %v6467 = vshrl.u32 %v6466, 7
    %v6468 = vsub.s32 0, %v6467
    %v6469 = vrot.slane %v6464, %v6468
    %v6507 = vunpack.c.l.b16 %v6428
    %v6508 = vunpack.c.l.b16 %v6429
    %v6509 = vunpack.c.l.b16 %v6430
    %v6510 = vunpack.c.l.b16 %v6431
    %v6511 = vunpack.c.l.b16 %v6432
    %v6512 = vunpack.c.l.b16 %v6433
    %v6513 = vunpack.c.l.b16 %v6434
    %v6514 = vunpack.c.l.b16 %v6435
    %v6515 = vunpack.c.l.b16 %v6436
    %v6516 = vunpack.c.l.b16 %v6437
    %v6517 = vunpack.c.l.b16 %v6438
    %v6518 = vunpack.c.l.b16 %v6439
    %v6519 = vunpack.c.l.b16 %v6440
    %v6520 = vunpack.c.l.b16 %v6441
    %v6521 = vunpack.c.l.b16 %v6442
    %v6522 = vunpack.c.l.b16 %v6443
    %v6523 = vunpack.c.l.b16 %v6444
    %v6524 = vunpack.c.l.b16 %v6445
    %v6525 = vunpack.c.l.b16 %v6446
    %v6526 = vunpack.c.l.b16 %v6447
    %v6527 = vunpack.c.l.b16 %v6448
    %v6528 = vunpack.c.l.b16 %v6449
    %v6529 = vunpack.c.l.b16 %v6450
    %v6530 = vunpack.c.l.b16 %v6451
    %v6531 = vunpack.c.l.b16 %v6452
    %v6532 = vunpack.c.l.b16 %v6453
    %v6533 = vunpack.c.l.b16 %v6454
    %v6534 = vunpack.c.l.b16 %v6455
    %v6535 = vunpack.c.l.b16 %v6456
    %v6536 = vunpack.c.l.b16 %v6457
    %v6537 = vunpack.c.l.b16 %v6458
    %v6538 = vunpack.c.l.b16 %v6459
    %v6539 = vunpack.c.l.b16 %v6460
    %v6540 = vunpack.c.l.b16 %v6461
    %v6541 = vunpack.c.l.b16 %v6462
    %v6542 = vunpack.c.l.b16 %v6463
    %v6543 = vpack.c.b16 %v6508, %v6507
    %v6544 = vpack.c.b16 %v6510, %v6509
    %v6545 = vpack.c.b16 %v6512, %v6511
    %v6546 = vpack.c.b16 %v6514, %v6513
    %v6547 = vpack.c.b16 %v6516, %v6515
    %v6548 = vpack.c.b16 %v6518, %v6517
    %v6549 = vpack.c.b16 %v6520, %v6519
    %v6550 = vpack.c.b16 %v6522, %v6521
    %v6551 = vpack.c.b16 %v6524, %v6523
    %v6552 = vpack.c.b16 %v6526, %v6525
    %v6553 = vpack.c.b16 %v6528, %v6527
    %v6554 = vpack.c.b16 %v6530, %v6529
    %v6555 = vpack.c.b16 %v6532, %v6531
    %v6556 = vpack.c.b16 %v6534, %v6533
    %v6557 = vpack.c.b16 %v6536, %v6535
    %v6558 = vpack.c.b16 %v6538, %v6537
    %v6559 = vpack.c.b16 %v6540, %v6539
    %v6560 = vpack.c.b16 %v6542, %v6541
    %v6580 = vsel %vm3103, %v6334, 0
    %v6583 = vsel %vm3103, %v6337, 0
    %v6586 = vsel %vm3103, %v6340, 0
    %v6589 = vsel %vm3103, %v6343, 0
    %v6592 = vsel %vm3103, %v6346, 0
    %v6595 = vsel %vm3103, %v6349, 0
    %v6598 = vsel %vm3103, %v6352, 0
    %v6601 = vsel %vm3103, %v6355, 0
    %v6604 = vsel %vm3103, %v6358, 0
    %v6607 = vsel %vm3103, %v6361, 0
    %v6610 = vsel %vm3103, %v6364, 0
    %v6613 = vsel %vm3103, %v6367, 0
    %v6616 = vsel %vm3103, %v6370, 0
    %v6619 = vsel %vm3103, %v6373, 0
    %v6622 = vsel %vm3103, %v6376, 0
    %v6625 = vsel %vm3103, %v6379, 0
    %v6628 = vsel %vm3103, %v6382, 0
    %v6631 = vsel %vm3103, %v6385, 0
    %v6634 = vsel %vm3103, %v6388, 0
    %v6637 = vsel %vm3103, %v6391, 0
    %v6640 = vsel %vm3103, %v6394, 0
    %v6643 = vsel %vm3103, %v6397, 0
    %v6646 = vsel %vm3103, %v6400, 0
    %v6649 = vsel %vm3103, %v6403, 0
    %v6652 = vsel %vm3103, %v6406, 0
    %v6655 = vsel %vm3103, %v6409, 0
    %v6658 = vsel %vm3103, %v6412, 0
    %v6661 = vsel %vm3103, %v6415, 0
    %v6664 = vsel %vm3103, %v6418, 0
    %v6667 = vsel %vm3103, %v6421, 0
    %v6670 = vsel %vm3103, %v6424, 0
    %v6673 = vsel %vm3103, %v6427, 0
    %6675 = vmatprep.subr.bf16.mxu0 0
    %6676 = vmatpush1.bf16.msra.mxu0 %v6543
    %6677 = vmatprep.subr.bf16.mxu0 0
    %6678 = vmatpush1.bf16.msra.mxu0 %v6544
    %6679 = vmatprep.subr.bf16.mxu0 0
    %6680 = vmatpush1.bf16.msra.mxu0 %v6545
    %6681 = vmatprep.subr.bf16.mxu0 0
    %6682 = vmatpush1.bf16.msra.mxu0 %v6546
    %6683 = vmatprep.subr.bf16.mxu0 0
    %6684 = vmatpush1.bf16.msra.mxu0 %v6547
    %6685 = vmatprep.subr.bf16.mxu0 0
    %6686 = vmatpush1.bf16.msra.mxu0 %v6548
    %6687 = vmatprep.subr.bf16.mxu0 0
    %6688 = vmatpush1.bf16.msra.mxu0 %v6549
    %6689 = vmatprep.subr.bf16.mxu0 0
    %6690 = vmatpush1.bf16.msra.mxu0 %v6550
    %6691 = vmatprep.subr.bf16.mxu0 0
    %6692 = vmatpush1.bf16.msra.mxu0 %v6551
    %6693 = vmatprep.subr.bf16.mxu0 0
    %6694 = vmatpush1.bf16.msra.mxu0 %v6552
    %6695 = vmatprep.subr.bf16.mxu0 0
    %6696 = vmatpush1.bf16.msra.mxu0 %v6553
    %6697 = vmatprep.subr.bf16.mxu0 0
    %6698 = vmatpush1.bf16.msra.mxu0 %v6554
    %6699 = vmatprep.subr.bf16.mxu0 0
    %6700 = vmatpush1.bf16.msra.mxu0 %v6555
    %6701 = vmatprep.subr.bf16.mxu0 0
    %6702 = vmatpush1.bf16.msra.mxu0 %v6556
    %6703 = vmatprep.subr.bf16.mxu0 0
    %6704 = vmatpush1.bf16.msra.mxu0 %v6557
    %6705 = vmatprep.subr.bf16.mxu0 0
    %6706 = vmatpush1.bf16.msra.mxu0 %v6558
    %6707 = vmatprep.mubr.bf16.mxu0 %v6333
    %6708 = vmatmul.mubr.bf16.gmra.mrb[0].mxu0 %v6332
    %v6709 = vpop.f32.mrb[0].mxu0
    %v6710 = vadd.f32 %v6469, %v6709
    %v6711 = vpop.f32.mrb[0].mxu0
    %v6712 = vpop.f32.mrb[0].mxu0
    %v6713 = vadd.f32 %v6469, %v6712
    %v6714 = vpop.f32.mrb[0].mxu0
    %6715 = vmatprep.mubr.bf16.mxu0 %v6336
    %6716 = vmatmul.mubr.bf16.gmra.mrb[0].mxu0 %v6335
    %v6717 = vpop.f32.mrb[0].mxu0
    %v6718 = vadd.f32 %v6469, %v6717
    %v6719 = vpop.f32.mrb[0].mxu0
    %v6720 = vpop.f32.mrb[0].mxu0
    %v6721 = vadd.f32 %v6469, %v6720
    %v6722 = vpop.f32.mrb[0].mxu0
    %6723 = vmatprep.mubr.bf16.mxu0 %v6339
    %6724 = vmatmul.mubr.bf16.gmra.mrb[0].mxu0 %v6338
    %v6725 = vpop.f32.mrb[0].mxu0
    %v6726 = vadd.f32 %v6469, %v6725
    %v6727 = vpop.f32.mrb[0].mxu0
    %v6728 = vpop.f32.mrb[0].mxu0
    %v6729 = vadd.f32 %v6469, %v6728
    %v6730 = vpop.f32.mrb[0].mxu0
    %6731 = vmatprep.mubr.bf16.mxu0 %v6342
    %6732 = vmatmul.mubr.bf16.gmra.mrb[0].mxu0 %v6341
    %v6733 = vpop.f32.mrb[0].mxu0
    %v6734 = vadd.f32 %v6469, %v6733
    %v6735 = vpop.f32.mrb[0].mxu0
    %v6736 = vpop.f32.mrb[0].mxu0
    %v6737 = vadd.f32 %v6469, %v6736
    %v6738 = vpop.f32.mrb[0].mxu0
    %6739 = vmatprep.mubr.bf16.mxu0 %v6345
    %6740 = vmatmul.mubr.bf16.gmra.mrb[0].mxu0 %v6344
    %v6741 = vpop.f32.mrb[0].mxu0
    %v6742 = vadd.f32 %v6469, %v6741
    %v6743 = vpop.f32.mrb[0].mxu0
    %v6744 = vpop.f32.mrb[0].mxu0
    %v6745 = vadd.f32 %v6469, %v6744
    %v6746 = vpop.f32.mrb[0].mxu0
    %6747 = vmatprep.mubr.bf16.mxu0 %v6348
    %6748 = vmatmul.mubr.bf16.gmra.mrb[0].mxu0 %v6347
    %v6749 = vpop.f32.mrb[0].mxu0
    %v6750 = vadd.f32 %v6469, %v6749
    %v6751 = vpop.f32.mrb[0].mxu0
    %v6752 = vpop.f32.mrb[0].mxu0
    %v6753 = vadd.f32 %v6469, %v6752
    %v6754 = vpop.f32.mrb[0].mxu0
    %6755 = vmatprep.mubr.bf16.mxu0 %v6351
    %6756 = vmatmul.mubr.bf16.gmra.mrb[0].mxu0 %v6350
    %v6757 = vpop.f32.mrb[0].mxu0
    %v6758 = vadd.f32 %v6469, %v6757
    %v6759 = vpop.f32.mrb[0].mxu0
    %v6760 = vpop.f32.mrb[0].mxu0
    %v6761 = vadd.f32 %v6469, %v6760
    %v6762 = vpop.f32.mrb[0].mxu0
    %6763 = vmatprep.mubr.bf16.mxu0 %v6354
    %6764 = vmatmul.mubr.bf16.gmra.mrb[0].mxu0 %v6353
    %v6765 = vpop.f32.mrb[0].mxu0
    %v6766 = vadd.f32 %v6469, %v6765
    %v6767 = vpop.f32.mrb[0].mxu0
    %v6768 = vpop.f32.mrb[0].mxu0
    %v6769 = vadd.f32 %v6469, %v6768
    %v6770 = vpop.f32.mrb[0].mxu0
    %6771 = vmatprep.mubr.bf16.mxu0 %v6357
    %6772 = vmatmul.mubr.bf16.gmra.mrb[0].mxu0 %v6356
    %v6773 = vpop.f32.mrb[0].mxu0
    %v6774 = vadd.f32 %v6469, %v6773
    %v6775 = vpop.f32.mrb[0].mxu0
    %v6776 = vpop.f32.mrb[0].mxu0
    %v6777 = vadd.f32 %v6469, %v6776
    %v6778 = vpop.f32.mrb[0].mxu0
    %6779 = vmatprep.mubr.bf16.mxu0 %v6360
    %6780 = vmatmul.mubr.bf16.gmra.mrb[0].mxu0 %v6359
    %v6781 = vpop.f32.mrb[0].mxu0
    %v6782 = vadd.f32 %v6469, %v6781
    %v6783 = vpop.f32.mrb[0].mxu0
    %v6784 = vpop.f32.mrb[0].mxu0
    %v6785 = vadd.f32 %v6469, %v6784
    %v6786 = vpop.f32.mrb[0].mxu0
    %6787 = vmatprep.mubr.bf16.mxu0 %v6363
    %6788 = vmatmul.mubr.bf16.gmra.mrb[0].mxu0 %v6362
    %v6789 = vpop.f32.mrb[0].mxu0
    %v6790 = vadd.f32 %v6469, %v6789
    %v6791 = vpop.f32.mrb[0].mxu0
    %v6792 = vpop.f32.mrb[0].mxu0
    %v6793 = vadd.f32 %v6469, %v6792
    %v6794 = vpop.f32.mrb[0].mxu0
    %6795 = vmatprep.mubr.bf16.mxu0 %v6366
    %6796 = vmatmul.mubr.bf16.gmra.mrb[0].mxu0 %v6365
    %v6797 = vpop.f32.mrb[0].mxu0
    %v6798 = vadd.f32 %v6469, %v6797
    %v6799 = vpop.f32.mrb[0].mxu0
    %v6800 = vpop.f32.mrb[0].mxu0
    %v6801 = vadd.f32 %v6469, %v6800
    %v6802 = vpop.f32.mrb[0].mxu0
    %6803 = vmatprep.mubr.bf16.mxu0 %v6369
    %6804 = vmatmul.mubr.bf16.gmra.mrb[0].mxu0 %v6368
    %v6805 = vpop.f32.mrb[0].mxu0
    %v6806 = vadd.f32 %v6469, %v6805
    %v6807 = vpop.f32.mrb[0].mxu0
    %v6808 = vpop.f32.mrb[0].mxu0
    %v6809 = vadd.f32 %v6469, %v6808
    %v6810 = vpop.f32.mrb[0].mxu0
    %6811 = vmatprep.mubr.bf16.mxu0 %v6372
    %6812 = vmatmul.mubr.bf16.gmra.mrb[0].mxu0 %v6371
    %v6813 = vpop.f32.mrb[0].mxu0
    %v6814 = vadd.f32 %v6469, %v6813
    %v6815 = vpop.f32.mrb[0].mxu0
    %v6816 = vpop.f32.mrb[0].mxu0
    %v6817 = vadd.f32 %v6469, %v6816
    %v6818 = vpop.f32.mrb[0].mxu0
    %6819 = vmatprep.mubr.bf16.mxu0 %v6375
    %6820 = vmatmul.mubr.bf16.gmra.mrb[0].mxu0 %v6374
    %v6821 = vpop.f32.mrb[0].mxu0
    %v6822 = vadd.f32 %v6469, %v6821
    %v6823 = vpop.f32.mrb[0].mxu0
    %v6824 = vpop.f32.mrb[0].mxu0
    %v6825 = vadd.f32 %v6469, %v6824
    %v6826 = vpop.f32.mrb[0].mxu0
    %6827 = vmatprep.mubr.bf16.mxu0 %v6378
    %6828 = vmatmul.mubr.bf16.gmra.mrb[0].mxu0 %v6377
    %v6829 = vpop.f32.mrb[0].mxu0
    %v6830 = vadd.f32 %v6469, %v6829
    %v6831 = vpop.f32.mrb[0].mxu0
    %v6832 = vpop.f32.mrb[0].mxu0
    %v6833 = vadd.f32 %v6469, %v6832
    %v6834 = vpop.f32.mrb[0].mxu0
    %6835 = vmatprep.mubr.bf16.mxu0 %v6381
    %6836 = vmatmul.mubr.bf16.gmra.mrb[0].mxu0 %v6380
    %v6837 = vpop.f32.mrb[0].mxu0
    %v6838 = vadd.f32 %v6469, %v6837
    %v6839 = vpop.f32.mrb[0].mxu0
    %v6840 = vpop.f32.mrb[0].mxu0
    %v6841 = vadd.f32 %v6469, %v6840
    %v6842 = vpop.f32.mrb[0].mxu0
    %6843 = vmatprep.mubr.bf16.mxu0 %v6384
    %6844 = vmatmul.mubr.bf16.gmra.mrb[0].mxu0 %v6383
    %v6845 = vpop.f32.mrb[0].mxu0
    %v6846 = vadd.f32 %v6469, %v6845
    %v6847 = vpop.f32.mrb[0].mxu0
    %v6848 = vpop.f32.mrb[0].mxu0
    %v6849 = vadd.f32 %v6469, %v6848
    %v6850 = vpop.f32.mrb[0].mxu0
    %6851 = vmatprep.mubr.bf16.mxu0 %v6387
    %6852 = vmatmul.mubr.bf16.gmra.mrb[0].mxu0 %v6386
    %v6853 = vpop.f32.mrb[0].mxu0
    %v6854 = vadd.f32 %v6469, %v6853
    %v6855 = vpop.f32.mrb[0].mxu0
    %v6856 = vpop.f32.mrb[0].mxu0
    %v6857 = vadd.f32 %v6469, %v6856
    %v6858 = vpop.f32.mrb[0].mxu0
    %6859 = vmatprep.mubr.bf16.mxu0 %v6390
    %6860 = vmatmul.mubr.bf16.gmra.mrb[0].mxu0 %v6389
    %v6861 = vpop.f32.mrb[0].mxu0
    %v6862 = vadd.f32 %v6469, %v6861
    %v6863 = vpop.f32.mrb[0].mxu0
    %v6864 = vpop.f32.mrb[0].mxu0
    %v6865 = vadd.f32 %v6469, %v6864
    %v6866 = vpop.f32.mrb[0].mxu0
    %6867 = vmatprep.mubr.bf16.mxu0 %v6393
    %6868 = vmatmul.mubr.bf16.gmra.mrb[0].mxu0 %v6392
    %v6869 = vpop.f32.mrb[0].mxu0
    %v6870 = vadd.f32 %v6469, %v6869
    %v6871 = vpop.f32.mrb[0].mxu0
    %v6872 = vpop.f32.mrb[0].mxu0
    %v6873 = vadd.f32 %v6469, %v6872
    %v6874 = vpop.f32.mrb[0].mxu0
    %6875 = vmatprep.mubr.bf16.mxu0 %v6396
    %6876 = vmatmul.mubr.bf16.gmra.mrb[0].mxu0 %v6395
    %v6877 = vpop.f32.mrb[0].mxu0
    %v6878 = vadd.f32 %v6469, %v6877
    %v6879 = vpop.f32.mrb[0].mxu0
    %v6880 = vpop.f32.mrb[0].mxu0
    %v6881 = vadd.f32 %v6469, %v6880
    %v6882 = vpop.f32.mrb[0].mxu0
    %6883 = vmatprep.mubr.bf16.mxu0 %v6399
    %6884 = vmatmul.mubr.bf16.gmra.mrb[0].mxu0 %v6398
    %v6885 = vpop.f32.mrb[0].mxu0
    %v6886 = vadd.f32 %v6469, %v6885
    %v6887 = vpop.f32.mrb[0].mxu0
    %v6888 = vpop.f32.mrb[0].mxu0
    %v6889 = vadd.f32 %v6469, %v6888
    %v6890 = vpop.f32.mrb[0].mxu0
    %6891 = vmatprep.mubr.bf16.mxu0 %v6402
    %6892 = vmatmul.mubr.bf16.gmra.mrb[0].mxu0 %v6401
    %v6893 = vpop.f32.mrb[0].mxu0
    %v6894 = vadd.f32 %v6469, %v6893
    %v6895 = vpop.f32.mrb[0].mxu0
    %v6896 = vpop.f32.mrb[0].mxu0
    %v6897 = vadd.f32 %v6469, %v6896
    %v6898 = vpop.f32.mrb[0].mxu0
    %6899 = vmatprep.mubr.bf16.mxu0 %v6405
    %6900 = vmatmul.mubr.bf16.gmra.mrb[0].mxu0 %v6404
    %v6901 = vpop.f32.mrb[0].mxu0
    %v6902 = vadd.f32 %v6469, %v6901
    %v6903 = vpop.f32.mrb[0].mxu0
    %v6904 = vpop.f32.mrb[0].mxu0
    %v6905 = vadd.f32 %v6469, %v6904
    %v6906 = vpop.f32.mrb[0].mxu0
    %6907 = vmatprep.mubr.bf16.mxu0 %v6408
    %6908 = vmatmul.mubr.bf16.gmra.mrb[0].mxu0 %v6407
    %v6909 = vpop.f32.mrb[0].mxu0
    %v6910 = vadd.f32 %v6469, %v6909
    %v6911 = vpop.f32.mrb[0].mxu0
    %v6912 = vpop.f32.mrb[0].mxu0
    %v6913 = vadd.f32 %v6469, %v6912
    %v6914 = vpop.f32.mrb[0].mxu0
    %6915 = vmatprep.mubr.bf16.mxu0 %v6411
    %6916 = vmatmul.mubr.bf16.gmra.mrb[0].mxu0 %v6410
    %v6917 = vpop.f32.mrb[0].mxu0
    %v6918 = vadd.f32 %v6469, %v6917
    %v6919 = vpop.f32.mrb[0].mxu0
    %v6920 = vpop.f32.mrb[0].mxu0
    %v6921 = vadd.f32 %v6469, %v6920
    %v6922 = vpop.f32.mrb[0].mxu0
    %6923 = vmatprep.mubr.bf16.mxu0 %v6414
    %6924 = vmatmul.mubr.bf16.gmra.mrb[0].mxu0 %v6413
    %v6925 = vpop.f32.mrb[0].mxu0
    %v6926 = vadd.f32 %v6469, %v6925
    %v6927 = vpop.f32.mrb[0].mxu0
    %v6928 = vpop.f32.mrb[0].mxu0
    %v6929 = vadd.f32 %v6469, %v6928
    %v6930 = vpop.f32.mrb[0].mxu0
    %6931 = vmatprep.mubr.bf16.mxu0 %v6417
    %6932 = vmatmul.mubr.bf16.gmra.mrb[0].mxu0 %v6416
    %v6933 = vpop.f32.mrb[0].mxu0
    %v6934 = vadd.f32 %v6469, %v6933
    %v6935 = vpop.f32.mrb[0].mxu0
    %v6936 = vpop.f32.mrb[0].mxu0
    %v6937 = vadd.f32 %v6469, %v6936
    %v6938 = vpop.f32.mrb[0].mxu0
    %6939 = vmatprep.mubr.bf16.mxu0 %v6420
    %6940 = vmatmul.mubr.bf16.gmra.mrb[0].mxu0 %v6419
    %v6941 = vpop.f32.mrb[0].mxu0
    %v6942 = vadd.f32 %v6469, %v6941
    %v6943 = vpop.f32.mrb[0].mxu0
    %v6944 = vpop.f32.mrb[0].mxu0
    %v6945 = vadd.f32 %v6469, %v6944
    %v6946 = vpop.f32.mrb[0].mxu0
    %6947 = vmatprep.mubr.bf16.mxu0 %v6423
    %6948 = vmatmul.mubr.bf16.gmra.mrb[0].mxu0 %v6422
    %v6949 = vpop.f32.mrb[0].mxu0
    %v6950 = vadd.f32 %v6469, %v6949
    %v6951 = vpop.f32.mrb[0].mxu0
    %v6952 = vpop.f32.mrb[0].mxu0
    %v6953 = vadd.f32 %v6469, %v6952
    %v6954 = vpop.f32.mrb[0].mxu0
    %6955 = vmatprep.mubr.bf16.mxu0 %v6426
    %6956 = vmatmul.mubr.bf16.gmra.mrb[0].mxu0 %v6425
    %v6957 = vpop.f32.mrb[0].mxu0
    %v6958 = vadd.f32 %v6469, %v6957
    %v6959 = vpop.f32.mrb[0].mxu0
    %v6960 = vpop.f32.mrb[0].mxu0
    %v6961 = vadd.f32 %v6469, %v6960
    %v6962 = vpop.f32.mrb[0].mxu0
    %6963 = vdwg.mxu0
    %6964 = vmatprep.subr.bf16.mxu0 0
    %6965 = vmatpush1.bf16.msra.mxu0 %v6559
    %6966 = vmatprep.subr.bf16.mxu0 0
    %6967 = vmatpush1.bf16.msra.mxu0 %v6560
    %6968 = vmatprep.subr.bf16.mxu0 0
    %6969 = vmatpush1.bf16.msra.mxu0 0
    %6970 = vmatprep.subr.bf16.mxu0 0
    %6971 = vmatpush1.bf16.msra.mxu0 0
    %6972 = vmatprep.subr.bf16.mxu0 0
    %6973 = vmatpush1.bf16.msra.mxu0 0
    %6974 = vmatprep.subr.bf16.mxu0 0
    %6975 = vmatpush1.bf16.msra.mxu0 0
    %6976 = vmatprep.subr.bf16.mxu0 0
    %6977 = vmatpush1.bf16.msra.mxu0 0
    %6978 = vmatprep.subr.bf16.mxu0 0
    %6979 = vmatpush1.bf16.msra.mxu0 0
    %6980 = vmatprep.subr.bf16.mxu0 0
    %6981 = vmatpush1.bf16.msra.mxu0 0
    %6982 = vmatprep.subr.bf16.mxu0 0
    %6983 = vmatpush1.bf16.msra.mxu0 0
    %6984 = vmatprep.subr.bf16.mxu0 0
    %6985 = vmatpush1.bf16.msra.mxu0 0
    %6986 = vmatprep.subr.bf16.mxu0 0
    %6987 = vmatpush1.bf16.msra.mxu0 0
    %6988 = vmatprep.subr.bf16.mxu0 0
    %6989 = vmatpush1.bf16.msra.mxu0 0
    %6990 = vmatprep.subr.bf16.mxu0 0
    %6991 = vmatpush1.bf16.msra.mxu0 0
    %6992 = vmatprep.subr.bf16.mxu0 0
    %6993 = vmatpush1.bf16.msra.mxu0 0
    %6994 = vmatprep.subr.bf16.mxu0 0
    %6995 = vmatpush1.bf16.msra.mxu0 0
    %6996 = vmatprep.mubr.bf16.mxu0 0
    %6997 = vmatmul.mubr.bf16.gmra.mrb[0].mxu0 %v6580
    %v6998 = vpop.f32.mrb[0].mxu0
    %v6999 = vadd.f32 %v6710, %v6998
    %v7000 = vpop.f32.mrb[0].mxu0
    %v7001 = vpop.f32.mrb[0].mxu0
    %v7002 = vadd.f32 %v6713, %v7001
    %v7003 = vpop.f32.mrb[0].mxu0
    %7004 = vmatprep.mubr.bf16.mxu0 0
    %7005 = vmatmul.mubr.bf16.gmra.mrb[0].mxu0 %v6583
    %v7006 = vpop.f32.mrb[0].mxu0
    %v7007 = vadd.f32 %v6718, %v7006
    %v7008 = vpop.f32.mrb[0].mxu0
    %v7009 = vpop.f32.mrb[0].mxu0
    %v7010 = vadd.f32 %v6721, %v7009
    %v7011 = vpop.f32.mrb[0].mxu0
    %7012 = vmatprep.mubr.bf16.mxu0 0
    %7013 = vmatmul.mubr.bf16.gmra.mrb[0].mxu0 %v6586
    %v7014 = vpop.f32.mrb[0].mxu0
    %v7015 = vadd.f32 %v6726, %v7014
    %v7016 = vpop.f32.mrb[0].mxu0
    %v7017 = vpop.f32.mrb[0].mxu0
    %v7018 = vadd.f32 %v6729, %v7017
    %v7019 = vpop.f32.mrb[0].mxu0
    %7020 = vmatprep.mubr.bf16.mxu0 0
    %7021 = vmatmul.mubr.bf16.gmra.mrb[0].mxu0 %v6589
    %v7022 = vpop.f32.mrb[0].mxu0
    %v7023 = vadd.f32 %v6734, %v7022
    %v7024 = vpop.f32.mrb[0].mxu0
    %v7025 = vpop.f32.mrb[0].mxu0
    %v7026 = vadd.f32 %v6737, %v7025
    %v7027 = vpop.f32.mrb[0].mxu0
    %7028 = vmatprep.mubr.bf16.mxu0 0
    %7029 = vmatmul.mubr.bf16.gmra.mrb[0].mxu0 %v6592
    %v7030 = vpop.f32.mrb[0].mxu0
    %v7031 = vadd.f32 %v6742, %v7030
    %v7032 = vpop.f32.mrb[0].mxu0
    %v7033 = vpop.f32.mrb[0].mxu0
    %v7034 = vadd.f32 %v6745, %v7033
    %v7035 = vpop.f32.mrb[0].mxu0
    %7036 = vmatprep.mubr.bf16.mxu0 0
    %7037 = vmatmul.mubr.bf16.gmra.mrb[0].mxu0 %v6595
    %v7038 = vpop.f32.mrb[0].mxu0
    %v7039 = vadd.f32 %v6750, %v7038
    %v7040 = vpop.f32.mrb[0].mxu0
    %v7041 = vpop.f32.mrb[0].mxu0
    %v7042 = vadd.f32 %v6753, %v7041
    %v7043 = vpop.f32.mrb[0].mxu0
    %7044 = vmatprep.mubr.bf16.mxu0 0
    %7045 = vmatmul.mubr.bf16.gmra.mrb[0].mxu0 %v6598
    %v7046 = vpop.f32.mrb[0].mxu0
    %v7047 = vadd.f32 %v6758, %v7046
    %v7048 = vpop.f32.mrb[0].mxu0
    %v7049 = vpop.f32.mrb[0].mxu0
    %v7050 = vadd.f32 %v6761, %v7049
    %v7051 = vpop.f32.mrb[0].mxu0
    %7052 = vmatprep.mubr.bf16.mxu0 0
    %7053 = vmatmul.mubr.bf16.gmra.mrb[0].mxu0 %v6601
    %v7054 = vpop.f32.mrb[0].mxu0
    %v7055 = vadd.f32 %v6766, %v7054
    %v7056 = vpop.f32.mrb[0].mxu0
    %v7057 = vpop.f32.mrb[0].mxu0
    %v7058 = vadd.f32 %v6769, %v7057
    %v7059 = vpop.f32.mrb[0].mxu0
    %7060 = vmatprep.mubr.bf16.mxu0 0
    %7061 = vmatmul.mubr.bf16.gmra.mrb[0].mxu0 %v6604
    %v7062 = vpop.f32.mrb[0].mxu0
    %v7063 = vadd.f32 %v6774, %v7062
    %v7064 = vpop.f32.mrb[0].mxu0
    %v7065 = vpop.f32.mrb[0].mxu0
    %v7066 = vadd.f32 %v6777, %v7065
    %v7067 = vpop.f32.mrb[0].mxu0
    %7068 = vmatprep.mubr.bf16.mxu0 0
    %7069 = vmatmul.mubr.bf16.gmra.mrb[0].mxu0 %v6607
    %v7070 = vpop.f32.mrb[0].mxu0
    %v7071 = vadd.f32 %v6782, %v7070
    %v7072 = vpop.f32.mrb[0].mxu0
    %v7073 = vpop.f32.mrb[0].mxu0
    %v7074 = vadd.f32 %v6785, %v7073
    %v7075 = vpop.f32.mrb[0].mxu0
    %7076 = vmatprep.mubr.bf16.mxu0 0
    %7077 = vmatmul.mubr.bf16.gmra.mrb[0].mxu0 %v6610
    %v7078 = vpop.f32.mrb[0].mxu0
    %v7079 = vadd.f32 %v6790, %v7078
    %v7080 = vpop.f32.mrb[0].mxu0
    %v7081 = vpop.f32.mrb[0].mxu0
    %v7082 = vadd.f32 %v6793, %v7081
    %v7083 = vpop.f32.mrb[0].mxu0
    %7084 = vmatprep.mubr.bf16.mxu0 0
    %7085 = vmatmul.mubr.bf16.gmra.mrb[0].mxu0 %v6613
    %v7086 = vpop.f32.mrb[0].mxu0
    %v7087 = vadd.f32 %v6798, %v7086
    %v7088 = vpop.f32.mrb[0].mxu0
    %v7089 = vpop.f32.mrb[0].mxu0
    %v7090 = vadd.f32 %v6801, %v7089
    %v7091 = vpop.f32.mrb[0].mxu0
    %7092 = vmatprep.mubr.bf16.mxu0 0
    %7093 = vmatmul.mubr.bf16.gmra.mrb[0].mxu0 %v6616
    %v7094 = vpop.f32.mrb[0].mxu0
    %v7095 = vadd.f32 %v6806, %v7094
    %v7096 = vpop.f32.mrb[0].mxu0
    %v7097 = vpop.f32.mrb[0].mxu0
    %v7098 = vadd.f32 %v6809, %v7097
    %v7099 = vpop.f32.mrb[0].mxu0
    %7100 = vmatprep.mubr.bf16.mxu0 0
    %7101 = vmatmul.mubr.bf16.gmra.mrb[0].mxu0 %v6619
    %v7102 = vpop.f32.mrb[0].mxu0
    %v7103 = vadd.f32 %v6814, %v7102
    %v7104 = vpop.f32.mrb[0].mxu0
    %v7105 = vpop.f32.mrb[0].mxu0
    %v7106 = vadd.f32 %v6817, %v7105
    %v7107 = vpop.f32.mrb[0].mxu0
    %7108 = vmatprep.mubr.bf16.mxu0 0
    %7109 = vmatmul.mubr.bf16.gmra.mrb[0].mxu0 %v6622
    %v7110 = vpop.f32.mrb[0].mxu0
    %v7111 = vadd.f32 %v6822, %v7110
    %v7112 = vpop.f32.mrb[0].mxu0
    %v7113 = vpop.f32.mrb[0].mxu0
    %v7114 = vadd.f32 %v6825, %v7113
    %v7115 = vpop.f32.mrb[0].mxu0
    %7116 = vmatprep.mubr.bf16.mxu0 0
    %7117 = vmatmul.mubr.bf16.gmra.mrb[0].mxu0 %v6625
    %v7118 = vpop.f32.mrb[0].mxu0
    %v7119 = vadd.f32 %v6830, %v7118
    %v7120 = vpop.f32.mrb[0].mxu0
    %v7121 = vpop.f32.mrb[0].mxu0
    %v7122 = vadd.f32 %v6833, %v7121
    %v7123 = vpop.f32.mrb[0].mxu0
    %7124 = vmatprep.mubr.bf16.mxu0 0
    %7125 = vmatmul.mubr.bf16.gmra.mrb[0].mxu0 %v6628
    %v7126 = vpop.f32.mrb[0].mxu0
    %v7127 = vadd.f32 %v6838, %v7126
    %v7128 = vpop.f32.mrb[0].mxu0
    %v7129 = vpop.f32.mrb[0].mxu0
    %v7130 = vadd.f32 %v6841, %v7129
    %v7131 = vpop.f32.mrb[0].mxu0
    %7132 = vmatprep.mubr.bf16.mxu0 0
    %7133 = vmatmul.mubr.bf16.gmra.mrb[0].mxu0 %v6631
    %v7134 = vpop.f32.mrb[0].mxu0
    %v7135 = vadd.f32 %v6846, %v7134
    %v7136 = vpop.f32.mrb[0].mxu0
    %v7137 = vpop.f32.mrb[0].mxu0
    %v7138 = vadd.f32 %v6849, %v7137
    %v7139 = vpop.f32.mrb[0].mxu0
    %7140 = vmatprep.mubr.bf16.mxu0 0
    %7141 = vmatmul.mubr.bf16.gmra.mrb[0].mxu0 %v6634
    %v7142 = vpop.f32.mrb[0].mxu0
    %v7143 = vadd.f32 %v6854, %v7142
    %v7144 = vpop.f32.mrb[0].mxu0
    %v7145 = vpop.f32.mrb[0].mxu0
    %v7146 = vadd.f32 %v6857, %v7145
    %v7147 = vpop.f32.mrb[0].mxu0
    %7148 = vmatprep.mubr.bf16.mxu0 0
    %7149 = vmatmul.mubr.bf16.gmra.mrb[0].mxu0 %v6637
    %v7150 = vpop.f32.mrb[0].mxu0
    %v7151 = vadd.f32 %v6862, %v7150
    %v7152 = vpop.f32.mrb[0].mxu0
    %v7153 = vpop.f32.mrb[0].mxu0
    %v7154 = vadd.f32 %v6865, %v7153
    %v7155 = vpop.f32.mrb[0].mxu0
    %7156 = vmatprep.mubr.bf16.mxu0 0
    %7157 = vmatmul.mubr.bf16.gmra.mrb[0].mxu0 %v6640
    %v7158 = vpop.f32.mrb[0].mxu0
    %v7159 = vadd.f32 %v6870, %v7158
    %v7160 = vpop.f32.mrb[0].mxu0
    %v7161 = vpop.f32.mrb[0].mxu0
    %v7162 = vadd.f32 %v6873, %v7161
    %v7163 = vpop.f32.mrb[0].mxu0
    %7164 = vmatprep.mubr.bf16.mxu0 0
    %7165 = vmatmul.mubr.bf16.gmra.mrb[0].mxu0 %v6643
    %v7166 = vpop.f32.mrb[0].mxu0
    %v7167 = vadd.f32 %v6878, %v7166
    %v7168 = vpop.f32.mrb[0].mxu0
    %v7169 = vpop.f32.mrb[0].mxu0
    %v7170 = vadd.f32 %v6881, %v7169
    %v7171 = vpop.f32.mrb[0].mxu0
    %7172 = vmatprep.mubr.bf16.mxu0 0
    %7173 = vmatmul.mubr.bf16.gmra.mrb[0].mxu0 %v6646
    %v7174 = vpop.f32.mrb[0].mxu0
    %v7175 = vadd.f32 %v6886, %v7174
    %v7176 = vpop.f32.mrb[0].mxu0
    %v7177 = vpop.f32.mrb[0].mxu0
    %v7178 = vadd.f32 %v6889, %v7177
    %v7179 = vpop.f32.mrb[0].mxu0
    %7180 = vmatprep.mubr.bf16.mxu0 0
    %7181 = vmatmul.mubr.bf16.gmra.mrb[0].mxu0 %v6649
    %v7182 = vpop.f32.mrb[0].mxu0
    %v7183 = vadd.f32 %v6894, %v7182
    %v7184 = vpop.f32.mrb[0].mxu0
    %v7185 = vpop.f32.mrb[0].mxu0
    %v7186 = vadd.f32 %v6897, %v7185
    %v7187 = vpop.f32.mrb[0].mxu0
    %7188 = vmatprep.mubr.bf16.mxu0 0
    %7189 = vmatmul.mubr.bf16.gmra.mrb[0].mxu0 %v6652
    %v7190 = vpop.f32.mrb[0].mxu0
    %v7191 = vadd.f32 %v6902, %v7190
    %v7192 = vpop.f32.mrb[0].mxu0
    %v7193 = vpop.f32.mrb[0].mxu0
    %v7194 = vadd.f32 %v6905, %v7193
    %v7195 = vpop.f32.mrb[0].mxu0
    %7196 = vmatprep.mubr.bf16.mxu0 0
    %7197 = vmatmul.mubr.bf16.gmra.mrb[0].mxu0 %v6655
    %v7198 = vpop.f32.mrb[0].mxu0
    %v7199 = vadd.f32 %v6910, %v7198
    %v7200 = vpop.f32.mrb[0].mxu0
    %v7201 = vpop.f32.mrb[0].mxu0
    %v7202 = vadd.f32 %v6913, %v7201
    %v7203 = vpop.f32.mrb[0].mxu0
    %7204 = vmatprep.mubr.bf16.mxu0 0
    %7205 = vmatmul.mubr.bf16.gmra.mrb[0].mxu0 %v6658
    %v7206 = vpop.f32.mrb[0].mxu0
    %v7207 = vadd.f32 %v6918, %v7206
    %v7208 = vpop.f32.mrb[0].mxu0
    %v7209 = vpop.f32.mrb[0].mxu0
    %v7210 = vadd.f32 %v6921, %v7209
    %v7211 = vpop.f32.mrb[0].mxu0
    %7212 = vmatprep.mubr.bf16.mxu0 0
    %7213 = vmatmul.mubr.bf16.gmra.mrb[0].mxu0 %v6661
    %v7214 = vpop.f32.mrb[0].mxu0
    %v7215 = vadd.f32 %v6926, %v7214
    %v7216 = vpop.f32.mrb[0].mxu0
    %v7217 = vpop.f32.mrb[0].mxu0
    %v7218 = vadd.f32 %v6929, %v7217
    %v7219 = vpop.f32.mrb[0].mxu0
    %7220 = vmatprep.mubr.bf16.mxu0 0
    %7221 = vmatmul.mubr.bf16.gmra.mrb[0].mxu0 %v6664
    %v7222 = vpop.f32.mrb[0].mxu0
    %v7223 = vadd.f32 %v6934, %v7222
    %v7224 = vpop.f32.mrb[0].mxu0
    %v7225 = vpop.f32.mrb[0].mxu0
    %v7226 = vadd.f32 %v6937, %v7225
    %v7227 = vpop.f32.mrb[0].mxu0
    %7228 = vmatprep.mubr.bf16.mxu0 0
    %7229 = vmatmul.mubr.bf16.gmra.mrb[0].mxu0 %v6667
    %v7230 = vpop.f32.mrb[0].mxu0
    %v7231 = vadd.f32 %v6942, %v7230
    %v7232 = vpop.f32.mrb[0].mxu0
    %v7233 = vpop.f32.mrb[0].mxu0
    %v7234 = vadd.f32 %v6945, %v7233
    %v7235 = vpop.f32.mrb[0].mxu0
    %7236 = vmatprep.mubr.bf16.mxu0 0
    %7237 = vmatmul.mubr.bf16.gmra.mrb[0].mxu0 %v6670
    %v7238 = vpop.f32.mrb[0].mxu0
    %v7239 = vadd.f32 %v6950, %v7238
    %v7240 = vpop.f32.mrb[0].mxu0
    %v7241 = vpop.f32.mrb[0].mxu0
    %v7242 = vadd.f32 %v6953, %v7241
    %v7243 = vpop.f32.mrb[0].mxu0
    %7244 = vmatprep.mubr.bf16.mxu0 0
    %7245 = vmatmul.mubr.bf16.gmra.mrb[0].mxu0 %v6673
    %v7246 = vpop.f32.mrb[0].mxu0
    %v7247 = vadd.f32 %v6958, %v7246
    %v7248 = vpop.f32.mrb[0].mxu0
    %v7249 = vpop.f32.mrb[0].mxu0
    %v7250 = vadd.f32 %v6961, %v7249
    %v7251 = vpop.f32.mrb[0].mxu0
    %7252 = vdwg.mxu0
    %v7253 = vmax.f32 %v6999, 0.0
    %v7254 = vmax.f32 %v7002, 0.0
    %v7255 = vmax.f32 %v7007, 0.0
    %v7256 = vmax.f32 %v7010, 0.0
    %v7257 = vmax.f32 %v7015, 0.0
    %v7258 = vmax.f32 %v7018, 0.0
    %v7259 = vmax.f32 %v7023, 0.0
    %v7260 = vmax.f32 %v7026, 0.0
    %v7261 = vmax.f32 %v7031, 0.0
    %v7262 = vmax.f32 %v7034, 0.0
    %v7263 = vmax.f32 %v7039, 0.0
    %v7264 = vmax.f32 %v7042, 0.0
    %v7265 = vmax.f32 %v7047, 0.0
    %v7266 = vmax.f32 %v7050, 0.0
    %v7267 = vmax.f32 %v7055, 0.0
    %v7268 = vmax.f32 %v7058, 0.0
    %v7269 = vmax.f32 %v7063, 0.0
    %v7270 = vmax.f32 %v7066, 0.0
    %v7271 = vmax.f32 %v7071, 0.0
    %v7272 = vmax.f32 %v7074, 0.0
    %v7273 = vmax.f32 %v7079, 0.0
    %v7274 = vmax.f32 %v7082, 0.0
    %v7275 = vmax.f32 %v7087, 0.0
    %v7276 = vmax.f32 %v7090, 0.0
    %v7277 = vmax.f32 %v7095, 0.0
    %v7278 = vmax.f32 %v7098, 0.0
    %v7279 = vmax.f32 %v7103, 0.0
    %v7280 = vmax.f32 %v7106, 0.0
    %v7281 = vmax.f32 %v7111, 0.0
    %v7282 = vmax.f32 %v7114, 0.0
    %v7283 = vmax.f32 %v7119, 0.0
    %v7284 = vmax.f32 %v7122, 0.0
    %v7285 = vmax.f32 %v7127, 0.0
    %v7286 = vmax.f32 %v7130, 0.0
    %v7287 = vmax.f32 %v7135, 0.0
    %v7288 = vmax.f32 %v7138, 0.0
    %v7289 = vmax.f32 %v7143, 0.0
    %v7290 = vmax.f32 %v7146, 0.0
    %v7291 = vmax.f32 %v7151, 0.0
    %v7292 = vmax.f32 %v7154, 0.0
    %v7293 = vmax.f32 %v7159, 0.0
    %v7294 = vmax.f32 %v7162, 0.0
    %v7295 = vmax.f32 %v7167, 0.0
    %v7296 = vmax.f32 %v7170, 0.0
    %v7297 = vmax.f32 %v7175, 0.0
    %v7298 = vmax.f32 %v7178, 0.0
    %v7299 = vmax.f32 %v7183, 0.0
    %v7300 = vmax.f32 %v7186, 0.0
    %v7301 = vmax.f32 %v7191, 0.0
    %v7302 = vmax.f32 %v7194, 0.0
    %v7303 = vmax.f32 %v7199, 0.0
    %v7304 = vmax.f32 %v7202, 0.0
    %v7305 = vmax.f32 %v7207, 0.0
    %v7306 = vmax.f32 %v7210, 0.0
    %v7307 = vmax.f32 %v7215, 0.0
    %v7308 = vmax.f32 %v7218, 0.0
    %v7309 = vmax.f32 %v7223, 0.0
    %v7310 = vmax.f32 %v7226, 0.0
    %v7311 = vmax.f32 %v7231, 0.0
    %v7312 = vmax.f32 %v7234, 0.0
    %v7313 = vmax.f32 %v7239, 0.0
    %v7314 = vmax.f32 %v7242, 0.0
    %v7315 = vmax.f32 %v7247, 0.0
    %v7316 = vmax.f32 %v7250, 0.0
    %v7381 = vcombine.high %v7253, %v7253
    %v7383 = vunpack.c.l.s4 1983009808
    %v7384 = vunpack.c.0.s8 %v7383
    %v7385 = vlaneseq
    %v7386 = vshrl.u32 %v7385, 7
    %v7387 = vsub.s32 %v7384, %v7386
    %v7388 = vrot.slane %v7253, %v7387
    %v7390 = vunpack.c.l.s4 1983009808
    %v7391 = vunpack.c.0.s8 %v7390
    %v7392 = vlaneseq
    %v7393 = vshrl.u32 %v7392, 7
    %v7394 = vsub.s32 %v7391, %v7393
    %v7395 = vrot.slane %v7381, %v7394
    %v7396 = vcombine.high %v7388, %v7388
    %v7397 = vcombine.high %v7395, %v7395
    %v7398 = vcombine.high %v7254, %v7254
    %v7400 = vunpack.c.l.s4 1983009808
    %v7401 = vunpack.c.0.s8 %v7400
    %v7402 = vlaneseq
    %v7403 = vshrl.u32 %v7402, 7
    %v7404 = vsub.s32 %v7401, %v7403
    %v7405 = vrot.slane %v7254, %v7404
    %v7407 = vunpack.c.l.s4 1983009808
    %v7408 = vunpack.c.0.s8 %v7407
    %v7409 = vlaneseq
    %v7410 = vshrl.u32 %v7409, 7
    %v7411 = vsub.s32 %v7408, %v7410
    %v7412 = vrot.slane %v7398, %v7411
    %v7413 = vcombine.high %v7405, %v7405
    %v7414 = vcombine.high %v7412, %v7412
    %v7415 = vcombine.high %v7255, %v7255
    %v7417 = vunpack.c.l.s4 1983009808
    %v7418 = vunpack.c.0.s8 %v7417
    %v7419 = vlaneseq
    %v7420 = vshrl.u32 %v7419, 7
    %v7421 = vsub.s32 %v7418, %v7420
    %v7422 = vrot.slane %v7255, %v7421
    %v7424 = vunpack.c.l.s4 1983009808
    %v7425 = vunpack.c.0.s8 %v7424
    %v7426 = vlaneseq
    %v7427 = vshrl.u32 %v7426, 7
    %v7428 = vsub.s32 %v7425, %v7427
    %v7429 = vrot.slane %v7415, %v7428
    %v7430 = vcombine.high %v7422, %v7422
    %v7431 = vcombine.high %v7429, %v7429
    %v7432 = vcombine.high %v7256, %v7256
    %v7434 = vunpack.c.l.s4 1983009808
    %v7435 = vunpack.c.0.s8 %v7434
    %v7436 = vlaneseq
    %v7437 = vshrl.u32 %v7436, 7
    %v7438 = vsub.s32 %v7435, %v7437
    %v7439 = vrot.slane %v7256, %v7438
    %v7441 = vunpack.c.l.s4 1983009808
    %v7442 = vunpack.c.0.s8 %v7441
    %v7443 = vlaneseq
    %v7444 = vshrl.u32 %v7443, 7
    %v7445 = vsub.s32 %v7442, %v7444
    %v7446 = vrot.slane %v7432, %v7445
    %v7447 = vcombine.high %v7439, %v7439
    %v7448 = vcombine.high %v7446, %v7446
    %v7449 = vcombine.high %v7257, %v7257
    %v7451 = vunpack.c.l.s4 1983009808
    %v7452 = vunpack.c.0.s8 %v7451
    %v7453 = vlaneseq
    %v7454 = vshrl.u32 %v7453, 7
    %v7455 = vsub.s32 %v7452, %v7454
    %v7456 = vrot.slane %v7257, %v7455
    %v7458 = vunpack.c.l.s4 1983009808
    %v7459 = vunpack.c.0.s8 %v7458
    %v7460 = vlaneseq
    %v7461 = vshrl.u32 %v7460, 7
    %v7462 = vsub.s32 %v7459, %v7461
    %v7463 = vrot.slane %v7449, %v7462
    %v7464 = vcombine.high %v7456, %v7456
    %v7465 = vcombine.high %v7463, %v7463
    %v7466 = vcombine.high %v7258, %v7258
    %v7468 = vunpack.c.l.s4 1983009808
    %v7469 = vunpack.c.0.s8 %v7468
    %v7470 = vlaneseq
    %v7471 = vshrl.u32 %v7470, 7
    %v7472 = vsub.s32 %v7469, %v7471
    %v7473 = vrot.slane %v7258, %v7472
    %v7475 = vunpack.c.l.s4 1983009808
    %v7476 = vunpack.c.0.s8 %v7475
    %v7477 = vlaneseq
    %v7478 = vshrl.u32 %v7477, 7
    %v7479 = vsub.s32 %v7476, %v7478
    %v7480 = vrot.slane %v7466, %v7479
    %v7481 = vcombine.high %v7473, %v7473
    %v7482 = vcombine.high %v7480, %v7480
    %v7483 = vcombine.high %v7259, %v7259
    %v7485 = vunpack.c.l.s4 1983009808
    %v7486 = vunpack.c.0.s8 %v7485
    %v7487 = vlaneseq
    %v7488 = vshrl.u32 %v7487, 7
    %v7489 = vsub.s32 %v7486, %v7488
    %v7490 = vrot.slane %v7259, %v7489
    %v7492 = vunpack.c.l.s4 1983009808
    %v7493 = vunpack.c.0.s8 %v7492
    %v7494 = vlaneseq
    %v7495 = vshrl.u32 %v7494, 7
    %v7496 = vsub.s32 %v7493, %v7495
    %v7497 = vrot.slane %v7483, %v7496
    %v7498 = vcombine.high %v7490, %v7490
    %v7499 = vcombine.high %v7497, %v7497
    %v7500 = vcombine.high %v7260, %v7260
    %v7502 = vunpack.c.l.s4 1983009808
    %v7503 = vunpack.c.0.s8 %v7502
    %v7504 = vlaneseq
    %v7505 = vshrl.u32 %v7504, 7
    %v7506 = vsub.s32 %v7503, %v7505
    %v7507 = vrot.slane %v7260, %v7506
    %v7509 = vunpack.c.l.s4 1983009808
    %v7510 = vunpack.c.0.s8 %v7509
    %v7511 = vlaneseq
    %v7512 = vshrl.u32 %v7511, 7
    %v7513 = vsub.s32 %v7510, %v7512
    %v7514 = vrot.slane %v7500, %v7513
    %v7515 = vcombine.high %v7507, %v7507
    %v7516 = vcombine.high %v7514, %v7514
    %v7517 = vcombine.high %v7261, %v7261
    %v7519 = vunpack.c.l.s4 1983009808
    %v7520 = vunpack.c.0.s8 %v7519
    %v7521 = vlaneseq
    %v7522 = vshrl.u32 %v7521, 7
    %v7523 = vsub.s32 %v7520, %v7522
    %v7524 = vrot.slane %v7261, %v7523
    %v7526 = vunpack.c.l.s4 1983009808
    %v7527 = vunpack.c.0.s8 %v7526
    %v7528 = vlaneseq
    %v7529 = vshrl.u32 %v7528, 7
    %v7530 = vsub.s32 %v7527, %v7529
    %v7531 = vrot.slane %v7517, %v7530
    %v7532 = vcombine.high %v7524, %v7524
    %v7533 = vcombine.high %v7531, %v7531
    %v7534 = vcombine.high %v7262, %v7262
    %v7536 = vunpack.c.l.s4 1983009808
    %v7537 = vunpack.c.0.s8 %v7536
    %v7538 = vlaneseq
    %v7539 = vshrl.u32 %v7538, 7
    %v7540 = vsub.s32 %v7537, %v7539
    %v7541 = vrot.slane %v7262, %v7540
    %v7543 = vunpack.c.l.s4 1983009808
    %v7544 = vunpack.c.0.s8 %v7543
    %v7545 = vlaneseq
    %v7546 = vshrl.u32 %v7545, 7
    %v7547 = vsub.s32 %v7544, %v7546
    %v7548 = vrot.slane %v7534, %v7547
    %v7549 = vcombine.high %v7541, %v7541
    %v7550 = vcombine.high %v7548, %v7548
    %v7551 = vcombine.high %v7263, %v7263
    %v7553 = vunpack.c.l.s4 1983009808
    %v7554 = vunpack.c.0.s8 %v7553
    %v7555 = vlaneseq
    %v7556 = vshrl.u32 %v7555, 7
    %v7557 = vsub.s32 %v7554, %v7556
    %v7558 = vrot.slane %v7263, %v7557
    %v7560 = vunpack.c.l.s4 1983009808
    %v7561 = vunpack.c.0.s8 %v7560
    %v7562 = vlaneseq
    %v7563 = vshrl.u32 %v7562, 7
    %v7564 = vsub.s32 %v7561, %v7563
    %v7565 = vrot.slane %v7551, %v7564
    %v7566 = vcombine.high %v7558, %v7558
    %v7567 = vcombine.high %v7565, %v7565
    %v7568 = vcombine.high %v7264, %v7264
    %v7570 = vunpack.c.l.s4 1983009808
    %v7571 = vunpack.c.0.s8 %v7570
    %v7572 = vlaneseq
    %v7573 = vshrl.u32 %v7572, 7
    %v7574 = vsub.s32 %v7571, %v7573
    %v7575 = vrot.slane %v7264, %v7574
    %v7577 = vunpack.c.l.s4 1983009808
    %v7578 = vunpack.c.0.s8 %v7577
    %v7579 = vlaneseq
    %v7580 = vshrl.u32 %v7579, 7
    %v7581 = vsub.s32 %v7578, %v7580
    %v7582 = vrot.slane %v7568, %v7581
    %v7583 = vcombine.high %v7575, %v7575
    %v7584 = vcombine.high %v7582, %v7582
    %v7585 = vcombine.high %v7265, %v7265
    %v7587 = vunpack.c.l.s4 1983009808
    %v7588 = vunpack.c.0.s8 %v7587
    %v7589 = vlaneseq
    %v7590 = vshrl.u32 %v7589, 7
    %v7591 = vsub.s32 %v7588, %v7590
    %v7592 = vrot.slane %v7265, %v7591
    %v7594 = vunpack.c.l.s4 1983009808
    %v7595 = vunpack.c.0.s8 %v7594
    %v7596 = vlaneseq
    %v7597 = vshrl.u32 %v7596, 7
    %v7598 = vsub.s32 %v7595, %v7597
    %v7599 = vrot.slane %v7585, %v7598
    %v7600 = vcombine.high %v7592, %v7592
    %v7601 = vcombine.high %v7599, %v7599
    %v7602 = vcombine.high %v7266, %v7266
    %v7604 = vunpack.c.l.s4 1983009808
    %v7605 = vunpack.c.0.s8 %v7604
    %v7606 = vlaneseq
    %v7607 = vshrl.u32 %v7606, 7
    %v7608 = vsub.s32 %v7605, %v7607
    %v7609 = vrot.slane %v7266, %v7608
    %v7611 = vunpack.c.l.s4 1983009808
    %v7612 = vunpack.c.0.s8 %v7611
    %v7613 = vlaneseq
    %v7614 = vshrl.u32 %v7613, 7
    %v7615 = vsub.s32 %v7612, %v7614
    %v7616 = vrot.slane %v7602, %v7615
    %v7617 = vcombine.high %v7609, %v7609
    %v7618 = vcombine.high %v7616, %v7616
    %v7619 = vcombine.high %v7267, %v7267
    %v7621 = vunpack.c.l.s4 1983009808
    %v7622 = vunpack.c.0.s8 %v7621
    %v7623 = vlaneseq
    %v7624 = vshrl.u32 %v7623, 7
    %v7625 = vsub.s32 %v7622, %v7624
    %v7626 = vrot.slane %v7267, %v7625
    %v7628 = vunpack.c.l.s4 1983009808
    %v7629 = vunpack.c.0.s8 %v7628
    %v7630 = vlaneseq
    %v7631 = vshrl.u32 %v7630, 7
    %v7632 = vsub.s32 %v7629, %v7631
    %v7633 = vrot.slane %v7619, %v7632
    %v7634 = vcombine.high %v7626, %v7626
    %v7635 = vcombine.high %v7633, %v7633
    %v7636 = vcombine.high %v7268, %v7268
    %v7638 = vunpack.c.l.s4 1983009808
    %v7639 = vunpack.c.0.s8 %v7638
    %v7640 = vlaneseq
    %v7641 = vshrl.u32 %v7640, 7
    %v7642 = vsub.s32 %v7639, %v7641
    %v7643 = vrot.slane %v7268, %v7642
    %v7645 = vunpack.c.l.s4 1983009808
    %v7646 = vunpack.c.0.s8 %v7645
    %v7647 = vlaneseq
    %v7648 = vshrl.u32 %v7647, 7
    %v7649 = vsub.s32 %v7646, %v7648
    %v7650 = vrot.slane %v7636, %v7649
    %v7651 = vcombine.high %v7643, %v7643
    %v7652 = vcombine.high %v7650, %v7650
    %v7653 = vcombine.high %v7269, %v7269
    %v7655 = vunpack.c.l.s4 1983009808
    %v7656 = vunpack.c.0.s8 %v7655
    %v7657 = vlaneseq
    %v7658 = vshrl.u32 %v7657, 7
    %v7659 = vsub.s32 %v7656, %v7658
    %v7660 = vrot.slane %v7269, %v7659
    %v7662 = vunpack.c.l.s4 1983009808
    %v7663 = vunpack.c.0.s8 %v7662
    %v7664 = vlaneseq
    %v7665 = vshrl.u32 %v7664, 7
    %v7666 = vsub.s32 %v7663, %v7665
    %v7667 = vrot.slane %v7653, %v7666
    %v7668 = vcombine.high %v7660, %v7660
    %v7669 = vcombine.high %v7667, %v7667
    %v7670 = vcombine.high %v7270, %v7270
    %v7672 = vunpack.c.l.s4 1983009808
    %v7673 = vunpack.c.0.s8 %v7672
    %v7674 = vlaneseq
    %v7675 = vshrl.u32 %v7674, 7
    %v7676 = vsub.s32 %v7673, %v7675
    %v7677 = vrot.slane %v7270, %v7676
    %v7679 = vunpack.c.l.s4 1983009808
    %v7680 = vunpack.c.0.s8 %v7679
    %v7681 = vlaneseq
    %v7682 = vshrl.u32 %v7681, 7
    %v7683 = vsub.s32 %v7680, %v7682
    %v7684 = vrot.slane %v7670, %v7683
    %v7685 = vcombine.high %v7677, %v7677
    %v7686 = vcombine.high %v7684, %v7684
    %v7687 = vcombine.high %v7271, %v7271
    %v7689 = vunpack.c.l.s4 1983009808
    %v7690 = vunpack.c.0.s8 %v7689
    %v7691 = vlaneseq
    %v7692 = vshrl.u32 %v7691, 7
    %v7693 = vsub.s32 %v7690, %v7692
    %v7694 = vrot.slane %v7271, %v7693
    %v7696 = vunpack.c.l.s4 1983009808
    %v7697 = vunpack.c.0.s8 %v7696
    %v7698 = vlaneseq
    %v7699 = vshrl.u32 %v7698, 7
    %v7700 = vsub.s32 %v7697, %v7699
    %v7701 = vrot.slane %v7687, %v7700
    %v7702 = vcombine.high %v7694, %v7694
    %v7703 = vcombine.high %v7701, %v7701
    %v7704 = vcombine.high %v7272, %v7272
    %v7706 = vunpack.c.l.s4 1983009808
    %v7707 = vunpack.c.0.s8 %v7706
    %v7708 = vlaneseq
    %v7709 = vshrl.u32 %v7708, 7
    %v7710 = vsub.s32 %v7707, %v7709
    %v7711 = vrot.slane %v7272, %v7710
    %v7713 = vunpack.c.l.s4 1983009808
    %v7714 = vunpack.c.0.s8 %v7713
    %v7715 = vlaneseq
    %v7716 = vshrl.u32 %v7715, 7
    %v7717 = vsub.s32 %v7714, %v7716
    %v7718 = vrot.slane %v7704, %v7717
    %v7719 = vcombine.high %v7711, %v7711
    %v7720 = vcombine.high %v7718, %v7718
    %v7721 = vcombine.high %v7273, %v7273
    %v7723 = vunpack.c.l.s4 1983009808
    %v7724 = vunpack.c.0.s8 %v7723
    %v7725 = vlaneseq
    %v7726 = vshrl.u32 %v7725, 7
    %v7727 = vsub.s32 %v7724, %v7726
    %v7728 = vrot.slane %v7273, %v7727
    %v7730 = vunpack.c.l.s4 1983009808
    %v7731 = vunpack.c.0.s8 %v7730
    %v7732 = vlaneseq
    %v7733 = vshrl.u32 %v7732, 7
    %v7734 = vsub.s32 %v7731, %v7733
    %v7735 = vrot.slane %v7721, %v7734
    %v7736 = vcombine.high %v7728, %v7728
    %v7737 = vcombine.high %v7735, %v7735
    %v7738 = vcombine.high %v7274, %v7274
    %v7740 = vunpack.c.l.s4 1983009808
    %v7741 = vunpack.c.0.s8 %v7740
    %v7742 = vlaneseq
    %v7743 = vshrl.u32 %v7742, 7
    %v7744 = vsub.s32 %v7741, %v7743
    %v7745 = vrot.slane %v7274, %v7744
    %v7747 = vunpack.c.l.s4 1983009808
    %v7748 = vunpack.c.0.s8 %v7747
    %v7749 = vlaneseq
    %v7750 = vshrl.u32 %v7749, 7
    %v7751 = vsub.s32 %v7748, %v7750
    %v7752 = vrot.slane %v7738, %v7751
    %v7753 = vcombine.high %v7745, %v7745
    %v7754 = vcombine.high %v7752, %v7752
    %v7755 = vcombine.high %v7275, %v7275
    %v7757 = vunpack.c.l.s4 1983009808
    %v7758 = vunpack.c.0.s8 %v7757
    %v7759 = vlaneseq
    %v7760 = vshrl.u32 %v7759, 7
    %v7761 = vsub.s32 %v7758, %v7760
    %v7762 = vrot.slane %v7275, %v7761
    %v7764 = vunpack.c.l.s4 1983009808
    %v7765 = vunpack.c.0.s8 %v7764
    %v7766 = vlaneseq
    %v7767 = vshrl.u32 %v7766, 7
    %v7768 = vsub.s32 %v7765, %v7767
    %v7769 = vrot.slane %v7755, %v7768
    %v7770 = vcombine.high %v7762, %v7762
    %v7771 = vcombine.high %v7769, %v7769
    %v7772 = vcombine.high %v7276, %v7276
    %v7774 = vunpack.c.l.s4 1983009808
    %v7775 = vunpack.c.0.s8 %v7774
    %v7776 = vlaneseq
    %v7777 = vshrl.u32 %v7776, 7
    %v7778 = vsub.s32 %v7775, %v7777
    %v7779 = vrot.slane %v7276, %v7778
    %v7781 = vunpack.c.l.s4 1983009808
    %v7782 = vunpack.c.0.s8 %v7781
    %v7783 = vlaneseq
    %v7784 = vshrl.u32 %v7783, 7
    %v7785 = vsub.s32 %v7782, %v7784
    %v7786 = vrot.slane %v7772, %v7785
    %v7787 = vcombine.high %v7779, %v7779
    %v7788 = vcombine.high %v7786, %v7786
    %v7789 = vcombine.high %v7277, %v7277
    %v7791 = vunpack.c.l.s4 1983009808
    %v7792 = vunpack.c.0.s8 %v7791
    %v7793 = vlaneseq
    %v7794 = vshrl.u32 %v7793, 7
    %v7795 = vsub.s32 %v7792, %v7794
    %v7796 = vrot.slane %v7277, %v7795
    %v7798 = vunpack.c.l.s4 1983009808
    %v7799 = vunpack.c.0.s8 %v7798
    %v7800 = vlaneseq
    %v7801 = vshrl.u32 %v7800, 7
    %v7802 = vsub.s32 %v7799, %v7801
    %v7803 = vrot.slane %v7789, %v7802
    %v7804 = vcombine.high %v7796, %v7796
    %v7805 = vcombine.high %v7803, %v7803
    %v7806 = vcombine.high %v7278, %v7278
    %v7808 = vunpack.c.l.s4 1983009808
    %v7809 = vunpack.c.0.s8 %v7808
    %v7810 = vlaneseq
    %v7811 = vshrl.u32 %v7810, 7
    %v7812 = vsub.s32 %v7809, %v7811
    %v7813 = vrot.slane %v7278, %v7812
    %v7815 = vunpack.c.l.s4 1983009808
    %v7816 = vunpack.c.0.s8 %v7815
    %v7817 = vlaneseq
    %v7818 = vshrl.u32 %v7817, 7
    %v7819 = vsub.s32 %v7816, %v7818
    %v7820 = vrot.slane %v7806, %v7819
    %v7821 = vcombine.high %v7813, %v7813
    %v7822 = vcombine.high %v7820, %v7820
    %v7823 = vcombine.high %v7279, %v7279
    %v7825 = vunpack.c.l.s4 1983009808
    %v7826 = vunpack.c.0.s8 %v7825
    %v7827 = vlaneseq
    %v7828 = vshrl.u32 %v7827, 7
    %v7829 = vsub.s32 %v7826, %v7828
    %v7830 = vrot.slane %v7279, %v7829
    %v7832 = vunpack.c.l.s4 1983009808
    %v7833 = vunpack.c.0.s8 %v7832
    %v7834 = vlaneseq
    %v7835 = vshrl.u32 %v7834, 7
    %v7836 = vsub.s32 %v7833, %v7835
    %v7837 = vrot.slane %v7823, %v7836
    %v7838 = vcombine.high %v7830, %v7830
    %v7839 = vcombine.high %v7837, %v7837
    %v7840 = vcombine.high %v7280, %v7280
    %v7842 = vunpack.c.l.s4 1983009808
    %v7843 = vunpack.c.0.s8 %v7842
    %v7844 = vlaneseq
    %v7845 = vshrl.u32 %v7844, 7
    %v7846 = vsub.s32 %v7843, %v7845
    %v7847 = vrot.slane %v7280, %v7846
    %v7849 = vunpack.c.l.s4 1983009808
    %v7850 = vunpack.c.0.s8 %v7849
    %v7851 = vlaneseq
    %v7852 = vshrl.u32 %v7851, 7
    %v7853 = vsub.s32 %v7850, %v7852
    %v7854 = vrot.slane %v7840, %v7853
    %v7855 = vcombine.high %v7847, %v7847
    %v7856 = vcombine.high %v7854, %v7854
    %v7857 = vcombine.high %v7281, %v7281
    %v7859 = vunpack.c.l.s4 1983009808
    %v7860 = vunpack.c.0.s8 %v7859
    %v7861 = vlaneseq
    %v7862 = vshrl.u32 %v7861, 7
    %v7863 = vsub.s32 %v7860, %v7862
    %v7864 = vrot.slane %v7281, %v7863
    %v7866 = vunpack.c.l.s4 1983009808
    %v7867 = vunpack.c.0.s8 %v7866
    %v7868 = vlaneseq
    %v7869 = vshrl.u32 %v7868, 7
    %v7870 = vsub.s32 %v7867, %v7869
    %v7871 = vrot.slane %v7857, %v7870
    %v7872 = vcombine.high %v7864, %v7864
    %v7873 = vcombine.high %v7871, %v7871
    %v7874 = vcombine.high %v7282, %v7282
    %v7876 = vunpack.c.l.s4 1983009808
    %v7877 = vunpack.c.0.s8 %v7876
    %v7878 = vlaneseq
    %v7879 = vshrl.u32 %v7878, 7
    %v7880 = vsub.s32 %v7877, %v7879
    %v7881 = vrot.slane %v7282, %v7880
    %v7883 = vunpack.c.l.s4 1983009808
    %v7884 = vunpack.c.0.s8 %v7883
    %v7885 = vlaneseq
    %v7886 = vshrl.u32 %v7885, 7
    %v7887 = vsub.s32 %v7884, %v7886
    %v7888 = vrot.slane %v7874, %v7887
    %v7889 = vcombine.high %v7881, %v7881
    %v7890 = vcombine.high %v7888, %v7888
    %v7891 = vcombine.high %v7283, %v7283
    %v7893 = vunpack.c.l.s4 1983009808
    %v7894 = vunpack.c.0.s8 %v7893
    %v7895 = vlaneseq
    %v7896 = vshrl.u32 %v7895, 7
    %v7897 = vsub.s32 %v7894, %v7896
    %v7898 = vrot.slane %v7283, %v7897
    %v7900 = vunpack.c.l.s4 1983009808
    %v7901 = vunpack.c.0.s8 %v7900
    %v7902 = vlaneseq
    %v7903 = vshrl.u32 %v7902, 7
    %v7904 = vsub.s32 %v7901, %v7903
    %v7905 = vrot.slane %v7891, %v7904
    %v7906 = vcombine.high %v7898, %v7898
    %v7907 = vcombine.high %v7905, %v7905
    %v7908 = vcombine.high %v7284, %v7284
    %v7910 = vunpack.c.l.s4 1983009808
    %v7911 = vunpack.c.0.s8 %v7910
    %v7912 = vlaneseq
    %v7913 = vshrl.u32 %v7912, 7
    %v7914 = vsub.s32 %v7911, %v7913
    %v7915 = vrot.slane %v7284, %v7914
    %v7917 = vunpack.c.l.s4 1983009808
    %v7918 = vunpack.c.0.s8 %v7917
    %v7919 = vlaneseq
    %v7920 = vshrl.u32 %v7919, 7
    %v7921 = vsub.s32 %v7918, %v7920
    %v7922 = vrot.slane %v7908, %v7921
    %v7923 = vcombine.high %v7915, %v7915
    %v7924 = vcombine.high %v7922, %v7922
    %v7925 = vcombine.high %v7285, %v7285
    %v7927 = vunpack.c.l.s4 1983009808
    %v7928 = vunpack.c.0.s8 %v7927
    %v7929 = vlaneseq
    %v7930 = vshrl.u32 %v7929, 7
    %v7931 = vsub.s32 %v7928, %v7930
    %v7932 = vrot.slane %v7285, %v7931
    %v7934 = vunpack.c.l.s4 1983009808
    %v7935 = vunpack.c.0.s8 %v7934
    %v7936 = vlaneseq
    %v7937 = vshrl.u32 %v7936, 7
    %v7938 = vsub.s32 %v7935, %v7937
    %v7939 = vrot.slane %v7925, %v7938
    %v7940 = vcombine.high %v7932, %v7932
    %v7941 = vcombine.high %v7939, %v7939
    %v7942 = vcombine.high %v7286, %v7286
    %v7944 = vunpack.c.l.s4 1983009808
    %v7945 = vunpack.c.0.s8 %v7944
    %v7946 = vlaneseq
    %v7947 = vshrl.u32 %v7946, 7
    %v7948 = vsub.s32 %v7945, %v7947
    %v7949 = vrot.slane %v7286, %v7948
    %v7951 = vunpack.c.l.s4 1983009808
    %v7952 = vunpack.c.0.s8 %v7951
    %v7953 = vlaneseq
    %v7954 = vshrl.u32 %v7953, 7
    %v7955 = vsub.s32 %v7952, %v7954
    %v7956 = vrot.slane %v7942, %v7955
    %v7957 = vcombine.high %v7949, %v7949
    %v7958 = vcombine.high %v7956, %v7956
    %v7959 = vcombine.high %v7287, %v7287
    %v7961 = vunpack.c.l.s4 1983009808
    %v7962 = vunpack.c.0.s8 %v7961
    %v7963 = vlaneseq
    %v7964 = vshrl.u32 %v7963, 7
    %v7965 = vsub.s32 %v7962, %v7964
    %v7966 = vrot.slane %v7287, %v7965
    %v7968 = vunpack.c.l.s4 1983009808
    %v7969 = vunpack.c.0.s8 %v7968
    %v7970 = vlaneseq
    %v7971 = vshrl.u32 %v7970, 7
    %v7972 = vsub.s32 %v7969, %v7971
    %v7973 = vrot.slane %v7959, %v7972
    %v7974 = vcombine.high %v7966, %v7966
    %v7975 = vcombine.high %v7973, %v7973
    %v7976 = vcombine.high %v7288, %v7288
    %v7978 = vunpack.c.l.s4 1983009808
    %v7979 = vunpack.c.0.s8 %v7978
    %v7980 = vlaneseq
    %v7981 = vshrl.u32 %v7980, 7
    %v7982 = vsub.s32 %v7979, %v7981
    %v7983 = vrot.slane %v7288, %v7982
    %v7985 = vunpack.c.l.s4 1983009808
    %v7986 = vunpack.c.0.s8 %v7985
    %v7987 = vlaneseq
    %v7988 = vshrl.u32 %v7987, 7
    %v7989 = vsub.s32 %v7986, %v7988
    %v7990 = vrot.slane %v7976, %v7989
    %v7991 = vcombine.high %v7983, %v7983
    %v7992 = vcombine.high %v7990, %v7990
    %v7993 = vcombine.high %v7289, %v7289
    %v7995 = vunpack.c.l.s4 1983009808
    %v7996 = vunpack.c.0.s8 %v7995
    %v7997 = vlaneseq
    %v7998 = vshrl.u32 %v7997, 7
    %v7999 = vsub.s32 %v7996, %v7998
    %v8000 = vrot.slane %v7289, %v7999
    %v8002 = vunpack.c.l.s4 1983009808
    %v8003 = vunpack.c.0.s8 %v8002
    %v8004 = vlaneseq
    %v8005 = vshrl.u32 %v8004, 7
    %v8006 = vsub.s32 %v8003, %v8005
    %v8007 = vrot.slane %v7993, %v8006
    %v8008 = vcombine.high %v8000, %v8000
    %v8009 = vcombine.high %v8007, %v8007
    %v8010 = vcombine.high %v7290, %v7290
    %v8012 = vunpack.c.l.s4 1983009808
    %v8013 = vunpack.c.0.s8 %v8012
    %v8014 = vlaneseq
    %v8015 = vshrl.u32 %v8014, 7
    %v8016 = vsub.s32 %v8013, %v8015
    %v8017 = vrot.slane %v7290, %v8016
    %v8019 = vunpack.c.l.s4 1983009808
    %v8020 = vunpack.c.0.s8 %v8019
    %v8021 = vlaneseq
    %v8022 = vshrl.u32 %v8021, 7
    %v8023 = vsub.s32 %v8020, %v8022
    %v8024 = vrot.slane %v8010, %v8023
    %v8025 = vcombine.high %v8017, %v8017
    %v8026 = vcombine.high %v8024, %v8024
    %v8027 = vcombine.high %v7291, %v7291
    %v8029 = vunpack.c.l.s4 1983009808
    %v8030 = vunpack.c.0.s8 %v8029
    %v8031 = vlaneseq
    %v8032 = vshrl.u32 %v8031, 7
    %v8033 = vsub.s32 %v8030, %v8032
    %v8034 = vrot.slane %v7291, %v8033
    %v8036 = vunpack.c.l.s4 1983009808
    %v8037 = vunpack.c.0.s8 %v8036
    %v8038 = vlaneseq
    %v8039 = vshrl.u32 %v8038, 7
    %v8040 = vsub.s32 %v8037, %v8039
    %v8041 = vrot.slane %v8027, %v8040
    %v8042 = vcombine.high %v8034, %v8034
    %v8043 = vcombine.high %v8041, %v8041
    %v8044 = vcombine.high %v7292, %v7292
    %v8046 = vunpack.c.l.s4 1983009808
    %v8047 = vunpack.c.0.s8 %v8046
    %v8048 = vlaneseq
    %v8049 = vshrl.u32 %v8048, 7
    %v8050 = vsub.s32 %v8047, %v8049
    %v8051 = vrot.slane %v7292, %v8050
    %v8053 = vunpack.c.l.s4 1983009808
    %v8054 = vunpack.c.0.s8 %v8053
    %v8055 = vlaneseq
    %v8056 = vshrl.u32 %v8055, 7
    %v8057 = vsub.s32 %v8054, %v8056
    %v8058 = vrot.slane %v8044, %v8057
    %v8059 = vcombine.high %v8051, %v8051
    %v8060 = vcombine.high %v8058, %v8058
    %v8061 = vcombine.high %v7293, %v7293
    %v8063 = vunpack.c.l.s4 1983009808
    %v8064 = vunpack.c.0.s8 %v8063
    %v8065 = vlaneseq
    %v8066 = vshrl.u32 %v8065, 7
    %v8067 = vsub.s32 %v8064, %v8066
    %v8068 = vrot.slane %v7293, %v8067
    %v8070 = vunpack.c.l.s4 1983009808
    %v8071 = vunpack.c.0.s8 %v8070
    %v8072 = vlaneseq
    %v8073 = vshrl.u32 %v8072, 7
    %v8074 = vsub.s32 %v8071, %v8073
    %v8075 = vrot.slane %v8061, %v8074
    %v8076 = vcombine.high %v8068, %v8068
    %v8077 = vcombine.high %v8075, %v8075
    %v8078 = vcombine.high %v7294, %v7294
    %v8080 = vunpack.c.l.s4 1983009808
    %v8081 = vunpack.c.0.s8 %v8080
    %v8082 = vlaneseq
    %v8083 = vshrl.u32 %v8082, 7
    %v8084 = vsub.s32 %v8081, %v8083
    %v8085 = vrot.slane %v7294, %v8084
    %v8087 = vunpack.c.l.s4 1983009808
    %v8088 = vunpack.c.0.s8 %v8087
    %v8089 = vlaneseq
    %v8090 = vshrl.u32 %v8089, 7
    %v8091 = vsub.s32 %v8088, %v8090
    %v8092 = vrot.slane %v8078, %v8091
    %v8093 = vcombine.high %v8085, %v8085
    %v8094 = vcombine.high %v8092, %v8092
    %v8095 = vcombine.high %v7295, %v7295
    %v8097 = vunpack.c.l.s4 1983009808
    %v8098 = vunpack.c.0.s8 %v8097
    %v8099 = vlaneseq
    %v8100 = vshrl.u32 %v8099, 7
    %v8101 = vsub.s32 %v8098, %v8100
    %v8102 = vrot.slane %v7295, %v8101
    %v8104 = vunpack.c.l.s4 1983009808
    %v8105 = vunpack.c.0.s8 %v8104
    %v8106 = vlaneseq
    %v8107 = vshrl.u32 %v8106, 7
    %v8108 = vsub.s32 %v8105, %v8107
    %v8109 = vrot.slane %v8095, %v8108
    %v8110 = vcombine.high %v8102, %v8102
    %v8111 = vcombine.high %v8109, %v8109
    %v8112 = vcombine.high %v7296, %v7296
    %v8114 = vunpack.c.l.s4 1983009808
    %v8115 = vunpack.c.0.s8 %v8114
    %v8116 = vlaneseq
    %v8117 = vshrl.u32 %v8116, 7
    %v8118 = vsub.s32 %v8115, %v8117
    %v8119 = vrot.slane %v7296, %v8118
    %v8121 = vunpack.c.l.s4 1983009808
    %v8122 = vunpack.c.0.s8 %v8121
    %v8123 = vlaneseq
    %v8124 = vshrl.u32 %v8123, 7
    %v8125 = vsub.s32 %v8122, %v8124
    %v8126 = vrot.slane %v8112, %v8125
    %v8127 = vcombine.high %v8119, %v8119
    %v8128 = vcombine.high %v8126, %v8126
    %v8129 = vcombine.high %v7297, %v7297
    %v8131 = vunpack.c.l.s4 1983009808
    %v8132 = vunpack.c.0.s8 %v8131
    %v8133 = vlaneseq
    %v8134 = vshrl.u32 %v8133, 7
    %v8135 = vsub.s32 %v8132, %v8134
    %v8136 = vrot.slane %v7297, %v8135
    %v8138 = vunpack.c.l.s4 1983009808
    %v8139 = vunpack.c.0.s8 %v8138
    %v8140 = vlaneseq
    %v8141 = vshrl.u32 %v8140, 7
    %v8142 = vsub.s32 %v8139, %v8141
    %v8143 = vrot.slane %v8129, %v8142
    %v8144 = vcombine.high %v8136, %v8136
    %v8145 = vcombine.high %v8143, %v8143
    %v8146 = vcombine.high %v7298, %v7298
    %v8148 = vunpack.c.l.s4 1983009808
    %v8149 = vunpack.c.0.s8 %v8148
    %v8150 = vlaneseq
    %v8151 = vshrl.u32 %v8150, 7
    %v8152 = vsub.s32 %v8149, %v8151
    %v8153 = vrot.slane %v7298, %v8152
    %v8155 = vunpack.c.l.s4 1983009808
    %v8156 = vunpack.c.0.s8 %v8155
    %v8157 = vlaneseq
    %v8158 = vshrl.u32 %v8157, 7
    %v8159 = vsub.s32 %v8156, %v8158
    %v8160 = vrot.slane %v8146, %v8159
    %v8161 = vcombine.high %v8153, %v8153
    %v8162 = vcombine.high %v8160, %v8160
    %v8163 = vcombine.high %v7299, %v7299
    %v8165 = vunpack.c.l.s4 1983009808
    %v8166 = vunpack.c.0.s8 %v8165
    %v8167 = vlaneseq
    %v8168 = vshrl.u32 %v8167, 7
    %v8169 = vsub.s32 %v8166, %v8168
    %v8170 = vrot.slane %v7299, %v8169
    %v8172 = vunpack.c.l.s4 1983009808
    %v8173 = vunpack.c.0.s8 %v8172
    %v8174 = vlaneseq
    %v8175 = vshrl.u32 %v8174, 7
    %v8176 = vsub.s32 %v8173, %v8175
    %v8177 = vrot.slane %v8163, %v8176
    %v8178 = vcombine.high %v8170, %v8170
    %v8179 = vcombine.high %v8177, %v8177
    %v8180 = vcombine.high %v7300, %v7300
    %v8182 = vunpack.c.l.s4 1983009808
    %v8183 = vunpack.c.0.s8 %v8182
    %v8184 = vlaneseq
    %v8185 = vshrl.u32 %v8184, 7
    %v8186 = vsub.s32 %v8183, %v8185
    %v8187 = vrot.slane %v7300, %v8186
    %v8189 = vunpack.c.l.s4 1983009808
    %v8190 = vunpack.c.0.s8 %v8189
    %v8191 = vlaneseq
    %v8192 = vshrl.u32 %v8191, 7
    %v8193 = vsub.s32 %v8190, %v8192
    %v8194 = vrot.slane %v8180, %v8193
    %v8195 = vcombine.high %v8187, %v8187
    %v8196 = vcombine.high %v8194, %v8194
    %v8197 = vcombine.high %v7301, %v7301
    %v8199 = vunpack.c.l.s4 1983009808
    %v8200 = vunpack.c.0.s8 %v8199
    %v8201 = vlaneseq
    %v8202 = vshrl.u32 %v8201, 7
    %v8203 = vsub.s32 %v8200, %v8202
    %v8204 = vrot.slane %v7301, %v8203
    %v8206 = vunpack.c.l.s4 1983009808
    %v8207 = vunpack.c.0.s8 %v8206
    %v8208 = vlaneseq
    %v8209 = vshrl.u32 %v8208, 7
    %v8210 = vsub.s32 %v8207, %v8209
    %v8211 = vrot.slane %v8197, %v8210
    %v8212 = vcombine.high %v8204, %v8204
    %v8213 = vcombine.high %v8211, %v8211
    %v8214 = vcombine.high %v7302, %v7302
    %v8216 = vunpack.c.l.s4 1983009808
    %v8217 = vunpack.c.0.s8 %v8216
    %v8218 = vlaneseq
    %v8219 = vshrl.u32 %v8218, 7
    %v8220 = vsub.s32 %v8217, %v8219
    %v8221 = vrot.slane %v7302, %v8220
    %v8223 = vunpack.c.l.s4 1983009808
    %v8224 = vunpack.c.0.s8 %v8223
    %v8225 = vlaneseq
    %v8226 = vshrl.u32 %v8225, 7
    %v8227 = vsub.s32 %v8224, %v8226
    %v8228 = vrot.slane %v8214, %v8227
    %v8229 = vcombine.high %v8221, %v8221
    %v8230 = vcombine.high %v8228, %v8228
    %v8231 = vcombine.high %v7303, %v7303
    %v8233 = vunpack.c.l.s4 1983009808
    %v8234 = vunpack.c.0.s8 %v8233
    %v8235 = vlaneseq
    %v8236 = vshrl.u32 %v8235, 7
    %v8237 = vsub.s32 %v8234, %v8236
    %v8238 = vrot.slane %v7303, %v8237
    %v8240 = vunpack.c.l.s4 1983009808
    %v8241 = vunpack.c.0.s8 %v8240
    %v8242 = vlaneseq
    %v8243 = vshrl.u32 %v8242, 7
    %v8244 = vsub.s32 %v8241, %v8243
    %v8245 = vrot.slane %v8231, %v8244
    %v8246 = vcombine.high %v8238, %v8238
    %v8247 = vcombine.high %v8245, %v8245
    %v8248 = vcombine.high %v7304, %v7304
    %v8250 = vunpack.c.l.s4 1983009808
    %v8251 = vunpack.c.0.s8 %v8250
    %v8252 = vlaneseq
    %v8253 = vshrl.u32 %v8252, 7
    %v8254 = vsub.s32 %v8251, %v8253
    %v8255 = vrot.slane %v7304, %v8254
    %v8257 = vunpack.c.l.s4 1983009808
    %v8258 = vunpack.c.0.s8 %v8257
    %v8259 = vlaneseq
    %v8260 = vshrl.u32 %v8259, 7
    %v8261 = vsub.s32 %v8258, %v8260
    %v8262 = vrot.slane %v8248, %v8261
    %v8263 = vcombine.high %v8255, %v8255
    %v8264 = vcombine.high %v8262, %v8262
    %v8265 = vcombine.high %v7305, %v7305
    %v8267 = vunpack.c.l.s4 1983009808
    %v8268 = vunpack.c.0.s8 %v8267
    %v8269 = vlaneseq
    %v8270 = vshrl.u32 %v8269, 7
    %v8271 = vsub.s32 %v8268, %v8270
    %v8272 = vrot.slane %v7305, %v8271
    %v8274 = vunpack.c.l.s4 1983009808
    %v8275 = vunpack.c.0.s8 %v8274
    %v8276 = vlaneseq
    %v8277 = vshrl.u32 %v8276, 7
    %v8278 = vsub.s32 %v8275, %v8277
    %v8279 = vrot.slane %v8265, %v8278
    %v8280 = vcombine.high %v8272, %v8272
    %v8281 = vcombine.high %v8279, %v8279
    %v8282 = vcombine.high %v7306, %v7306
    %v8284 = vunpack.c.l.s4 1983009808
    %v8285 = vunpack.c.0.s8 %v8284
    %v8286 = vlaneseq
    %v8287 = vshrl.u32 %v8286, 7
    %v8288 = vsub.s32 %v8285, %v8287
    %v8289 = vrot.slane %v7306, %v8288
    %v8291 = vunpack.c.l.s4 1983009808
    %v8292 = vunpack.c.0.s8 %v8291
    %v8293 = vlaneseq
    %v8294 = vshrl.u32 %v8293, 7
    %v8295 = vsub.s32 %v8292, %v8294
    %v8296 = vrot.slane %v8282, %v8295
    %v8297 = vcombine.high %v8289, %v8289
    %v8298 = vcombine.high %v8296, %v8296
    %v8299 = vcombine.high %v7307, %v7307
    %v8301 = vunpack.c.l.s4 1983009808
    %v8302 = vunpack.c.0.s8 %v8301
    %v8303 = vlaneseq
    %v8304 = vshrl.u32 %v8303, 7
    %v8305 = vsub.s32 %v8302, %v8304
    %v8306 = vrot.slane %v7307, %v8305
    %v8308 = vunpack.c.l.s4 1983009808
    %v8309 = vunpack.c.0.s8 %v8308
    %v8310 = vlaneseq
    %v8311 = vshrl.u32 %v8310, 7
    %v8312 = vsub.s32 %v8309, %v8311
    %v8313 = vrot.slane %v8299, %v8312
    %v8314 = vcombine.high %v8306, %v8306
    %v8315 = vcombine.high %v8313, %v8313
    %v8316 = vcombine.high %v7308, %v7308
    %v8318 = vunpack.c.l.s4 1983009808
    %v8319 = vunpack.c.0.s8 %v8318
    %v8320 = vlaneseq
    %v8321 = vshrl.u32 %v8320, 7
    %v8322 = vsub.s32 %v8319, %v8321
    %v8323 = vrot.slane %v7308, %v8322
    %v8325 = vunpack.c.l.s4 1983009808
    %v8326 = vunpack.c.0.s8 %v8325
    %v8327 = vlaneseq
    %v8328 = vshrl.u32 %v8327, 7
    %v8329 = vsub.s32 %v8326, %v8328
    %v8330 = vrot.slane %v8316, %v8329
    %v8331 = vcombine.high %v8323, %v8323
    %v8332 = vcombine.high %v8330, %v8330
    %v8333 = vcombine.high %v7309, %v7309
    %v8335 = vunpack.c.l.s4 1983009808
    %v8336 = vunpack.c.0.s8 %v8335
    %v8337 = vlaneseq
    %v8338 = vshrl.u32 %v8337, 7
    %v8339 = vsub.s32 %v8336, %v8338
    %v8340 = vrot.slane %v7309, %v8339
    %v8342 = vunpack.c.l.s4 1983009808
    %v8343 = vunpack.c.0.s8 %v8342
    %v8344 = vlaneseq
    %v8345 = vshrl.u32 %v8344, 7
    %v8346 = vsub.s32 %v8343, %v8345
    %v8347 = vrot.slane %v8333, %v8346
    %v8348 = vcombine.high %v8340, %v8340
    %v8349 = vcombine.high %v8347, %v8347
    %v8350 = vcombine.high %v7310, %v7310
    %v8352 = vunpack.c.l.s4 1983009808
    %v8353 = vunpack.c.0.s8 %v8352
    %v8354 = vlaneseq
    %v8355 = vshrl.u32 %v8354, 7
    %v8356 = vsub.s32 %v8353, %v8355
    %v8357 = vrot.slane %v7310, %v8356
    %v8359 = vunpack.c.l.s4 1983009808
    %v8360 = vunpack.c.0.s8 %v8359
    %v8361 = vlaneseq
    %v8362 = vshrl.u32 %v8361, 7
    %v8363 = vsub.s32 %v8360, %v8362
    %v8364 = vrot.slane %v8350, %v8363
    %v8365 = vcombine.high %v8357, %v8357
    %v8366 = vcombine.high %v8364, %v8364
    %v8367 = vcombine.high %v7311, %v7311
    %v8369 = vunpack.c.l.s4 1983009808
    %v8370 = vunpack.c.0.s8 %v8369
    %v8371 = vlaneseq
    %v8372 = vshrl.u32 %v8371, 7
    %v8373 = vsub.s32 %v8370, %v8372
    %v8374 = vrot.slane %v7311, %v8373
    %v8376 = vunpack.c.l.s4 1983009808
    %v8377 = vunpack.c.0.s8 %v8376
    %v8378 = vlaneseq
    %v8379 = vshrl.u32 %v8378, 7
    %v8380 = vsub.s32 %v8377, %v8379
    %v8381 = vrot.slane %v8367, %v8380
    %v8382 = vcombine.high %v8374, %v8374
    %v8383 = vcombine.high %v8381, %v8381
    %v8384 = vcombine.high %v7312, %v7312
    %v8386 = vunpack.c.l.s4 1983009808
    %v8387 = vunpack.c.0.s8 %v8386
    %v8388 = vlaneseq
    %v8389 = vshrl.u32 %v8388, 7
    %v8390 = vsub.s32 %v8387, %v8389
    %v8391 = vrot.slane %v7312, %v8390
    %v8393 = vunpack.c.l.s4 1983009808
    %v8394 = vunpack.c.0.s8 %v8393
    %v8395 = vlaneseq
    %v8396 = vshrl.u32 %v8395, 7
    %v8397 = vsub.s32 %v8394, %v8396
    %v8398 = vrot.slane %v8384, %v8397
    %v8399 = vcombine.high %v8391, %v8391
    %v8400 = vcombine.high %v8398, %v8398
    %v8401 = vcombine.high %v7313, %v7313
    %v8403 = vunpack.c.l.s4 1983009808
    %v8404 = vunpack.c.0.s8 %v8403
    %v8405 = vlaneseq
    %v8406 = vshrl.u32 %v8405, 7
    %v8407 = vsub.s32 %v8404, %v8406
    %v8408 = vrot.slane %v7313, %v8407
    %v8410 = vunpack.c.l.s4 1983009808
    %v8411 = vunpack.c.0.s8 %v8410
    %v8412 = vlaneseq
    %v8413 = vshrl.u32 %v8412, 7
    %v8414 = vsub.s32 %v8411, %v8413
    %v8415 = vrot.slane %v8401, %v8414
    %v8416 = vcombine.high %v8408, %v8408
    %v8417 = vcombine.high %v8415, %v8415
    %v8418 = vcombine.high %v7314, %v7314
    %v8420 = vunpack.c.l.s4 1983009808
    %v8421 = vunpack.c.0.s8 %v8420
    %v8422 = vlaneseq
    %v8423 = vshrl.u32 %v8422, 7
    %v8424 = vsub.s32 %v8421, %v8423
    %v8425 = vrot.slane %v7314, %v8424
    %v8427 = vunpack.c.l.s4 1983009808
    %v8428 = vunpack.c.0.s8 %v8427
    %v8429 = vlaneseq
    %v8430 = vshrl.u32 %v8429, 7
    %v8431 = vsub.s32 %v8428, %v8430
    %v8432 = vrot.slane %v8418, %v8431
    %v8433 = vcombine.high %v8425, %v8425
    %v8434 = vcombine.high %v8432, %v8432
    %v8435 = vcombine.high %v7315, %v7315
    %v8437 = vunpack.c.l.s4 1983009808
    %v8438 = vunpack.c.0.s8 %v8437
    %v8439 = vlaneseq
    %v8440 = vshrl.u32 %v8439, 7
    %v8441 = vsub.s32 %v8438, %v8440
    %v8442 = vrot.slane %v7315, %v8441
    %v8444 = vunpack.c.l.s4 1983009808
    %v8445 = vunpack.c.0.s8 %v8444
    %v8446 = vlaneseq
    %v8447 = vshrl.u32 %v8446, 7
    %v8448 = vsub.s32 %v8445, %v8447
    %v8449 = vrot.slane %v8435, %v8448
    %v8450 = vcombine.high %v8442, %v8442
    %v8451 = vcombine.high %v8449, %v8449
    %v8452 = vcombine.high %v7316, %v7316
    %v8454 = vunpack.c.l.s4 1983009808
    %v8455 = vunpack.c.0.s8 %v8454
    %v8456 = vlaneseq
    %v8457 = vshrl.u32 %v8456, 7
    %v8458 = vsub.s32 %v8455, %v8457
    %v8459 = vrot.slane %v7316, %v8458
    %v8461 = vunpack.c.l.s4 1983009808
    %v8462 = vunpack.c.0.s8 %v8461
    %v8463 = vlaneseq
    %v8464 = vshrl.u32 %v8463, 7
    %v8465 = vsub.s32 %v8462, %v8464
    %v8466 = vrot.slane %v8452, %v8465
    %v8467 = vcombine.high %v8459, %v8459
    %v8468 = vcombine.high %v8466, %v8466
    %v8725 = vrot.slane %v7388, 7
    %v8726 = vrot.slane %v8725, 2
    %v8727 = vrot.slane %v7396, 7
    %v8728 = vrot.slane %v8727, 2
    %v8729 = vrot.slane %v7395, 7
    %v8730 = vrot.slane %v8729, 2
    %v8731 = vrot.slane %v7397, 7
    %v8732 = vrot.slane %v8731, 2
    %v8733 = vrot.slane %v7405, 7
    %v8734 = vrot.slane %v8733, 2
    %v8735 = vrot.slane %v7413, 7
    %v8736 = vrot.slane %v8735, 2
    %v8737 = vrot.slane %v7412, 7
    %v8738 = vrot.slane %v8737, 2
    %v8739 = vrot.slane %v7414, 7
    %v8740 = vrot.slane %v8739, 2
    %v8741 = vrot.slane %v7422, 7
    %v8742 = vrot.slane %v8741, 2
    %v8743 = vrot.slane %v7430, 7
    %v8744 = vrot.slane %v8743, 2
    %v8745 = vrot.slane %v7429, 7
    %v8746 = vrot.slane %v8745, 2
    %v8747 = vrot.slane %v7431, 7
    %v8748 = vrot.slane %v8747, 2
    %v8749 = vrot.slane %v7439, 7
    %v8750 = vrot.slane %v8749, 2
    %v8751 = vrot.slane %v7447, 7
    %v8752 = vrot.slane %v8751, 2
    %v8753 = vrot.slane %v7446, 7
    %v8754 = vrot.slane %v8753, 2
    %v8755 = vrot.slane %v7448, 7
    %v8756 = vrot.slane %v8755, 2
    %v8757 = vrot.slane %v7456, 7
    %v8758 = vrot.slane %v8757, 2
    %v8759 = vrot.slane %v7464, 7
    %v8760 = vrot.slane %v8759, 2
    %v8761 = vrot.slane %v7463, 7
    %v8762 = vrot.slane %v8761, 2
    %v8763 = vrot.slane %v7465, 7
    %v8764 = vrot.slane %v8763, 2
    %v8765 = vrot.slane %v7473, 7
    %v8766 = vrot.slane %v8765, 2
    %v8767 = vrot.slane %v7481, 7
    %v8768 = vrot.slane %v8767, 2
    %v8769 = vrot.slane %v7480, 7
    %v8770 = vrot.slane %v8769, 2
    %v8771 = vrot.slane %v7482, 7
    %v8772 = vrot.slane %v8771, 2
    %v8773 = vrot.slane %v7490, 7
    %v8774 = vrot.slane %v8773, 2
    %v8775 = vrot.slane %v7498, 7
    %v8776 = vrot.slane %v8775, 2
    %v8777 = vrot.slane %v7497, 7
    %v8778 = vrot.slane %v8777, 2
    %v8779 = vrot.slane %v7499, 7
    %v8780 = vrot.slane %v8779, 2
    %v8781 = vrot.slane %v7507, 7
    %v8782 = vrot.slane %v8781, 2
    %v8783 = vrot.slane %v7515, 7
    %v8784 = vrot.slane %v8783, 2
    %v8785 = vrot.slane %v7514, 7
    %v8786 = vrot.slane %v8785, 2
    %v8787 = vrot.slane %v7516, 7
    %v8788 = vrot.slane %v8787, 2
    %v8789 = vrot.slane %v7524, 7
    %v8790 = vrot.slane %v8789, 2
    %v8791 = vrot.slane %v7532, 7
    %v8792 = vrot.slane %v8791, 2
    %v8793 = vrot.slane %v7531, 7
    %v8794 = vrot.slane %v8793, 2
    %v8795 = vrot.slane %v7533, 7
    %v8796 = vrot.slane %v8795, 2
    %v8797 = vrot.slane %v7541, 7
    %v8798 = vrot.slane %v8797, 2
    %v8799 = vrot.slane %v7549, 7
    %v8800 = vrot.slane %v8799, 2
    %v8801 = vrot.slane %v7548, 7
    %v8802 = vrot.slane %v8801, 2
    %v8803 = vrot.slane %v7550, 7
    %v8804 = vrot.slane %v8803, 2
    %v8805 = vrot.slane %v7558, 7
    %v8806 = vrot.slane %v8805, 2
    %v8807 = vrot.slane %v7566, 7
    %v8808 = vrot.slane %v8807, 2
    %v8809 = vrot.slane %v7565, 7
    %v8810 = vrot.slane %v8809, 2
    %v8811 = vrot.slane %v7567, 7
    %v8812 = vrot.slane %v8811, 2
    %v8813 = vrot.slane %v7575, 7
    %v8814 = vrot.slane %v8813, 2
    %v8815 = vrot.slane %v7583, 7
    %v8816 = vrot.slane %v8815, 2
    %v8817 = vrot.slane %v7582, 7
    %v8818 = vrot.slane %v8817, 2
    %v8819 = vrot.slane %v7584, 7
    %v8820 = vrot.slane %v8819, 2
    %v8821 = vrot.slane %v7592, 7
    %v8822 = vrot.slane %v8821, 2
    %v8823 = vrot.slane %v7600, 7
    %v8824 = vrot.slane %v8823, 2
    %v8825 = vrot.slane %v7599, 7
    %v8826 = vrot.slane %v8825, 2
    %v8827 = vrot.slane %v7601, 7
    %v8828 = vrot.slane %v8827, 2
    %v8829 = vrot.slane %v7609, 7
    %v8830 = vrot.slane %v8829, 2
    %v8831 = vrot.slane %v7617, 7
    %v8832 = vrot.slane %v8831, 2
    %v8833 = vrot.slane %v7616, 7
    %v8834 = vrot.slane %v8833, 2
    %v8835 = vrot.slane %v7618, 7
    %v8836 = vrot.slane %v8835, 2
    %v8837 = vrot.slane %v7626, 7
    %v8838 = vrot.slane %v8837, 2
    %v8839 = vrot.slane %v7634, 7
    %v8840 = vrot.slane %v8839, 2
    %v8841 = vrot.slane %v7633, 7
    %v8842 = vrot.slane %v8841, 2
    %v8843 = vrot.slane %v7635, 7
    %v8844 = vrot.slane %v8843, 2
    %v8845 = vrot.slane %v7643, 7
    %v8846 = vrot.slane %v8845, 2
    %v8847 = vrot.slane %v7651, 7
    %v8848 = vrot.slane %v8847, 2
    %v8849 = vrot.slane %v7650, 7
    %v8850 = vrot.slane %v8849, 2
    %v8851 = vrot.slane %v7652, 7
    %v8852 = vrot.slane %v8851, 2
    %v8853 = vrot.slane %v7660, 7
    %v8854 = vrot.slane %v8853, 2
    %v8855 = vrot.slane %v7668, 7
    %v8856 = vrot.slane %v8855, 2
    %v8857 = vrot.slane %v7667, 7
    %v8858 = vrot.slane %v8857, 2
    %v8859 = vrot.slane %v7669, 7
    %v8860 = vrot.slane %v8859, 2
    %v8861 = vrot.slane %v7677, 7
    %v8862 = vrot.slane %v8861, 2
    %v8863 = vrot.slane %v7685, 7
    %v8864 = vrot.slane %v8863, 2
    %v8865 = vrot.slane %v7684, 7
    %v8866 = vrot.slane %v8865, 2
    %v8867 = vrot.slane %v7686, 7
    %v8868 = vrot.slane %v8867, 2
    %v8869 = vrot.slane %v7694, 7
    %v8870 = vrot.slane %v8869, 2
    %v8871 = vrot.slane %v7702, 7
    %v8872 = vrot.slane %v8871, 2
    %v8873 = vrot.slane %v7701, 7
    %v8874 = vrot.slane %v8873, 2
    %v8875 = vrot.slane %v7703, 7
    %v8876 = vrot.slane %v8875, 2
    %v8877 = vrot.slane %v7711, 7
    %v8878 = vrot.slane %v8877, 2
    %v8879 = vrot.slane %v7719, 7
    %v8880 = vrot.slane %v8879, 2
    %v8881 = vrot.slane %v7718, 7
    %v8882 = vrot.slane %v8881, 2
    %v8883 = vrot.slane %v7720, 7
    %v8884 = vrot.slane %v8883, 2
    %v8885 = vrot.slane %v7728, 7
    %v8886 = vrot.slane %v8885, 2
    %v8887 = vrot.slane %v7736, 7
    %v8888 = vrot.slane %v8887, 2
    %v8889 = vrot.slane %v7735, 7
    %v8890 = vrot.slane %v8889, 2
    %v8891 = vrot.slane %v7737, 7
    %v8892 = vrot.slane %v8891, 2
    %v8893 = vrot.slane %v7745, 7
    %v8894 = vrot.slane %v8893, 2
    %v8895 = vrot.slane %v7753, 7
    %v8896 = vrot.slane %v8895, 2
    %v8897 = vrot.slane %v7752, 7
    %v8898 = vrot.slane %v8897, 2
    %v8899 = vrot.slane %v7754, 7
    %v8900 = vrot.slane %v8899, 2
    %v8901 = vrot.slane %v7762, 7
    %v8902 = vrot.slane %v8901, 2
    %v8903 = vrot.slane %v7770, 7
    %v8904 = vrot.slane %v8903, 2
    %v8905 = vrot.slane %v7769, 7
    %v8906 = vrot.slane %v8905, 2
    %v8907 = vrot.slane %v7771, 7
    %v8908 = vrot.slane %v8907, 2
    %v8909 = vrot.slane %v7779, 7
    %v8910 = vrot.slane %v8909, 2
    %v8911 = vrot.slane %v7787, 7
    %v8912 = vrot.slane %v8911, 2
    %v8913 = vrot.slane %v7786, 7
    %v8914 = vrot.slane %v8913, 2
    %v8915 = vrot.slane %v7788, 7
    %v8916 = vrot.slane %v8915, 2
    %v8917 = vrot.slane %v7796, 7
    %v8918 = vrot.slane %v8917, 2
    %v8919 = vrot.slane %v7804, 7
    %v8920 = vrot.slane %v8919, 2
    %v8921 = vrot.slane %v7803, 7
    %v8922 = vrot.slane %v8921, 2
    %v8923 = vrot.slane %v7805, 7
    %v8924 = vrot.slane %v8923, 2
    %v8925 = vrot.slane %v7813, 7
    %v8926 = vrot.slane %v8925, 2
    %v8927 = vrot.slane %v7821, 7
    %v8928 = vrot.slane %v8927, 2
    %v8929 = vrot.slane %v7820, 7
    %v8930 = vrot.slane %v8929, 2
    %v8931 = vrot.slane %v7822, 7
    %v8932 = vrot.slane %v8931, 2
    %v8933 = vrot.slane %v7830, 7
    %v8934 = vrot.slane %v8933, 2
    %v8935 = vrot.slane %v7838, 7
    %v8936 = vrot.slane %v8935, 2
    %v8937 = vrot.slane %v7837, 7
    %v8938 = vrot.slane %v8937, 2
    %v8939 = vrot.slane %v7839, 7
    %v8940 = vrot.slane %v8939, 2
    %v8941 = vrot.slane %v7847, 7
    %v8942 = vrot.slane %v8941, 2
    %v8943 = vrot.slane %v7855, 7
    %v8944 = vrot.slane %v8943, 2
    %v8945 = vrot.slane %v7854, 7
    %v8946 = vrot.slane %v8945, 2
    %v8947 = vrot.slane %v7856, 7
    %v8948 = vrot.slane %v8947, 2
    %v8949 = vrot.slane %v7864, 7
    %v8950 = vrot.slane %v8949, 2
    %v8951 = vrot.slane %v7872, 7
    %v8952 = vrot.slane %v8951, 2
    %v8953 = vrot.slane %v7871, 7
    %v8954 = vrot.slane %v8953, 2
    %v8955 = vrot.slane %v7873, 7
    %v8956 = vrot.slane %v8955, 2
    %v8957 = vrot.slane %v7881, 7
    %v8958 = vrot.slane %v8957, 2
    %v8959 = vrot.slane %v7889, 7
    %v8960 = vrot.slane %v8959, 2
    %v8961 = vrot.slane %v7888, 7
    %v8962 = vrot.slane %v8961, 2
    %v8963 = vrot.slane %v7890, 7
    %v8964 = vrot.slane %v8963, 2
    %v8965 = vrot.slane %v7898, 7
    %v8966 = vrot.slane %v8965, 2
    %v8967 = vrot.slane %v7906, 7
    %v8968 = vrot.slane %v8967, 2
    %v8969 = vrot.slane %v7905, 7
    %v8970 = vrot.slane %v8969, 2
    %v8971 = vrot.slane %v7907, 7
    %v8972 = vrot.slane %v8971, 2
    %v8973 = vrot.slane %v7915, 7
    %v8974 = vrot.slane %v8973, 2
    %v8975 = vrot.slane %v7923, 7
    %v8976 = vrot.slane %v8975, 2
    %v8977 = vrot.slane %v7922, 7
    %v8978 = vrot.slane %v8977, 2
    %v8979 = vrot.slane %v7924, 7
    %v8980 = vrot.slane %v8979, 2
    %v8981 = vrot.slane %v7932, 7
    %v8982 = vrot.slane %v8981, 2
    %v8983 = vrot.slane %v7940, 7
    %v8984 = vrot.slane %v8983, 2
    %v8985 = vrot.slane %v7939, 7
    %v8986 = vrot.slane %v8985, 2
    %v8987 = vrot.slane %v7941, 7
    %v8988 = vrot.slane %v8987, 2
    %v8989 = vrot.slane %v7949, 7
    %v8990 = vrot.slane %v8989, 2
    %v8991 = vrot.slane %v7957, 7
    %v8992 = vrot.slane %v8991, 2
    %v8993 = vrot.slane %v7956, 7
    %v8994 = vrot.slane %v8993, 2
    %v8995 = vrot.slane %v7958, 7
    %v8996 = vrot.slane %v8995, 2
    %v8997 = vrot.slane %v7966, 7
    %v8998 = vrot.slane %v8997, 2
    %v8999 = vrot.slane %v7974, 7
    %v9000 = vrot.slane %v8999, 2
    %v9001 = vrot.slane %v7973, 7
    %v9002 = vrot.slane %v9001, 2
    %v9003 = vrot.slane %v7975, 7
    %v9004 = vrot.slane %v9003, 2
    %v9005 = vrot.slane %v7983, 7
    %v9006 = vrot.slane %v9005, 2
    %v9007 = vrot.slane %v7991, 7
    %v9008 = vrot.slane %v9007, 2
    %v9009 = vrot.slane %v7990, 7
    %v9010 = vrot.slane %v9009, 2
    %v9011 = vrot.slane %v7992, 7
    %v9012 = vrot.slane %v9011, 2
    %v9013 = vrot.slane %v8000, 7
    %v9014 = vrot.slane %v9013, 2
    %v9015 = vrot.slane %v8008, 7
    %v9016 = vrot.slane %v9015, 2
    %v9017 = vrot.slane %v8007, 7
    %v9018 = vrot.slane %v9017, 2
    %v9019 = vrot.slane %v8009, 7
    %v9020 = vrot.slane %v9019, 2
    %v9021 = vrot.slane %v8017, 7
    %v9022 = vrot.slane %v9021, 2
    %v9023 = vrot.slane %v8025, 7
    %v9024 = vrot.slane %v9023, 2
    %v9025 = vrot.slane %v8024, 7
    %v9026 = vrot.slane %v9025, 2
    %v9027 = vrot.slane %v8026, 7
    %v9028 = vrot.slane %v9027, 2
    %v9029 = vrot.slane %v8034, 7
    %v9030 = vrot.slane %v9029, 2
    %v9031 = vrot.slane %v8042, 7
    %v9032 = vrot.slane %v9031, 2
    %v9033 = vrot.slane %v8041, 7
    %v9034 = vrot.slane %v9033, 2
    %v9035 = vrot.slane %v8043, 7
    %v9036 = vrot.slane %v9035, 2
    %v9037 = vrot.slane %v8051, 7
    %v9038 = vrot.slane %v9037, 2
    %v9039 = vrot.slane %v8059, 7
    %v9040 = vrot.slane %v9039, 2
    %v9041 = vrot.slane %v8058, 7
    %v9042 = vrot.slane %v9041, 2
    %v9043 = vrot.slane %v8060, 7
    %v9044 = vrot.slane %v9043, 2
    %v9045 = vrot.slane %v8068, 7
    %v9046 = vrot.slane %v9045, 2
    %v9047 = vrot.slane %v8076, 7
    %v9048 = vrot.slane %v9047, 2
    %v9049 = vrot.slane %v8075, 7
    %v9050 = vrot.slane %v9049, 2
    %v9051 = vrot.slane %v8077, 7
    %v9052 = vrot.slane %v9051, 2
    %v9053 = vrot.slane %v8085, 7
    %v9054 = vrot.slane %v9053, 2
    %v9055 = vrot.slane %v8093, 7
    %v9056 = vrot.slane %v9055, 2
    %v9057 = vrot.slane %v8092, 7
    %v9058 = vrot.slane %v9057, 2
    %v9059 = vrot.slane %v8094, 7
    %v9060 = vrot.slane %v9059, 2
    %v9061 = vrot.slane %v8102, 7
    %v9062 = vrot.slane %v9061, 2
    %v9063 = vrot.slane %v8110, 7
    %v9064 = vrot.slane %v9063, 2
    %v9065 = vrot.slane %v8109, 7
    %v9066 = vrot.slane %v9065, 2
    %v9067 = vrot.slane %v8111, 7
    %v9068 = vrot.slane %v9067, 2
    %v9069 = vrot.slane %v8119, 7
    %v9070 = vrot.slane %v9069, 2
    %v9071 = vrot.slane %v8127, 7
    %v9072 = vrot.slane %v9071, 2
    %v9073 = vrot.slane %v8126, 7
    %v9074 = vrot.slane %v9073, 2
    %v9075 = vrot.slane %v8128, 7
    %v9076 = vrot.slane %v9075, 2
    %v9077 = vrot.slane %v8136, 7
    %v9078 = vrot.slane %v9077, 2
    %v9079 = vrot.slane %v8144, 7
    %v9080 = vrot.slane %v9079, 2
    %v9081 = vrot.slane %v8143, 7
    %v9082 = vrot.slane %v9081, 2
    %v9083 = vrot.slane %v8145, 7
    %v9084 = vrot.slane %v9083, 2
    %v9085 = vrot.slane %v8153, 7
    %v9086 = vrot.slane %v9085, 2
    %v9087 = vrot.slane %v8161, 7
    %v9088 = vrot.slane %v9087, 2
    %v9089 = vrot.slane %v8160, 7
    %v9090 = vrot.slane %v9089, 2
    %v9091 = vrot.slane %v8162, 7
    %v9092 = vrot.slane %v9091, 2
    %v9093 = vrot.slane %v8170, 7
    %v9094 = vrot.slane %v9093, 2
    %v9095 = vrot.slane %v8178, 7
    %v9096 = vrot.slane %v9095, 2
    %v9097 = vrot.slane %v8177, 7
    %v9098 = vrot.slane %v9097, 2
    %v9099 = vrot.slane %v8179, 7
    %v9100 = vrot.slane %v9099, 2
    %v9101 = vrot.slane %v8187, 7
    %v9102 = vrot.slane %v9101, 2
    %v9103 = vrot.slane %v8195, 7
    %v9104 = vrot.slane %v9103, 2
    %v9105 = vrot.slane %v8194, 7
    %v9106 = vrot.slane %v9105, 2
    %v9107 = vrot.slane %v8196, 7
    %v9108 = vrot.slane %v9107, 2
    %v9109 = vrot.slane %v8204, 7
    %v9110 = vrot.slane %v9109, 2
    %v9111 = vrot.slane %v8212, 7
    %v9112 = vrot.slane %v9111, 2
    %v9113 = vrot.slane %v8211, 7
    %v9114 = vrot.slane %v9113, 2
    %v9115 = vrot.slane %v8213, 7
    %v9116 = vrot.slane %v9115, 2
    %v9117 = vrot.slane %v8221, 7
    %v9118 = vrot.slane %v9117, 2
    %v9119 = vrot.slane %v8229, 7
    %v9120 = vrot.slane %v9119, 2
    %v9121 = vrot.slane %v8228, 7
    %v9122 = vrot.slane %v9121, 2
    %v9123 = vrot.slane %v8230, 7
    %v9124 = vrot.slane %v9123, 2
    %v9125 = vrot.slane %v8238, 7
    %v9126 = vrot.slane %v9125, 2
    %v9127 = vrot.slane %v8246, 7
    %v9128 = vrot.slane %v9127, 2
    %v9129 = vrot.slane %v8245, 7
    %v9130 = vrot.slane %v9129, 2
    %v9131 = vrot.slane %v8247, 7
    %v9132 = vrot.slane %v9131, 2
    %v9133 = vrot.slane %v8255, 7
    %v9134 = vrot.slane %v9133, 2
    %v9135 = vrot.slane %v8263, 7
    %v9136 = vrot.slane %v9135, 2
    %v9137 = vrot.slane %v8262, 7
    %v9138 = vrot.slane %v9137, 2
    %v9139 = vrot.slane %v8264, 7
    %v9140 = vrot.slane %v9139, 2
    %v9141 = vrot.slane %v8272, 7
    %v9142 = vrot.slane %v9141, 2
    %v9143 = vrot.slane %v8280, 7
    %v9144 = vrot.slane %v9143, 2
    %v9145 = vrot.slane %v8279, 7
    %v9146 = vrot.slane %v9145, 2
    %v9147 = vrot.slane %v8281, 7
    %v9148 = vrot.slane %v9147, 2
    %v9149 = vrot.slane %v8289, 7
    %v9150 = vrot.slane %v9149, 2
    %v9151 = vrot.slane %v8297, 7
    %v9152 = vrot.slane %v9151, 2
    %v9153 = vrot.slane %v8296, 7
    %v9154 = vrot.slane %v9153, 2
    %v9155 = vrot.slane %v8298, 7
    %v9156 = vrot.slane %v9155, 2
    %v9157 = vrot.slane %v8306, 7
    %v9158 = vrot.slane %v9157, 2
    %v9159 = vrot.slane %v8314, 7
    %v9160 = vrot.slane %v9159, 2
    %v9161 = vrot.slane %v8313, 7
    %v9162 = vrot.slane %v9161, 2
    %v9163 = vrot.slane %v8315, 7
    %v9164 = vrot.slane %v9163, 2
    %v9165 = vrot.slane %v8323, 7
    %v9166 = vrot.slane %v9165, 2
    %v9167 = vrot.slane %v8331, 7
    %v9168 = vrot.slane %v9167, 2
    %v9169 = vrot.slane %v8330, 7
    %v9170 = vrot.slane %v9169, 2
    %v9171 = vrot.slane %v8332, 7
    %v9172 = vrot.slane %v9171, 2
    %v9173 = vrot.slane %v8340, 7
    %v9174 = vrot.slane %v9173, 2
    %v9175 = vrot.slane %v8348, 7
    %v9176 = vrot.slane %v9175, 2
    %v9177 = vrot.slane %v8347, 7
    %v9178 = vrot.slane %v9177, 2
    %v9179 = vrot.slane %v8349, 7
    %v9180 = vrot.slane %v9179, 2
    %v9181 = vrot.slane %v8357, 7
    %v9182 = vrot.slane %v9181, 2
    %v9183 = vrot.slane %v8365, 7
    %v9184 = vrot.slane %v9183, 2
    %v9185 = vrot.slane %v8364, 7
    %v9186 = vrot.slane %v9185, 2
    %v9187 = vrot.slane %v8366, 7
    %v9188 = vrot.slane %v9187, 2
    %v9189 = vrot.slane %v8374, 7
    %v9190 = vrot.slane %v9189, 2
    %v9191 = vrot.slane %v8382, 7
    %v9192 = vrot.slane %v9191, 2
    %v9193 = vrot.slane %v8381, 7
    %v9194 = vrot.slane %v9193, 2
    %v9195 = vrot.slane %v8383, 7
    %v9196 = vrot.slane %v9195, 2
    %v9197 = vrot.slane %v8391, 7
    %v9198 = vrot.slane %v9197, 2
    %v9199 = vrot.slane %v8399, 7
    %v9200 = vrot.slane %v9199, 2
    %v9201 = vrot.slane %v8398, 7
    %v9202 = vrot.slane %v9201, 2
    %v9203 = vrot.slane %v8400, 7
    %v9204 = vrot.slane %v9203, 2
    %v9205 = vrot.slane %v8408, 7
    %v9206 = vrot.slane %v9205, 2
    %v9207 = vrot.slane %v8416, 7
    %v9208 = vrot.slane %v9207, 2
    %v9209 = vrot.slane %v8415, 7
    %v9210 = vrot.slane %v9209, 2
    %v9211 = vrot.slane %v8417, 7
    %v9212 = vrot.slane %v9211, 2
    %v9213 = vrot.slane %v8425, 7
    %v9214 = vrot.slane %v9213, 2
    %v9215 = vrot.slane %v8433, 7
    %v9216 = vrot.slane %v9215, 2
    %v9217 = vrot.slane %v8432, 7
    %v9218 = vrot.slane %v9217, 2
    %v9219 = vrot.slane %v8434, 7
    %v9220 = vrot.slane %v9219, 2
    %v9221 = vrot.slane %v8442, 7
    %v9222 = vrot.slane %v9221, 2
    %v9223 = vrot.slane %v8450, 7
    %v9224 = vrot.slane %v9223, 2
    %v9225 = vrot.slane %v8449, 7
    %v9226 = vrot.slane %v9225, 2
    %v9227 = vrot.slane %v8451, 7
    %v9228 = vrot.slane %v9227, 2
    %v9229 = vrot.slane %v8459, 7
    %v9230 = vrot.slane %v9229, 2
    %v9231 = vrot.slane %v8467, 7
    %v9232 = vrot.slane %v9231, 2
    %v9233 = vrot.slane %v8466, 7
    %v9234 = vrot.slane %v9233, 2
    %v9235 = vrot.slane %v8468, 7
    %v9236 = vrot.slane %v9235, 2
    %v9493 = vmax.f32 %v7388, %v8726
    %v9494 = vmax.f32 %v7396, %v8728
    %v9495 = vmax.f32 %v7395, %v8730
    %v9496 = vmax.f32 %v7397, %v8732
    %v9497 = vmax.f32 %v7405, %v8734
    %v9498 = vmax.f32 %v7413, %v8736
    %v9499 = vmax.f32 %v7412, %v8738
    %v9500 = vmax.f32 %v7414, %v8740
    %v9501 = vmax.f32 %v7422, %v8742
    %v9502 = vmax.f32 %v7430, %v8744
    %v9503 = vmax.f32 %v7429, %v8746
    %v9504 = vmax.f32 %v7431, %v8748
    %v9505 = vmax.f32 %v7439, %v8750
    %v9506 = vmax.f32 %v7447, %v8752
    %v9507 = vmax.f32 %v7446, %v8754
    %v9508 = vmax.f32 %v7448, %v8756
    %v9509 = vmax.f32 %v7456, %v8758
    %v9510 = vmax.f32 %v7464, %v8760
    %v9511 = vmax.f32 %v7463, %v8762
    %v9512 = vmax.f32 %v7465, %v8764
    %v9513 = vmax.f32 %v7473, %v8766
    %v9514 = vmax.f32 %v7481, %v8768
    %v9515 = vmax.f32 %v7480, %v8770
    %v9516 = vmax.f32 %v7482, %v8772
    %v9517 = vmax.f32 %v7490, %v8774
    %v9518 = vmax.f32 %v7498, %v8776
    %v9519 = vmax.f32 %v7497, %v8778
    %v9520 = vmax.f32 %v7499, %v8780
    %v9521 = vmax.f32 %v7507, %v8782
    %v9522 = vmax.f32 %v7515, %v8784
    %v9523 = vmax.f32 %v7514, %v8786
    %v9524 = vmax.f32 %v7516, %v8788
    %v9525 = vmax.f32 %v7524, %v8790
    %v9526 = vmax.f32 %v7532, %v8792
    %v9527 = vmax.f32 %v7531, %v8794
    %v9528 = vmax.f32 %v7533, %v8796
    %v9529 = vmax.f32 %v7541, %v8798
    %v9530 = vmax.f32 %v7549, %v8800
    %v9531 = vmax.f32 %v7548, %v8802
    %v9532 = vmax.f32 %v7550, %v8804
    %v9533 = vmax.f32 %v7558, %v8806
    %v9534 = vmax.f32 %v7566, %v8808
    %v9535 = vmax.f32 %v7565, %v8810
    %v9536 = vmax.f32 %v7567, %v8812
    %v9537 = vmax.f32 %v7575, %v8814
    %v9538 = vmax.f32 %v7583, %v8816
    %v9539 = vmax.f32 %v7582, %v8818
    %v9540 = vmax.f32 %v7584, %v8820
    %v9541 = vmax.f32 %v7592, %v8822
    %v9542 = vmax.f32 %v7600, %v8824
    %v9543 = vmax.f32 %v7599, %v8826
    %v9544 = vmax.f32 %v7601, %v8828
    %v9545 = vmax.f32 %v7609, %v8830
    %v9546 = vmax.f32 %v7617, %v8832
    %v9547 = vmax.f32 %v7616, %v8834
    %v9548 = vmax.f32 %v7618, %v8836
    %v9549 = vmax.f32 %v7626, %v8838
    %v9550 = vmax.f32 %v7634, %v8840
    %v9551 = vmax.f32 %v7633, %v8842
    %v9552 = vmax.f32 %v7635, %v8844
    %v9553 = vmax.f32 %v7643, %v8846
    %v9554 = vmax.f32 %v7651, %v8848
    %v9555 = vmax.f32 %v7650, %v8850
    %v9556 = vmax.f32 %v7652, %v8852
    %v9557 = vmax.f32 %v7660, %v8854
    %v9558 = vmax.f32 %v7668, %v8856
    %v9559 = vmax.f32 %v7667, %v8858
    %v9560 = vmax.f32 %v7669, %v8860
    %v9561 = vmax.f32 %v7677, %v8862
    %v9562 = vmax.f32 %v7685, %v8864
    %v9563 = vmax.f32 %v7684, %v8866
    %v9564 = vmax.f32 %v7686, %v8868
    %v9565 = vmax.f32 %v7694, %v8870
    %v9566 = vmax.f32 %v7702, %v8872
    %v9567 = vmax.f32 %v7701, %v8874
    %v9568 = vmax.f32 %v7703, %v8876
    %v9569 = vmax.f32 %v7711, %v8878
    %v9570 = vmax.f32 %v7719, %v8880
    %v9571 = vmax.f32 %v7718, %v8882
    %v9572 = vmax.f32 %v7720, %v8884
    %v9573 = vmax.f32 %v7728, %v8886
    %v9574 = vmax.f32 %v7736, %v8888
    %v9575 = vmax.f32 %v7735, %v8890
    %v9576 = vmax.f32 %v7737, %v8892
    %v9577 = vmax.f32 %v7745, %v8894
    %v9578 = vmax.f32 %v7753, %v8896
    %v9579 = vmax.f32 %v7752, %v8898
    %v9580 = vmax.f32 %v7754, %v8900
    %v9581 = vmax.f32 %v7762, %v8902
    %v9582 = vmax.f32 %v7770, %v8904
    %v9583 = vmax.f32 %v7769, %v8906
    %v9584 = vmax.f32 %v7771, %v8908
    %v9585 = vmax.f32 %v7779, %v8910
    %v9586 = vmax.f32 %v7787, %v8912
    %v9587 = vmax.f32 %v7786, %v8914
    %v9588 = vmax.f32 %v7788, %v8916
    %v9589 = vmax.f32 %v7796, %v8918
    %v9590 = vmax.f32 %v7804, %v8920
    %v9591 = vmax.f32 %v7803, %v8922
    %v9592 = vmax.f32 %v7805, %v8924
    %v9593 = vmax.f32 %v7813, %v8926
    %v9594 = vmax.f32 %v7821, %v8928
    %v9595 = vmax.f32 %v7820, %v8930
    %v9596 = vmax.f32 %v7822, %v8932
    %v9597 = vmax.f32 %v7830, %v8934
    %v9598 = vmax.f32 %v7838, %v8936
    %v9599 = vmax.f32 %v7837, %v8938
    %v9600 = vmax.f32 %v7839, %v8940
    %v9601 = vmax.f32 %v7847, %v8942
    %v9602 = vmax.f32 %v7855, %v8944
    %v9603 = vmax.f32 %v7854, %v8946
    %v9604 = vmax.f32 %v7856, %v8948
    %v9605 = vmax.f32 %v7864, %v8950
    %v9606 = vmax.f32 %v7872, %v8952
    %v9607 = vmax.f32 %v7871, %v8954
    %v9608 = vmax.f32 %v7873, %v8956
    %v9609 = vmax.f32 %v7881, %v8958
    %v9610 = vmax.f32 %v7889, %v8960
    %v9611 = vmax.f32 %v7888, %v8962
    %v9612 = vmax.f32 %v7890, %v8964
    %v9613 = vmax.f32 %v7898, %v8966
    %v9614 = vmax.f32 %v7906, %v8968
    %v9615 = vmax.f32 %v7905, %v8970
    %v9616 = vmax.f32 %v7907, %v8972
    %v9617 = vmax.f32 %v7915, %v8974
    %v9618 = vmax.f32 %v7923, %v8976
    %v9619 = vmax.f32 %v7922, %v8978
    %v9620 = vmax.f32 %v7924, %v8980
    %v9621 = vmax.f32 %v7932, %v8982
    %v9622 = vmax.f32 %v7940, %v8984
    %v9623 = vmax.f32 %v7939, %v8986
    %v9624 = vmax.f32 %v7941, %v8988
    %v9625 = vmax.f32 %v7949, %v8990
    %v9626 = vmax.f32 %v7957, %v8992
    %v9627 = vmax.f32 %v7956, %v8994
    %v9628 = vmax.f32 %v7958, %v8996
    %v9629 = vmax.f32 %v7966, %v8998
    %v9630 = vmax.f32 %v7974, %v9000
    %v9631 = vmax.f32 %v7973, %v9002
    %v9632 = vmax.f32 %v7975, %v9004
    %v9633 = vmax.f32 %v7983, %v9006
    %v9634 = vmax.f32 %v7991, %v9008
    %v9635 = vmax.f32 %v7990, %v9010
    %v9636 = vmax.f32 %v7992, %v9012
    %v9637 = vmax.f32 %v8000, %v9014
    %v9638 = vmax.f32 %v8008, %v9016
    %v9639 = vmax.f32 %v8007, %v9018
    %v9640 = vmax.f32 %v8009, %v9020
    %v9641 = vmax.f32 %v8017, %v9022
    %v9642 = vmax.f32 %v8025, %v9024
    %v9643 = vmax.f32 %v8024, %v9026
    %v9644 = vmax.f32 %v8026, %v9028
    %v9645 = vmax.f32 %v8034, %v9030
    %v9646 = vmax.f32 %v8042, %v9032
    %v9647 = vmax.f32 %v8041, %v9034
    %v9648 = vmax.f32 %v8043, %v9036
    %v9649 = vmax.f32 %v8051, %v9038
    %v9650 = vmax.f32 %v8059, %v9040
    %v9651 = vmax.f32 %v8058, %v9042
    %v9652 = vmax.f32 %v8060, %v9044
    %v9653 = vmax.f32 %v8068, %v9046
    %v9654 = vmax.f32 %v8076, %v9048
    %v9655 = vmax.f32 %v8075, %v9050
    %v9656 = vmax.f32 %v8077, %v9052
    %v9657 = vmax.f32 %v8085, %v9054
    %v9658 = vmax.f32 %v8093, %v9056
    %v9659 = vmax.f32 %v8092, %v9058
    %v9660 = vmax.f32 %v8094, %v9060
    %v9661 = vmax.f32 %v8102, %v9062
    %v9662 = vmax.f32 %v8110, %v9064
    %v9663 = vmax.f32 %v8109, %v9066
    %v9664 = vmax.f32 %v8111, %v9068
    %v9665 = vmax.f32 %v8119, %v9070
    %v9666 = vmax.f32 %v8127, %v9072
    %v9667 = vmax.f32 %v8126, %v9074
    %v9668 = vmax.f32 %v8128, %v9076
    %v9669 = vmax.f32 %v8136, %v9078
    %v9670 = vmax.f32 %v8144, %v9080
    %v9671 = vmax.f32 %v8143, %v9082
    %v9672 = vmax.f32 %v8145, %v9084
    %v9673 = vmax.f32 %v8153, %v9086
    %v9674 = vmax.f32 %v8161, %v9088
    %v9675 = vmax.f32 %v8160, %v9090
    %v9676 = vmax.f32 %v8162, %v9092
    %v9677 = vmax.f32 %v8170, %v9094
    %v9678 = vmax.f32 %v8178, %v9096
    %v9679 = vmax.f32 %v8177, %v9098
    %v9680 = vmax.f32 %v8179, %v9100
    %v9681 = vmax.f32 %v8187, %v9102
    %v9682 = vmax.f32 %v8195, %v9104
    %v9683 = vmax.f32 %v8194, %v9106
    %v9684 = vmax.f32 %v8196, %v9108
    %v9685 = vmax.f32 %v8204, %v9110
    %v9686 = vmax.f32 %v8212, %v9112
    %v9687 = vmax.f32 %v8211, %v9114
    %v9688 = vmax.f32 %v8213, %v9116
    %v9689 = vmax.f32 %v8221, %v9118
    %v9690 = vmax.f32 %v8229, %v9120
    %v9691 = vmax.f32 %v8228, %v9122
    %v9692 = vmax.f32 %v8230, %v9124
    %v9693 = vmax.f32 %v8238, %v9126
    %v9694 = vmax.f32 %v8246, %v9128
    %v9695 = vmax.f32 %v8245, %v9130
    %v9696 = vmax.f32 %v8247, %v9132
    %v9697 = vmax.f32 %v8255, %v9134
    %v9698 = vmax.f32 %v8263, %v9136
    %v9699 = vmax.f32 %v8262, %v9138
    %v9700 = vmax.f32 %v8264, %v9140
    %v9701 = vmax.f32 %v8272, %v9142
    %v9702 = vmax.f32 %v8280, %v9144
    %v9703 = vmax.f32 %v8279, %v9146
    %v9704 = vmax.f32 %v8281, %v9148
    %v9705 = vmax.f32 %v8289, %v9150
    %v9706 = vmax.f32 %v8297, %v9152
    %v9707 = vmax.f32 %v8296, %v9154
    %v9708 = vmax.f32 %v8298, %v9156
    %v9709 = vmax.f32 %v8306, %v9158
    %v9710 = vmax.f32 %v8314, %v9160
    %v9711 = vmax.f32 %v8313, %v9162
    %v9712 = vmax.f32 %v8315, %v9164
    %v9713 = vmax.f32 %v8323, %v9166
    %v9714 = vmax.f32 %v8331, %v9168
    %v9715 = vmax.f32 %v8330, %v9170
    %v9716 = vmax.f32 %v8332, %v9172
    %v9717 = vmax.f32 %v8340, %v9174
    %v9718 = vmax.f32 %v8348, %v9176
    %v9719 = vmax.f32 %v8347, %v9178
    %v9720 = vmax.f32 %v8349, %v9180
    %v9721 = vmax.f32 %v8357, %v9182
    %v9722 = vmax.f32 %v8365, %v9184
    %v9723 = vmax.f32 %v8364, %v9186
    %v9724 = vmax.f32 %v8366, %v9188
    %v9725 = vmax.f32 %v8374, %v9190
    %v9726 = vmax.f32 %v8382, %v9192
    %v9727 = vmax.f32 %v8381, %v9194
    %v9728 = vmax.f32 %v8383, %v9196
    %v9729 = vmax.f32 %v8391, %v9198
    %v9730 = vmax.f32 %v8399, %v9200
    %v9731 = vmax.f32 %v8398, %v9202
    %v9732 = vmax.f32 %v8400, %v9204
    %v9733 = vmax.f32 %v8408, %v9206
    %v9734 = vmax.f32 %v8416, %v9208
    %v9735 = vmax.f32 %v8415, %v9210
    %v9736 = vmax.f32 %v8417, %v9212
    %v9737 = vmax.f32 %v8425, %v9214
    %v9738 = vmax.f32 %v8433, %v9216
    %v9739 = vmax.f32 %v8432, %v9218
    %v9740 = vmax.f32 %v8434, %v9220
    %v9741 = vmax.f32 %v8442, %v9222
    %v9742 = vmax.f32 %v8450, %v9224
    %v9743 = vmax.f32 %v8449, %v9226
    %v9744 = vmax.f32 %v8451, %v9228
    %v9745 = vmax.f32 %v8459, %v9230
    %v9746 = vmax.f32 %v8467, %v9232
    %v9747 = vmax.f32 %v8466, %v9234
    %v9748 = vmax.f32 %v8468, %v9236
    %v9749 = vmax.f32 %v9493, %v9501
    %v9750 = vmax.f32 %v9494, %v9502
    %v9751 = vmax.f32 %v9495, %v9503
    %v9752 = vmax.f32 %v9496, %v9504
    %v9753 = vmax.f32 %v9497, %v9505
    %v9754 = vmax.f32 %v9498, %v9506
    %v9755 = vmax.f32 %v9499, %v9507
    %v9756 = vmax.f32 %v9500, %v9508
    %v9757 = vmax.f32 %v9509, %v9517
    %v9758 = vmax.f32 %v9510, %v9518
    %v9759 = vmax.f32 %v9511, %v9519
    %v9760 = vmax.f32 %v9512, %v9520
    %v9761 = vmax.f32 %v9513, %v9521
    %v9762 = vmax.f32 %v9514, %v9522
    %v9763 = vmax.f32 %v9515, %v9523
    %v9764 = vmax.f32 %v9516, %v9524
    %v9765 = vmax.f32 %v9525, %v9533
    %v9766 = vmax.f32 %v9526, %v9534
    %v9767 = vmax.f32 %v9527, %v9535
    %v9768 = vmax.f32 %v9528, %v9536
    %v9769 = vmax.f32 %v9529, %v9537
    %v9770 = vmax.f32 %v9530, %v9538
    %v9771 = vmax.f32 %v9531, %v9539
    %v9772 = vmax.f32 %v9532, %v9540
    %v9773 = vmax.f32 %v9541, %v9549
    %v9774 = vmax.f32 %v9542, %v9550
    %v9775 = vmax.f32 %v9543, %v9551
    %v9776 = vmax.f32 %v9544, %v9552
    %v9777 = vmax.f32 %v9545, %v9553
    %v9778 = vmax.f32 %v9546, %v9554
    %v9779 = vmax.f32 %v9547, %v9555
    %v9780 = vmax.f32 %v9548, %v9556
    %v9781 = vmax.f32 %v9557, %v9565
    %v9782 = vmax.f32 %v9558, %v9566
    %v9783 = vmax.f32 %v9559, %v9567
    %v9784 = vmax.f32 %v9560, %v9568
    %v9785 = vmax.f32 %v9561, %v9569
    %v9786 = vmax.f32 %v9562, %v9570
    %v9787 = vmax.f32 %v9563, %v9571
    %v9788 = vmax.f32 %v9564, %v9572
    %v9789 = vmax.f32 %v9573, %v9581
    %v9790 = vmax.f32 %v9574, %v9582
    %v9791 = vmax.f32 %v9575, %v9583
    %v9792 = vmax.f32 %v9576, %v9584
    %v9793 = vmax.f32 %v9577, %v9585
    %v9794 = vmax.f32 %v9578, %v9586
    %v9795 = vmax.f32 %v9579, %v9587
    %v9796 = vmax.f32 %v9580, %v9588
    %v9797 = vmax.f32 %v9589, %v9597
    %v9798 = vmax.f32 %v9590, %v9598
    %v9799 = vmax.f32 %v9591, %v9599
    %v9800 = vmax.f32 %v9592, %v9600
    %v9801 = vmax.f32 %v9593, %v9601
    %v9802 = vmax.f32 %v9594, %v9602
    %v9803 = vmax.f32 %v9595, %v9603
    %v9804 = vmax.f32 %v9596, %v9604
    %v9805 = vmax.f32 %v9605, %v9613
    %v9806 = vmax.f32 %v9606, %v9614
    %v9807 = vmax.f32 %v9607, %v9615
    %v9808 = vmax.f32 %v9608, %v9616
    %v9809 = vmax.f32 %v9609, %v9617
    %v9810 = vmax.f32 %v9610, %v9618
    %v9811 = vmax.f32 %v9611, %v9619
    %v9812 = vmax.f32 %v9612, %v9620
    %v9813 = vmax.f32 %v9621, %v9629
    %v9814 = vmax.f32 %v9622, %v9630
    %v9815 = vmax.f32 %v9623, %v9631
    %v9816 = vmax.f32 %v9624, %v9632
    %v9817 = vmax.f32 %v9625, %v9633
    %v9818 = vmax.f32 %v9626, %v9634
    %v9819 = vmax.f32 %v9627, %v9635
    %v9820 = vmax.f32 %v9628, %v9636
    %v9821 = vmax.f32 %v9637, %v9645
    %v9822 = vmax.f32 %v9638, %v9646
    %v9823 = vmax.f32 %v9639, %v9647
    %v9824 = vmax.f32 %v9640, %v9648
    %v9825 = vmax.f32 %v9641, %v9649
    %v9826 = vmax.f32 %v9642, %v9650
    %v9827 = vmax.f32 %v9643, %v9651
    %v9828 = vmax.f32 %v9644, %v9652
    %v9829 = vmax.f32 %v9653, %v9661
    %v9830 = vmax.f32 %v9654, %v9662
    %v9831 = vmax.f32 %v9655, %v9663
    %v9832 = vmax.f32 %v9656, %v9664
    %v9833 = vmax.f32 %v9657, %v9665
    %v9834 = vmax.f32 %v9658, %v9666
    %v9835 = vmax.f32 %v9659, %v9667
    %v9836 = vmax.f32 %v9660, %v9668
    %v9837 = vmax.f32 %v9669, %v9677
    %v9838 = vmax.f32 %v9670, %v9678
    %v9839 = vmax.f32 %v9671, %v9679
    %v9840 = vmax.f32 %v9672, %v9680
    %v9841 = vmax.f32 %v9673, %v9681
    %v9842 = vmax.f32 %v9674, %v9682
    %v9843 = vmax.f32 %v9675, %v9683
    %v9844 = vmax.f32 %v9676, %v9684
    %v9845 = vmax.f32 %v9685, %v9693
    %v9846 = vmax.f32 %v9686, %v9694
    %v9847 = vmax.f32 %v9687, %v9695
    %v9848 = vmax.f32 %v9688, %v9696
    %v9849 = vmax.f32 %v9689, %v9697
    %v9850 = vmax.f32 %v9690, %v9698
    %v9851 = vmax.f32 %v9691, %v9699
    %v9852 = vmax.f32 %v9692, %v9700
    %v9853 = vmax.f32 %v9701, %v9709
    %v9854 = vmax.f32 %v9702, %v9710
    %v9855 = vmax.f32 %v9703, %v9711
    %v9856 = vmax.f32 %v9704, %v9712
    %v9857 = vmax.f32 %v9705, %v9713
    %v9858 = vmax.f32 %v9706, %v9714
    %v9859 = vmax.f32 %v9707, %v9715
    %v9860 = vmax.f32 %v9708, %v9716
    %v9861 = vmax.f32 %v9717, %v9725
    %v9862 = vmax.f32 %v9718, %v9726
    %v9863 = vmax.f32 %v9719, %v9727
    %v9864 = vmax.f32 %v9720, %v9728
    %v9865 = vmax.f32 %v9721, %v9729
    %v9866 = vmax.f32 %v9722, %v9730
    %v9867 = vmax.f32 %v9723, %v9731
    %v9868 = vmax.f32 %v9724, %v9732
    %v9869 = vmax.f32 %v9733, %v9741
    %v9870 = vmax.f32 %v9734, %v9742
    %v9871 = vmax.f32 %v9735, %v9743
    %v9872 = vmax.f32 %v9736, %v9744
    %v9873 = vmax.f32 %v9737, %v9745
    %v9874 = vmax.f32 %v9738, %v9746
    %v9875 = vmax.f32 %v9739, %v9747
    %v9876 = vmax.f32 %v9740, %v9748
    %v10005 = vlaneseq
    %v10006 = vshrl.u32 %v10005, 7
    %v10007 = vsub.s32 0, %v10006
    %v10008 = vrot.slane %v9749, %v10007
    %v10009 = vlaneseq
    %v10010 = vshrl.u32 %v10009, 7
    %v10011 = vsub.s32 0, %v10010
    %v10012 = vrot.slane %v9750, %v10011
    %v10013 = vlaneseq
    %v10014 = vshrl.u32 %v10013, 7
    %v10015 = vsub.s32 0, %v10014
    %v10016 = vrot.slane %v9751, %v10015
    %v10017 = vlaneseq
    %v10018 = vshrl.u32 %v10017, 7
    %v10019 = vsub.s32 0, %v10018
    %v10020 = vrot.slane %v9752, %v10019
    %v10021 = vlaneseq
    %v10022 = vshrl.u32 %v10021, 7
    %v10023 = vsub.s32 0, %v10022
    %v10024 = vrot.slane %v9753, %v10023
    %v10025 = vlaneseq
    %v10026 = vshrl.u32 %v10025, 7
    %v10027 = vsub.s32 0, %v10026
    %v10028 = vrot.slane %v9754, %v10027
    %v10029 = vlaneseq
    %v10030 = vshrl.u32 %v10029, 7
    %v10031 = vsub.s32 0, %v10030
    %v10032 = vrot.slane %v9755, %v10031
    %v10033 = vlaneseq
    %v10034 = vshrl.u32 %v10033, 7
    %v10035 = vsub.s32 0, %v10034
    %v10036 = vrot.slane %v9756, %v10035
    %v10037 = vlaneseq
    %v10038 = vshrl.u32 %v10037, 7
    %v10039 = vsub.s32 0, %v10038
    %v10040 = vrot.slane %v9757, %v10039
    %v10041 = vlaneseq
    %v10042 = vshrl.u32 %v10041, 7
    %v10043 = vsub.s32 0, %v10042
    %v10044 = vrot.slane %v9758, %v10043
    %v10045 = vlaneseq
    %v10046 = vshrl.u32 %v10045, 7
    %v10047 = vsub.s32 0, %v10046
    %v10048 = vrot.slane %v9759, %v10047
    %v10049 = vlaneseq
    %v10050 = vshrl.u32 %v10049, 7
    %v10051 = vsub.s32 0, %v10050
    %v10052 = vrot.slane %v9760, %v10051
    %v10053 = vlaneseq
    %v10054 = vshrl.u32 %v10053, 7
    %v10055 = vsub.s32 0, %v10054
    %v10056 = vrot.slane %v9761, %v10055
    %v10057 = vlaneseq
    %v10058 = vshrl.u32 %v10057, 7
    %v10059 = vsub.s32 0, %v10058
    %v10060 = vrot.slane %v9762, %v10059
    %v10061 = vlaneseq
    %v10062 = vshrl.u32 %v10061, 7
    %v10063 = vsub.s32 0, %v10062
    %v10064 = vrot.slane %v9763, %v10063
    %v10065 = vlaneseq
    %v10066 = vshrl.u32 %v10065, 7
    %v10067 = vsub.s32 0, %v10066
    %v10068 = vrot.slane %v9764, %v10067
    %v10069 = vlaneseq
    %v10070 = vshrl.u32 %v10069, 7
    %v10071 = vsub.s32 0, %v10070
    %v10072 = vrot.slane %v9765, %v10071
    %v10073 = vlaneseq
    %v10074 = vshrl.u32 %v10073, 7
    %v10075 = vsub.s32 0, %v10074
    %v10076 = vrot.slane %v9766, %v10075
    %v10077 = vlaneseq
    %v10078 = vshrl.u32 %v10077, 7
    %v10079 = vsub.s32 0, %v10078
    %v10080 = vrot.slane %v9767, %v10079
    %v10081 = vlaneseq
    %v10082 = vshrl.u32 %v10081, 7
    %v10083 = vsub.s32 0, %v10082
    %v10084 = vrot.slane %v9768, %v10083
    %v10085 = vlaneseq
    %v10086 = vshrl.u32 %v10085, 7
    %v10087 = vsub.s32 0, %v10086
    %v10088 = vrot.slane %v9769, %v10087
    %v10089 = vlaneseq
    %v10090 = vshrl.u32 %v10089, 7
    %v10091 = vsub.s32 0, %v10090
    %v10092 = vrot.slane %v9770, %v10091
    %v10093 = vlaneseq
    %v10094 = vshrl.u32 %v10093, 7
    %v10095 = vsub.s32 0, %v10094
    %v10096 = vrot.slane %v9771, %v10095
    %v10097 = vlaneseq
    %v10098 = vshrl.u32 %v10097, 7
    %v10099 = vsub.s32 0, %v10098
    %v10100 = vrot.slane %v9772, %v10099
    %v10101 = vlaneseq
    %v10102 = vshrl.u32 %v10101, 7
    %v10103 = vsub.s32 0, %v10102
    %v10104 = vrot.slane %v9773, %v10103
    %v10105 = vlaneseq
    %v10106 = vshrl.u32 %v10105, 7
    %v10107 = vsub.s32 0, %v10106
    %v10108 = vrot.slane %v9774, %v10107
    %v10109 = vlaneseq
    %v10110 = vshrl.u32 %v10109, 7
    %v10111 = vsub.s32 0, %v10110
    %v10112 = vrot.slane %v9775, %v10111
    %v10113 = vlaneseq
    %v10114 = vshrl.u32 %v10113, 7
    %v10115 = vsub.s32 0, %v10114
    %v10116 = vrot.slane %v9776, %v10115
    %v10117 = vlaneseq
    %v10118 = vshrl.u32 %v10117, 7
    %v10119 = vsub.s32 0, %v10118
    %v10120 = vrot.slane %v9777, %v10119
    %v10121 = vlaneseq
    %v10122 = vshrl.u32 %v10121, 7
    %v10123 = vsub.s32 0, %v10122
    %v10124 = vrot.slane %v9778, %v10123
    %v10125 = vlaneseq
    %v10126 = vshrl.u32 %v10125, 7
    %v10127 = vsub.s32 0, %v10126
    %v10128 = vrot.slane %v9779, %v10127
    %v10129 = vlaneseq
    %v10130 = vshrl.u32 %v10129, 7
    %v10131 = vsub.s32 0, %v10130
    %v10132 = vrot.slane %v9780, %v10131
    %v10133 = vlaneseq
    %v10134 = vshrl.u32 %v10133, 7
    %v10135 = vsub.s32 0, %v10134
    %v10136 = vrot.slane %v9781, %v10135
    %v10137 = vlaneseq
    %v10138 = vshrl.u32 %v10137, 7
    %v10139 = vsub.s32 0, %v10138
    %v10140 = vrot.slane %v9782, %v10139
    %v10141 = vlaneseq
    %v10142 = vshrl.u32 %v10141, 7
    %v10143 = vsub.s32 0, %v10142
    %v10144 = vrot.slane %v9783, %v10143
    %v10145 = vlaneseq
    %v10146 = vshrl.u32 %v10145, 7
    %v10147 = vsub.s32 0, %v10146
    %v10148 = vrot.slane %v9784, %v10147
    %v10149 = vlaneseq
    %v10150 = vshrl.u32 %v10149, 7
    %v10151 = vsub.s32 0, %v10150
    %v10152 = vrot.slane %v9785, %v10151
    %v10153 = vlaneseq
    %v10154 = vshrl.u32 %v10153, 7
    %v10155 = vsub.s32 0, %v10154
    %v10156 = vrot.slane %v9786, %v10155
    %v10157 = vlaneseq
    %v10158 = vshrl.u32 %v10157, 7
    %v10159 = vsub.s32 0, %v10158
    %v10160 = vrot.slane %v9787, %v10159
    %v10161 = vlaneseq
    %v10162 = vshrl.u32 %v10161, 7
    %v10163 = vsub.s32 0, %v10162
    %v10164 = vrot.slane %v9788, %v10163
    %v10165 = vlaneseq
    %v10166 = vshrl.u32 %v10165, 7
    %v10167 = vsub.s32 0, %v10166
    %v10168 = vrot.slane %v9789, %v10167
    %v10169 = vlaneseq
    %v10170 = vshrl.u32 %v10169, 7
    %v10171 = vsub.s32 0, %v10170
    %v10172 = vrot.slane %v9790, %v10171
    %v10173 = vlaneseq
    %v10174 = vshrl.u32 %v10173, 7
    %v10175 = vsub.s32 0, %v10174
    %v10176 = vrot.slane %v9791, %v10175
    %v10177 = vlaneseq
    %v10178 = vshrl.u32 %v10177, 7
    %v10179 = vsub.s32 0, %v10178
    %v10180 = vrot.slane %v9792, %v10179
    %v10181 = vlaneseq
    %v10182 = vshrl.u32 %v10181, 7
    %v10183 = vsub.s32 0, %v10182
    %v10184 = vrot.slane %v9793, %v10183
    %v10185 = vlaneseq
    %v10186 = vshrl.u32 %v10185, 7
    %v10187 = vsub.s32 0, %v10186
    %v10188 = vrot.slane %v9794, %v10187
    %v10189 = vlaneseq
    %v10190 = vshrl.u32 %v10189, 7
    %v10191 = vsub.s32 0, %v10190
    %v10192 = vrot.slane %v9795, %v10191
    %v10193 = vlaneseq
    %v10194 = vshrl.u32 %v10193, 7
    %v10195 = vsub.s32 0, %v10194
    %v10196 = vrot.slane %v9796, %v10195
    %v10197 = vlaneseq
    %v10198 = vshrl.u32 %v10197, 7
    %v10199 = vsub.s32 0, %v10198
    %v10200 = vrot.slane %v9797, %v10199
    %v10201 = vlaneseq
    %v10202 = vshrl.u32 %v10201, 7
    %v10203 = vsub.s32 0, %v10202
    %v10204 = vrot.slane %v9798, %v10203
    %v10205 = vlaneseq
    %v10206 = vshrl.u32 %v10205, 7
    %v10207 = vsub.s32 0, %v10206
    %v10208 = vrot.slane %v9799, %v10207
    %v10209 = vlaneseq
    %v10210 = vshrl.u32 %v10209, 7
    %v10211 = vsub.s32 0, %v10210
    %v10212 = vrot.slane %v9800, %v10211
    %v10213 = vlaneseq
    %v10214 = vshrl.u32 %v10213, 7
    %v10215 = vsub.s32 0, %v10214
    %v10216 = vrot.slane %v9801, %v10215
    %v10217 = vlaneseq
    %v10218 = vshrl.u32 %v10217, 7
    %v10219 = vsub.s32 0, %v10218
    %v10220 = vrot.slane %v9802, %v10219
    %v10221 = vlaneseq
    %v10222 = vshrl.u32 %v10221, 7
    %v10223 = vsub.s32 0, %v10222
    %v10224 = vrot.slane %v9803, %v10223
    %v10225 = vlaneseq
    %v10226 = vshrl.u32 %v10225, 7
    %v10227 = vsub.s32 0, %v10226
    %v10228 = vrot.slane %v9804, %v10227
    %v10229 = vlaneseq
    %v10230 = vshrl.u32 %v10229, 7
    %v10231 = vsub.s32 0, %v10230
    %v10232 = vrot.slane %v9805, %v10231
    %v10233 = vlaneseq
    %v10234 = vshrl.u32 %v10233, 7
    %v10235 = vsub.s32 0, %v10234
    %v10236 = vrot.slane %v9806, %v10235
    %v10237 = vlaneseq
    %v10238 = vshrl.u32 %v10237, 7
    %v10239 = vsub.s32 0, %v10238
    %v10240 = vrot.slane %v9807, %v10239
    %v10241 = vlaneseq
    %v10242 = vshrl.u32 %v10241, 7
    %v10243 = vsub.s32 0, %v10242
    %v10244 = vrot.slane %v9808, %v10243
    %v10245 = vlaneseq
    %v10246 = vshrl.u32 %v10245, 7
    %v10247 = vsub.s32 0, %v10246
    %v10248 = vrot.slane %v9809, %v10247
    %v10249 = vlaneseq
    %v10250 = vshrl.u32 %v10249, 7
    %v10251 = vsub.s32 0, %v10250
    %v10252 = vrot.slane %v9810, %v10251
    %v10253 = vlaneseq
    %v10254 = vshrl.u32 %v10253, 7
    %v10255 = vsub.s32 0, %v10254
    %v10256 = vrot.slane %v9811, %v10255
    %v10257 = vlaneseq
    %v10258 = vshrl.u32 %v10257, 7
    %v10259 = vsub.s32 0, %v10258
    %v10260 = vrot.slane %v9812, %v10259
    %v10261 = vlaneseq
    %v10262 = vshrl.u32 %v10261, 7
    %v10263 = vsub.s32 0, %v10262
    %v10264 = vrot.slane %v9813, %v10263
    %v10265 = vlaneseq
    %v10266 = vshrl.u32 %v10265, 7
    %v10267 = vsub.s32 0, %v10266
    %v10268 = vrot.slane %v9814, %v10267
    %v10269 = vlaneseq
    %v10270 = vshrl.u32 %v10269, 7
    %v10271 = vsub.s32 0, %v10270
    %v10272 = vrot.slane %v9815, %v10271
    %v10273 = vlaneseq
    %v10274 = vshrl.u32 %v10273, 7
    %v10275 = vsub.s32 0, %v10274
    %v10276 = vrot.slane %v9816, %v10275
    %v10277 = vlaneseq
    %v10278 = vshrl.u32 %v10277, 7
    %v10279 = vsub.s32 0, %v10278
    %v10280 = vrot.slane %v9817, %v10279
    %v10281 = vlaneseq
    %v10282 = vshrl.u32 %v10281, 7
    %v10283 = vsub.s32 0, %v10282
    %v10284 = vrot.slane %v9818, %v10283
    %v10285 = vlaneseq
    %v10286 = vshrl.u32 %v10285, 7
    %v10287 = vsub.s32 0, %v10286
    %v10288 = vrot.slane %v9819, %v10287
    %v10289 = vlaneseq
    %v10290 = vshrl.u32 %v10289, 7
    %v10291 = vsub.s32 0, %v10290
    %v10292 = vrot.slane %v9820, %v10291
    %v10293 = vlaneseq
    %v10294 = vshrl.u32 %v10293, 7
    %v10295 = vsub.s32 0, %v10294
    %v10296 = vrot.slane %v9821, %v10295
    %v10297 = vlaneseq
    %v10298 = vshrl.u32 %v10297, 7
    %v10299 = vsub.s32 0, %v10298
    %v10300 = vrot.slane %v9822, %v10299
    %v10301 = vlaneseq
    %v10302 = vshrl.u32 %v10301, 7
    %v10303 = vsub.s32 0, %v10302
    %v10304 = vrot.slane %v9823, %v10303
    %v10305 = vlaneseq
    %v10306 = vshrl.u32 %v10305, 7
    %v10307 = vsub.s32 0, %v10306
    %v10308 = vrot.slane %v9824, %v10307
    %v10309 = vlaneseq
    %v10310 = vshrl.u32 %v10309, 7
    %v10311 = vsub.s32 0, %v10310
    %v10312 = vrot.slane %v9825, %v10311
    %v10313 = vlaneseq
    %v10314 = vshrl.u32 %v10313, 7
    %v10315 = vsub.s32 0, %v10314
    %v10316 = vrot.slane %v9826, %v10315
    %v10317 = vlaneseq
    %v10318 = vshrl.u32 %v10317, 7
    %v10319 = vsub.s32 0, %v10318
    %v10320 = vrot.slane %v9827, %v10319
    %v10321 = vlaneseq
    %v10322 = vshrl.u32 %v10321, 7
    %v10323 = vsub.s32 0, %v10322
    %v10324 = vrot.slane %v9828, %v10323
    %v10325 = vlaneseq
    %v10326 = vshrl.u32 %v10325, 7
    %v10327 = vsub.s32 0, %v10326
    %v10328 = vrot.slane %v9829, %v10327
    %v10329 = vlaneseq
    %v10330 = vshrl.u32 %v10329, 7
    %v10331 = vsub.s32 0, %v10330
    %v10332 = vrot.slane %v9830, %v10331
    %v10333 = vlaneseq
    %v10334 = vshrl.u32 %v10333, 7
    %v10335 = vsub.s32 0, %v10334
    %v10336 = vrot.slane %v9831, %v10335
    %v10337 = vlaneseq
    %v10338 = vshrl.u32 %v10337, 7
    %v10339 = vsub.s32 0, %v10338
    %v10340 = vrot.slane %v9832, %v10339
    %v10341 = vlaneseq
    %v10342 = vshrl.u32 %v10341, 7
    %v10343 = vsub.s32 0, %v10342
    %v10344 = vrot.slane %v9833, %v10343
    %v10345 = vlaneseq
    %v10346 = vshrl.u32 %v10345, 7
    %v10347 = vsub.s32 0, %v10346
    %v10348 = vrot.slane %v9834, %v10347
    %v10349 = vlaneseq
    %v10350 = vshrl.u32 %v10349, 7
    %v10351 = vsub.s32 0, %v10350
    %v10352 = vrot.slane %v9835, %v10351
    %v10353 = vlaneseq
    %v10354 = vshrl.u32 %v10353, 7
    %v10355 = vsub.s32 0, %v10354
    %v10356 = vrot.slane %v9836, %v10355
    %v10357 = vlaneseq
    %v10358 = vshrl.u32 %v10357, 7
    %v10359 = vsub.s32 0, %v10358
    %v10360 = vrot.slane %v9837, %v10359
    %v10361 = vlaneseq
    %v10362 = vshrl.u32 %v10361, 7
    %v10363 = vsub.s32 0, %v10362
    %v10364 = vrot.slane %v9838, %v10363
    %v10365 = vlaneseq
    %v10366 = vshrl.u32 %v10365, 7
    %v10367 = vsub.s32 0, %v10366
    %v10368 = vrot.slane %v9839, %v10367
    %v10369 = vlaneseq
    %v10370 = vshrl.u32 %v10369, 7
    %v10371 = vsub.s32 0, %v10370
    %v10372 = vrot.slane %v9840, %v10371
    %v10373 = vlaneseq
    %v10374 = vshrl.u32 %v10373, 7
    %v10375 = vsub.s32 0, %v10374
    %v10376 = vrot.slane %v9841, %v10375
    %v10377 = vlaneseq
    %v10378 = vshrl.u32 %v10377, 7
    %v10379 = vsub.s32 0, %v10378
    %v10380 = vrot.slane %v9842, %v10379
    %v10381 = vlaneseq
    %v10382 = vshrl.u32 %v10381, 7
    %v10383 = vsub.s32 0, %v10382
    %v10384 = vrot.slane %v9843, %v10383
    %v10385 = vlaneseq
    %v10386 = vshrl.u32 %v10385, 7
    %v10387 = vsub.s32 0, %v10386
    %v10388 = vrot.slane %v9844, %v10387
    %v10389 = vlaneseq
    %v10390 = vshrl.u32 %v10389, 7
    %v10391 = vsub.s32 0, %v10390
    %v10392 = vrot.slane %v9845, %v10391
    %v10393 = vlaneseq
    %v10394 = vshrl.u32 %v10393, 7
    %v10395 = vsub.s32 0, %v10394
    %v10396 = vrot.slane %v9846, %v10395
    %v10397 = vlaneseq
    %v10398 = vshrl.u32 %v10397, 7
    %v10399 = vsub.s32 0, %v10398
    %v10400 = vrot.slane %v9847, %v10399
    %v10401 = vlaneseq
    %v10402 = vshrl.u32 %v10401, 7
    %v10403 = vsub.s32 0, %v10402
    %v10404 = vrot.slane %v9848, %v10403
    %v10405 = vlaneseq
    %v10406 = vshrl.u32 %v10405, 7
    %v10407 = vsub.s32 0, %v10406
    %v10408 = vrot.slane %v9849, %v10407
    %v10409 = vlaneseq
    %v10410 = vshrl.u32 %v10409, 7
    %v10411 = vsub.s32 0, %v10410
    %v10412 = vrot.slane %v9850, %v10411
    %v10413 = vlaneseq
    %v10414 = vshrl.u32 %v10413, 7
    %v10415 = vsub.s32 0, %v10414
    %v10416 = vrot.slane %v9851, %v10415
    %v10417 = vlaneseq
    %v10418 = vshrl.u32 %v10417, 7
    %v10419 = vsub.s32 0, %v10418
    %v10420 = vrot.slane %v9852, %v10419
    %v10421 = vlaneseq
    %v10422 = vshrl.u32 %v10421, 7
    %v10423 = vsub.s32 0, %v10422
    %v10424 = vrot.slane %v9853, %v10423
    %v10425 = vlaneseq
    %v10426 = vshrl.u32 %v10425, 7
    %v10427 = vsub.s32 0, %v10426
    %v10428 = vrot.slane %v9854, %v10427
    %v10429 = vlaneseq
    %v10430 = vshrl.u32 %v10429, 7
    %v10431 = vsub.s32 0, %v10430
    %v10432 = vrot.slane %v9855, %v10431
    %v10433 = vlaneseq
    %v10434 = vshrl.u32 %v10433, 7
    %v10435 = vsub.s32 0, %v10434
    %v10436 = vrot.slane %v9856, %v10435
    %v10437 = vlaneseq
    %v10438 = vshrl.u32 %v10437, 7
    %v10439 = vsub.s32 0, %v10438
    %v10440 = vrot.slane %v9857, %v10439
    %v10441 = vlaneseq
    %v10442 = vshrl.u32 %v10441, 7
    %v10443 = vsub.s32 0, %v10442
    %v10444 = vrot.slane %v9858, %v10443
    %v10445 = vlaneseq
    %v10446 = vshrl.u32 %v10445, 7
    %v10447 = vsub.s32 0, %v10446
    %v10448 = vrot.slane %v9859, %v10447
    %v10449 = vlaneseq
    %v10450 = vshrl.u32 %v10449, 7
    %v10451 = vsub.s32 0, %v10450
    %v10452 = vrot.slane %v9860, %v10451
    %v10453 = vlaneseq
    %v10454 = vshrl.u32 %v10453, 7
    %v10455 = vsub.s32 0, %v10454
    %v10456 = vrot.slane %v9861, %v10455
    %v10457 = vlaneseq
    %v10458 = vshrl.u32 %v10457, 7
    %v10459 = vsub.s32 0, %v10458
    %v10460 = vrot.slane %v9862, %v10459
    %v10461 = vlaneseq
    %v10462 = vshrl.u32 %v10461, 7
    %v10463 = vsub.s32 0, %v10462
    %v10464 = vrot.slane %v9863, %v10463
    %v10465 = vlaneseq
    %v10466 = vshrl.u32 %v10465, 7
    %v10467 = vsub.s32 0, %v10466
    %v10468 = vrot.slane %v9864, %v10467
    %v10469 = vlaneseq
    %v10470 = vshrl.u32 %v10469, 7
    %v10471 = vsub.s32 0, %v10470
    %v10472 = vrot.slane %v9865, %v10471
    %v10473 = vlaneseq
    %v10474 = vshrl.u32 %v10473, 7
    %v10475 = vsub.s32 0, %v10474
    %v10476 = vrot.slane %v9866, %v10475
    %v10477 = vlaneseq
    %v10478 = vshrl.u32 %v10477, 7
    %v10479 = vsub.s32 0, %v10478
    %v10480 = vrot.slane %v9867, %v10479
    %v10481 = vlaneseq
    %v10482 = vshrl.u32 %v10481, 7
    %v10483 = vsub.s32 0, %v10482
    %v10484 = vrot.slane %v9868, %v10483
    %v10485 = vlaneseq
    %v10486 = vshrl.u32 %v10485, 7
    %v10487 = vsub.s32 0, %v10486
    %v10488 = vrot.slane %v9869, %v10487
    %v10489 = vlaneseq
    %v10490 = vshrl.u32 %v10489, 7
    %v10491 = vsub.s32 0, %v10490
    %v10492 = vrot.slane %v9870, %v10491
    %v10493 = vlaneseq
    %v10494 = vshrl.u32 %v10493, 7
    %v10495 = vsub.s32 0, %v10494
    %v10496 = vrot.slane %v9871, %v10495
    %v10497 = vlaneseq
    %v10498 = vshrl.u32 %v10497, 7
    %v10499 = vsub.s32 0, %v10498
    %v10500 = vrot.slane %v9872, %v10499
    %v10501 = vlaneseq
    %v10502 = vshrl.u32 %v10501, 7
    %v10503 = vsub.s32 0, %v10502
    %v10504 = vrot.slane %v9873, %v10503
    %v10505 = vlaneseq
    %v10506 = vshrl.u32 %v10505, 7
    %v10507 = vsub.s32 0, %v10506
    %v10508 = vrot.slane %v9874, %v10507
    %v10509 = vlaneseq
    %v10510 = vshrl.u32 %v10509, 7
    %v10511 = vsub.s32 0, %v10510
    %v10512 = vrot.slane %v9875, %v10511
    %v10513 = vlaneseq
    %v10514 = vshrl.u32 %v10513, 7
    %v10515 = vsub.s32 0, %v10514
    %v10516 = vrot.slane %v9876, %v10515
    %vm10517 = vcmask 1041409
    %v10518 = vsel %vm10517, %v10012, %v10008
    %vm10519 = vcmask 1042434
    %v10520 = vsel %vm10519, %v10016, %v10518
    %vm10521 = vcmask 1043459
    %v10522 = vsel %vm10521, %v10020, %v10520
    %vm10523 = vcmask 1044484
    %v10524 = vsel %vm10523, %v10024, %v10522
    %vm10525 = vcmask 1045509
    %v10526 = vsel %vm10525, %v10028, %v10524
    %vm10527 = vcmask 1046534
    %v10528 = vsel %vm10527, %v10032, %v10526
    %vm10529 = vcmask 1047559
    %v10530 = vsel %vm10529, %v10036, %v10528
    %v10531 = vsel %vm10517, %v10044, %v10040
    %v10532 = vsel %vm10519, %v10048, %v10531
    %v10533 = vsel %vm10521, %v10052, %v10532
    %v10534 = vsel %vm10523, %v10056, %v10533
    %v10535 = vsel %vm10525, %v10060, %v10534
    %v10536 = vsel %vm10527, %v10064, %v10535
    %v10537 = vsel %vm10529, %v10068, %v10536
    %v10538 = vsel %vm10517, %v10076, %v10072
    %v10539 = vsel %vm10519, %v10080, %v10538
    %v10540 = vsel %vm10521, %v10084, %v10539
    %v10541 = vsel %vm10523, %v10088, %v10540
    %v10542 = vsel %vm10525, %v10092, %v10541
    %v10543 = vsel %vm10527, %v10096, %v10542
    %v10544 = vsel %vm10529, %v10100, %v10543
    %v10545 = vsel %vm10517, %v10108, %v10104
    %v10546 = vsel %vm10519, %v10112, %v10545
    %v10547 = vsel %vm10521, %v10116, %v10546
    %v10548 = vsel %vm10523, %v10120, %v10547
    %v10549 = vsel %vm10525, %v10124, %v10548
    %v10550 = vsel %vm10527, %v10128, %v10549
    %v10551 = vsel %vm10529, %v10132, %v10550
    %v10552 = vsel %vm10517, %v10140, %v10136
    %v10553 = vsel %vm10519, %v10144, %v10552
    %v10554 = vsel %vm10521, %v10148, %v10553
    %v10555 = vsel %vm10523, %v10152, %v10554
    %v10556 = vsel %vm10525, %v10156, %v10555
    %v10557 = vsel %vm10527, %v10160, %v10556
    %v10558 = vsel %vm10529, %v10164, %v10557
    %v10559 = vsel %vm10517, %v10172, %v10168
    %v10560 = vsel %vm10519, %v10176, %v10559
    %v10561 = vsel %vm10521, %v10180, %v10560
    %v10562 = vsel %vm10523, %v10184, %v10561
    %v10563 = vsel %vm10525, %v10188, %v10562
    %v10564 = vsel %vm10527, %v10192, %v10563
    %v10565 = vsel %vm10529, %v10196, %v10564
    %v10566 = vsel %vm10517, %v10204, %v10200
    %v10567 = vsel %vm10519, %v10208, %v10566
    %v10568 = vsel %vm10521, %v10212, %v10567
    %v10569 = vsel %vm10523, %v10216, %v10568
    %v10570 = vsel %vm10525, %v10220, %v10569
    %v10571 = vsel %vm10527, %v10224, %v10570
    %v10572 = vsel %vm10529, %v10228, %v10571
    %v10573 = vsel %vm10517, %v10236, %v10232
    %v10574 = vsel %vm10519, %v10240, %v10573
    %v10575 = vsel %vm10521, %v10244, %v10574
    %v10576 = vsel %vm10523, %v10248, %v10575
    %v10577 = vsel %vm10525, %v10252, %v10576
    %v10578 = vsel %vm10527, %v10256, %v10577
    %v10579 = vsel %vm10529, %v10260, %v10578
    %v10580 = vsel %vm10517, %v10268, %v10264
    %v10581 = vsel %vm10519, %v10272, %v10580
    %v10582 = vsel %vm10521, %v10276, %v10581
    %v10583 = vsel %vm10523, %v10280, %v10582
    %v10584 = vsel %vm10525, %v10284, %v10583
    %v10585 = vsel %vm10527, %v10288, %v10584
    %v10586 = vsel %vm10529, %v10292, %v10585
    %v10587 = vsel %vm10517, %v10300, %v10296
    %v10588 = vsel %vm10519, %v10304, %v10587
    %v10589 = vsel %vm10521, %v10308, %v10588
    %v10590 = vsel %vm10523, %v10312, %v10589
    %v10591 = vsel %vm10525, %v10316, %v10590
    %v10592 = vsel %vm10527, %v10320, %v10591
    %v10593 = vsel %vm10529, %v10324, %v10592
    %v10594 = vsel %vm10517, %v10332, %v10328
    %v10595 = vsel %vm10519, %v10336, %v10594
    %v10596 = vsel %vm10521, %v10340, %v10595
    %v10597 = vsel %vm10523, %v10344, %v10596
    %v10598 = vsel %vm10525, %v10348, %v10597
    %v10599 = vsel %vm10527, %v10352, %v10598
    %v10600 = vsel %vm10529, %v10356, %v10599
    %v10601 = vsel %vm10517, %v10364, %v10360
    %v10602 = vsel %vm10519, %v10368, %v10601
    %v10603 = vsel %vm10521, %v10372, %v10602
    %v10604 = vsel %vm10523, %v10376, %v10603
    %v10605 = vsel %vm10525, %v10380, %v10604
    %v10606 = vsel %vm10527, %v10384, %v10605
    %v10607 = vsel %vm10529, %v10388, %v10606
    %v10608 = vsel %vm10517, %v10396, %v10392
    %v10609 = vsel %vm10519, %v10400, %v10608
    %v10610 = vsel %vm10521, %v10404, %v10609
    %v10611 = vsel %vm10523, %v10408, %v10610
    %v10612 = vsel %vm10525, %v10412, %v10611
    %v10613 = vsel %vm10527, %v10416, %v10612
    %v10614 = vsel %vm10529, %v10420, %v10613
    %v10615 = vsel %vm10517, %v10428, %v10424
    %v10616 = vsel %vm10519, %v10432, %v10615
    %v10617 = vsel %vm10521, %v10436, %v10616
    %v10618 = vsel %vm10523, %v10440, %v10617
    %v10619 = vsel %vm10525, %v10444, %v10618
    %v10620 = vsel %vm10527, %v10448, %v10619
    %v10621 = vsel %vm10529, %v10452, %v10620
    %v10622 = vsel %vm10517, %v10460, %v10456
    %v10623 = vsel %vm10519, %v10464, %v10622
    %v10624 = vsel %vm10521, %v10468, %v10623
    %v10625 = vsel %vm10523, %v10472, %v10624
    %v10626 = vsel %vm10525, %v10476, %v10625
    %v10627 = vsel %vm10527, %v10480, %v10626
    %v10628 = vsel %vm10529, %v10484, %v10627
    %v10629 = vsel %vm10517, %v10492, %v10488
    %v10630 = vsel %vm10519, %v10496, %v10629
    %v10631 = vsel %vm10521, %v10500, %v10630
    %v10632 = vsel %vm10523, %v10504, %v10631
    %v10633 = vsel %vm10525, %v10508, %v10632
    %v10634 = vsel %vm10527, %v10512, %v10633
    %v10635 = vsel %vm10529, %v10516, %v10634
    %10652 = vst.msk [vmem:[#allocation3] sm:$0xff] %vm2713, %v10530
    %10653 = vst.msk [vmem:[#allocation3 + $0x8] sm:$0xff] %vm2713, %v10537
    %10654 = vst.msk [vmem:[#allocation3 + $0x10] sm:$0xff] %vm2713, %v10544
    %10655 = vst.msk [vmem:[#allocation3 + $0x18] sm:$0xff] %vm2713, %v10551
    %10656 = vst.msk [vmem:[#allocation3 + $0x20] sm:$0xff] %vm2713, %v10558
    %10657 = vst.msk [vmem:[#allocation3 + $0x28] sm:$0xff] %vm2713, %v10565
    %10658 = vst.msk [vmem:[#allocation3 + $0x30] sm:$0xff] %vm2713, %v10572
    %10659 = vst.msk [vmem:[#allocation3 + $0x38] sm:$0xff] %vm2713, %v10579
    %10660 = vst.msk [vmem:[#allocation3 + $0x40] sm:$0xff] %vm2713, %v10586
    %10661 = vst.msk [vmem:[#allocation3 + $0x48] sm:$0xff] %vm2713, %v10593
    %10662 = vst.msk [vmem:[#allocation3 + $0x50] sm:$0xff] %vm2713, %v10600
    %10663 = vst.msk [vmem:[#allocation3 + $0x58] sm:$0xff] %vm2713, %v10607
    %10664 = vst.msk [vmem:[#allocation3 + $0x60] sm:$0xff] %vm2713, %v10614
    %10665 = vst.msk [vmem:[#allocation3 + $0x68] sm:$0xff] %vm2713, %v10621
    %10666 = vst.msk [vmem:[#allocation3 + $0x70] sm:$0xff] %vm2713, %v10628
    %10667 = vst.msk [vmem:[#allocation3 + $0x78] sm:$0xff] %vm2713, %v10635
    // Predicated region
    $region22: #{tpu_custom_call.1} parent=1 // pred_check
      _
    $region23: #{tpu_custom_call.1} parent=1 // pred_check_branch
      %10669 = sbr.rel (0) target = $region25
    $region24: #{tpu_custom_call.1} parent=1 // pred_region
      %s10671 = ssub.s32 2048, 2048
      %10672 = vsyncadd [#allocation4], %s10671
      %s10673 = sshll.u32 [#allocation3], 4
      %s10674 = int_to_ptr.vmem [resolvable:$true] %s10673
      %10679 = dma.vmem_to_hbm [thread:$0]  %s10674, 2048, %s5, [#allocation4], 128, 128, 8
    $region25: #{tpu_custom_call.1} parent=1 // pred_fallthru
      _
    // Predicated region
    $region26: #{tpu_custom_call.1} parent=1 // pred_check
      _
    $region27: #{tpu_custom_call.1} parent=1 // pred_check_branch
      %10681 = sbr.rel (0) target = $region29
    $region28: #{tpu_custom_call.1} parent=1 // pred_region
      %10682 = dma.done [#allocation4], 2048
    $region29: #{tpu_custom_call.1} parent=1 // pred_fallthru
      _
    %10683 = vsyncpa [#allocation4], 1

</llo_original>
